<compile_context>
chip_gen: v7x
topology: tpu7x:2x2x1
jax: 0.10.0
libtpu: 0.0.40
codegen_flags: <defaults>
</compile_context>

<pallas_src>
import functools

import jax
import jax.numpy as jnp
from jax.experimental import pallas as pl
from jax.experimental.pallas import tpu as pltpu

N_FEATURES = 28 * 28   # 784
N_LATENT = 9

# (in, out) sizes of the 10 Linear layers (5 encoder + 5 decoder)
LAYER_DIMS = [
    (N_FEATURES, 256), (256, 128), (128, 128), (128, 96), (96, N_LATENT),   # encoder
    (N_LATENT, 96), (96, 128), (128, 128), (128, 256), (256, N_FEATURES),   # decoder
]
NUM_LAYERS = len(LAYER_DIMS)
# activation after each layer: "relu", None (latent layer), or "sigmoid" (last)
ACTIVATIONS = ["relu", "relu", "relu", "relu", None,
               "relu", "relu", "relu", "relu", "sigmoid"]


def _pad128(d):
    return ((d + 127) // 128) * 128


# Interior widths padded to lane multiples; the 784-wide feature axis is left unpadded
# (full-extent blocks; 784 = 49*16 is a valid bf16 sublane extent for W0's leading dim).
PADDED_DIMS = []
for _i, (_din, _dout) in enumerate(LAYER_DIMS):
    _din_p = _din if _i == 0 else _pad128(_din)
    _dout_p = _dout if _i == NUM_LAYERS - 1 else _pad128(_dout)
    PADDED_DIMS.append((_din_p, _dout_p))


def ae_kernel(x_ref, *refs):
    """refs = (w0..w9 [bf16, padded], b0..b9 [f32, padded], out_ref). One batch tile."""
    w_refs = refs[:NUM_LAYERS]
    b_refs = refs[NUM_LAYERS:2 * NUM_LAYERS]
    out_ref = refs[2 * NUM_LAYERS]

    h = x_ref[...].astype(jnp.float32)
    for i in range(NUM_LAYERS):
        # bf16 MXU operands, f32 accumulation; elementwise stays f32.
        h = jnp.dot(h.astype(jnp.bfloat16), w_refs[i][...],
                    preferred_element_type=jnp.float32)
        h = h + b_refs[i][...]             # bias is (1, out_p) -> broadcasts over rows
        act = ACTIVATIONS[i]
        if act == "relu":
            h = jnp.maximum(h, 0.0)
        elif act == "sigmoid":
            h = jax.nn.sigmoid(h)
    out_ref[...] = h.astype(out_ref.dtype)


def prepare_params(weights, biases):
    """Pad interior widths to lane multiples and cast weights to bf16. Call ONCE,
    outside the jitted forward — the padded params are then reused every call."""
    wp, bp = [], []
    for i, (din, dout) in enumerate(LAYER_DIMS):
        din_p, dout_p = PADDED_DIMS[i]
        w = jnp.pad(weights[i].astype(jnp.bfloat16),
                    ((0, din_p - din), (0, dout_p - dout)))
        b = jnp.pad(biases[i].astype(jnp.float32).reshape(1, dout),
                    ((0, 0), (0, dout_p - dout)))
        wp.append(w)
        bp.append(b)
    return tuple(wp), tuple(bp)


@functools.partial(jax.jit, static_argnames=("batch_tile",))
def ae_forward(x, padded_weights, padded_biases, *, batch_tile=256):
    """x: (B, 784). padded_weights/padded_biases from prepare_params()."""
    B, F = x.shape
    assert F == N_FEATURES

    grid = (pl.cdiv(B, batch_tile),)

    # x / out tiles: last dim 784 is full-extent (legal), batch tile is MXU-sized.
    in_specs = [pl.BlockSpec((batch_tile, N_FEATURES), lambda i: (i, 0))]
    # Weights / biases: full-extent blocks, constant block index => no re-DMA per step.
    for (din_p, dout_p) in PADDED_DIMS:
        in_specs.append(pl.BlockSpec((din_p, dout_p), lambda i: (0, 0)))
    for (_, dout_p) in PADDED_DIMS:
        in_specs.append(pl.BlockSpec((1, dout_p), lambda i: (0, 0)))

    out_spec = pl.BlockSpec((batch_tile, N_FEATURES), lambda i: (i, 0))

    return pl.pallas_call(
        ae_kernel,
        out_shape=jax.ShapeDtypeStruct((B, N_FEATURES), x.dtype),
        grid_spec=pltpu.PrefetchScalarGridSpec(
            num_scalar_prefetch=0,
            grid=grid,
            in_specs=in_specs,
            out_specs=out_spec,
        ),
        compiler_params=pltpu.CompilerParams(
            dimension_semantics=("parallel",),
            vmem_limit_bytes=32 << 20,
        ),
    )(x, *padded_weights, *padded_biases)


def init_params(key):
    """Deterministic init mimicking torch.nn.Linear default (uniform +-1/sqrt(fan_in))."""
    weights, biases = [], []
    for idx, (din, dout) in enumerate(LAYER_DIMS):
        kw, kb = jax.random.split(jax.random.fold_in(key, idx))
        bound = 1.0 / (din ** 0.5)
        w = jax.random.uniform(kw, (din, dout), jnp.float32, -bound, bound)
        b = jax.random.uniform(kb, (1, dout), jnp.float32, -bound, bound)
        weights.append(w)
        biases.append(b)
    return weights, biases


def ae_forward_ref(x, weights, biases):
    """Pure-JAX f32 reference for correctness checking."""
    h = x.astype(jnp.float32)
    for i in range(NUM_LAYERS):
        h = h @ weights[i] + biases[i]
        if ACTIVATIONS[i] == "relu":
            h = jnp.maximum(h, 0.0)
        elif ACTIVATIONS[i] == "sigmoid":
            h = jax.nn.sigmoid(h)
    return h.astype(x.dtype)


if __name__ == "__main__":
    key = jax.random.PRNGKey(0)
    k_param, k_x = jax.random.split(key)

    weights, biases = init_params(k_param)
    padded_weights, padded_biases = prepare_params(weights, biases)  # once, not per call

    B = 1024                                  # 4 grid steps at tile=256 (>=2 per v7x core)
    x = jax.random.uniform(k_x, (B, N_FEATURES), jnp.float32)   # MNIST-like in [0,1)

    out = ae_forward(x, padded_weights, padded_biases, batch_tile=256)
    out = jax.block_until_ready(out)

    ref = ae_forward_ref(x, weights, biases)
    assert out.shape == (B, N_FEATURES), out.shape
    # bf16 matmul operands (f32 accumulation) -> loosened tolerance vs f32 reference.
    max_err = float(jnp.max(jnp.abs(out - ref)))
    assert jnp.allclose(out, ref, atol=2e-2, rtol=2e-2), max_err

    print("KERNEL_OK")
</pallas_src>

<mosaic_0001>
module attributes {stable_mosaic.version = 11 : i64} {
  func.func @ae_kernel(%arg0: i32, %arg1: memref<256x784xf32, #tpu.memory_space<vmem>>, %arg2: memref<784x256xbf16, #tpu.memory_space<vmem>>, %arg3: memref<256x128xbf16, #tpu.memory_space<vmem>>, %arg4: memref<128x128xbf16, #tpu.memory_space<vmem>>, %arg5: memref<128x128xbf16, #tpu.memory_space<vmem>>, %arg6: memref<128x128xbf16, #tpu.memory_space<vmem>>, %arg7: memref<128x128xbf16, #tpu.memory_space<vmem>>, %arg8: memref<128x128xbf16, #tpu.memory_space<vmem>>, %arg9: memref<128x128xbf16, #tpu.memory_space<vmem>>, %arg10: memref<128x256xbf16, #tpu.memory_space<vmem>>, %arg11: memref<256x784xbf16, #tpu.memory_space<vmem>>, %arg12: memref<1x256xf32, #tpu.memory_space<vmem>>, %arg13: memref<1x128xf32, #tpu.memory_space<vmem>>, %arg14: memref<1x128xf32, #tpu.memory_space<vmem>>, %arg15: memref<1x128xf32, #tpu.memory_space<vmem>>, %arg16: memref<1x128xf32, #tpu.memory_space<vmem>>, %arg17: memref<1x128xf32, #tpu.memory_space<vmem>>, %arg18: memref<1x128xf32, #tpu.memory_space<vmem>>, %arg19: memref<1x128xf32, #tpu.memory_space<vmem>>, %arg20: memref<1x256xf32, #tpu.memory_space<vmem>>, %arg21: memref<1x784xf32, #tpu.memory_space<vmem>>, %arg22: memref<256x784xf32, #tpu.memory_space<vmem>>) attributes {dimension_semantics = [#tpu.dimension_semantics<parallel>], iteration_bounds = array<i64: 4>, scalar_prefetch = 0 : i64, scratch_operands = 0 : i64, tpu.core_type = #tpu.core_type<tc>, window_params = [{transform_indices = @transform_0, window_bounds = array<i64: 256, 784>}, {pipeline_mode = #tpu.pipeline_mode<synchronous>, transform_indices = @transform_1, window_bounds = array<i64: 784, 256>}, {pipeline_mode = #tpu.pipeline_mode<synchronous>, transform_indices = @transform_2, window_bounds = array<i64: 256, 128>}, {pipeline_mode = #tpu.pipeline_mode<synchronous>, transform_indices = @transform_3, window_bounds = array<i64: 128, 128>}, {pipeline_mode = #tpu.pipeline_mode<synchronous>, transform_indices = @transform_4, window_bounds = array<i64: 128, 128>}, {pipeline_mode = #tpu.pipeline_mode<synchronous>, transform_indices = @transform_5, window_bounds = array<i64: 128, 128>}, {pipeline_mode = #tpu.pipeline_mode<synchronous>, transform_indices = @transform_6, window_bounds = array<i64: 128, 128>}, {pipeline_mode = #tpu.pipeline_mode<synchronous>, transform_indices = @transform_7, window_bounds = array<i64: 128, 128>}, {pipeline_mode = #tpu.pipeline_mode<synchronous>, transform_indices = @transform_8, window_bounds = array<i64: 128, 128>}, {pipeline_mode = #tpu.pipeline_mode<synchronous>, transform_indices = @transform_9, window_bounds = array<i64: 128, 256>}, {pipeline_mode = #tpu.pipeline_mode<synchronous>, transform_indices = @transform_10, window_bounds = array<i64: 256, 784>}, {pipeline_mode = #tpu.pipeline_mode<synchronous>, transform_indices = @transform_11, window_bounds = array<i64: 1, 256>}, {pipeline_mode = #tpu.pipeline_mode<synchronous>, transform_indices = @transform_12, window_bounds = array<i64: 1, 128>}, {pipeline_mode = #tpu.pipeline_mode<synchronous>, transform_indices = @transform_13, window_bounds = array<i64: 1, 128>}, {pipeline_mode = #tpu.pipeline_mode<synchronous>, transform_indices = @transform_14, window_bounds = array<i64: 1, 128>}, {pipeline_mode = #tpu.pipeline_mode<synchronous>, transform_indices = @transform_15, window_bounds = array<i64: 1, 128>}, {pipeline_mode = #tpu.pipeline_mode<synchronous>, transform_indices = @transform_16, window_bounds = array<i64: 1, 128>}, {pipeline_mode = #tpu.pipeline_mode<synchronous>, transform_indices = @transform_17, window_bounds = array<i64: 1, 128>}, {pipeline_mode = #tpu.pipeline_mode<synchronous>, transform_indices = @transform_18, window_bounds = array<i64: 1, 128>}, {pipeline_mode = #tpu.pipeline_mode<synchronous>, transform_indices = @transform_19, window_bounds = array<i64: 1, 256>}, {pipeline_mode = #tpu.pipeline_mode<synchronous>, transform_indices = @transform_20, window_bounds = array<i64: 1, 784>}, {transform_indices = @transform_21, window_bounds = array<i64: 256, 784>}]} {
    %c0 = arith.constant 0 : index
    %c0_0 = arith.constant 0 : index
    %0 = vector.load %arg1[%c0, %c0_0] : memref<256x784xf32, #tpu.memory_space<vmem>>, vector<256x784xf32>
    %1 = arith.truncf %0 : vector<256x784xf32> to vector<256x784xbf16>
    %c0_1 = arith.constant 0 : index
    %c0_2 = arith.constant 0 : index
    %2 = vector.load %arg2[%c0_1, %c0_2] : memref<784x256xbf16, #tpu.memory_space<vmem>>, vector<784x256xbf16>
    %cst = arith.constant dense<0.000000e+00> : vector<256x256xf32>
    %3 = tpu.matmul %1, %2, %cst {dimension_numbers = #tpu.dot_dimension_numbers<[1], [0], [0], [1], [0, 0, 1, 1], [], []>} : vector<256x784xbf16>, vector<784x256xbf16>, vector<256x256xf32> -> vector<256x256xf32>
    %c0_3 = arith.constant 0 : index
    %c0_4 = arith.constant 0 : index
    %4 = vector.load %arg12[%c0_3, %c0_4] : memref<1x256xf32, #tpu.memory_space<vmem>>, vector<1x256xf32>
    %5 = vector.broadcast %4 : vector<1x256xf32> to vector<256x256xf32>
    %6 = arith.addf %3, %5 : vector<256x256xf32>
    %cst_5 = arith.constant 0.000000e+00 : f32
    %7 = vector.broadcast %cst_5 : f32 to vector<256x256xf32>
    %8 = arith.maximumf %6, %7 : vector<256x256xf32>
    %9 = arith.truncf %8 : vector<256x256xf32> to vector<256x256xbf16>
    %c0_6 = arith.constant 0 : index
    %c0_7 = arith.constant 0 : index
    %10 = vector.load %arg3[%c0_6, %c0_7] : memref<256x128xbf16, #tpu.memory_space<vmem>>, vector<256x128xbf16>
    %cst_8 = arith.constant dense<0.000000e+00> : vector<256x128xf32>
    %11 = tpu.matmul %9, %10, %cst_8 {dimension_numbers = #tpu.dot_dimension_numbers<[1], [0], [0], [1], [0, 0, 1, 1], [], []>} : vector<256x256xbf16>, vector<256x128xbf16>, vector<256x128xf32> -> vector<256x128xf32>
    %c0_9 = arith.constant 0 : index
    %c0_10 = arith.constant 0 : index
    %12 = vector.load %arg13[%c0_9, %c0_10] : memref<1x128xf32, #tpu.memory_space<vmem>>, vector<1x128xf32>
    %13 = vector.broadcast %12 : vector<1x128xf32> to vector<256x128xf32>
    %14 = arith.addf %11, %13 : vector<256x128xf32>
    %cst_11 = arith.constant 0.000000e+00 : f32
    %15 = vector.broadcast %cst_11 : f32 to vector<256x128xf32>
    %16 = arith.maximumf %14, %15 : vector<256x128xf32>
    %17 = arith.truncf %16 : vector<256x128xf32> to vector<256x128xbf16>
    %c0_12 = arith.constant 0 : index
    %c0_13 = arith.constant 0 : index
    %18 = vector.load %arg4[%c0_12, %c0_13] : memref<128x128xbf16, #tpu.memory_space<vmem>>, vector<128x128xbf16>
    %cst_14 = arith.constant dense<0.000000e+00> : vector<256x128xf32>
    %19 = tpu.matmul %17, %18, %cst_14 {dimension_numbers = #tpu.dot_dimension_numbers<[1], [0], [0], [1], [0, 0, 1, 1], [], []>} : vector<256x128xbf16>, vector<128x128xbf16>, vector<256x128xf32> -> vector<256x128xf32>
    %c0_15 = arith.constant 0 : index
    %c0_16 = arith.constant 0 : index
    %20 = vector.load %arg14[%c0_15, %c0_16] : memref<1x128xf32, #tpu.memory_space<vmem>>, vector<1x128xf32>
    %21 = vector.broadcast %20 : vector<1x128xf32> to vector<256x128xf32>
    %22 = arith.addf %19, %21 : vector<256x128xf32>
    %cst_17 = arith.constant 0.000000e+00 : f32
    %23 = vector.broadcast %cst_17 : f32 to vector<256x128xf32>
    %24 = arith.maximumf %22, %23 : vector<256x128xf32>
    %25 = arith.truncf %24 : vector<256x128xf32> to vector<256x128xbf16>
    %c0_18 = arith.constant 0 : index
    %c0_19 = arith.constant 0 : index
    %26 = vector.load %arg5[%c0_18, %c0_19] : memref<128x128xbf16, #tpu.memory_space<vmem>>, vector<128x128xbf16>
    %cst_20 = arith.constant dense<0.000000e+00> : vector<256x128xf32>
    %27 = tpu.matmul %25, %26, %cst_20 {dimension_numbers = #tpu.dot_dimension_numbers<[1], [0], [0], [1], [0, 0, 1, 1], [], []>} : vector<256x128xbf16>, vector<128x128xbf16>, vector<256x128xf32> -> vector<256x128xf32>
    %c0_21 = arith.constant 0 : index
    %c0_22 = arith.constant 0 : index
    %28 = vector.load %arg15[%c0_21, %c0_22] : memref<1x128xf32, #tpu.memory_space<vmem>>, vector<1x128xf32>
    %29 = vector.broadcast %28 : vector<1x128xf32> to vector<256x128xf32>
    %30 = arith.addf %27, %29 : vector<256x128xf32>
    %cst_23 = arith.constant 0.000000e+00 : f32
    %31 = vector.broadcast %cst_23 : f32 to vector<256x128xf32>
    %32 = arith.maximumf %30, %31 : vector<256x128xf32>
    %33 = arith.truncf %32 : vector<256x128xf32> to vector<256x128xbf16>
    %c0_24 = arith.constant 0 : index
    %c0_25 = arith.constant 0 : index
    %34 = vector.load %arg6[%c0_24, %c0_25] : memref<128x128xbf16, #tpu.memory_space<vmem>>, vector<128x128xbf16>
    %cst_26 = arith.constant dense<0.000000e+00> : vector<256x128xf32>
    %35 = tpu.matmul %33, %34, %cst_26 {dimension_numbers = #tpu.dot_dimension_numbers<[1], [0], [0], [1], [0, 0, 1, 1], [], []>} : vector<256x128xbf16>, vector<128x128xbf16>, vector<256x128xf32> -> vector<256x128xf32>
    %c0_27 = arith.constant 0 : index
    %c0_28 = arith.constant 0 : index
    %36 = vector.load %arg16[%c0_27, %c0_28] : memref<1x128xf32, #tpu.memory_space<vmem>>, vector<1x128xf32>
    %37 = vector.broadcast %36 : vector<1x128xf32> to vector<256x128xf32>
    %38 = arith.addf %35, %37 : vector<256x128xf32>
    %39 = arith.truncf %38 : vector<256x128xf32> to vector<256x128xbf16>
    %c0_29 = arith.constant 0 : index
    %c0_30 = arith.constant 0 : index
    %40 = vector.load %arg7[%c0_29, %c0_30] : memref<128x128xbf16, #tpu.memory_space<vmem>>, vector<128x128xbf16>
    %cst_31 = arith.constant dense<0.000000e+00> : vector<256x128xf32>
    %41 = tpu.matmul %39, %40, %cst_31 {dimension_numbers = #tpu.dot_dimension_numbers<[1], [0], [0], [1], [0, 0, 1, 1], [], []>} : vector<256x128xbf16>, vector<128x128xbf16>, vector<256x128xf32> -> vector<256x128xf32>
    %c0_32 = arith.constant 0 : index
    %c0_33 = arith.constant 0 : index
    %42 = vector.load %arg17[%c0_32, %c0_33] : memref<1x128xf32, #tpu.memory_space<vmem>>, vector<1x128xf32>
    %43 = vector.broadcast %42 : vector<1x128xf32> to vector<256x128xf32>
    %44 = arith.addf %41, %43 : vector<256x128xf32>
    %cst_34 = arith.constant 0.000000e+00 : f32
    %45 = vector.broadcast %cst_34 : f32 to vector<256x128xf32>
    %46 = arith.maximumf %44, %45 : vector<256x128xf32>
    %47 = arith.truncf %46 : vector<256x128xf32> to vector<256x128xbf16>
    %c0_35 = arith.constant 0 : index
    %c0_36 = arith.constant 0 : index
    %48 = vector.load %arg8[%c0_35, %c0_36] : memref<128x128xbf16, #tpu.memory_space<vmem>>, vector<128x128xbf16>
    %cst_37 = arith.constant dense<0.000000e+00> : vector<256x128xf32>
    %49 = tpu.matmul %47, %48, %cst_37 {dimension_numbers = #tpu.dot_dimension_numbers<[1], [0], [0], [1], [0, 0, 1, 1], [], []>} : vector<256x128xbf16>, vector<128x128xbf16>, vector<256x128xf32> -> vector<256x128xf32>
    %c0_38 = arith.constant 0 : index
    %c0_39 = arith.constant 0 : index
    %50 = vector.load %arg18[%c0_38, %c0_39] : memref<1x128xf32, #tpu.memory_space<vmem>>, vector<1x128xf32>
    %51 = vector.broadcast %50 : vector<1x128xf32> to vector<256x128xf32>
    %52 = arith.addf %49, %51 : vector<256x128xf32>
    %cst_40 = arith.constant 0.000000e+00 : f32
    %53 = vector.broadcast %cst_40 : f32 to vector<256x128xf32>
    %54 = arith.maximumf %52, %53 : vector<256x128xf32>
    %55 = arith.truncf %54 : vector<256x128xf32> to vector<256x128xbf16>
    %c0_41 = arith.constant 0 : index
    %c0_42 = arith.constant 0 : index
    %56 = vector.load %arg9[%c0_41, %c0_42] : memref<128x128xbf16, #tpu.memory_space<vmem>>, vector<128x128xbf16>
    %cst_43 = arith.constant dense<0.000000e+00> : vector<256x128xf32>
    %57 = tpu.matmul %55, %56, %cst_43 {dimension_numbers = #tpu.dot_dimension_numbers<[1], [0], [0], [1], [0, 0, 1, 1], [], []>} : vector<256x128xbf16>, vector<128x128xbf16>, vector<256x128xf32> -> vector<256x128xf32>
    %c0_44 = arith.constant 0 : index
    %c0_45 = arith.constant 0 : index
    %58 = vector.load %arg19[%c0_44, %c0_45] : memref<1x128xf32, #tpu.memory_space<vmem>>, vector<1x128xf32>
    %59 = vector.broadcast %58 : vector<1x128xf32> to vector<256x128xf32>
    %60 = arith.addf %57, %59 : vector<256x128xf32>
    %cst_46 = arith.constant 0.000000e+00 : f32
    %61 = vector.broadcast %cst_46 : f32 to vector<256x128xf32>
    %62 = arith.maximumf %60, %61 : vector<256x128xf32>
    %63 = arith.truncf %62 : vector<256x128xf32> to vector<256x128xbf16>
    %c0_47 = arith.constant 0 : index
    %c0_48 = arith.constant 0 : index
    %64 = vector.load %arg10[%c0_47, %c0_48] : memref<128x256xbf16, #tpu.memory_space<vmem>>, vector<128x256xbf16>
    %cst_49 = arith.constant dense<0.000000e+00> : vector<256x256xf32>
    %65 = tpu.matmul %63, %64, %cst_49 {dimension_numbers = #tpu.dot_dimension_numbers<[1], [0], [0], [1], [0, 0, 1, 1], [], []>} : vector<256x128xbf16>, vector<128x256xbf16>, vector<256x256xf32> -> vector<256x256xf32>
    %c0_50 = arith.constant 0 : index
    %c0_51 = arith.constant 0 : index
    %66 = vector.load %arg20[%c0_50, %c0_51] : memref<1x256xf32, #tpu.memory_space<vmem>>, vector<1x256xf32>
    %67 = vector.broadcast %66 : vector<1x256xf32> to vector<256x256xf32>
    %68 = arith.addf %65, %67 : vector<256x256xf32>
    %cst_52 = arith.constant 0.000000e+00 : f32
    %69 = vector.broadcast %cst_52 : f32 to vector<256x256xf32>
    %70 = arith.maximumf %68, %69 : vector<256x256xf32>
    %71 = arith.truncf %70 : vector<256x256xf32> to vector<256x256xbf16>
    %c0_53 = arith.constant 0 : index
    %c0_54 = arith.constant 0 : index
    %72 = vector.load %arg11[%c0_53, %c0_54] : memref<256x784xbf16, #tpu.memory_space<vmem>>, vector<256x784xbf16>
    %cst_55 = arith.constant dense<0.000000e+00> : vector<256x784xf32>
    %73 = tpu.matmul %71, %72, %cst_55 {dimension_numbers = #tpu.dot_dimension_numbers<[1], [0], [0], [1], [0, 0, 1, 1], [], []>} : vector<256x256xbf16>, vector<256x784xbf16>, vector<256x784xf32> -> vector<256x784xf32>
    %c0_56 = arith.constant 0 : index
    %c0_57 = arith.constant 0 : index
    %74 = vector.load %arg21[%c0_56, %c0_57] : memref<1x784xf32, #tpu.memory_space<vmem>>, vector<1x784xf32>
    %75 = vector.broadcast %74 : vector<1x784xf32> to vector<256x784xf32>
    %76 = arith.addf %73, %75 : vector<256x784xf32>
    %77 = arith.negf %76 : vector<256x784xf32>
    %78 = math.exp %77 : vector<256x784xf32>
    %cst_58 = arith.constant 1.000000e+00 : f32
    %79 = vector.broadcast %cst_58 : f32 to vector<256x784xf32>
    %80 = arith.addf %79, %78 : vector<256x784xf32>
    %81 = arith.divf %79, %80 : vector<256x784xf32>
    %c0_59 = arith.constant 0 : index
    %c0_60 = arith.constant 0 : index
    %82 = vector.load %arg22[%c0_59, %c0_60] : memref<256x784xf32, #tpu.memory_space<vmem>>, vector<256x784xf32>
    tpu.vector_store %arg22[%c0_59, %c0_60], %81 {strides = array<i32>} : memref<256x784xf32, #tpu.memory_space<vmem>>, vector<256x784xf32>,
    return
  }
  func.func @transform_0(%arg0: i32) -> (i32, i32) {
    %c0_i32 = arith.constant 0 : i32
    %c0_i32_0 = arith.constant 0 : i32
    return %arg0, %c0_i32 : i32, i32
  }
  func.func @transform_1(%arg0: i32) -> (i32, i32) {
    %c0_i32 = arith.constant 0 : i32
    %c0_i32_0 = arith.constant 0 : i32
    %c0_i32_1 = arith.constant 0 : i32
    return %c0_i32, %c0_i32_0 : i32, i32
  }
  func.func @transform_2(%arg0: i32) -> (i32, i32) {
    %c0_i32 = arith.constant 0 : i32
    %c0_i32_0 = arith.constant 0 : i32
    %c0_i32_1 = arith.constant 0 : i32
    return %c0_i32, %c0_i32_0 : i32, i32
  }
  func.func @transform_3(%arg0: i32) -> (i32, i32) {
    %c0_i32 = arith.constant 0 : i32
    %c0_i32_0 = arith.constant 0 : i32
    %c0_i32_1 = arith.constant 0 : i32
    return %c0_i32, %c0_i32_0 : i32, i32
  }
  func.func @transform_4(%arg0: i32) -> (i32, i32) {
    %c0_i32 = arith.constant 0 : i32
    %c0_i32_0 = arith.constant 0 : i32
    %c0_i32_1 = arith.constant 0 : i32
    return %c0_i32, %c0_i32_0 : i32, i32
  }
  func.func @transform_5(%arg0: i32) -> (i32, i32) {
    %c0_i32 = arith.constant 0 : i32
    %c0_i32_0 = arith.constant 0 : i32
    %c0_i32_1 = arith.constant 0 : i32
    return %c0_i32, %c0_i32_0 : i32, i32
  }
  func.func @transform_6(%arg0: i32) -> (i32, i32) {
    %c0_i32 = arith.constant 0 : i32
    %c0_i32_0 = arith.constant 0 : i32
    %c0_i32_1 = arith.constant 0 : i32
    return %c0_i32, %c0_i32_0 : i32, i32
  }
  func.func @transform_7(%arg0: i32) -> (i32, i32) {
    %c0_i32 = arith.constant 0 : i32
    %c0_i32_0 = arith.constant 0 : i32
    %c0_i32_1 = arith.constant 0 : i32
    return %c0_i32, %c0_i32_0 : i32, i32
  }
  func.func @transform_8(%arg0: i32) -> (i32, i32) {
    %c0_i32 = arith.constant 0 : i32
    %c0_i32_0 = arith.constant 0 : i32
    %c0_i32_1 = arith.constant 0 : i32
    return %c0_i32, %c0_i32_0 : i32, i32
  }
  func.func @transform_9(%arg0: i32) -> (i32, i32) {
    %c0_i32 = arith.constant 0 : i32
    %c0_i32_0 = arith.constant 0 : i32
    %c0_i32_1 = arith.constant 0 : i32
    return %c0_i32, %c0_i32_0 : i32, i32
  }
  func.func @transform_10(%arg0: i32) -> (i32, i32) {
    %c0_i32 = arith.constant 0 : i32
    %c0_i32_0 = arith.constant 0 : i32
    %c0_i32_1 = arith.constant 0 : i32
    return %c0_i32, %c0_i32_0 : i32, i32
  }
  func.func @transform_11(%arg0: i32) -> (i32, i32) {
    %c0_i32 = arith.constant 0 : i32
    %c0_i32_0 = arith.constant 0 : i32
    %c0_i32_1 = arith.constant 0 : i32
    return %c0_i32, %c0_i32_0 : i32, i32
  }
  func.func @transform_12(%arg0: i32) -> (i32, i32) {
    %c0_i32 = arith.constant 0 : i32
    %c0_i32_0 = arith.constant 0 : i32
    %c0_i32_1 = arith.constant 0 : i32
    return %c0_i32, %c0_i32_0 : i32, i32
  }
  func.func @transform_13(%arg0: i32) -> (i32, i32) {
    %c0_i32 = arith.constant 0 : i32
    %c0_i32_0 = arith.constant 0 : i32
    %c0_i32_1 = arith.constant 0 : i32
    return %c0_i32, %c0_i32_0 : i32, i32
  }
  func.func @transform_14(%arg0: i32) -> (i32, i32) {
    %c0_i32 = arith.constant 0 : i32
    %c0_i32_0 = arith.constant 0 : i32
    %c0_i32_1 = arith.constant 0 : i32
    return %c0_i32, %c0_i32_0 : i32, i32
  }
  func.func @transform_15(%arg0: i32) -> (i32, i32) {
    %c0_i32 = arith.constant 0 : i32
    %c0_i32_0 = arith.constant 0 : i32
    %c0_i32_1 = arith.constant 0 : i32
    return %c0_i32, %c0_i32_0 : i32, i32
  }
  func.func @transform_16(%arg0: i32) -> (i32, i32) {
    %c0_i32 = arith.constant 0 : i32
    %c0_i32_0 = arith.constant 0 : i32
    %c0_i32_1 = arith.constant 0 : i32
    return %c0_i32, %c0_i32_0 : i32, i32
  }
  func.func @transform_17(%arg0: i32) -> (i32, i32) {
    %c0_i32 = arith.constant 0 : i32
    %c0_i32_0 = arith.constant 0 : i32
    %c0_i32_1 = arith.constant 0 : i32
    return %c0_i32, %c0_i32_0 : i32, i32
  }
  func.func @transform_18(%arg0: i32) -> (i32, i32) {
    %c0_i32 = arith.constant 0 : i32
    %c0_i32_0 = arith.constant 0 : i32
    %c0_i32_1 = arith.constant 0 : i32
    return %c0_i32, %c0_i32_0 : i32, i32
  }
  func.func @transform_19(%arg0: i32) -> (i32, i32) {
    %c0_i32 = arith.constant 0 : i32
    %c0_i32_0 = arith.constant 0 : i32
    %c0_i32_1 = arith.constant 0 : i32
    return %c0_i32, %c0_i32_0 : i32, i32
  }
  func.func @transform_20(%arg0: i32) -> (i32, i32) {
    %c0_i32 = arith.constant 0 : i32
    %c0_i32_0 = arith.constant 0 : i32
    %c0_i32_1 = arith.constant 0 : i32
    return %c0_i32, %c0_i32_0 : i32, i32
  }
  func.func @transform_21(%arg0: i32) -> (i32, i32) {
    %c0_i32 = arith.constant 0 : i32
    %c0_i32_0 = arith.constant 0 : i32
    return %arg0, %c0_i32 : i32, i32
  }
}

</mosaic_0001>

<llo_original>
// kernel: ae_forward.1
$region0: #{ae_forward.1}
  #allocation0 [shape = 'u32[]', space=smem, size = 0x4, offset = 0x4, fixed_abs, tag = 'smem constant byte address 0x4 - core index']
  #allocation1 [shape = 'u32[144,128]{1,0:T(1,128)}', space=vmem, size = 0x12000, scoped, tag = 'internal scratch']
  %s0 = inlined_call_operand.vmem [shape: f32[1024,784], index: 0, kind: input, shape index: {}]
  %s1 = inlined_call_operand.vmem [shape: bf16[784,256], index: 1, kind: input, shape index: {}]
  %s2 = inlined_call_operand.vmem [shape: bf16[256,128], index: 2, kind: input, shape index: {}]
  %s3 = inlined_call_operand.vmem [shape: bf16[128,128], index: 3, kind: input, shape index: {}]
  %s4 = inlined_call_operand.vmem [shape: bf16[128,128], index: 4, kind: input, shape index: {}]
  %s5 = inlined_call_operand.vmem [shape: bf16[128,128], index: 5, kind: input, shape index: {}]
  %s6 = inlined_call_operand.vmem [shape: bf16[128,128], index: 6, kind: input, shape index: {}]
  %s7 = inlined_call_operand.vmem [shape: bf16[128,128], index: 7, kind: input, shape index: {}]
  %s8 = inlined_call_operand.vmem [shape: bf16[128,128], index: 8, kind: input, shape index: {}]
  %s9 = inlined_call_operand.vmem [shape: bf16[128,256], index: 9, kind: input, shape index: {}]
  %s10 = inlined_call_operand.vmem [shape: bf16[256,784], index: 10, kind: input, shape index: {}]
  %s11 = inlined_call_operand.vmem [shape: f32[1,256], index: 11, kind: input, shape index: {}]
  %s12 = inlined_call_operand.vmem [shape: f32[1,128], index: 12, kind: input, shape index: {}]
  %s13 = inlined_call_operand.vmem [shape: f32[1,128], index: 13, kind: input, shape index: {}]
  %s14 = inlined_call_operand.vmem [shape: f32[1,128], index: 14, kind: input, shape index: {}]
  %s15 = inlined_call_operand.vmem [shape: f32[1,128], index: 15, kind: input, shape index: {}]
  %s16 = inlined_call_operand.vmem [shape: f32[1,128], index: 16, kind: input, shape index: {}]
  %s17 = inlined_call_operand.vmem [shape: f32[1,128], index: 17, kind: input, shape index: {}]
  %s18 = inlined_call_operand.vmem [shape: f32[1,128], index: 18, kind: input, shape index: {}]
  %s19 = inlined_call_operand.vmem [shape: f32[1,256], index: 19, kind: input, shape index: {}]
  %s20 = inlined_call_operand.vmem [shape: f32[1,784], index: 20, kind: input, shape index: {}]
  %s21 = inlined_call_operand.vmem [shape: f32[1024,784], index: 21, kind: output, shape index: {}]
  %s22 = sld [smem:[#allocation0]]
  $region117: #{ae_forward.1} parent=0
    _
  %s24 = ssub.s32 1, %s22
  %s25 = scalar_select 0, %s24, %s22
  loop: start=0, step=1, limit=6
  $region2: #{ae_forward.1} parent=0 // loop_pre_header
    _
  $region3: #{ae_forward.1} parent=0 // loop_header
    %s27 = sphi 0, %s31
    %p28 = scmp.ge.s32.totalorder %s27, 6
    %s37 = sphi 0, %s39
    %s40 = sphi 0, %s37
    %s41 = sphi 0, %s40
    %s57 = sphi 0, %s41
    %s61 = sphi 0, %s61
    %s63 = sphi 0, %s61
    %s64 = sphi 0, %s63
    %s78 = sphi 0, %s64
    %s82 = sphi 0, %s82
    %s84 = sphi 0, %s82
    %s85 = sphi 0, %s84
    %s99 = sphi 0, %s85
    %s103 = sphi 0, %s103
    %s105 = sphi 0, %s103
    %s106 = sphi 0, %s105
    %s120 = sphi 0, %s106
    %s124 = sphi 0, %s124
    %s126 = sphi 0, %s124
    %s127 = sphi 0, %s126
    %s141 = sphi 0, %s127
    %s145 = sphi 0, %s145
    %s147 = sphi 0, %s145
    %s148 = sphi 0, %s147
    %s162 = sphi 0, %s148
    %s166 = sphi 0, %s166
    %s168 = sphi 0, %s166
    %s169 = sphi 0, %s168
    %s183 = sphi 0, %s169
    %s187 = sphi 0, %s187
    %s189 = sphi 0, %s187
    %s190 = sphi 0, %s189
    %s204 = sphi 0, %s190
    %s208 = sphi 0, %s208
    %s210 = sphi 0, %s208
    %s211 = sphi 0, %s210
    %s225 = sphi 0, %s211
    %s229 = sphi 0, %s229
    %s231 = sphi 0, %s229
    %s232 = sphi 0, %s231
    %s246 = sphi 0, %s232
    %s250 = sphi 0, %s250
    %s252 = sphi 0, %s250
    %s253 = sphi 0, %s252
    %s267 = sphi 0, %s253
    %s271 = sphi 0, %s271
    %s273 = sphi 0, %s271
    %s274 = sphi 0, %s273
    %s288 = sphi 0, %s274
    %s292 = sphi 0, %s292
    %s294 = sphi 0, %s292
    %s295 = sphi 0, %s294
    %s309 = sphi 0, %s295
    %s313 = sphi 0, %s313
    %s315 = sphi 0, %s313
    %s316 = sphi 0, %s315
    %s330 = sphi 0, %s316
    %s334 = sphi 0, %s334
    %s336 = sphi 0, %s334
    %s337 = sphi 0, %s336
    %s351 = sphi 0, %s337
    %s355 = sphi 0, %s355
    %s357 = sphi 0, %s355
    %s358 = sphi 0, %s357
    %s372 = sphi 0, %s358
    %s376 = sphi 0, %s376
    %s378 = sphi 0, %s376
    %s379 = sphi 0, %s378
    %s393 = sphi 0, %s379
    %s397 = sphi 0, %s397
    %s399 = sphi 0, %s397
    %s400 = sphi 0, %s399
    %s414 = sphi 0, %s400
    %s418 = sphi 0, %s418
    %s420 = sphi 0, %s418
    %s421 = sphi 0, %s420
    %s435 = sphi 0, %s421
    %s439 = sphi 0, %s439
    %s441 = sphi 0, %s439
    %s442 = sphi 0, %s441
    %s456 = sphi 0, %s442
    %s460 = sphi 0, %s460
    %s462 = sphi 0, %s460
    %s463 = sphi 0, %s462
    %s477 = sphi 0, %s463
    %s483 = sphi 0, %s485
    %s486 = sphi 0, %s483
    %s487 = sphi 0, %s486
    %s503 = sphi 0, %s487
  $region4: #{ae_forward.1} parent=0 // loop_header_branch
    %30 = sbr.rel (%p28) target = $region8
  $region5: #{ae_forward.1} parent=0 // loop_body
    %s32 = ssub.s32 %s27, 1
    %s33 = ssub.s32 %s27, 2
    %s34 = sadd.s32 %s27, 1
    %s35 = ssub.s32 %s27, %s34
    %p36 = scmp.eq.s32.totalorder %s35, 0
    %s38 = sadd.s32 %s37, 1
    %s39 = scalar_select %p36, %s37, %s38
    %p42 = pneg %p36
    %p43 = scmp.eq.s32.totalorder %s27, 3
    %p44 = por %p42, %p43
    %p45 = scmp.ne.s32.totalorder %s37, %s40
    %p46 = scmp.eq.s32.totalorder %s27, 0
    %p47 = por %p45, %p46
    %p48 = scmp.ne.s32.totalorder %s37, %s40
    %p49 = scmp.eq.s32.totalorder %s32, 3
    %p50 = por %p48, %p49
    %p51 = scmp.ne.s32.totalorder %s40, %s41
    %p52 = scmp.eq.s32.totalorder %s32, 0
    %p53 = por %p51, %p52
    %p54 = scmp.ne.s32.totalorder %s40, %s41
    %p55 = scmp.eq.s32.totalorder %s33, 3
    %p56 = por %p54, %p55
    %p58 = scmp.ne.s32.totalorder %s41, %s57
    %p59 = scmp.eq.s32.totalorder %s33, 0
    %p60 = por %p58, %p59
    %s62 = sadd.s32 %s61, 1
    %p65 = scmp.eq.s32.totalorder %s27, 3
    %p66 = scmp.ne.s32.totalorder %s61, %s63
    %p67 = scmp.eq.s32.totalorder %s27, 0
    %p68 = por %p66, %p67
    %p69 = scmp.ne.s32.totalorder %s61, %s63
    %p70 = scmp.eq.s32.totalorder %s32, 3
    %p71 = por %p69, %p70
    %p72 = scmp.ne.s32.totalorder %s63, %s64
    %p73 = scmp.eq.s32.totalorder %s32, 0
    %p74 = por %p72, %p73
    %p75 = scmp.ne.s32.totalorder %s63, %s64
    %p76 = scmp.eq.s32.totalorder %s33, 3
    %p77 = por %p75, %p76
    %p79 = scmp.ne.s32.totalorder %s64, %s78
    %p80 = scmp.eq.s32.totalorder %s33, 0
    %p81 = por %p79, %p80
    %s83 = sadd.s32 %s82, 1
    %p86 = scmp.eq.s32.totalorder %s27, 3
    %p87 = scmp.ne.s32.totalorder %s82, %s84
    %p88 = scmp.eq.s32.totalorder %s27, 0
    %p89 = por %p87, %p88
    %p90 = scmp.ne.s32.totalorder %s82, %s84
    %p91 = scmp.eq.s32.totalorder %s32, 3
    %p92 = por %p90, %p91
    %p93 = scmp.ne.s32.totalorder %s84, %s85
    %p94 = scmp.eq.s32.totalorder %s32, 0
    %p95 = por %p93, %p94
    %p96 = scmp.ne.s32.totalorder %s84, %s85
    %p97 = scmp.eq.s32.totalorder %s33, 3
    %p98 = por %p96, %p97
    %p100 = scmp.ne.s32.totalorder %s85, %s99
    %p101 = scmp.eq.s32.totalorder %s33, 0
    %p102 = por %p100, %p101
    %s104 = sadd.s32 %s103, 1
    %p107 = scmp.eq.s32.totalorder %s27, 3
    %p108 = scmp.ne.s32.totalorder %s103, %s105
    %p109 = scmp.eq.s32.totalorder %s27, 0
    %p110 = por %p108, %p109
    %p111 = scmp.ne.s32.totalorder %s103, %s105
    %p112 = scmp.eq.s32.totalorder %s32, 3
    %p113 = por %p111, %p112
    %p114 = scmp.ne.s32.totalorder %s105, %s106
    %p115 = scmp.eq.s32.totalorder %s32, 0
    %p116 = por %p114, %p115
    %p117 = scmp.ne.s32.totalorder %s105, %s106
    %p118 = scmp.eq.s32.totalorder %s33, 3
    %p119 = por %p117, %p118
    %p121 = scmp.ne.s32.totalorder %s106, %s120
    %p122 = scmp.eq.s32.totalorder %s33, 0
    %p123 = por %p121, %p122
    %s125 = sadd.s32 %s124, 1
    %p128 = scmp.eq.s32.totalorder %s27, 3
    %p129 = scmp.ne.s32.totalorder %s124, %s126
    %p130 = scmp.eq.s32.totalorder %s27, 0
    %p131 = por %p129, %p130
    %p132 = scmp.ne.s32.totalorder %s124, %s126
    %p133 = scmp.eq.s32.totalorder %s32, 3
    %p134 = por %p132, %p133
    %p135 = scmp.ne.s32.totalorder %s126, %s127
    %p136 = scmp.eq.s32.totalorder %s32, 0
    %p137 = por %p135, %p136
    %p138 = scmp.ne.s32.totalorder %s126, %s127
    %p139 = scmp.eq.s32.totalorder %s33, 3
    %p140 = por %p138, %p139
    %p142 = scmp.ne.s32.totalorder %s127, %s141
    %p143 = scmp.eq.s32.totalorder %s33, 0
    %p144 = por %p142, %p143
    %s146 = sadd.s32 %s145, 1
    %p149 = scmp.eq.s32.totalorder %s27, 3
    %p150 = scmp.ne.s32.totalorder %s145, %s147
    %p151 = scmp.eq.s32.totalorder %s27, 0
    %p152 = por %p150, %p151
    %p153 = scmp.ne.s32.totalorder %s145, %s147
    %p154 = scmp.eq.s32.totalorder %s32, 3
    %p155 = por %p153, %p154
    %p156 = scmp.ne.s32.totalorder %s147, %s148
    %p157 = scmp.eq.s32.totalorder %s32, 0
    %p158 = por %p156, %p157
    %p159 = scmp.ne.s32.totalorder %s147, %s148
    %p160 = scmp.eq.s32.totalorder %s33, 3
    %p161 = por %p159, %p160
    %p163 = scmp.ne.s32.totalorder %s148, %s162
    %p164 = scmp.eq.s32.totalorder %s33, 0
    %p165 = por %p163, %p164
    %s167 = sadd.s32 %s166, 1
    %p170 = scmp.eq.s32.totalorder %s27, 3
    %p171 = scmp.ne.s32.totalorder %s166, %s168
    %p172 = scmp.eq.s32.totalorder %s27, 0
    %p173 = por %p171, %p172
    %p174 = scmp.ne.s32.totalorder %s166, %s168
    %p175 = scmp.eq.s32.totalorder %s32, 3
    %p176 = por %p174, %p175
    %p177 = scmp.ne.s32.totalorder %s168, %s169
    %p178 = scmp.eq.s32.totalorder %s32, 0
    %p179 = por %p177, %p178
    %p180 = scmp.ne.s32.totalorder %s168, %s169
    %p181 = scmp.eq.s32.totalorder %s33, 3
    %p182 = por %p180, %p181
    %p184 = scmp.ne.s32.totalorder %s169, %s183
    %p185 = scmp.eq.s32.totalorder %s33, 0
    %p186 = por %p184, %p185
    %s188 = sadd.s32 %s187, 1
    %p191 = scmp.eq.s32.totalorder %s27, 3
    %p192 = scmp.ne.s32.totalorder %s187, %s189
    %p193 = scmp.eq.s32.totalorder %s27, 0
    %p194 = por %p192, %p193
    %p195 = scmp.ne.s32.totalorder %s187, %s189
    %p196 = scmp.eq.s32.totalorder %s32, 3
    %p197 = por %p195, %p196
    %p198 = scmp.ne.s32.totalorder %s189, %s190
    %p199 = scmp.eq.s32.totalorder %s32, 0
    %p200 = por %p198, %p199
    %p201 = scmp.ne.s32.totalorder %s189, %s190
    %p202 = scmp.eq.s32.totalorder %s33, 3
    %p203 = por %p201, %p202
    %p205 = scmp.ne.s32.totalorder %s190, %s204
    %p206 = scmp.eq.s32.totalorder %s33, 0
    %p207 = por %p205, %p206
    %s209 = sadd.s32 %s208, 1
    %p212 = scmp.eq.s32.totalorder %s27, 3
    %p213 = scmp.ne.s32.totalorder %s208, %s210
    %p214 = scmp.eq.s32.totalorder %s27, 0
    %p215 = por %p213, %p214
    %p216 = scmp.ne.s32.totalorder %s208, %s210
    %p217 = scmp.eq.s32.totalorder %s32, 3
    %p218 = por %p216, %p217
    %p219 = scmp.ne.s32.totalorder %s210, %s211
    %p220 = scmp.eq.s32.totalorder %s32, 0
    %p221 = por %p219, %p220
    %p222 = scmp.ne.s32.totalorder %s210, %s211
    %p223 = scmp.eq.s32.totalorder %s33, 3
    %p224 = por %p222, %p223
    %p226 = scmp.ne.s32.totalorder %s211, %s225
    %p227 = scmp.eq.s32.totalorder %s33, 0
    %p228 = por %p226, %p227
    %s230 = sadd.s32 %s229, 1
    %p233 = scmp.eq.s32.totalorder %s27, 3
    %p234 = scmp.ne.s32.totalorder %s229, %s231
    %p235 = scmp.eq.s32.totalorder %s27, 0
    %p236 = por %p234, %p235
    %p237 = scmp.ne.s32.totalorder %s229, %s231
    %p238 = scmp.eq.s32.totalorder %s32, 3
    %p239 = por %p237, %p238
    %p240 = scmp.ne.s32.totalorder %s231, %s232
    %p241 = scmp.eq.s32.totalorder %s32, 0
    %p242 = por %p240, %p241
    %p243 = scmp.ne.s32.totalorder %s231, %s232
    %p244 = scmp.eq.s32.totalorder %s33, 3
    %p245 = por %p243, %p244
    %p247 = scmp.ne.s32.totalorder %s232, %s246
    %p248 = scmp.eq.s32.totalorder %s33, 0
    %p249 = por %p247, %p248
    %s251 = sadd.s32 %s250, 1
    %p254 = scmp.eq.s32.totalorder %s27, 3
    %p255 = scmp.ne.s32.totalorder %s250, %s252
    %p256 = scmp.eq.s32.totalorder %s27, 0
    %p257 = por %p255, %p256
    %p258 = scmp.ne.s32.totalorder %s250, %s252
    %p259 = scmp.eq.s32.totalorder %s32, 3
    %p260 = por %p258, %p259
    %p261 = scmp.ne.s32.totalorder %s252, %s253
    %p262 = scmp.eq.s32.totalorder %s32, 0
    %p263 = por %p261, %p262
    %p264 = scmp.ne.s32.totalorder %s252, %s253
    %p265 = scmp.eq.s32.totalorder %s33, 3
    %p266 = por %p264, %p265
    %p268 = scmp.ne.s32.totalorder %s253, %s267
    %p269 = scmp.eq.s32.totalorder %s33, 0
    %p270 = por %p268, %p269
    %s272 = sadd.s32 %s271, 1
    %p275 = scmp.eq.s32.totalorder %s27, 3
    %p276 = scmp.ne.s32.totalorder %s271, %s273
    %p277 = scmp.eq.s32.totalorder %s27, 0
    %p278 = por %p276, %p277
    %p279 = scmp.ne.s32.totalorder %s271, %s273
    %p280 = scmp.eq.s32.totalorder %s32, 3
    %p281 = por %p279, %p280
    %p282 = scmp.ne.s32.totalorder %s273, %s274
    %p283 = scmp.eq.s32.totalorder %s32, 0
    %p284 = por %p282, %p283
    %p285 = scmp.ne.s32.totalorder %s273, %s274
    %p286 = scmp.eq.s32.totalorder %s33, 3
    %p287 = por %p285, %p286
    %p289 = scmp.ne.s32.totalorder %s274, %s288
    %p290 = scmp.eq.s32.totalorder %s33, 0
    %p291 = por %p289, %p290
    %s293 = sadd.s32 %s292, 1
    %p296 = scmp.eq.s32.totalorder %s27, 3
    %p297 = scmp.ne.s32.totalorder %s292, %s294
    %p298 = scmp.eq.s32.totalorder %s27, 0
    %p299 = por %p297, %p298
    %p300 = scmp.ne.s32.totalorder %s292, %s294
    %p301 = scmp.eq.s32.totalorder %s32, 3
    %p302 = por %p300, %p301
    %p303 = scmp.ne.s32.totalorder %s294, %s295
    %p304 = scmp.eq.s32.totalorder %s32, 0
    %p305 = por %p303, %p304
    %p306 = scmp.ne.s32.totalorder %s294, %s295
    %p307 = scmp.eq.s32.totalorder %s33, 3
    %p308 = por %p306, %p307
    %p310 = scmp.ne.s32.totalorder %s295, %s309
    %p311 = scmp.eq.s32.totalorder %s33, 0
    %p312 = por %p310, %p311
    %s314 = sadd.s32 %s313, 1
    %p317 = scmp.eq.s32.totalorder %s27, 3
    %p318 = scmp.ne.s32.totalorder %s313, %s315
    %p319 = scmp.eq.s32.totalorder %s27, 0
    %p320 = por %p318, %p319
    %p321 = scmp.ne.s32.totalorder %s313, %s315
    %p322 = scmp.eq.s32.totalorder %s32, 3
    %p323 = por %p321, %p322
    %p324 = scmp.ne.s32.totalorder %s315, %s316
    %p325 = scmp.eq.s32.totalorder %s32, 0
    %p326 = por %p324, %p325
    %p327 = scmp.ne.s32.totalorder %s315, %s316
    %p328 = scmp.eq.s32.totalorder %s33, 3
    %p329 = por %p327, %p328
    %p331 = scmp.ne.s32.totalorder %s316, %s330
    %p332 = scmp.eq.s32.totalorder %s33, 0
    %p333 = por %p331, %p332
    %s335 = sadd.s32 %s334, 1
    %p338 = scmp.eq.s32.totalorder %s27, 3
    %p339 = scmp.ne.s32.totalorder %s334, %s336
    %p340 = scmp.eq.s32.totalorder %s27, 0
    %p341 = por %p339, %p340
    %p342 = scmp.ne.s32.totalorder %s334, %s336
    %p343 = scmp.eq.s32.totalorder %s32, 3
    %p344 = por %p342, %p343
    %p345 = scmp.ne.s32.totalorder %s336, %s337
    %p346 = scmp.eq.s32.totalorder %s32, 0
    %p347 = por %p345, %p346
    %p348 = scmp.ne.s32.totalorder %s336, %s337
    %p349 = scmp.eq.s32.totalorder %s33, 3
    %p350 = por %p348, %p349
    %p352 = scmp.ne.s32.totalorder %s337, %s351
    %p353 = scmp.eq.s32.totalorder %s33, 0
    %p354 = por %p352, %p353
    %s356 = sadd.s32 %s355, 1
    %p359 = scmp.eq.s32.totalorder %s27, 3
    %p360 = scmp.ne.s32.totalorder %s355, %s357
    %p361 = scmp.eq.s32.totalorder %s27, 0
    %p362 = por %p360, %p361
    %p363 = scmp.ne.s32.totalorder %s355, %s357
    %p364 = scmp.eq.s32.totalorder %s32, 3
    %p365 = por %p363, %p364
    %p366 = scmp.ne.s32.totalorder %s357, %s358
    %p367 = scmp.eq.s32.totalorder %s32, 0
    %p368 = por %p366, %p367
    %p369 = scmp.ne.s32.totalorder %s357, %s358
    %p370 = scmp.eq.s32.totalorder %s33, 3
    %p371 = por %p369, %p370
    %p373 = scmp.ne.s32.totalorder %s358, %s372
    %p374 = scmp.eq.s32.totalorder %s33, 0
    %p375 = por %p373, %p374
    %s377 = sadd.s32 %s376, 1
    %p380 = scmp.eq.s32.totalorder %s27, 3
    %p381 = scmp.ne.s32.totalorder %s376, %s378
    %p382 = scmp.eq.s32.totalorder %s27, 0
    %p383 = por %p381, %p382
    %p384 = scmp.ne.s32.totalorder %s376, %s378
    %p385 = scmp.eq.s32.totalorder %s32, 3
    %p386 = por %p384, %p385
    %p387 = scmp.ne.s32.totalorder %s378, %s379
    %p388 = scmp.eq.s32.totalorder %s32, 0
    %p389 = por %p387, %p388
    %p390 = scmp.ne.s32.totalorder %s378, %s379
    %p391 = scmp.eq.s32.totalorder %s33, 3
    %p392 = por %p390, %p391
    %p394 = scmp.ne.s32.totalorder %s379, %s393
    %p395 = scmp.eq.s32.totalorder %s33, 0
    %p396 = por %p394, %p395
    %s398 = sadd.s32 %s397, 1
    %p401 = scmp.eq.s32.totalorder %s27, 3
    %p402 = scmp.ne.s32.totalorder %s397, %s399
    %p403 = scmp.eq.s32.totalorder %s27, 0
    %p404 = por %p402, %p403
    %p405 = scmp.ne.s32.totalorder %s397, %s399
    %p406 = scmp.eq.s32.totalorder %s32, 3
    %p407 = por %p405, %p406
    %p408 = scmp.ne.s32.totalorder %s399, %s400
    %p409 = scmp.eq.s32.totalorder %s32, 0
    %p410 = por %p408, %p409
    %p411 = scmp.ne.s32.totalorder %s399, %s400
    %p412 = scmp.eq.s32.totalorder %s33, 3
    %p413 = por %p411, %p412
    %p415 = scmp.ne.s32.totalorder %s400, %s414
    %p416 = scmp.eq.s32.totalorder %s33, 0
    %p417 = por %p415, %p416
    %s419 = sadd.s32 %s418, 1
    %p422 = scmp.eq.s32.totalorder %s27, 3
    %p423 = scmp.ne.s32.totalorder %s418, %s420
    %p424 = scmp.eq.s32.totalorder %s27, 0
    %p425 = por %p423, %p424
    %p426 = scmp.ne.s32.totalorder %s418, %s420
    %p427 = scmp.eq.s32.totalorder %s32, 3
    %p428 = por %p426, %p427
    %p429 = scmp.ne.s32.totalorder %s420, %s421
    %p430 = scmp.eq.s32.totalorder %s32, 0
    %p431 = por %p429, %p430
    %p432 = scmp.ne.s32.totalorder %s420, %s421
    %p433 = scmp.eq.s32.totalorder %s33, 3
    %p434 = por %p432, %p433
    %p436 = scmp.ne.s32.totalorder %s421, %s435
    %p437 = scmp.eq.s32.totalorder %s33, 0
    %p438 = por %p436, %p437
    %s440 = sadd.s32 %s439, 1
    %p443 = scmp.eq.s32.totalorder %s27, 3
    %p444 = scmp.ne.s32.totalorder %s439, %s441
    %p445 = scmp.eq.s32.totalorder %s27, 0
    %p446 = por %p444, %p445
    %p447 = scmp.ne.s32.totalorder %s439, %s441
    %p448 = scmp.eq.s32.totalorder %s32, 3
    %p449 = por %p447, %p448
    %p450 = scmp.ne.s32.totalorder %s441, %s442
    %p451 = scmp.eq.s32.totalorder %s32, 0
    %p452 = por %p450, %p451
    %p453 = scmp.ne.s32.totalorder %s441, %s442
    %p454 = scmp.eq.s32.totalorder %s33, 3
    %p455 = por %p453, %p454
    %p457 = scmp.ne.s32.totalorder %s442, %s456
    %p458 = scmp.eq.s32.totalorder %s33, 0
    %p459 = por %p457, %p458
    %s461 = sadd.s32 %s460, 1
    %p464 = scmp.eq.s32.totalorder %s27, 3
    %p465 = scmp.ne.s32.totalorder %s460, %s462
    %p466 = scmp.eq.s32.totalorder %s27, 0
    %p467 = por %p465, %p466
    %p468 = scmp.ne.s32.totalorder %s460, %s462
    %p469 = scmp.eq.s32.totalorder %s32, 3
    %p470 = por %p468, %p469
    %p471 = scmp.ne.s32.totalorder %s462, %s463
    %p472 = scmp.eq.s32.totalorder %s32, 0
    %p473 = por %p471, %p472
    %p474 = scmp.ne.s32.totalorder %s462, %s463
    %p475 = scmp.eq.s32.totalorder %s33, 3
    %p476 = por %p474, %p475
    %p478 = scmp.ne.s32.totalorder %s463, %s477
    %p479 = scmp.eq.s32.totalorder %s33, 0
    %p480 = por %p478, %p479
    %s481 = ssub.s32 %s27, %s34
    %p482 = scmp.eq.s32.totalorder %s481, 0
    %s484 = sadd.s32 %s483, 1
    %s485 = scalar_select %p482, %s483, %s484
    %p488 = pneg %p482
    %p489 = scmp.eq.s32.totalorder %s27, 3
    %p490 = por %p488, %p489
    %p491 = scmp.ne.s32.totalorder %s483, %s486
    %p492 = scmp.eq.s32.totalorder %s27, 0
    %p493 = por %p491, %p492
    %p494 = scmp.ne.s32.totalorder %s483, %s486
    %p495 = scmp.eq.s32.totalorder %s32, 3
    %p496 = por %p494, %p495
    %p497 = scmp.ne.s32.totalorder %s486, %s487
    %p498 = scmp.eq.s32.totalorder %s32, 0
    %p499 = por %p497, %p498
    %p500 = scmp.ne.s32.totalorder %s486, %s487
    %p501 = scmp.eq.s32.totalorder %s33, 3
    %p502 = por %p500, %p501
    %p504 = scmp.ne.s32.totalorder %s487, %s503
    %p505 = scmp.eq.s32.totalorder %s33, 0
    %p506 = por %p504, %p505
    %p507 = scmp.le.s32.totalorder 1, %s27
    %p508 = scmp.lt.s32.totalorder %s27, 5
    %p509 = pnand %p507, %p508
    %p510 = pneg %p509
    // Predicated region
    $region9: #{ae_forward.1} parent=5 // pred_check
      _
    $region10: #{ae_forward.1} parent=5 // pred_check_branch
      %512 = sbr.rel (%p509) target = $region12
    $region11: #{ae_forward.1} parent=5 // pred_region
      %s513 = ssub.s32 %s27, 1
      // Predicated region
      $region13: #{ae_forward.1} parent=11 // pred_check
        %p514 = pneg %p74
      $region14: #{ae_forward.1} parent=11 // pred_check_branch
        %516 = sbr.rel (%p514) target = $region16
      $region15: #{ae_forward.1} parent=11 // pred_region
        _
      $region16: #{ae_forward.1} parent=11 // pred_fallthru
        _
      // Predicated region
      $region17: #{ae_forward.1} parent=11 // pred_check
        %p517 = pneg %p95
      $region18: #{ae_forward.1} parent=11 // pred_check_branch
        %519 = sbr.rel (%p517) target = $region20
      $region19: #{ae_forward.1} parent=11 // pred_region
        _
      $region20: #{ae_forward.1} parent=11 // pred_fallthru
        _
      // Predicated region
      $region21: #{ae_forward.1} parent=11 // pred_check
        %p520 = pneg %p116
      $region22: #{ae_forward.1} parent=11 // pred_check_branch
        %522 = sbr.rel (%p520) target = $region24
      $region23: #{ae_forward.1} parent=11 // pred_region
        _
      $region24: #{ae_forward.1} parent=11 // pred_fallthru
        _
      // Predicated region
      $region25: #{ae_forward.1} parent=11 // pred_check
        %p523 = pneg %p137
      $region26: #{ae_forward.1} parent=11 // pred_check_branch
        %525 = sbr.rel (%p523) target = $region28
      $region27: #{ae_forward.1} parent=11 // pred_region
        _
      $region28: #{ae_forward.1} parent=11 // pred_fallthru
        _
      // Predicated region
      $region29: #{ae_forward.1} parent=11 // pred_check
        %p526 = pneg %p158
      $region30: #{ae_forward.1} parent=11 // pred_check_branch
        %528 = sbr.rel (%p526) target = $region32
      $region31: #{ae_forward.1} parent=11 // pred_region
        _
      $region32: #{ae_forward.1} parent=11 // pred_fallthru
        _
      // Predicated region
      $region33: #{ae_forward.1} parent=11 // pred_check
        %p529 = pneg %p179
      $region34: #{ae_forward.1} parent=11 // pred_check_branch
        %531 = sbr.rel (%p529) target = $region36
      $region35: #{ae_forward.1} parent=11 // pred_region
        _
      $region36: #{ae_forward.1} parent=11 // pred_fallthru
        _
      // Predicated region
      $region37: #{ae_forward.1} parent=11 // pred_check
        %p532 = pneg %p200
      $region38: #{ae_forward.1} parent=11 // pred_check_branch
        %534 = sbr.rel (%p532) target = $region40
      $region39: #{ae_forward.1} parent=11 // pred_region
        _
      $region40: #{ae_forward.1} parent=11 // pred_fallthru
        _
      // Predicated region
      $region41: #{ae_forward.1} parent=11 // pred_check
        %p535 = pneg %p221
      $region42: #{ae_forward.1} parent=11 // pred_check_branch
        %537 = sbr.rel (%p535) target = $region44
      $region43: #{ae_forward.1} parent=11 // pred_region
        _
      $region44: #{ae_forward.1} parent=11 // pred_fallthru
        _
      // Predicated region
      $region45: #{ae_forward.1} parent=11 // pred_check
        %p538 = pneg %p242
      $region46: #{ae_forward.1} parent=11 // pred_check_branch
        %540 = sbr.rel (%p538) target = $region48
      $region47: #{ae_forward.1} parent=11 // pred_region
        _
      $region48: #{ae_forward.1} parent=11 // pred_fallthru
        _
      // Predicated region
      $region49: #{ae_forward.1} parent=11 // pred_check
        %p541 = pneg %p263
      $region50: #{ae_forward.1} parent=11 // pred_check_branch
        %543 = sbr.rel (%p541) target = $region52
      $region51: #{ae_forward.1} parent=11 // pred_region
        _
      $region52: #{ae_forward.1} parent=11 // pred_fallthru
        _
      // Predicated region
      $region53: #{ae_forward.1} parent=11 // pred_check
        %p544 = pneg %p284
      $region54: #{ae_forward.1} parent=11 // pred_check_branch
        %546 = sbr.rel (%p544) target = $region56
      $region55: #{ae_forward.1} parent=11 // pred_region
        _
      $region56: #{ae_forward.1} parent=11 // pred_fallthru
        _
      // Predicated region
      $region57: #{ae_forward.1} parent=11 // pred_check
        %p547 = pneg %p305
      $region58: #{ae_forward.1} parent=11 // pred_check_branch
        %549 = sbr.rel (%p547) target = $region60
      $region59: #{ae_forward.1} parent=11 // pred_region
        _
      $region60: #{ae_forward.1} parent=11 // pred_fallthru
        _
      // Predicated region
      $region61: #{ae_forward.1} parent=11 // pred_check
        %p550 = pneg %p326
      $region62: #{ae_forward.1} parent=11 // pred_check_branch
        %552 = sbr.rel (%p550) target = $region64
      $region63: #{ae_forward.1} parent=11 // pred_region
        _
      $region64: #{ae_forward.1} parent=11 // pred_fallthru
        _
      // Predicated region
      $region65: #{ae_forward.1} parent=11 // pred_check
        %p553 = pneg %p347
      $region66: #{ae_forward.1} parent=11 // pred_check_branch
        %555 = sbr.rel (%p553) target = $region68
      $region67: #{ae_forward.1} parent=11 // pred_region
        _
      $region68: #{ae_forward.1} parent=11 // pred_fallthru
        _
      // Predicated region
      $region69: #{ae_forward.1} parent=11 // pred_check
        %p556 = pneg %p368
      $region70: #{ae_forward.1} parent=11 // pred_check_branch
        %558 = sbr.rel (%p556) target = $region72
      $region71: #{ae_forward.1} parent=11 // pred_region
        _
      $region72: #{ae_forward.1} parent=11 // pred_fallthru
        _
      // Predicated region
      $region73: #{ae_forward.1} parent=11 // pred_check
        %p559 = pneg %p389
      $region74: #{ae_forward.1} parent=11 // pred_check_branch
        %561 = sbr.rel (%p559) target = $region76
      $region75: #{ae_forward.1} parent=11 // pred_region
        _
      $region76: #{ae_forward.1} parent=11 // pred_fallthru
        _
      // Predicated region
      $region77: #{ae_forward.1} parent=11 // pred_check
        %p562 = pneg %p410
      $region78: #{ae_forward.1} parent=11 // pred_check_branch
        %564 = sbr.rel (%p562) target = $region80
      $region79: #{ae_forward.1} parent=11 // pred_region
        _
      $region80: #{ae_forward.1} parent=11 // pred_fallthru
        _
      // Predicated region
      $region81: #{ae_forward.1} parent=11 // pred_check
        %p565 = pneg %p431
      $region82: #{ae_forward.1} parent=11 // pred_check_branch
        %567 = sbr.rel (%p565) target = $region84
      $region83: #{ae_forward.1} parent=11 // pred_region
        _
      $region84: #{ae_forward.1} parent=11 // pred_fallthru
        _
      // Predicated region
      $region85: #{ae_forward.1} parent=11 // pred_check
        %p568 = pneg %p452
      $region86: #{ae_forward.1} parent=11 // pred_check_branch
        %570 = sbr.rel (%p568) target = $region88
      $region87: #{ae_forward.1} parent=11 // pred_region
        _
      $region88: #{ae_forward.1} parent=11 // pred_fallthru
        _
      // Predicated region
      $region89: #{ae_forward.1} parent=11 // pred_check
        %p571 = pneg %p473
      $region90: #{ae_forward.1} parent=11 // pred_check_branch
        %573 = sbr.rel (%p571) target = $region92
      $region91: #{ae_forward.1} parent=11 // pred_region
        _
      $region92: #{ae_forward.1} parent=11 // pred_fallthru
        _
    $region12: #{ae_forward.1} parent=5 // pred_fallthru
      _
    %p574 = scmp.lt.s32.totalorder %s27, 4
    // Predicated region
    $region93: #{ae_forward.1} parent=5 // pred_check
      %p575 = pneg %p574
    $region94: #{ae_forward.1} parent=5 // pred_check_branch
      %577 = sbr.rel (%p575) target = $region96
    $region95: #{ae_forward.1} parent=5 // pred_region
      // Predicated region
      $region97: #{ae_forward.1} parent=95 // pred_check
        %p578 = pneg %p47
      $region98: #{ae_forward.1} parent=95 // pred_check_branch
        %580 = sbr.rel (%p578) target = $region100
      $region99: #{ae_forward.1} parent=95 // pred_region
        %s581 = smul.u32 32, %s27
        %p582 = scmp.lt.s32.totalorder %s581, 127
        %s583 = scalar_select %p582, %s581, 127
        %s584 = smul.addr %s583, 7
        %s585 = smul.addr %s584, 8
        %s586 = scalar_lea.vmem %s0, %s585
        %s587 = smul.u32 32, %s27
      $region100: #{ae_forward.1} parent=95 // pred_fallthru
        _
    $region96: #{ae_forward.1} parent=5 // pred_fallthru
      _
    %p588 = scmp.le.s32.totalorder 1, %s27
    %p589 = scmp.lt.s32.totalorder %s27, 5
    %p590 = pnand %p588, %p589
    %p591 = pneg %p590
    // Predicated region
    $region101: #{ae_forward.1} parent=5 // pred_check
      _
    $region102: #{ae_forward.1} parent=5 // pred_check_branch
      %593 = sbr.rel (%p590) target = $region104
    $region103: #{ae_forward.1} parent=5 // pred_region
      %s594 = ssub.s32 %s27, 1
      %s595 = smul.u32 32, %s32
      %p596 = scmp.lt.s32.totalorder %s595, 127
      %s597 = scalar_select %p596, %s595, 127
      %s598 = smul.addr %s597, 7
      %s599 = smul.addr %s598, 8
      %s600 = scalar_lea.vmem %s0, %s599
      %p601 = pneg %p53
      %p602 = pneg %p50
      %p603 = pneg %p74
      %p604 = pneg %p71
      %p605 = pneg %p95
      %p606 = pneg %p92
      %p607 = pneg %p116
      %p608 = pneg %p113
      %p609 = pneg %p137
      %p610 = pneg %p134
      %p611 = pneg %p158
      %p612 = pneg %p155
      %p613 = pneg %p179
      %p614 = pneg %p176
      %p615 = pneg %p200
      %p616 = pneg %p197
      %p617 = pneg %p221
      %p618 = pneg %p218
      %p619 = pneg %p242
      %p620 = pneg %p239
      %p621 = pneg %p263
      %p622 = pneg %p260
      %p623 = pneg %p284
      %p624 = pneg %p281
      %p625 = pneg %p305
      %p626 = pneg %p302
      %p627 = pneg %p326
      %p628 = pneg %p323
      %p629 = pneg %p347
      %p630 = pneg %p344
      %p631 = pneg %p368
      %p632 = pneg %p365
      %p633 = pneg %p389
      %p634 = pneg %p386
      %p635 = pneg %p410
      %p636 = pneg %p407
      %p637 = pneg %p431
      %p638 = pneg %p428
      %p639 = pneg %p452
      %p640 = pneg %p449
      %p641 = pneg %p473
      %p642 = pneg %p470
      %p643 = pneg %p499
      %p644 = pneg %p496
      %s645 = smul.u32 32, %s32
      %p646 = scmp.lt.s32.totalorder %s645, 127
      %s647 = scalar_select %p646, %s645, 127
      %s648 = smul.addr %s647, 7
      %s649 = smul.addr %s648, 8
      %s650 = scalar_lea.vmem %s21, %s649
      %s651 = smul.u32 32, %s32
      %p652 = scmp.lt.s32.totalorder %s651, 127
      %s653 = scalar_select %p652, %s651, 127
      %s654 = smul.addr %s653, 7
      %s655 = smul.addr %s654, 8
      %s656 = scalar_lea.vmem %s0, %s655
      %s657 = smul.u32 32, %s32
      %s658 = smul.u32 32, %s32
      %p659 = scmp.lt.s32.totalorder %s658, 127
      %s660 = scalar_select %p659, %s658, 127
      %s661 = smul.addr %s660, 7
      %s662 = smul.addr %s661, 8
      %s663 = scalar_lea.vmem %s21, %s662
      %s664 = smul.u32 32, %s32
      %v666 = vld [vmem:[%s656] sm:$0xff]
      %v667 = vld [vmem:[%s656 + $0x8] sm:$0xff]
      %v668 = vld [vmem:[%s656 + $0x10] sm:$0xff]
      %v669 = vld [vmem:[%s656 + $0x18] sm:$0xff]
      %v670 = vld [vmem:[%s656 + $0x20] sm:$0xff]
      %v671 = vld [vmem:[%s656 + $0x28] sm:$0xff]
      %v672 = vld [vmem:[%s656 + $0x30] sm:$0xff]
      %v673 = vld [vmem:[%s656 + $0x38] sm:$0xff]
      %v674 = vld [vmem:[%s656 + $0x40] sm:$0xff]
      %v675 = vld [vmem:[%s656 + $0x48] sm:$0xff]
      %v676 = vld [vmem:[%s656 + $0x50] sm:$0xff]
      %v677 = vld [vmem:[%s656 + $0x58] sm:$0xff]
      %v678 = vld [vmem:[%s656 + $0x60] sm:$0xff]
      %v679 = vld [vmem:[%s656 + $0x68] sm:$0xff]
      %v680 = vld [vmem:[%s656 + $0x70] sm:$0xff]
      %v681 = vld [vmem:[%s656 + $0x78] sm:$0xff]
      %v682 = vld [vmem:[%s656 + $0x80] sm:$0xff]
      %v683 = vld [vmem:[%s656 + $0x88] sm:$0xff]
      %v684 = vld [vmem:[%s656 + $0x90] sm:$0xff]
      %v685 = vld [vmem:[%s656 + $0x98] sm:$0xff]
      %v686 = vld [vmem:[%s656 + $0xa0] sm:$0xff]
      %v687 = vld [vmem:[%s656 + $0xa8] sm:$0xff]
      %v688 = vld [vmem:[%s656 + $0xb0] sm:$0xff]
      %v689 = vld [vmem:[%s656 + $0xb8] sm:$0xff]
      %v690 = vld [vmem:[%s656 + $0xc0] sm:$0xff]
      %v691 = vld [vmem:[%s656 + $0xc8] sm:$0xff]
      %v692 = vld [vmem:[%s656 + $0xd0] sm:$0xff]
      %v693 = vld [vmem:[%s656 + $0xd8] sm:$0xff]
      %v694 = vld [vmem:[%s656 + $0xe0] sm:$0xff]
      %v695 = vld [vmem:[%s656 + $0xe8] sm:$0xff]
      %v696 = vld [vmem:[%s656 + $0xf0] sm:$0xff]
      %v697 = vld [vmem:[%s656 + $0xf8] sm:$0xff]
      %v698 = vld [vmem:[%s656 + $0x100] sm:$0xff]
      %v699 = vld [vmem:[%s656 + $0x108] sm:$0xff]
      %v700 = vld [vmem:[%s656 + $0x110] sm:$0xff]
      %v701 = vld [vmem:[%s656 + $0x118] sm:$0xff]
      %v702 = vld [vmem:[%s656 + $0x120] sm:$0xff]
      %v703 = vld [vmem:[%s656 + $0x128] sm:$0xff]
      %v704 = vld [vmem:[%s656 + $0x130] sm:$0xff]
      %v705 = vld [vmem:[%s656 + $0x138] sm:$0xff]
      %v706 = vld [vmem:[%s656 + $0x140] sm:$0xff]
      %v707 = vld [vmem:[%s656 + $0x148] sm:$0xff]
      %v708 = vld [vmem:[%s656 + $0x150] sm:$0xff]
      %v709 = vld [vmem:[%s656 + $0x158] sm:$0xff]
      %v710 = vld [vmem:[%s656 + $0x160] sm:$0xff]
      %v711 = vld [vmem:[%s656 + $0x168] sm:$0xff]
      %v712 = vld [vmem:[%s656 + $0x170] sm:$0xff]
      %v713 = vld [vmem:[%s656 + $0x178] sm:$0xff]
      %v714 = vld [vmem:[%s656 + $0x180] sm:$0xff]
      %v715 = vld [vmem:[%s656 + $0x188] sm:$0xff]
      %v716 = vld [vmem:[%s656 + $0x190] sm:$0xff]
      %v717 = vld [vmem:[%s656 + $0x198] sm:$0xff]
      %v718 = vld [vmem:[%s656 + $0x1a0] sm:$0xff]
      %v719 = vld [vmem:[%s656 + $0x1a8] sm:$0xff]
      %v720 = vld [vmem:[%s656 + $0x1b0] sm:$0xff]
      %v721 = vld [vmem:[%s656 + $0x1b8] sm:$0xff]
      %v722 = vld [vmem:[%s656 + $0x1c0] sm:$0xff]
      %v723 = vld [vmem:[%s656 + $0x1c8] sm:$0xff]
      %v724 = vld [vmem:[%s656 + $0x1d0] sm:$0xff]
      %v725 = vld [vmem:[%s656 + $0x1d8] sm:$0xff]
      %v726 = vld [vmem:[%s656 + $0x1e0] sm:$0xff]
      %v727 = vld [vmem:[%s656 + $0x1e8] sm:$0xff]
      %v728 = vld [vmem:[%s656 + $0x1f0] sm:$0xff]
      %v729 = vld [vmem:[%s656 + $0x1f8] sm:$0xff]
      %v730 = vld [vmem:[%s656 + $0x200] sm:$0xff]
      %v731 = vld [vmem:[%s656 + $0x208] sm:$0xff]
      %v732 = vld [vmem:[%s656 + $0x210] sm:$0xff]
      %v733 = vld [vmem:[%s656 + $0x218] sm:$0xff]
      %v734 = vld [vmem:[%s656 + $0x220] sm:$0xff]
      %v735 = vld [vmem:[%s656 + $0x228] sm:$0xff]
      %v736 = vld [vmem:[%s656 + $0x230] sm:$0xff]
      %v737 = vld [vmem:[%s656 + $0x238] sm:$0xff]
      %v738 = vld [vmem:[%s656 + $0x240] sm:$0xff]
      %v739 = vld [vmem:[%s656 + $0x248] sm:$0xff]
      %v740 = vld [vmem:[%s656 + $0x250] sm:$0xff]
      %v741 = vld [vmem:[%s656 + $0x258] sm:$0xff]
      %v742 = vld [vmem:[%s656 + $0x260] sm:$0xff]
      %v743 = vld [vmem:[%s656 + $0x268] sm:$0xff]
      %v744 = vld [vmem:[%s656 + $0x270] sm:$0xff]
      %v745 = vld [vmem:[%s656 + $0x278] sm:$0xff]
      %v746 = vld [vmem:[%s656 + $0x280] sm:$0xff]
      %v747 = vld [vmem:[%s656 + $0x288] sm:$0xff]
      %v748 = vld [vmem:[%s656 + $0x290] sm:$0xff]
      %v749 = vld [vmem:[%s656 + $0x298] sm:$0xff]
      %v750 = vld [vmem:[%s656 + $0x2a0] sm:$0xff]
      %v751 = vld [vmem:[%s656 + $0x2a8] sm:$0xff]
      %v752 = vld [vmem:[%s656 + $0x2b0] sm:$0xff]
      %v753 = vld [vmem:[%s656 + $0x2b8] sm:$0xff]
      %v754 = vld [vmem:[%s656 + $0x2c0] sm:$0xff]
      %v755 = vld [vmem:[%s656 + $0x2c8] sm:$0xff]
      %v756 = vld [vmem:[%s656 + $0x2d0] sm:$0xff]
      %v757 = vld [vmem:[%s656 + $0x2d8] sm:$0xff]
      %v758 = vld [vmem:[%s656 + $0x2e0] sm:$0xff]
      %v759 = vld [vmem:[%s656 + $0x2e8] sm:$0xff]
      %v760 = vld [vmem:[%s656 + $0x2f0] sm:$0xff]
      %v761 = vld [vmem:[%s656 + $0x2f8] sm:$0xff]
      %v762 = vld [vmem:[%s656 + $0x300] sm:$0xff]
      %v763 = vld [vmem:[%s656 + $0x308] sm:$0xff]
      %v764 = vld [vmem:[%s656 + $0x310] sm:$0xff]
      %v765 = vld [vmem:[%s656 + $0x318] sm:$0xff]
      %v766 = vld [vmem:[%s656 + $0x320] sm:$0xff]
      %v767 = vld [vmem:[%s656 + $0x328] sm:$0xff]
      %v768 = vld [vmem:[%s656 + $0x330] sm:$0xff]
      %v769 = vld [vmem:[%s656 + $0x338] sm:$0xff]
      %v770 = vld [vmem:[%s656 + $0x340] sm:$0xff]
      %v771 = vld [vmem:[%s656 + $0x348] sm:$0xff]
      %v772 = vld [vmem:[%s656 + $0x350] sm:$0xff]
      %v773 = vld [vmem:[%s656 + $0x358] sm:$0xff]
      %v774 = vld [vmem:[%s656 + $0x360] sm:$0xff]
      %v775 = vld [vmem:[%s656 + $0x368] sm:$0xff]
      %v776 = vld [vmem:[%s656 + $0x370] sm:$0xff]
      %v777 = vld [vmem:[%s656 + $0x378] sm:$0xff]
      %v778 = vld [vmem:[%s656 + $0x380] sm:$0xff]
      %v779 = vld [vmem:[%s656 + $0x388] sm:$0xff]
      %v780 = vld [vmem:[%s656 + $0x390] sm:$0xff]
      %v781 = vld [vmem:[%s656 + $0x398] sm:$0xff]
      %v782 = vld [vmem:[%s656 + $0x3a0] sm:$0xff]
      %v783 = vld [vmem:[%s656 + $0x3a8] sm:$0xff]
      %v784 = vld [vmem:[%s656 + $0x3b0] sm:$0xff]
      %v785 = vld [vmem:[%s656 + $0x3b8] sm:$0xff]
      %v786 = vld [vmem:[%s656 + $0x3c0] sm:$0xff]
      %v787 = vld [vmem:[%s656 + $0x3c8] sm:$0xff]
      %v788 = vld [vmem:[%s656 + $0x3d0] sm:$0xff]
      %v789 = vld [vmem:[%s656 + $0x3d8] sm:$0xff]
      %v790 = vld [vmem:[%s656 + $0x3e0] sm:$0xff]
      %v791 = vld [vmem:[%s656 + $0x3e8] sm:$0xff]
      %v792 = vld [vmem:[%s656 + $0x3f0] sm:$0xff]
      %v793 = vld [vmem:[%s656 + $0x3f8] sm:$0xff]
      %v794 = vld [vmem:[%s656 + $0x400] sm:$0xff]
      %v795 = vld [vmem:[%s656 + $0x408] sm:$0xff]
      %v796 = vld [vmem:[%s656 + $0x410] sm:$0xff]
      %v797 = vld [vmem:[%s656 + $0x418] sm:$0xff]
      %v798 = vld [vmem:[%s656 + $0x420] sm:$0xff]
      %v799 = vld [vmem:[%s656 + $0x428] sm:$0xff]
      %v800 = vld [vmem:[%s656 + $0x430] sm:$0xff]
      %v801 = vld [vmem:[%s656 + $0x438] sm:$0xff]
      %v802 = vld [vmem:[%s656 + $0x440] sm:$0xff]
      %v803 = vld [vmem:[%s656 + $0x448] sm:$0xff]
      %v804 = vld [vmem:[%s656 + $0x450] sm:$0xff]
      %v805 = vld [vmem:[%s656 + $0x458] sm:$0xff]
      %v806 = vld [vmem:[%s656 + $0x460] sm:$0xff]
      %v807 = vld [vmem:[%s656 + $0x468] sm:$0xff]
      %v808 = vld [vmem:[%s656 + $0x470] sm:$0xff]
      %v809 = vld [vmem:[%s656 + $0x478] sm:$0xff]
      %v810 = vld [vmem:[%s656 + $0x480] sm:$0xff]
      %v811 = vld [vmem:[%s656 + $0x488] sm:$0xff]
      %v812 = vld [vmem:[%s656 + $0x490] sm:$0xff]
      %v813 = vld [vmem:[%s656 + $0x498] sm:$0xff]
      %v814 = vld [vmem:[%s656 + $0x4a0] sm:$0xff]
      %v815 = vld [vmem:[%s656 + $0x4a8] sm:$0xff]
      %v816 = vld [vmem:[%s656 + $0x4b0] sm:$0xff]
      %v817 = vld [vmem:[%s656 + $0x4b8] sm:$0xff]
      %v818 = vld [vmem:[%s656 + $0x4c0] sm:$0xff]
      %v819 = vld [vmem:[%s656 + $0x4c8] sm:$0xff]
      %v820 = vld [vmem:[%s656 + $0x4d0] sm:$0xff]
      %v821 = vld [vmem:[%s656 + $0x4d8] sm:$0xff]
      %v822 = vld [vmem:[%s656 + $0x4e0] sm:$0xff]
      %v823 = vld [vmem:[%s656 + $0x4e8] sm:$0xff]
      %v824 = vld [vmem:[%s656 + $0x4f0] sm:$0xff]
      %v825 = vld [vmem:[%s656 + $0x4f8] sm:$0xff]
      %v826 = vld [vmem:[%s656 + $0x500] sm:$0xff]
      %v827 = vld [vmem:[%s656 + $0x508] sm:$0xff]
      %v828 = vld [vmem:[%s656 + $0x510] sm:$0xff]
      %v829 = vld [vmem:[%s656 + $0x518] sm:$0xff]
      %v830 = vld [vmem:[%s656 + $0x520] sm:$0xff]
      %v831 = vld [vmem:[%s656 + $0x528] sm:$0xff]
      %v832 = vld [vmem:[%s656 + $0x530] sm:$0xff]
      %v833 = vld [vmem:[%s656 + $0x538] sm:$0xff]
      %v834 = vld [vmem:[%s656 + $0x540] sm:$0xff]
      %v835 = vld [vmem:[%s656 + $0x548] sm:$0xff]
      %v836 = vld [vmem:[%s656 + $0x550] sm:$0xff]
      %v837 = vld [vmem:[%s656 + $0x558] sm:$0xff]
      %v838 = vld [vmem:[%s656 + $0x560] sm:$0xff]
      %v839 = vld [vmem:[%s656 + $0x568] sm:$0xff]
      %v840 = vld [vmem:[%s656 + $0x570] sm:$0xff]
      %v841 = vld [vmem:[%s656 + $0x578] sm:$0xff]
      %v842 = vld [vmem:[%s656 + $0x580] sm:$0xff]
      %v843 = vld [vmem:[%s656 + $0x588] sm:$0xff]
      %v844 = vld [vmem:[%s656 + $0x590] sm:$0xff]
      %v845 = vld [vmem:[%s656 + $0x598] sm:$0xff]
      %v846 = vld [vmem:[%s656 + $0x5a0] sm:$0xff]
      %v847 = vld [vmem:[%s656 + $0x5a8] sm:$0xff]
      %v848 = vld [vmem:[%s656 + $0x5b0] sm:$0xff]
      %v849 = vld [vmem:[%s656 + $0x5b8] sm:$0xff]
      %v850 = vld [vmem:[%s656 + $0x5c0] sm:$0xff]
      %v851 = vld [vmem:[%s656 + $0x5c8] sm:$0xff]
      %v852 = vld [vmem:[%s656 + $0x5d0] sm:$0xff]
      %v853 = vld [vmem:[%s656 + $0x5d8] sm:$0xff]
      %v854 = vld [vmem:[%s656 + $0x5e0] sm:$0xff]
      %v855 = vld [vmem:[%s656 + $0x5e8] sm:$0xff]
      %v856 = vld [vmem:[%s656 + $0x5f0] sm:$0xff]
      %v857 = vld [vmem:[%s656 + $0x5f8] sm:$0xff]
      %v858 = vld [vmem:[%s656 + $0x600] sm:$0xff]
      %v859 = vld [vmem:[%s656 + $0x608] sm:$0xff]
      %v860 = vld [vmem:[%s656 + $0x610] sm:$0xff]
      %v861 = vld [vmem:[%s656 + $0x618] sm:$0xff]
      %v862 = vld [vmem:[%s656 + $0x620] sm:$0xff]
      %v863 = vld [vmem:[%s656 + $0x628] sm:$0xff]
      %v864 = vld [vmem:[%s656 + $0x630] sm:$0xff]
      %v865 = vld [vmem:[%s656 + $0x638] sm:$0xff]
      %v866 = vld [vmem:[%s656 + $0x640] sm:$0xff]
      %v867 = vld [vmem:[%s656 + $0x648] sm:$0xff]
      %v868 = vld [vmem:[%s656 + $0x650] sm:$0xff]
      %v869 = vld [vmem:[%s656 + $0x658] sm:$0xff]
      %v870 = vld [vmem:[%s656 + $0x660] sm:$0xff]
      %v871 = vld [vmem:[%s656 + $0x668] sm:$0xff]
      %v872 = vld [vmem:[%s656 + $0x670] sm:$0xff]
      %v873 = vld [vmem:[%s656 + $0x678] sm:$0xff]
      %v874 = vld [vmem:[%s656 + $0x680] sm:$0xff]
      %v875 = vld [vmem:[%s656 + $0x688] sm:$0xff]
      %v876 = vld [vmem:[%s656 + $0x690] sm:$0xff]
      %v877 = vld [vmem:[%s656 + $0x698] sm:$0xff]
      %v878 = vld [vmem:[%s656 + $0x6a0] sm:$0xff]
      %v879 = vld [vmem:[%s656 + $0x6a8] sm:$0xff]
      %v880 = vld [vmem:[%s656 + $0x6b0] sm:$0xff]
      %v881 = vld [vmem:[%s656 + $0x6b8] sm:$0xff]
      %v882 = vld [vmem:[%s656 + $0x6c0] sm:$0xff]
      %v883 = vld [vmem:[%s656 + $0x6c8] sm:$0xff]
      %v884 = vld [vmem:[%s656 + $0x6d0] sm:$0xff]
      %v885 = vld [vmem:[%s656 + $0x6d8] sm:$0xff]
      %v886 = vld [vmem:[%s656 + $0x6e0] sm:$0xff]
      %v887 = vld [vmem:[%s656 + $0x6e8] sm:$0xff]
      %v888 = vld [vmem:[%s656 + $0x6f0] sm:$0xff]
      %v889 = vld [vmem:[%s656 + $0x6f8] sm:$0xff]
      %v890 = vpack.c.bf16 %v673, %v666
      %v891 = vpack.c.bf16 %v674, %v667
      %v892 = vpack.c.bf16 %v675, %v668
      %v893 = vpack.c.bf16 %v676, %v669
      %v894 = vpack.c.bf16 %v677, %v670
      %v895 = vpack.c.bf16 %v678, %v671
      %v896 = vpack.c.bf16 %v679, %v672
      %v897 = vpack.c.bf16 %v687, %v680
      %v898 = vpack.c.bf16 %v688, %v681
      %v899 = vpack.c.bf16 %v689, %v682
      %v900 = vpack.c.bf16 %v690, %v683
      %v901 = vpack.c.bf16 %v691, %v684
      %v902 = vpack.c.bf16 %v692, %v685
      %v903 = vpack.c.bf16 %v693, %v686
      %v904 = vpack.c.bf16 %v701, %v694
      %v905 = vpack.c.bf16 %v702, %v695
      %v906 = vpack.c.bf16 %v703, %v696
      %v907 = vpack.c.bf16 %v704, %v697
      %v908 = vpack.c.bf16 %v705, %v698
      %v909 = vpack.c.bf16 %v706, %v699
      %v910 = vpack.c.bf16 %v707, %v700
      %v911 = vpack.c.bf16 %v715, %v708
      %v912 = vpack.c.bf16 %v716, %v709
      %v913 = vpack.c.bf16 %v717, %v710
      %v914 = vpack.c.bf16 %v718, %v711
      %v915 = vpack.c.bf16 %v719, %v712
      %v916 = vpack.c.bf16 %v720, %v713
      %v917 = vpack.c.bf16 %v721, %v714
      %v918 = vpack.c.bf16 %v729, %v722
      %v919 = vpack.c.bf16 %v730, %v723
      %v920 = vpack.c.bf16 %v731, %v724
      %v921 = vpack.c.bf16 %v732, %v725
      %v922 = vpack.c.bf16 %v733, %v726
      %v923 = vpack.c.bf16 %v734, %v727
      %v924 = vpack.c.bf16 %v735, %v728
      %v925 = vpack.c.bf16 %v743, %v736
      %v926 = vpack.c.bf16 %v744, %v737
      %v927 = vpack.c.bf16 %v745, %v738
      %v928 = vpack.c.bf16 %v746, %v739
      %v929 = vpack.c.bf16 %v747, %v740
      %v930 = vpack.c.bf16 %v748, %v741
      %v931 = vpack.c.bf16 %v749, %v742
      %v932 = vpack.c.bf16 %v757, %v750
      %v933 = vpack.c.bf16 %v758, %v751
      %v934 = vpack.c.bf16 %v759, %v752
      %v935 = vpack.c.bf16 %v760, %v753
      %v936 = vpack.c.bf16 %v761, %v754
      %v937 = vpack.c.bf16 %v762, %v755
      %v938 = vpack.c.bf16 %v763, %v756
      %v939 = vpack.c.bf16 %v771, %v764
      %v940 = vpack.c.bf16 %v772, %v765
      %v941 = vpack.c.bf16 %v773, %v766
      %v942 = vpack.c.bf16 %v774, %v767
      %v943 = vpack.c.bf16 %v775, %v768
      %v944 = vpack.c.bf16 %v776, %v769
      %v945 = vpack.c.bf16 %v777, %v770
      %v946 = vpack.c.bf16 %v785, %v778
      %v947 = vpack.c.bf16 %v786, %v779
      %v948 = vpack.c.bf16 %v787, %v780
      %v949 = vpack.c.bf16 %v788, %v781
      %v950 = vpack.c.bf16 %v789, %v782
      %v951 = vpack.c.bf16 %v790, %v783
      %v952 = vpack.c.bf16 %v791, %v784
      %v953 = vpack.c.bf16 %v799, %v792
      %v954 = vpack.c.bf16 %v800, %v793
      %v955 = vpack.c.bf16 %v801, %v794
      %v956 = vpack.c.bf16 %v802, %v795
      %v957 = vpack.c.bf16 %v803, %v796
      %v958 = vpack.c.bf16 %v804, %v797
      %v959 = vpack.c.bf16 %v805, %v798
      %v960 = vpack.c.bf16 %v813, %v806
      %v961 = vpack.c.bf16 %v814, %v807
      %v962 = vpack.c.bf16 %v815, %v808
      %v963 = vpack.c.bf16 %v816, %v809
      %v964 = vpack.c.bf16 %v817, %v810
      %v965 = vpack.c.bf16 %v818, %v811
      %v966 = vpack.c.bf16 %v819, %v812
      %v967 = vpack.c.bf16 %v827, %v820
      %v968 = vpack.c.bf16 %v828, %v821
      %v969 = vpack.c.bf16 %v829, %v822
      %v970 = vpack.c.bf16 %v830, %v823
      %v971 = vpack.c.bf16 %v831, %v824
      %v972 = vpack.c.bf16 %v832, %v825
      %v973 = vpack.c.bf16 %v833, %v826
      %v974 = vpack.c.bf16 %v841, %v834
      %v975 = vpack.c.bf16 %v842, %v835
      %v976 = vpack.c.bf16 %v843, %v836
      %v977 = vpack.c.bf16 %v844, %v837
      %v978 = vpack.c.bf16 %v845, %v838
      %v979 = vpack.c.bf16 %v846, %v839
      %v980 = vpack.c.bf16 %v847, %v840
      %v981 = vpack.c.bf16 %v855, %v848
      %v982 = vpack.c.bf16 %v856, %v849
      %v983 = vpack.c.bf16 %v857, %v850
      %v984 = vpack.c.bf16 %v858, %v851
      %v985 = vpack.c.bf16 %v859, %v852
      %v986 = vpack.c.bf16 %v860, %v853
      %v987 = vpack.c.bf16 %v861, %v854
      %v988 = vpack.c.bf16 %v869, %v862
      %v989 = vpack.c.bf16 %v870, %v863
      %v990 = vpack.c.bf16 %v871, %v864
      %v991 = vpack.c.bf16 %v872, %v865
      %v992 = vpack.c.bf16 %v873, %v866
      %v993 = vpack.c.bf16 %v874, %v867
      %v994 = vpack.c.bf16 %v875, %v868
      %v995 = vpack.c.bf16 %v883, %v876
      %v996 = vpack.c.bf16 %v884, %v877
      %v997 = vpack.c.bf16 %v885, %v878
      %v998 = vpack.c.bf16 %v886, %v879
      %v999 = vpack.c.bf16 %v887, %v880
      %v1000 = vpack.c.bf16 %v888, %v881
      %v1001 = vpack.c.bf16 %v889, %v882
      %v1002 = vld [vmem:[%s1] sm:$0xff]
      %v1003 = vld [vmem:[%s1 + $0x8] sm:$0xff]
      %v1004 = vld [vmem:[%s1 + $0x10] sm:$0xff]
      %v1005 = vld [vmem:[%s1 + $0x18] sm:$0xff]
      %v1006 = vld [vmem:[%s1 + $0x20] sm:$0xff]
      %v1007 = vld [vmem:[%s1 + $0x28] sm:$0xff]
      %v1008 = vld [vmem:[%s1 + $0x30] sm:$0xff]
      %v1009 = vld [vmem:[%s1 + $0x38] sm:$0xff]
      %v1010 = vld [vmem:[%s1 + $0x40] sm:$0xff]
      %v1011 = vld [vmem:[%s1 + $0x48] sm:$0xff]
      %v1012 = vld [vmem:[%s1 + $0x50] sm:$0xff]
      %v1013 = vld [vmem:[%s1 + $0x58] sm:$0xff]
      %v1014 = vld [vmem:[%s1 + $0x60] sm:$0xff]
      %v1015 = vld [vmem:[%s1 + $0x68] sm:$0xff]
      %v1016 = vld [vmem:[%s1 + $0x70] sm:$0xff]
      %v1017 = vld [vmem:[%s1 + $0x78] sm:$0xff]
      %v1018 = vld [vmem:[%s1 + $0x80] sm:$0xff]
      %v1019 = vld [vmem:[%s1 + $0x88] sm:$0xff]
      %v1020 = vld [vmem:[%s1 + $0x90] sm:$0xff]
      %v1021 = vld [vmem:[%s1 + $0x98] sm:$0xff]
      %v1022 = vld [vmem:[%s1 + $0xa0] sm:$0xff]
      %v1023 = vld [vmem:[%s1 + $0xa8] sm:$0xff]
      %v1024 = vld [vmem:[%s1 + $0xb0] sm:$0xff]
      %v1025 = vld [vmem:[%s1 + $0xb8] sm:$0xff]
      %v1026 = vld [vmem:[%s1 + $0xc0] sm:$0xff]
      %v1027 = vld [vmem:[%s1 + $0xc8] sm:$0xff]
      %v1028 = vld [vmem:[%s1 + $0xd0] sm:$0xff]
      %v1029 = vld [vmem:[%s1 + $0xd8] sm:$0xff]
      %v1030 = vld [vmem:[%s1 + $0xe0] sm:$0xff]
      %v1031 = vld [vmem:[%s1 + $0xe8] sm:$0xff]
      %v1032 = vld [vmem:[%s1 + $0xf0] sm:$0xff]
      %v1033 = vld [vmem:[%s1 + $0xf8] sm:$0xff]
      %v1034 = vld [vmem:[%s1 + $0x100] sm:$0xff]
      %v1035 = vld [vmem:[%s1 + $0x108] sm:$0xff]
      %v1036 = vld [vmem:[%s1 + $0x110] sm:$0xff]
      %v1037 = vld [vmem:[%s1 + $0x118] sm:$0xff]
      %v1038 = vld [vmem:[%s1 + $0x120] sm:$0xff]
      %v1039 = vld [vmem:[%s1 + $0x128] sm:$0xff]
      %v1040 = vld [vmem:[%s1 + $0x130] sm:$0xff]
      %v1041 = vld [vmem:[%s1 + $0x138] sm:$0xff]
      %v1042 = vld [vmem:[%s1 + $0x140] sm:$0xff]
      %v1043 = vld [vmem:[%s1 + $0x148] sm:$0xff]
      %v1044 = vld [vmem:[%s1 + $0x150] sm:$0xff]
      %v1045 = vld [vmem:[%s1 + $0x158] sm:$0xff]
      %v1046 = vld [vmem:[%s1 + $0x160] sm:$0xff]
      %v1047 = vld [vmem:[%s1 + $0x168] sm:$0xff]
      %v1048 = vld [vmem:[%s1 + $0x170] sm:$0xff]
      %v1049 = vld [vmem:[%s1 + $0x178] sm:$0xff]
      %v1050 = vld [vmem:[%s1 + $0x180] sm:$0xff]
      %v1051 = vld [vmem:[%s1 + $0x188] sm:$0xff]
      %v1052 = vld [vmem:[%s1 + $0x190] sm:$0xff]
      %v1053 = vld [vmem:[%s1 + $0x198] sm:$0xff]
      %v1054 = vld [vmem:[%s1 + $0x1a0] sm:$0xff]
      %v1055 = vld [vmem:[%s1 + $0x1a8] sm:$0xff]
      %v1056 = vld [vmem:[%s1 + $0x1b0] sm:$0xff]
      %v1057 = vld [vmem:[%s1 + $0x1b8] sm:$0xff]
      %v1058 = vld [vmem:[%s1 + $0x1c0] sm:$0xff]
      %v1059 = vld [vmem:[%s1 + $0x1c8] sm:$0xff]
      %v1060 = vld [vmem:[%s1 + $0x1d0] sm:$0xff]
      %v1061 = vld [vmem:[%s1 + $0x1d8] sm:$0xff]
      %v1062 = vld [vmem:[%s1 + $0x1e0] sm:$0xff]
      %v1063 = vld [vmem:[%s1 + $0x1e8] sm:$0xff]
      %v1064 = vld [vmem:[%s1 + $0x1f0] sm:$0xff]
      %v1065 = vld [vmem:[%s1 + $0x1f8] sm:$0xff]
      %v1066 = vld [vmem:[%s1 + $0x200] sm:$0xff]
      %v1067 = vld [vmem:[%s1 + $0x208] sm:$0xff]
      %v1068 = vld [vmem:[%s1 + $0x210] sm:$0xff]
      %v1069 = vld [vmem:[%s1 + $0x218] sm:$0xff]
      %v1070 = vld [vmem:[%s1 + $0x220] sm:$0xff]
      %v1071 = vld [vmem:[%s1 + $0x228] sm:$0xff]
      %v1072 = vld [vmem:[%s1 + $0x230] sm:$0xff]
      %v1073 = vld [vmem:[%s1 + $0x238] sm:$0xff]
      %v1074 = vld [vmem:[%s1 + $0x240] sm:$0xff]
      %v1075 = vld [vmem:[%s1 + $0x248] sm:$0xff]
      %v1076 = vld [vmem:[%s1 + $0x250] sm:$0xff]
      %v1077 = vld [vmem:[%s1 + $0x258] sm:$0xff]
      %v1078 = vld [vmem:[%s1 + $0x260] sm:$0xff]
      %v1079 = vld [vmem:[%s1 + $0x268] sm:$0xff]
      %v1080 = vld [vmem:[%s1 + $0x270] sm:$0xff]
      %v1081 = vld [vmem:[%s1 + $0x278] sm:$0xff]
      %v1082 = vld [vmem:[%s1 + $0x280] sm:$0xff]
      %v1083 = vld [vmem:[%s1 + $0x288] sm:$0xff]
      %v1084 = vld [vmem:[%s1 + $0x290] sm:$0xff]
      %v1085 = vld [vmem:[%s1 + $0x298] sm:$0xff]
      %v1086 = vld [vmem:[%s1 + $0x2a0] sm:$0xff]
      %v1087 = vld [vmem:[%s1 + $0x2a8] sm:$0xff]
      %v1088 = vld [vmem:[%s1 + $0x2b0] sm:$0xff]
      %v1089 = vld [vmem:[%s1 + $0x2b8] sm:$0xff]
      %v1090 = vld [vmem:[%s1 + $0x2c0] sm:$0xff]
      %v1091 = vld [vmem:[%s1 + $0x2c8] sm:$0xff]
      %v1092 = vld [vmem:[%s1 + $0x2d0] sm:$0xff]
      %v1093 = vld [vmem:[%s1 + $0x2d8] sm:$0xff]
      %v1094 = vld [vmem:[%s1 + $0x2e0] sm:$0xff]
      %v1095 = vld [vmem:[%s1 + $0x2e8] sm:$0xff]
      %v1096 = vld [vmem:[%s1 + $0x2f0] sm:$0xff]
      %v1097 = vld [vmem:[%s1 + $0x2f8] sm:$0xff]
      %v1098 = vld [vmem:[%s1 + $0x300] sm:$0xff]
      %v1099 = vld [vmem:[%s1 + $0x308] sm:$0xff]
      %v1100 = vld [vmem:[%s11] sm:$0x3]
      %v1102 = vlaneseq
      %v1103 = vshrl.u32 %v1102, 7
      %v1104 = vsub.s32 0, %v1103
      %v1105 = vrot.slane %v1100, %v1104
      %v1106 = vlaneseq
      %v1107 = vshrl.u32 %v1106, 7
      %v1108 = vsub.s32 1, %v1107
      %v1109 = vrot.slane %v1100, %v1108
      %v1210 = vunpack.c.l.b16 %v1002
      %v1211 = vunpack.c.h.b16 %v1002
      %v1212 = vunpack.c.l.b16 %v1003
      %v1213 = vunpack.c.h.b16 %v1003
      %v1214 = vunpack.c.l.b16 %v1004
      %v1215 = vunpack.c.h.b16 %v1004
      %v1216 = vunpack.c.l.b16 %v1005
      %v1217 = vunpack.c.h.b16 %v1005
      %v1218 = vunpack.c.l.b16 %v1006
      %v1219 = vunpack.c.h.b16 %v1006
      %v1220 = vunpack.c.l.b16 %v1007
      %v1221 = vunpack.c.h.b16 %v1007
      %v1222 = vunpack.c.l.b16 %v1008
      %v1223 = vunpack.c.h.b16 %v1008
      %v1224 = vunpack.c.l.b16 %v1009
      %v1225 = vunpack.c.h.b16 %v1009
      %v1226 = vunpack.c.l.b16 %v1010
      %v1227 = vunpack.c.h.b16 %v1010
      %v1228 = vunpack.c.l.b16 %v1011
      %v1229 = vunpack.c.h.b16 %v1011
      %v1230 = vunpack.c.l.b16 %v1012
      %v1231 = vunpack.c.h.b16 %v1012
      %v1232 = vunpack.c.l.b16 %v1013
      %v1233 = vunpack.c.h.b16 %v1013
      %v1234 = vunpack.c.l.b16 %v1014
      %v1235 = vunpack.c.h.b16 %v1014
      %v1236 = vunpack.c.l.b16 %v1015
      %v1237 = vunpack.c.h.b16 %v1015
      %v1238 = vunpack.c.l.b16 %v1016
      %v1239 = vunpack.c.h.b16 %v1016
      %v1240 = vunpack.c.l.b16 %v1017
      %v1241 = vunpack.c.h.b16 %v1017
      %v1242 = vunpack.c.l.b16 %v1018
      %v1243 = vunpack.c.h.b16 %v1018
      %v1244 = vunpack.c.l.b16 %v1019
      %v1245 = vunpack.c.h.b16 %v1019
      %v1246 = vunpack.c.l.b16 %v1020
      %v1247 = vunpack.c.h.b16 %v1020
      %v1248 = vunpack.c.l.b16 %v1021
      %v1249 = vunpack.c.h.b16 %v1021
      %v1250 = vunpack.c.l.b16 %v1022
      %v1251 = vunpack.c.h.b16 %v1022
      %v1252 = vunpack.c.l.b16 %v1023
      %v1253 = vunpack.c.h.b16 %v1023
      %v1254 = vunpack.c.l.b16 %v1024
      %v1255 = vunpack.c.h.b16 %v1024
      %v1256 = vunpack.c.l.b16 %v1025
      %v1257 = vunpack.c.h.b16 %v1025
      %v1258 = vunpack.c.l.b16 %v1026
      %v1259 = vunpack.c.h.b16 %v1026
      %v1260 = vunpack.c.l.b16 %v1027
      %v1261 = vunpack.c.h.b16 %v1027
      %v1262 = vunpack.c.l.b16 %v1028
      %v1263 = vunpack.c.h.b16 %v1028
      %v1264 = vunpack.c.l.b16 %v1029
      %v1265 = vunpack.c.h.b16 %v1029
      %v1266 = vunpack.c.l.b16 %v1030
      %v1267 = vunpack.c.h.b16 %v1030
      %v1268 = vunpack.c.l.b16 %v1031
      %v1269 = vunpack.c.h.b16 %v1031
      %v1270 = vunpack.c.l.b16 %v1032
      %v1271 = vunpack.c.h.b16 %v1032
      %v1272 = vunpack.c.l.b16 %v1033
      %v1273 = vunpack.c.h.b16 %v1033
      %v1274 = vunpack.c.l.b16 %v1034
      %v1275 = vunpack.c.h.b16 %v1034
      %v1276 = vunpack.c.l.b16 %v1035
      %v1277 = vunpack.c.h.b16 %v1035
      %v1278 = vunpack.c.l.b16 %v1036
      %v1279 = vunpack.c.h.b16 %v1036
      %v1280 = vunpack.c.l.b16 %v1037
      %v1281 = vunpack.c.h.b16 %v1037
      %v1282 = vunpack.c.l.b16 %v1038
      %v1283 = vunpack.c.h.b16 %v1038
      %v1284 = vunpack.c.l.b16 %v1039
      %v1285 = vunpack.c.h.b16 %v1039
      %v1286 = vunpack.c.l.b16 %v1040
      %v1287 = vunpack.c.h.b16 %v1040
      %v1288 = vunpack.c.l.b16 %v1041
      %v1289 = vunpack.c.h.b16 %v1041
      %v1290 = vunpack.c.l.b16 %v1042
      %v1291 = vunpack.c.h.b16 %v1042
      %v1292 = vunpack.c.l.b16 %v1043
      %v1293 = vunpack.c.h.b16 %v1043
      %v1294 = vunpack.c.l.b16 %v1044
      %v1295 = vunpack.c.h.b16 %v1044
      %v1296 = vunpack.c.l.b16 %v1045
      %v1297 = vunpack.c.h.b16 %v1045
      %v1298 = vunpack.c.l.b16 %v1046
      %v1299 = vunpack.c.h.b16 %v1046
      %v1300 = vunpack.c.l.b16 %v1047
      %v1301 = vunpack.c.h.b16 %v1047
      %v1302 = vunpack.c.l.b16 %v1048
      %v1303 = vunpack.c.h.b16 %v1048
      %v1304 = vunpack.c.l.b16 %v1049
      %v1305 = vunpack.c.h.b16 %v1049
      %v1306 = vunpack.c.l.b16 %v1050
      %v1307 = vunpack.c.h.b16 %v1050
      %v1308 = vunpack.c.l.b16 %v1051
      %v1309 = vunpack.c.h.b16 %v1051
      %v1310 = vunpack.c.l.b16 %v1052
      %v1311 = vunpack.c.h.b16 %v1052
      %v1312 = vunpack.c.l.b16 %v1053
      %v1313 = vunpack.c.h.b16 %v1053
      %v1314 = vunpack.c.l.b16 %v1054
      %v1315 = vunpack.c.h.b16 %v1054
      %v1316 = vunpack.c.l.b16 %v1055
      %v1317 = vunpack.c.h.b16 %v1055
      %v1318 = vunpack.c.l.b16 %v1056
      %v1319 = vunpack.c.h.b16 %v1056
      %v1320 = vunpack.c.l.b16 %v1057
      %v1321 = vunpack.c.h.b16 %v1057
      %v1322 = vunpack.c.l.b16 %v1058
      %v1323 = vunpack.c.h.b16 %v1058
      %v1324 = vunpack.c.l.b16 %v1059
      %v1325 = vunpack.c.h.b16 %v1059
      %v1326 = vunpack.c.l.b16 %v1060
      %v1327 = vunpack.c.h.b16 %v1060
      %v1328 = vunpack.c.l.b16 %v1061
      %v1329 = vunpack.c.h.b16 %v1061
      %v1330 = vunpack.c.l.b16 %v1062
      %v1331 = vunpack.c.h.b16 %v1062
      %v1332 = vunpack.c.l.b16 %v1063
      %v1333 = vunpack.c.h.b16 %v1063
      %v1334 = vunpack.c.l.b16 %v1064
      %v1335 = vunpack.c.h.b16 %v1064
      %v1336 = vunpack.c.l.b16 %v1065
      %v1337 = vunpack.c.h.b16 %v1065
      %v1338 = vunpack.c.l.b16 %v1066
      %v1339 = vunpack.c.h.b16 %v1066
      %v1340 = vunpack.c.l.b16 %v1067
      %v1341 = vunpack.c.h.b16 %v1067
      %v1342 = vunpack.c.l.b16 %v1068
      %v1343 = vunpack.c.h.b16 %v1068
      %v1344 = vunpack.c.l.b16 %v1069
      %v1345 = vunpack.c.h.b16 %v1069
      %v1346 = vunpack.c.l.b16 %v1070
      %v1347 = vunpack.c.h.b16 %v1070
      %v1348 = vunpack.c.l.b16 %v1071
      %v1349 = vunpack.c.h.b16 %v1071
      %v1350 = vunpack.c.l.b16 %v1072
      %v1351 = vunpack.c.h.b16 %v1072
      %v1352 = vunpack.c.l.b16 %v1073
      %v1353 = vunpack.c.h.b16 %v1073
      %v1354 = vunpack.c.l.b16 %v1074
      %v1355 = vunpack.c.h.b16 %v1074
      %v1356 = vunpack.c.l.b16 %v1075
      %v1357 = vunpack.c.h.b16 %v1075
      %v1358 = vunpack.c.l.b16 %v1076
      %v1359 = vunpack.c.h.b16 %v1076
      %v1360 = vunpack.c.l.b16 %v1077
      %v1361 = vunpack.c.h.b16 %v1077
      %v1362 = vunpack.c.l.b16 %v1078
      %v1363 = vunpack.c.h.b16 %v1078
      %v1364 = vunpack.c.l.b16 %v1079
      %v1365 = vunpack.c.h.b16 %v1079
      %v1366 = vunpack.c.l.b16 %v1080
      %v1367 = vunpack.c.h.b16 %v1080
      %v1368 = vunpack.c.l.b16 %v1081
      %v1369 = vunpack.c.h.b16 %v1081
      %v1370 = vunpack.c.l.b16 %v1082
      %v1371 = vunpack.c.h.b16 %v1082
      %v1372 = vunpack.c.l.b16 %v1083
      %v1373 = vunpack.c.h.b16 %v1083
      %v1374 = vunpack.c.l.b16 %v1084
      %v1375 = vunpack.c.h.b16 %v1084
      %v1376 = vunpack.c.l.b16 %v1085
      %v1377 = vunpack.c.h.b16 %v1085
      %v1378 = vunpack.c.l.b16 %v1086
      %v1379 = vunpack.c.h.b16 %v1086
      %v1380 = vunpack.c.l.b16 %v1087
      %v1381 = vunpack.c.h.b16 %v1087
      %v1382 = vunpack.c.l.b16 %v1088
      %v1383 = vunpack.c.h.b16 %v1088
      %v1384 = vunpack.c.l.b16 %v1089
      %v1385 = vunpack.c.h.b16 %v1089
      %v1386 = vunpack.c.l.b16 %v1090
      %v1387 = vunpack.c.h.b16 %v1090
      %v1388 = vunpack.c.l.b16 %v1091
      %v1389 = vunpack.c.h.b16 %v1091
      %v1390 = vunpack.c.l.b16 %v1092
      %v1391 = vunpack.c.h.b16 %v1092
      %v1392 = vunpack.c.l.b16 %v1093
      %v1393 = vunpack.c.h.b16 %v1093
      %v1394 = vunpack.c.l.b16 %v1094
      %v1395 = vunpack.c.h.b16 %v1094
      %v1396 = vunpack.c.l.b16 %v1095
      %v1397 = vunpack.c.h.b16 %v1095
      %v1398 = vunpack.c.l.b16 %v1096
      %v1399 = vunpack.c.h.b16 %v1096
      %v1400 = vunpack.c.l.b16 %v1097
      %v1401 = vunpack.c.h.b16 %v1097
      %v1402 = vunpack.c.l.b16 %v1098
      %v1403 = vunpack.c.h.b16 %v1098
      %v1404 = vunpack.c.l.b16 %v1099
      %v1405 = vunpack.c.h.b16 %v1099
      %v1406 = vpack.c.b16 %v1212, %v1210
      %v1407 = vpack.c.b16 %v1213, %v1211
      %v1408 = vpack.c.b16 %v1216, %v1214
      %v1409 = vpack.c.b16 %v1217, %v1215
      %v1410 = vpack.c.b16 %v1220, %v1218
      %v1411 = vpack.c.b16 %v1221, %v1219
      %v1412 = vpack.c.b16 %v1224, %v1222
      %v1413 = vpack.c.b16 %v1225, %v1223
      %v1414 = vpack.c.b16 %v1228, %v1226
      %v1415 = vpack.c.b16 %v1229, %v1227
      %v1416 = vpack.c.b16 %v1232, %v1230
      %v1417 = vpack.c.b16 %v1233, %v1231
      %v1418 = vpack.c.b16 %v1236, %v1234
      %v1419 = vpack.c.b16 %v1237, %v1235
      %v1420 = vpack.c.b16 %v1240, %v1238
      %v1421 = vpack.c.b16 %v1241, %v1239
      %v1422 = vpack.c.b16 %v1244, %v1242
      %v1423 = vpack.c.b16 %v1245, %v1243
      %v1424 = vpack.c.b16 %v1248, %v1246
      %v1425 = vpack.c.b16 %v1249, %v1247
      %v1426 = vpack.c.b16 %v1252, %v1250
      %v1427 = vpack.c.b16 %v1253, %v1251
      %v1428 = vpack.c.b16 %v1256, %v1254
      %v1429 = vpack.c.b16 %v1257, %v1255
      %v1430 = vpack.c.b16 %v1260, %v1258
      %v1431 = vpack.c.b16 %v1261, %v1259
      %v1432 = vpack.c.b16 %v1264, %v1262
      %v1433 = vpack.c.b16 %v1265, %v1263
      %v1434 = vpack.c.b16 %v1268, %v1266
      %v1435 = vpack.c.b16 %v1269, %v1267
      %v1436 = vpack.c.b16 %v1272, %v1270
      %v1437 = vpack.c.b16 %v1273, %v1271
      %v1438 = vpack.c.b16 %v1276, %v1274
      %v1439 = vpack.c.b16 %v1277, %v1275
      %v1440 = vpack.c.b16 %v1280, %v1278
      %v1441 = vpack.c.b16 %v1281, %v1279
      %v1442 = vpack.c.b16 %v1284, %v1282
      %v1443 = vpack.c.b16 %v1285, %v1283
      %v1444 = vpack.c.b16 %v1288, %v1286
      %v1445 = vpack.c.b16 %v1289, %v1287
      %v1446 = vpack.c.b16 %v1292, %v1290
      %v1447 = vpack.c.b16 %v1293, %v1291
      %v1448 = vpack.c.b16 %v1296, %v1294
      %v1449 = vpack.c.b16 %v1297, %v1295
      %v1450 = vpack.c.b16 %v1300, %v1298
      %v1451 = vpack.c.b16 %v1301, %v1299
      %v1452 = vpack.c.b16 %v1304, %v1302
      %v1453 = vpack.c.b16 %v1305, %v1303
      %v1454 = vpack.c.b16 %v1308, %v1306
      %v1455 = vpack.c.b16 %v1309, %v1307
      %v1456 = vpack.c.b16 %v1312, %v1310
      %v1457 = vpack.c.b16 %v1313, %v1311
      %v1458 = vpack.c.b16 %v1316, %v1314
      %v1459 = vpack.c.b16 %v1317, %v1315
      %v1460 = vpack.c.b16 %v1320, %v1318
      %v1461 = vpack.c.b16 %v1321, %v1319
      %v1462 = vpack.c.b16 %v1324, %v1322
      %v1463 = vpack.c.b16 %v1325, %v1323
      %v1464 = vpack.c.b16 %v1328, %v1326
      %v1465 = vpack.c.b16 %v1329, %v1327
      %v1466 = vpack.c.b16 %v1332, %v1330
      %v1467 = vpack.c.b16 %v1333, %v1331
      %v1468 = vpack.c.b16 %v1336, %v1334
      %v1469 = vpack.c.b16 %v1337, %v1335
      %v1470 = vpack.c.b16 %v1340, %v1338
      %v1471 = vpack.c.b16 %v1341, %v1339
      %v1472 = vpack.c.b16 %v1344, %v1342
      %v1473 = vpack.c.b16 %v1345, %v1343
      %v1474 = vpack.c.b16 %v1348, %v1346
      %v1475 = vpack.c.b16 %v1349, %v1347
      %v1476 = vpack.c.b16 %v1352, %v1350
      %v1477 = vpack.c.b16 %v1353, %v1351
      %v1478 = vpack.c.b16 %v1356, %v1354
      %v1479 = vpack.c.b16 %v1357, %v1355
      %v1480 = vpack.c.b16 %v1360, %v1358
      %v1481 = vpack.c.b16 %v1361, %v1359
      %v1482 = vpack.c.b16 %v1364, %v1362
      %v1483 = vpack.c.b16 %v1365, %v1363
      %v1484 = vpack.c.b16 %v1368, %v1366
      %v1485 = vpack.c.b16 %v1369, %v1367
      %v1486 = vpack.c.b16 %v1372, %v1370
      %v1487 = vpack.c.b16 %v1373, %v1371
      %v1488 = vpack.c.b16 %v1376, %v1374
      %v1489 = vpack.c.b16 %v1377, %v1375
      %v1490 = vpack.c.b16 %v1380, %v1378
      %v1491 = vpack.c.b16 %v1381, %v1379
      %v1492 = vpack.c.b16 %v1384, %v1382
      %v1493 = vpack.c.b16 %v1385, %v1383
      %v1494 = vpack.c.b16 %v1388, %v1386
      %v1495 = vpack.c.b16 %v1389, %v1387
      %v1496 = vpack.c.b16 %v1392, %v1390
      %v1497 = vpack.c.b16 %v1393, %v1391
      %v1498 = vpack.c.b16 %v1396, %v1394
      %v1499 = vpack.c.b16 %v1397, %v1395
      %v1500 = vpack.c.b16 %v1400, %v1398
      %v1501 = vpack.c.b16 %v1401, %v1399
      %v1502 = vpack.c.b16 %v1404, %v1402
      %v1503 = vpack.c.b16 %v1405, %v1403
      %vm1602 = vcmask 130048
      %v1604 = vsel %vm1602, %v896, 0
      %v1607 = vsel %vm1602, %v903, 0
      %v1610 = vsel %vm1602, %v910, 0
      %v1613 = vsel %vm1602, %v917, 0
      %v1616 = vsel %vm1602, %v924, 0
      %v1619 = vsel %vm1602, %v931, 0
      %v1622 = vsel %vm1602, %v938, 0
      %v1625 = vsel %vm1602, %v945, 0
      %v1628 = vsel %vm1602, %v952, 0
      %v1631 = vsel %vm1602, %v959, 0
      %v1634 = vsel %vm1602, %v966, 0
      %v1637 = vsel %vm1602, %v973, 0
      %v1640 = vsel %vm1602, %v980, 0
      %v1643 = vsel %vm1602, %v987, 0
      %v1646 = vsel %vm1602, %v994, 0
      %v1649 = vsel %vm1602, %v1001, 0
      %1651 = vmatprep.subr.bf16.mxu0 %v1407
      %1652 = vmatpush1.bf16.msra.mxu0 %v1406
      %1653 = vmatprep.subr.bf16.mxu0 %v1409
      %1654 = vmatpush1.bf16.msra.mxu0 %v1408
      %1655 = vmatprep.subr.bf16.mxu0 %v1411
      %1656 = vmatpush1.bf16.msra.mxu0 %v1410
      %1657 = vmatprep.subr.bf16.mxu0 %v1413
      %1658 = vmatpush1.bf16.msra.mxu0 %v1412
      %1659 = vmatprep.subr.bf16.mxu0 %v1415
      %1660 = vmatpush1.bf16.msra.mxu0 %v1414
      %1661 = vmatprep.subr.bf16.mxu0 %v1417
      %1662 = vmatpush1.bf16.msra.mxu0 %v1416
      %1663 = vmatprep.subr.bf16.mxu0 %v1419
      %1664 = vmatpush1.bf16.msra.mxu0 %v1418
      %1665 = vmatprep.subr.bf16.mxu0 %v1421
      %1666 = vmatpush1.bf16.msra.mxu0 %v1420
      %1667 = vmatprep.subr.bf16.mxu0 %v1423
      %1668 = vmatpush1.bf16.msra.mxu0 %v1422
      %1669 = vmatprep.subr.bf16.mxu0 %v1425
      %1670 = vmatpush1.bf16.msra.mxu0 %v1424
      %1671 = vmatprep.subr.bf16.mxu0 %v1427
      %1672 = vmatpush1.bf16.msra.mxu0 %v1426
      %1673 = vmatprep.subr.bf16.mxu0 %v1429
      %1674 = vmatpush1.bf16.msra.mxu0 %v1428
      %1675 = vmatprep.subr.bf16.mxu0 %v1431
      %1676 = vmatpush1.bf16.msra.mxu0 %v1430
      %1677 = vmatprep.subr.bf16.mxu0 %v1433
      %1678 = vmatpush1.bf16.msra.mxu0 %v1432
      %1679 = vmatprep.subr.bf16.mxu0 %v1435
      %1680 = vmatpush1.bf16.msra.mxu0 %v1434
      %1681 = vmatprep.subr.bf16.mxu0 %v1437
      %1682 = vmatpush1.bf16.msra.mxu0 %v1436
      %1683 = vmatprep.mubr.bf16.mxu0 %v891
      %1684 = vmatmul.mubr.bf16.gmra.mrb[0].mxu0 %v890
      %v1685 = vpop.f32.mrb[0].mxu0
      %v1686 = vadd.f32 %v1105, %v1685
      %v1687 = vpop.f32.mrb[0].mxu0
      %v1688 = vadd.f32 %v1109, %v1687
      %v1689 = vpop.f32.mrb[0].mxu0
      %v1690 = vadd.f32 %v1105, %v1689
      %v1691 = vpop.f32.mrb[0].mxu0
      %v1692 = vadd.f32 %v1109, %v1691
      %1693 = vmatprep.mubr.bf16.mxu0 %v898
      %1694 = vmatmul.mubr.bf16.gmra.mrb[0].mxu0 %v897
      %v1695 = vpop.f32.mrb[0].mxu0
      %v1696 = vadd.f32 %v1105, %v1695
      %v1697 = vpop.f32.mrb[0].mxu0
      %v1698 = vadd.f32 %v1109, %v1697
      %v1699 = vpop.f32.mrb[0].mxu0
      %v1700 = vadd.f32 %v1105, %v1699
      %v1701 = vpop.f32.mrb[0].mxu0
      %v1702 = vadd.f32 %v1109, %v1701
      %1703 = vmatprep.mubr.bf16.mxu0 %v905
      %1704 = vmatmul.mubr.bf16.gmra.mrb[0].mxu0 %v904
      %v1705 = vpop.f32.mrb[0].mxu0
      %v1706 = vadd.f32 %v1105, %v1705
      %v1707 = vpop.f32.mrb[0].mxu0
      %v1708 = vadd.f32 %v1109, %v1707
      %v1709 = vpop.f32.mrb[0].mxu0
      %v1710 = vadd.f32 %v1105, %v1709
      %v1711 = vpop.f32.mrb[0].mxu0
      %v1712 = vadd.f32 %v1109, %v1711
      %1713 = vmatprep.mubr.bf16.mxu0 %v912
      %1714 = vmatmul.mubr.bf16.gmra.mrb[0].mxu0 %v911
      %v1715 = vpop.f32.mrb[0].mxu0
      %v1716 = vadd.f32 %v1105, %v1715
      %v1717 = vpop.f32.mrb[0].mxu0
      %v1718 = vadd.f32 %v1109, %v1717
      %v1719 = vpop.f32.mrb[0].mxu0
      %v1720 = vadd.f32 %v1105, %v1719
      %v1721 = vpop.f32.mrb[0].mxu0
      %v1722 = vadd.f32 %v1109, %v1721
      %1723 = vmatprep.mubr.bf16.mxu0 %v919
      %1724 = vmatmul.mubr.bf16.gmra.mrb[0].mxu0 %v918
      %v1725 = vpop.f32.mrb[0].mxu0
      %v1726 = vadd.f32 %v1105, %v1725
      %v1727 = vpop.f32.mrb[0].mxu0
      %v1728 = vadd.f32 %v1109, %v1727
      %v1729 = vpop.f32.mrb[0].mxu0
      %v1730 = vadd.f32 %v1105, %v1729
      %v1731 = vpop.f32.mrb[0].mxu0
      %v1732 = vadd.f32 %v1109, %v1731
      %1733 = vmatprep.mubr.bf16.mxu0 %v926
      %1734 = vmatmul.mubr.bf16.gmra.mrb[0].mxu0 %v925
      %v1735 = vpop.f32.mrb[0].mxu0
      %v1736 = vadd.f32 %v1105, %v1735
      %v1737 = vpop.f32.mrb[0].mxu0
      %v1738 = vadd.f32 %v1109, %v1737
      %v1739 = vpop.f32.mrb[0].mxu0
      %v1740 = vadd.f32 %v1105, %v1739
      %v1741 = vpop.f32.mrb[0].mxu0
      %v1742 = vadd.f32 %v1109, %v1741
      %1743 = vmatprep.mubr.bf16.mxu0 %v933
      %1744 = vmatmul.mubr.bf16.gmra.mrb[0].mxu0 %v932
      %v1745 = vpop.f32.mrb[0].mxu0
      %v1746 = vadd.f32 %v1105, %v1745
      %v1747 = vpop.f32.mrb[0].mxu0
      %v1748 = vadd.f32 %v1109, %v1747
      %v1749 = vpop.f32.mrb[0].mxu0
      %v1750 = vadd.f32 %v1105, %v1749
      %v1751 = vpop.f32.mrb[0].mxu0
      %v1752 = vadd.f32 %v1109, %v1751
      %1753 = vmatprep.mubr.bf16.mxu0 %v940
      %1754 = vmatmul.mubr.bf16.gmra.mrb[0].mxu0 %v939
      %v1755 = vpop.f32.mrb[0].mxu0
      %v1756 = vadd.f32 %v1105, %v1755
      %v1757 = vpop.f32.mrb[0].mxu0
      %v1758 = vadd.f32 %v1109, %v1757
      %v1759 = vpop.f32.mrb[0].mxu0
      %v1760 = vadd.f32 %v1105, %v1759
      %v1761 = vpop.f32.mrb[0].mxu0
      %v1762 = vadd.f32 %v1109, %v1761
      %1763 = vmatprep.mubr.bf16.mxu0 %v947
      %1764 = vmatmul.mubr.bf16.gmra.mrb[0].mxu0 %v946
      %v1765 = vpop.f32.mrb[0].mxu0
      %v1766 = vadd.f32 %v1105, %v1765
      %v1767 = vpop.f32.mrb[0].mxu0
      %v1768 = vadd.f32 %v1109, %v1767
      %v1769 = vpop.f32.mrb[0].mxu0
      %v1770 = vadd.f32 %v1105, %v1769
      %v1771 = vpop.f32.mrb[0].mxu0
      %v1772 = vadd.f32 %v1109, %v1771
      %1773 = vmatprep.mubr.bf16.mxu0 %v954
      %1774 = vmatmul.mubr.bf16.gmra.mrb[0].mxu0 %v953
      %v1775 = vpop.f32.mrb[0].mxu0
      %v1776 = vadd.f32 %v1105, %v1775
      %v1777 = vpop.f32.mrb[0].mxu0
      %v1778 = vadd.f32 %v1109, %v1777
      %v1779 = vpop.f32.mrb[0].mxu0
      %v1780 = vadd.f32 %v1105, %v1779
      %v1781 = vpop.f32.mrb[0].mxu0
      %v1782 = vadd.f32 %v1109, %v1781
      %1783 = vmatprep.mubr.bf16.mxu0 %v961
      %1784 = vmatmul.mubr.bf16.gmra.mrb[0].mxu0 %v960
      %v1785 = vpop.f32.mrb[0].mxu0
      %v1786 = vadd.f32 %v1105, %v1785
      %v1787 = vpop.f32.mrb[0].mxu0
      %v1788 = vadd.f32 %v1109, %v1787
      %v1789 = vpop.f32.mrb[0].mxu0
      %v1790 = vadd.f32 %v1105, %v1789
      %v1791 = vpop.f32.mrb[0].mxu0
      %v1792 = vadd.f32 %v1109, %v1791
      %1793 = vmatprep.mubr.bf16.mxu0 %v968
      %1794 = vmatmul.mubr.bf16.gmra.mrb[0].mxu0 %v967
      %v1795 = vpop.f32.mrb[0].mxu0
      %v1796 = vadd.f32 %v1105, %v1795
      %v1797 = vpop.f32.mrb[0].mxu0
      %v1798 = vadd.f32 %v1109, %v1797
      %v1799 = vpop.f32.mrb[0].mxu0
      %v1800 = vadd.f32 %v1105, %v1799
      %v1801 = vpop.f32.mrb[0].mxu0
      %v1802 = vadd.f32 %v1109, %v1801
      %1803 = vmatprep.mubr.bf16.mxu0 %v975
      %1804 = vmatmul.mubr.bf16.gmra.mrb[0].mxu0 %v974
      %v1805 = vpop.f32.mrb[0].mxu0
      %v1806 = vadd.f32 %v1105, %v1805
      %v1807 = vpop.f32.mrb[0].mxu0
      %v1808 = vadd.f32 %v1109, %v1807
      %v1809 = vpop.f32.mrb[0].mxu0
      %v1810 = vadd.f32 %v1105, %v1809
      %v1811 = vpop.f32.mrb[0].mxu0
      %v1812 = vadd.f32 %v1109, %v1811
      %1813 = vmatprep.mubr.bf16.mxu0 %v982
      %1814 = vmatmul.mubr.bf16.gmra.mrb[0].mxu0 %v981
      %v1815 = vpop.f32.mrb[0].mxu0
      %v1816 = vadd.f32 %v1105, %v1815
      %v1817 = vpop.f32.mrb[0].mxu0
      %v1818 = vadd.f32 %v1109, %v1817
      %v1819 = vpop.f32.mrb[0].mxu0
      %v1820 = vadd.f32 %v1105, %v1819
      %v1821 = vpop.f32.mrb[0].mxu0
      %v1822 = vadd.f32 %v1109, %v1821
      %1823 = vmatprep.mubr.bf16.mxu0 %v989
      %1824 = vmatmul.mubr.bf16.gmra.mrb[0].mxu0 %v988
      %v1825 = vpop.f32.mrb[0].mxu0
      %v1826 = vadd.f32 %v1105, %v1825
      %v1827 = vpop.f32.mrb[0].mxu0
      %v1828 = vadd.f32 %v1109, %v1827
      %v1829 = vpop.f32.mrb[0].mxu0
      %v1830 = vadd.f32 %v1105, %v1829
      %v1831 = vpop.f32.mrb[0].mxu0
      %v1832 = vadd.f32 %v1109, %v1831
      %1833 = vmatprep.mubr.bf16.mxu0 %v996
      %1834 = vmatmul.mubr.bf16.gmra.mrb[0].mxu0 %v995
      %v1835 = vpop.f32.mrb[0].mxu0
      %v1836 = vadd.f32 %v1105, %v1835
      %v1837 = vpop.f32.mrb[0].mxu0
      %v1838 = vadd.f32 %v1109, %v1837
      %v1839 = vpop.f32.mrb[0].mxu0
      %v1840 = vadd.f32 %v1105, %v1839
      %v1841 = vpop.f32.mrb[0].mxu0
      %v1842 = vadd.f32 %v1109, %v1841
      %1843 = vdwg.mxu0
      %1844 = vmatprep.subr.bf16.mxu0 %v1439
      %1845 = vmatpush1.bf16.msra.mxu0 %v1438
      %1846 = vmatprep.subr.bf16.mxu0 %v1441
      %1847 = vmatpush1.bf16.msra.mxu0 %v1440
      %1848 = vmatprep.subr.bf16.mxu0 %v1443
      %1849 = vmatpush1.bf16.msra.mxu0 %v1442
      %1850 = vmatprep.subr.bf16.mxu0 %v1445
      %1851 = vmatpush1.bf16.msra.mxu0 %v1444
      %1852 = vmatprep.subr.bf16.mxu0 %v1447
      %1853 = vmatpush1.bf16.msra.mxu0 %v1446
      %1854 = vmatprep.subr.bf16.mxu0 %v1449
      %1855 = vmatpush1.bf16.msra.mxu0 %v1448
      %1856 = vmatprep.subr.bf16.mxu0 %v1451
      %1857 = vmatpush1.bf16.msra.mxu0 %v1450
      %1858 = vmatprep.subr.bf16.mxu0 %v1453
      %1859 = vmatpush1.bf16.msra.mxu0 %v1452
      %1860 = vmatprep.subr.bf16.mxu0 %v1455
      %1861 = vmatpush1.bf16.msra.mxu0 %v1454
      %1862 = vmatprep.subr.bf16.mxu0 %v1457
      %1863 = vmatpush1.bf16.msra.mxu0 %v1456
      %1864 = vmatprep.subr.bf16.mxu0 %v1459
      %1865 = vmatpush1.bf16.msra.mxu0 %v1458
      %1866 = vmatprep.subr.bf16.mxu0 %v1461
      %1867 = vmatpush1.bf16.msra.mxu0 %v1460
      %1868 = vmatprep.subr.bf16.mxu0 %v1463
      %1869 = vmatpush1.bf16.msra.mxu0 %v1462
      %1870 = vmatprep.subr.bf16.mxu0 %v1465
      %1871 = vmatpush1.bf16.msra.mxu0 %v1464
      %1872 = vmatprep.subr.bf16.mxu0 %v1467
      %1873 = vmatpush1.bf16.msra.mxu0 %v1466
      %1874 = vmatprep.subr.bf16.mxu0 %v1469
      %1875 = vmatpush1.bf16.msra.mxu0 %v1468
      %1876 = vmatprep.mubr.bf16.mxu0 %v893
      %1877 = vmatmul.mubr.bf16.gmra.mrb[0].mxu0 %v892
      %v1878 = vpop.f32.mrb[0].mxu0
      %v1879 = vadd.f32 %v1686, %v1878
      %v1880 = vpop.f32.mrb[0].mxu0
      %v1881 = vadd.f32 %v1688, %v1880
      %v1882 = vpop.f32.mrb[0].mxu0
      %v1883 = vadd.f32 %v1690, %v1882
      %v1884 = vpop.f32.mrb[0].mxu0
      %v1885 = vadd.f32 %v1692, %v1884
      %1886 = vmatprep.mubr.bf16.mxu0 %v900
      %1887 = vmatmul.mubr.bf16.gmra.mrb[0].mxu0 %v899
      %v1888 = vpop.f32.mrb[0].mxu0
      %v1889 = vadd.f32 %v1696, %v1888
      %v1890 = vpop.f32.mrb[0].mxu0
      %v1891 = vadd.f32 %v1698, %v1890
      %v1892 = vpop.f32.mrb[0].mxu0
      %v1893 = vadd.f32 %v1700, %v1892
      %v1894 = vpop.f32.mrb[0].mxu0
      %v1895 = vadd.f32 %v1702, %v1894
      %1896 = vmatprep.mubr.bf16.mxu0 %v907
      %1897 = vmatmul.mubr.bf16.gmra.mrb[0].mxu0 %v906
      %v1898 = vpop.f32.mrb[0].mxu0
      %v1899 = vadd.f32 %v1706, %v1898
      %v1900 = vpop.f32.mrb[0].mxu0
      %v1901 = vadd.f32 %v1708, %v1900
      %v1902 = vpop.f32.mrb[0].mxu0
      %v1903 = vadd.f32 %v1710, %v1902
      %v1904 = vpop.f32.mrb[0].mxu0
      %v1905 = vadd.f32 %v1712, %v1904
      %1906 = vmatprep.mubr.bf16.mxu0 %v914
      %1907 = vmatmul.mubr.bf16.gmra.mrb[0].mxu0 %v913
      %v1908 = vpop.f32.mrb[0].mxu0
      %v1909 = vadd.f32 %v1716, %v1908
      %v1910 = vpop.f32.mrb[0].mxu0
      %v1911 = vadd.f32 %v1718, %v1910
      %v1912 = vpop.f32.mrb[0].mxu0
      %v1913 = vadd.f32 %v1720, %v1912
      %v1914 = vpop.f32.mrb[0].mxu0
      %v1915 = vadd.f32 %v1722, %v1914
      %1916 = vmatprep.mubr.bf16.mxu0 %v921
      %1917 = vmatmul.mubr.bf16.gmra.mrb[0].mxu0 %v920
      %v1918 = vpop.f32.mrb[0].mxu0
      %v1919 = vadd.f32 %v1726, %v1918
      %v1920 = vpop.f32.mrb[0].mxu0
      %v1921 = vadd.f32 %v1728, %v1920
      %v1922 = vpop.f32.mrb[0].mxu0
      %v1923 = vadd.f32 %v1730, %v1922
      %v1924 = vpop.f32.mrb[0].mxu0
      %v1925 = vadd.f32 %v1732, %v1924
      %1926 = vmatprep.mubr.bf16.mxu0 %v928
      %1927 = vmatmul.mubr.bf16.gmra.mrb[0].mxu0 %v927
      %v1928 = vpop.f32.mrb[0].mxu0
      %v1929 = vadd.f32 %v1736, %v1928
      %v1930 = vpop.f32.mrb[0].mxu0
      %v1931 = vadd.f32 %v1738, %v1930
      %v1932 = vpop.f32.mrb[0].mxu0
      %v1933 = vadd.f32 %v1740, %v1932
      %v1934 = vpop.f32.mrb[0].mxu0
      %v1935 = vadd.f32 %v1742, %v1934
      %1936 = vmatprep.mubr.bf16.mxu0 %v935
      %1937 = vmatmul.mubr.bf16.gmra.mrb[0].mxu0 %v934
      %v1938 = vpop.f32.mrb[0].mxu0
      %v1939 = vadd.f32 %v1746, %v1938
      %v1940 = vpop.f32.mrb[0].mxu0
      %v1941 = vadd.f32 %v1748, %v1940
      %v1942 = vpop.f32.mrb[0].mxu0
      %v1943 = vadd.f32 %v1750, %v1942
      %v1944 = vpop.f32.mrb[0].mxu0
      %v1945 = vadd.f32 %v1752, %v1944
      %1946 = vmatprep.mubr.bf16.mxu0 %v942
      %1947 = vmatmul.mubr.bf16.gmra.mrb[0].mxu0 %v941
      %v1948 = vpop.f32.mrb[0].mxu0
      %v1949 = vadd.f32 %v1756, %v1948
      %v1950 = vpop.f32.mrb[0].mxu0
      %v1951 = vadd.f32 %v1758, %v1950
      %v1952 = vpop.f32.mrb[0].mxu0
      %v1953 = vadd.f32 %v1760, %v1952
      %v1954 = vpop.f32.mrb[0].mxu0
      %v1955 = vadd.f32 %v1762, %v1954
      %1956 = vmatprep.mubr.bf16.mxu0 %v949
      %1957 = vmatmul.mubr.bf16.gmra.mrb[0].mxu0 %v948
      %v1958 = vpop.f32.mrb[0].mxu0
      %v1959 = vadd.f32 %v1766, %v1958
      %v1960 = vpop.f32.mrb[0].mxu0
      %v1961 = vadd.f32 %v1768, %v1960
      %v1962 = vpop.f32.mrb[0].mxu0
      %v1963 = vadd.f32 %v1770, %v1962
      %v1964 = vpop.f32.mrb[0].mxu0
      %v1965 = vadd.f32 %v1772, %v1964
      %1966 = vmatprep.mubr.bf16.mxu0 %v956
      %1967 = vmatmul.mubr.bf16.gmra.mrb[0].mxu0 %v955
      %v1968 = vpop.f32.mrb[0].mxu0
      %v1969 = vadd.f32 %v1776, %v1968
      %v1970 = vpop.f32.mrb[0].mxu0
      %v1971 = vadd.f32 %v1778, %v1970
      %v1972 = vpop.f32.mrb[0].mxu0
      %v1973 = vadd.f32 %v1780, %v1972
      %v1974 = vpop.f32.mrb[0].mxu0
      %v1975 = vadd.f32 %v1782, %v1974
      %1976 = vmatprep.mubr.bf16.mxu0 %v963
      %1977 = vmatmul.mubr.bf16.gmra.mrb[0].mxu0 %v962
      %v1978 = vpop.f32.mrb[0].mxu0
      %v1979 = vadd.f32 %v1786, %v1978
      %v1980 = vpop.f32.mrb[0].mxu0
      %v1981 = vadd.f32 %v1788, %v1980
      %v1982 = vpop.f32.mrb[0].mxu0
      %v1983 = vadd.f32 %v1790, %v1982
      %v1984 = vpop.f32.mrb[0].mxu0
      %v1985 = vadd.f32 %v1792, %v1984
      %1986 = vmatprep.mubr.bf16.mxu0 %v970
      %1987 = vmatmul.mubr.bf16.gmra.mrb[0].mxu0 %v969
      %v1988 = vpop.f32.mrb[0].mxu0
      %v1989 = vadd.f32 %v1796, %v1988
      %v1990 = vpop.f32.mrb[0].mxu0
      %v1991 = vadd.f32 %v1798, %v1990
      %v1992 = vpop.f32.mrb[0].mxu0
      %v1993 = vadd.f32 %v1800, %v1992
      %v1994 = vpop.f32.mrb[0].mxu0
      %v1995 = vadd.f32 %v1802, %v1994
      %1996 = vmatprep.mubr.bf16.mxu0 %v977
      %1997 = vmatmul.mubr.bf16.gmra.mrb[0].mxu0 %v976
      %v1998 = vpop.f32.mrb[0].mxu0
      %v1999 = vadd.f32 %v1806, %v1998
      %v2000 = vpop.f32.mrb[0].mxu0
      %v2001 = vadd.f32 %v1808, %v2000
      %v2002 = vpop.f32.mrb[0].mxu0
      %v2003 = vadd.f32 %v1810, %v2002
      %v2004 = vpop.f32.mrb[0].mxu0
      %v2005 = vadd.f32 %v1812, %v2004
      %2006 = vmatprep.mubr.bf16.mxu0 %v984
      %2007 = vmatmul.mubr.bf16.gmra.mrb[0].mxu0 %v983
      %v2008 = vpop.f32.mrb[0].mxu0
      %v2009 = vadd.f32 %v1816, %v2008
      %v2010 = vpop.f32.mrb[0].mxu0
      %v2011 = vadd.f32 %v1818, %v2010
      %v2012 = vpop.f32.mrb[0].mxu0
      %v2013 = vadd.f32 %v1820, %v2012
      %v2014 = vpop.f32.mrb[0].mxu0
      %v2015 = vadd.f32 %v1822, %v2014
      %2016 = vmatprep.mubr.bf16.mxu0 %v991
      %2017 = vmatmul.mubr.bf16.gmra.mrb[0].mxu0 %v990
      %v2018 = vpop.f32.mrb[0].mxu0
      %v2019 = vadd.f32 %v1826, %v2018
      %v2020 = vpop.f32.mrb[0].mxu0
      %v2021 = vadd.f32 %v1828, %v2020
      %v2022 = vpop.f32.mrb[0].mxu0
      %v2023 = vadd.f32 %v1830, %v2022
      %v2024 = vpop.f32.mrb[0].mxu0
      %v2025 = vadd.f32 %v1832, %v2024
      %2026 = vmatprep.mubr.bf16.mxu0 %v998
      %2027 = vmatmul.mubr.bf16.gmra.mrb[0].mxu0 %v997
      %v2028 = vpop.f32.mrb[0].mxu0
      %v2029 = vadd.f32 %v1836, %v2028
      %v2030 = vpop.f32.mrb[0].mxu0
      %v2031 = vadd.f32 %v1838, %v2030
      %v2032 = vpop.f32.mrb[0].mxu0
      %v2033 = vadd.f32 %v1840, %v2032
      %v2034 = vpop.f32.mrb[0].mxu0
      %v2035 = vadd.f32 %v1842, %v2034
      %2036 = vdwg.mxu0
      %2037 = vmatprep.subr.bf16.mxu0 %v1471
      %2038 = vmatpush1.bf16.msra.mxu0 %v1470
      %2039 = vmatprep.subr.bf16.mxu0 %v1473
      %2040 = vmatpush1.bf16.msra.mxu0 %v1472
      %2041 = vmatprep.subr.bf16.mxu0 %v1475
      %2042 = vmatpush1.bf16.msra.mxu0 %v1474
      %2043 = vmatprep.subr.bf16.mxu0 %v1477
      %2044 = vmatpush1.bf16.msra.mxu0 %v1476
      %2045 = vmatprep.subr.bf16.mxu0 %v1479
      %2046 = vmatpush1.bf16.msra.mxu0 %v1478
      %2047 = vmatprep.subr.bf16.mxu0 %v1481
      %2048 = vmatpush1.bf16.msra.mxu0 %v1480
      %2049 = vmatprep.subr.bf16.mxu0 %v1483
      %2050 = vmatpush1.bf16.msra.mxu0 %v1482
      %2051 = vmatprep.subr.bf16.mxu0 %v1485
      %2052 = vmatpush1.bf16.msra.mxu0 %v1484
      %2053 = vmatprep.subr.bf16.mxu0 %v1487
      %2054 = vmatpush1.bf16.msra.mxu0 %v1486
      %2055 = vmatprep.subr.bf16.mxu0 %v1489
      %2056 = vmatpush1.bf16.msra.mxu0 %v1488
      %2057 = vmatprep.subr.bf16.mxu0 %v1491
      %2058 = vmatpush1.bf16.msra.mxu0 %v1490
      %2059 = vmatprep.subr.bf16.mxu0 %v1493
      %2060 = vmatpush1.bf16.msra.mxu0 %v1492
      %2061 = vmatprep.subr.bf16.mxu0 %v1495
      %2062 = vmatpush1.bf16.msra.mxu0 %v1494
      %2063 = vmatprep.subr.bf16.mxu0 %v1497
      %2064 = vmatpush1.bf16.msra.mxu0 %v1496
      %2065 = vmatprep.subr.bf16.mxu0 %v1499
      %2066 = vmatpush1.bf16.msra.mxu0 %v1498
      %2067 = vmatprep.subr.bf16.mxu0 %v1501
      %2068 = vmatpush1.bf16.msra.mxu0 %v1500
      %2069 = vmatprep.mubr.bf16.mxu0 %v895
      %2070 = vmatmul.mubr.bf16.gmra.mrb[0].mxu0 %v894
      %v2071 = vpop.f32.mrb[0].mxu0
      %v2072 = vadd.f32 %v1879, %v2071
      %v2073 = vpop.f32.mrb[0].mxu0
      %v2074 = vadd.f32 %v1881, %v2073
      %v2075 = vpop.f32.mrb[0].mxu0
      %v2076 = vadd.f32 %v1883, %v2075
      %v2077 = vpop.f32.mrb[0].mxu0
      %v2078 = vadd.f32 %v1885, %v2077
      %2079 = vmatprep.mubr.bf16.mxu0 %v902
      %2080 = vmatmul.mubr.bf16.gmra.mrb[0].mxu0 %v901
      %v2081 = vpop.f32.mrb[0].mxu0
      %v2082 = vadd.f32 %v1889, %v2081
      %v2083 = vpop.f32.mrb[0].mxu0
      %v2084 = vadd.f32 %v1891, %v2083
      %v2085 = vpop.f32.mrb[0].mxu0
      %v2086 = vadd.f32 %v1893, %v2085
      %v2087 = vpop.f32.mrb[0].mxu0
      %v2088 = vadd.f32 %v1895, %v2087
      %2089 = vmatprep.mubr.bf16.mxu0 %v909
      %2090 = vmatmul.mubr.bf16.gmra.mrb[0].mxu0 %v908
      %v2091 = vpop.f32.mrb[0].mxu0
      %v2092 = vadd.f32 %v1899, %v2091
      %v2093 = vpop.f32.mrb[0].mxu0
      %v2094 = vadd.f32 %v1901, %v2093
      %v2095 = vpop.f32.mrb[0].mxu0
      %v2096 = vadd.f32 %v1903, %v2095
      %v2097 = vpop.f32.mrb[0].mxu0
      %v2098 = vadd.f32 %v1905, %v2097
      %2099 = vmatprep.mubr.bf16.mxu0 %v916
      %2100 = vmatmul.mubr.bf16.gmra.mrb[0].mxu0 %v915
      %v2101 = vpop.f32.mrb[0].mxu0
      %v2102 = vadd.f32 %v1909, %v2101
      %v2103 = vpop.f32.mrb[0].mxu0
      %v2104 = vadd.f32 %v1911, %v2103
      %v2105 = vpop.f32.mrb[0].mxu0
      %v2106 = vadd.f32 %v1913, %v2105
      %v2107 = vpop.f32.mrb[0].mxu0
      %v2108 = vadd.f32 %v1915, %v2107
      %2109 = vmatprep.mubr.bf16.mxu0 %v923
      %2110 = vmatmul.mubr.bf16.gmra.mrb[0].mxu0 %v922
      %v2111 = vpop.f32.mrb[0].mxu0
      %v2112 = vadd.f32 %v1919, %v2111
      %v2113 = vpop.f32.mrb[0].mxu0
      %v2114 = vadd.f32 %v1921, %v2113
      %v2115 = vpop.f32.mrb[0].mxu0
      %v2116 = vadd.f32 %v1923, %v2115
      %v2117 = vpop.f32.mrb[0].mxu0
      %v2118 = vadd.f32 %v1925, %v2117
      %2119 = vmatprep.mubr.bf16.mxu0 %v930
      %2120 = vmatmul.mubr.bf16.gmra.mrb[0].mxu0 %v929
      %v2121 = vpop.f32.mrb[0].mxu0
      %v2122 = vadd.f32 %v1929, %v2121
      %v2123 = vpop.f32.mrb[0].mxu0
      %v2124 = vadd.f32 %v1931, %v2123
      %v2125 = vpop.f32.mrb[0].mxu0
      %v2126 = vadd.f32 %v1933, %v2125
      %v2127 = vpop.f32.mrb[0].mxu0
      %v2128 = vadd.f32 %v1935, %v2127
      %2129 = vmatprep.mubr.bf16.mxu0 %v937
      %2130 = vmatmul.mubr.bf16.gmra.mrb[0].mxu0 %v936
      %v2131 = vpop.f32.mrb[0].mxu0
      %v2132 = vadd.f32 %v1939, %v2131
      %v2133 = vpop.f32.mrb[0].mxu0
      %v2134 = vadd.f32 %v1941, %v2133
      %v2135 = vpop.f32.mrb[0].mxu0
      %v2136 = vadd.f32 %v1943, %v2135
      %v2137 = vpop.f32.mrb[0].mxu0
      %v2138 = vadd.f32 %v1945, %v2137
      %2139 = vmatprep.mubr.bf16.mxu0 %v944
      %2140 = vmatmul.mubr.bf16.gmra.mrb[0].mxu0 %v943
      %v2141 = vpop.f32.mrb[0].mxu0
      %v2142 = vadd.f32 %v1949, %v2141
      %v2143 = vpop.f32.mrb[0].mxu0
      %v2144 = vadd.f32 %v1951, %v2143
      %v2145 = vpop.f32.mrb[0].mxu0
      %v2146 = vadd.f32 %v1953, %v2145
      %v2147 = vpop.f32.mrb[0].mxu0
      %v2148 = vadd.f32 %v1955, %v2147
      %2149 = vmatprep.mubr.bf16.mxu0 %v951
      %2150 = vmatmul.mubr.bf16.gmra.mrb[0].mxu0 %v950
      %v2151 = vpop.f32.mrb[0].mxu0
      %v2152 = vadd.f32 %v1959, %v2151
      %v2153 = vpop.f32.mrb[0].mxu0
      %v2154 = vadd.f32 %v1961, %v2153
      %v2155 = vpop.f32.mrb[0].mxu0
      %v2156 = vadd.f32 %v1963, %v2155
      %v2157 = vpop.f32.mrb[0].mxu0
      %v2158 = vadd.f32 %v1965, %v2157
      %2159 = vmatprep.mubr.bf16.mxu0 %v958
      %2160 = vmatmul.mubr.bf16.gmra.mrb[0].mxu0 %v957
      %v2161 = vpop.f32.mrb[0].mxu0
      %v2162 = vadd.f32 %v1969, %v2161
      %v2163 = vpop.f32.mrb[0].mxu0
      %v2164 = vadd.f32 %v1971, %v2163
      %v2165 = vpop.f32.mrb[0].mxu0
      %v2166 = vadd.f32 %v1973, %v2165
      %v2167 = vpop.f32.mrb[0].mxu0
      %v2168 = vadd.f32 %v1975, %v2167
      %2169 = vmatprep.mubr.bf16.mxu0 %v965
      %2170 = vmatmul.mubr.bf16.gmra.mrb[0].mxu0 %v964
      %v2171 = vpop.f32.mrb[0].mxu0
      %v2172 = vadd.f32 %v1979, %v2171
      %v2173 = vpop.f32.mrb[0].mxu0
      %v2174 = vadd.f32 %v1981, %v2173
      %v2175 = vpop.f32.mrb[0].mxu0
      %v2176 = vadd.f32 %v1983, %v2175
      %v2177 = vpop.f32.mrb[0].mxu0
      %v2178 = vadd.f32 %v1985, %v2177
      %2179 = vmatprep.mubr.bf16.mxu0 %v972
      %2180 = vmatmul.mubr.bf16.gmra.mrb[0].mxu0 %v971
      %v2181 = vpop.f32.mrb[0].mxu0
      %v2182 = vadd.f32 %v1989, %v2181
      %v2183 = vpop.f32.mrb[0].mxu0
      %v2184 = vadd.f32 %v1991, %v2183
      %v2185 = vpop.f32.mrb[0].mxu0
      %v2186 = vadd.f32 %v1993, %v2185
      %v2187 = vpop.f32.mrb[0].mxu0
      %v2188 = vadd.f32 %v1995, %v2187
      %2189 = vmatprep.mubr.bf16.mxu0 %v979
      %2190 = vmatmul.mubr.bf16.gmra.mrb[0].mxu0 %v978
      %v2191 = vpop.f32.mrb[0].mxu0
      %v2192 = vadd.f32 %v1999, %v2191
      %v2193 = vpop.f32.mrb[0].mxu0
      %v2194 = vadd.f32 %v2001, %v2193
      %v2195 = vpop.f32.mrb[0].mxu0
      %v2196 = vadd.f32 %v2003, %v2195
      %v2197 = vpop.f32.mrb[0].mxu0
      %v2198 = vadd.f32 %v2005, %v2197
      %2199 = vmatprep.mubr.bf16.mxu0 %v986
      %2200 = vmatmul.mubr.bf16.gmra.mrb[0].mxu0 %v985
      %v2201 = vpop.f32.mrb[0].mxu0
      %v2202 = vadd.f32 %v2009, %v2201
      %v2203 = vpop.f32.mrb[0].mxu0
      %v2204 = vadd.f32 %v2011, %v2203
      %v2205 = vpop.f32.mrb[0].mxu0
      %v2206 = vadd.f32 %v2013, %v2205
      %v2207 = vpop.f32.mrb[0].mxu0
      %v2208 = vadd.f32 %v2015, %v2207
      %2209 = vmatprep.mubr.bf16.mxu0 %v993
      %2210 = vmatmul.mubr.bf16.gmra.mrb[0].mxu0 %v992
      %v2211 = vpop.f32.mrb[0].mxu0
      %v2212 = vadd.f32 %v2019, %v2211
      %v2213 = vpop.f32.mrb[0].mxu0
      %v2214 = vadd.f32 %v2021, %v2213
      %v2215 = vpop.f32.mrb[0].mxu0
      %v2216 = vadd.f32 %v2023, %v2215
      %v2217 = vpop.f32.mrb[0].mxu0
      %v2218 = vadd.f32 %v2025, %v2217
      %2219 = vmatprep.mubr.bf16.mxu0 %v1000
      %2220 = vmatmul.mubr.bf16.gmra.mrb[0].mxu0 %v999
      %v2221 = vpop.f32.mrb[0].mxu0
      %v2222 = vadd.f32 %v2029, %v2221
      %v2223 = vpop.f32.mrb[0].mxu0
      %v2224 = vadd.f32 %v2031, %v2223
      %v2225 = vpop.f32.mrb[0].mxu0
      %v2226 = vadd.f32 %v2033, %v2225
      %v2227 = vpop.f32.mrb[0].mxu0
      %v2228 = vadd.f32 %v2035, %v2227
      %2229 = vdwg.mxu0
      %2230 = vmatprep.subr.bf16.mxu0 %v1503
      %2231 = vmatpush1.bf16.msra.mxu0 %v1502
      %2232 = vmatprep.subr.bf16.mxu0 0
      %2233 = vmatpush1.bf16.msra.mxu0 0
      %2234 = vmatprep.subr.bf16.mxu0 0
      %2235 = vmatpush1.bf16.msra.mxu0 0
      %2236 = vmatprep.subr.bf16.mxu0 0
      %2237 = vmatpush1.bf16.msra.mxu0 0
      %2238 = vmatprep.subr.bf16.mxu0 0
      %2239 = vmatpush1.bf16.msra.mxu0 0
      %2240 = vmatprep.subr.bf16.mxu0 0
      %2241 = vmatpush1.bf16.msra.mxu0 0
      %2242 = vmatprep.subr.bf16.mxu0 0
      %2243 = vmatpush1.bf16.msra.mxu0 0
      %2244 = vmatprep.subr.bf16.mxu0 0
      %2245 = vmatpush1.bf16.msra.mxu0 0
      %2246 = vmatprep.subr.bf16.mxu0 0
      %2247 = vmatpush1.bf16.msra.mxu0 0
      %2248 = vmatprep.subr.bf16.mxu0 0
      %2249 = vmatpush1.bf16.msra.mxu0 0
      %2250 = vmatprep.subr.bf16.mxu0 0
      %2251 = vmatpush1.bf16.msra.mxu0 0
      %2252 = vmatprep.subr.bf16.mxu0 0
      %2253 = vmatpush1.bf16.msra.mxu0 0
      %2254 = vmatprep.subr.bf16.mxu0 0
      %2255 = vmatpush1.bf16.msra.mxu0 0
      %2256 = vmatprep.subr.bf16.mxu0 0
      %2257 = vmatpush1.bf16.msra.mxu0 0
      %2258 = vmatprep.subr.bf16.mxu0 0
      %2259 = vmatpush1.bf16.msra.mxu0 0
      %2260 = vmatprep.subr.bf16.mxu0 0
      %2261 = vmatpush1.bf16.msra.mxu0 0
      %2262 = vmatprep.mubr.bf16.mxu0 0
      %2263 = vmatmul.mubr.bf16.gmra.mrb[0].mxu0 %v1604
      %v2264 = vpop.f32.mrb[0].mxu0
      %v2265 = vadd.f32 %v2072, %v2264
      %v2266 = vpop.f32.mrb[0].mxu0
      %v2267 = vadd.f32 %v2074, %v2266
      %v2268 = vpop.f32.mrb[0].mxu0
      %v2269 = vadd.f32 %v2076, %v2268
      %v2270 = vpop.f32.mrb[0].mxu0
      %v2271 = vadd.f32 %v2078, %v2270
      %2272 = vmatprep.mubr.bf16.mxu0 0
      %2273 = vmatmul.mubr.bf16.gmra.mrb[0].mxu0 %v1607
      %v2274 = vpop.f32.mrb[0].mxu0
      %v2275 = vadd.f32 %v2082, %v2274
      %v2276 = vpop.f32.mrb[0].mxu0
      %v2277 = vadd.f32 %v2084, %v2276
      %v2278 = vpop.f32.mrb[0].mxu0
      %v2279 = vadd.f32 %v2086, %v2278
      %v2280 = vpop.f32.mrb[0].mxu0
      %v2281 = vadd.f32 %v2088, %v2280
      %2282 = vmatprep.mubr.bf16.mxu0 0
      %2283 = vmatmul.mubr.bf16.gmra.mrb[0].mxu0 %v1610
      %v2284 = vpop.f32.mrb[0].mxu0
      %v2285 = vadd.f32 %v2092, %v2284
      %v2286 = vpop.f32.mrb[0].mxu0
      %v2287 = vadd.f32 %v2094, %v2286
      %v2288 = vpop.f32.mrb[0].mxu0
      %v2289 = vadd.f32 %v2096, %v2288
      %v2290 = vpop.f32.mrb[0].mxu0
      %v2291 = vadd.f32 %v2098, %v2290
      %2292 = vmatprep.mubr.bf16.mxu0 0
      %2293 = vmatmul.mubr.bf16.gmra.mrb[0].mxu0 %v1613
      %v2294 = vpop.f32.mrb[0].mxu0
      %v2295 = vadd.f32 %v2102, %v2294
      %v2296 = vpop.f32.mrb[0].mxu0
      %v2297 = vadd.f32 %v2104, %v2296
      %v2298 = vpop.f32.mrb[0].mxu0
      %v2299 = vadd.f32 %v2106, %v2298
      %v2300 = vpop.f32.mrb[0].mxu0
      %v2301 = vadd.f32 %v2108, %v2300
      %2302 = vmatprep.mubr.bf16.mxu0 0
      %2303 = vmatmul.mubr.bf16.gmra.mrb[0].mxu0 %v1616
      %v2304 = vpop.f32.mrb[0].mxu0
      %v2305 = vadd.f32 %v2112, %v2304
      %v2306 = vpop.f32.mrb[0].mxu0
      %v2307 = vadd.f32 %v2114, %v2306
      %v2308 = vpop.f32.mrb[0].mxu0
      %v2309 = vadd.f32 %v2116, %v2308
      %v2310 = vpop.f32.mrb[0].mxu0
      %v2311 = vadd.f32 %v2118, %v2310
      %2312 = vmatprep.mubr.bf16.mxu0 0
      %2313 = vmatmul.mubr.bf16.gmra.mrb[0].mxu0 %v1619
      %v2314 = vpop.f32.mrb[0].mxu0
      %v2315 = vadd.f32 %v2122, %v2314
      %v2316 = vpop.f32.mrb[0].mxu0
      %v2317 = vadd.f32 %v2124, %v2316
      %v2318 = vpop.f32.mrb[0].mxu0
      %v2319 = vadd.f32 %v2126, %v2318
      %v2320 = vpop.f32.mrb[0].mxu0
      %v2321 = vadd.f32 %v2128, %v2320
      %2322 = vmatprep.mubr.bf16.mxu0 0
      %2323 = vmatmul.mubr.bf16.gmra.mrb[0].mxu0 %v1622
      %v2324 = vpop.f32.mrb[0].mxu0
      %v2325 = vadd.f32 %v2132, %v2324
      %v2326 = vpop.f32.mrb[0].mxu0
      %v2327 = vadd.f32 %v2134, %v2326
      %v2328 = vpop.f32.mrb[0].mxu0
      %v2329 = vadd.f32 %v2136, %v2328
      %v2330 = vpop.f32.mrb[0].mxu0
      %v2331 = vadd.f32 %v2138, %v2330
      %2332 = vmatprep.mubr.bf16.mxu0 0
      %2333 = vmatmul.mubr.bf16.gmra.mrb[0].mxu0 %v1625
      %v2334 = vpop.f32.mrb[0].mxu0
      %v2335 = vadd.f32 %v2142, %v2334
      %v2336 = vpop.f32.mrb[0].mxu0
      %v2337 = vadd.f32 %v2144, %v2336
      %v2338 = vpop.f32.mrb[0].mxu0
      %v2339 = vadd.f32 %v2146, %v2338
      %v2340 = vpop.f32.mrb[0].mxu0
      %v2341 = vadd.f32 %v2148, %v2340
      %2342 = vmatprep.mubr.bf16.mxu0 0
      %2343 = vmatmul.mubr.bf16.gmra.mrb[0].mxu0 %v1628
      %v2344 = vpop.f32.mrb[0].mxu0
      %v2345 = vadd.f32 %v2152, %v2344
      %v2346 = vpop.f32.mrb[0].mxu0
      %v2347 = vadd.f32 %v2154, %v2346
      %v2348 = vpop.f32.mrb[0].mxu0
      %v2349 = vadd.f32 %v2156, %v2348
      %v2350 = vpop.f32.mrb[0].mxu0
      %v2351 = vadd.f32 %v2158, %v2350
      %2352 = vmatprep.mubr.bf16.mxu0 0
      %2353 = vmatmul.mubr.bf16.gmra.mrb[0].mxu0 %v1631
      %v2354 = vpop.f32.mrb[0].mxu0
      %v2355 = vadd.f32 %v2162, %v2354
      %v2356 = vpop.f32.mrb[0].mxu0
      %v2357 = vadd.f32 %v2164, %v2356
      %v2358 = vpop.f32.mrb[0].mxu0
      %v2359 = vadd.f32 %v2166, %v2358
      %v2360 = vpop.f32.mrb[0].mxu0
      %v2361 = vadd.f32 %v2168, %v2360
      %2362 = vmatprep.mubr.bf16.mxu0 0
      %2363 = vmatmul.mubr.bf16.gmra.mrb[0].mxu0 %v1634
      %v2364 = vpop.f32.mrb[0].mxu0
      %v2365 = vadd.f32 %v2172, %v2364
      %v2366 = vpop.f32.mrb[0].mxu0
      %v2367 = vadd.f32 %v2174, %v2366
      %v2368 = vpop.f32.mrb[0].mxu0
      %v2369 = vadd.f32 %v2176, %v2368
      %v2370 = vpop.f32.mrb[0].mxu0
      %v2371 = vadd.f32 %v2178, %v2370
      %2372 = vmatprep.mubr.bf16.mxu0 0
      %2373 = vmatmul.mubr.bf16.gmra.mrb[0].mxu0 %v1637
      %v2374 = vpop.f32.mrb[0].mxu0
      %v2375 = vadd.f32 %v2182, %v2374
      %v2376 = vpop.f32.mrb[0].mxu0
      %v2377 = vadd.f32 %v2184, %v2376
      %v2378 = vpop.f32.mrb[0].mxu0
      %v2379 = vadd.f32 %v2186, %v2378
      %v2380 = vpop.f32.mrb[0].mxu0
      %v2381 = vadd.f32 %v2188, %v2380
      %2382 = vmatprep.mubr.bf16.mxu0 0
      %2383 = vmatmul.mubr.bf16.gmra.mrb[0].mxu0 %v1640
      %v2384 = vpop.f32.mrb[0].mxu0
      %v2385 = vadd.f32 %v2192, %v2384
      %v2386 = vpop.f32.mrb[0].mxu0
      %v2387 = vadd.f32 %v2194, %v2386
      %v2388 = vpop.f32.mrb[0].mxu0
      %v2389 = vadd.f32 %v2196, %v2388
      %v2390 = vpop.f32.mrb[0].mxu0
      %v2391 = vadd.f32 %v2198, %v2390
      %2392 = vmatprep.mubr.bf16.mxu0 0
      %2393 = vmatmul.mubr.bf16.gmra.mrb[0].mxu0 %v1643
      %v2394 = vpop.f32.mrb[0].mxu0
      %v2395 = vadd.f32 %v2202, %v2394
      %v2396 = vpop.f32.mrb[0].mxu0
      %v2397 = vadd.f32 %v2204, %v2396
      %v2398 = vpop.f32.mrb[0].mxu0
      %v2399 = vadd.f32 %v2206, %v2398
      %v2400 = vpop.f32.mrb[0].mxu0
      %v2401 = vadd.f32 %v2208, %v2400
      %2402 = vmatprep.mubr.bf16.mxu0 0
      %2403 = vmatmul.mubr.bf16.gmra.mrb[0].mxu0 %v1646
      %v2404 = vpop.f32.mrb[0].mxu0
      %v2405 = vadd.f32 %v2212, %v2404
      %v2406 = vpop.f32.mrb[0].mxu0
      %v2407 = vadd.f32 %v2214, %v2406
      %v2408 = vpop.f32.mrb[0].mxu0
      %v2409 = vadd.f32 %v2216, %v2408
      %v2410 = vpop.f32.mrb[0].mxu0
      %v2411 = vadd.f32 %v2218, %v2410
      %2412 = vmatprep.mubr.bf16.mxu0 0
      %2413 = vmatmul.mubr.bf16.gmra.mrb[0].mxu0 %v1649
      %v2414 = vpop.f32.mrb[0].mxu0
      %v2415 = vadd.f32 %v2222, %v2414
      %v2416 = vpop.f32.mrb[0].mxu0
      %v2417 = vadd.f32 %v2224, %v2416
      %v2418 = vpop.f32.mrb[0].mxu0
      %v2419 = vadd.f32 %v2226, %v2418
      %v2420 = vpop.f32.mrb[0].mxu0
      %v2421 = vadd.f32 %v2228, %v2420
      %2422 = vdwg.mxu0
      %v2423 = vmax.f32 %v2265, 0.0
      %v2424 = vmax.f32 %v2267, 0.0
      %v2425 = vmax.f32 %v2269, 0.0
      %v2426 = vmax.f32 %v2271, 0.0
      %v2427 = vmax.f32 %v2275, 0.0
      %v2428 = vmax.f32 %v2277, 0.0
      %v2429 = vmax.f32 %v2279, 0.0
      %v2430 = vmax.f32 %v2281, 0.0
      %v2431 = vmax.f32 %v2285, 0.0
      %v2432 = vmax.f32 %v2287, 0.0
      %v2433 = vmax.f32 %v2289, 0.0
      %v2434 = vmax.f32 %v2291, 0.0
      %v2435 = vmax.f32 %v2295, 0.0
      %v2436 = vmax.f32 %v2297, 0.0
      %v2437 = vmax.f32 %v2299, 0.0
      %v2438 = vmax.f32 %v2301, 0.0
      %v2439 = vmax.f32 %v2305, 0.0
      %v2440 = vmax.f32 %v2307, 0.0
      %v2441 = vmax.f32 %v2309, 0.0
      %v2442 = vmax.f32 %v2311, 0.0
      %v2443 = vmax.f32 %v2315, 0.0
      %v2444 = vmax.f32 %v2317, 0.0
      %v2445 = vmax.f32 %v2319, 0.0
      %v2446 = vmax.f32 %v2321, 0.0
      %v2447 = vmax.f32 %v2325, 0.0
      %v2448 = vmax.f32 %v2327, 0.0
      %v2449 = vmax.f32 %v2329, 0.0
      %v2450 = vmax.f32 %v2331, 0.0
      %v2451 = vmax.f32 %v2335, 0.0
      %v2452 = vmax.f32 %v2337, 0.0
      %v2453 = vmax.f32 %v2339, 0.0
      %v2454 = vmax.f32 %v2341, 0.0
      %v2455 = vmax.f32 %v2345, 0.0
      %v2456 = vmax.f32 %v2347, 0.0
      %v2457 = vmax.f32 %v2349, 0.0
      %v2458 = vmax.f32 %v2351, 0.0
      %v2459 = vmax.f32 %v2355, 0.0
      %v2460 = vmax.f32 %v2357, 0.0
      %v2461 = vmax.f32 %v2359, 0.0
      %v2462 = vmax.f32 %v2361, 0.0
      %v2463 = vmax.f32 %v2365, 0.0
      %v2464 = vmax.f32 %v2367, 0.0
      %v2465 = vmax.f32 %v2369, 0.0
      %v2466 = vmax.f32 %v2371, 0.0
      %v2467 = vmax.f32 %v2375, 0.0
      %v2468 = vmax.f32 %v2377, 0.0
      %v2469 = vmax.f32 %v2379, 0.0
      %v2470 = vmax.f32 %v2381, 0.0
      %v2471 = vmax.f32 %v2385, 0.0
      %v2472 = vmax.f32 %v2387, 0.0
      %v2473 = vmax.f32 %v2389, 0.0
      %v2474 = vmax.f32 %v2391, 0.0
      %v2475 = vmax.f32 %v2395, 0.0
      %v2476 = vmax.f32 %v2397, 0.0
      %v2477 = vmax.f32 %v2399, 0.0
      %v2478 = vmax.f32 %v2401, 0.0
      %v2479 = vmax.f32 %v2405, 0.0
      %v2480 = vmax.f32 %v2407, 0.0
      %v2481 = vmax.f32 %v2409, 0.0
      %v2482 = vmax.f32 %v2411, 0.0
      %v2483 = vmax.f32 %v2415, 0.0
      %v2484 = vmax.f32 %v2417, 0.0
      %v2485 = vmax.f32 %v2419, 0.0
      %v2486 = vmax.f32 %v2421, 0.0
      %v2487 = vpack.c.bf16 %v2425, %v2423
      %v2488 = vpack.c.bf16 %v2426, %v2424
      %v2489 = vpack.c.bf16 %v2429, %v2427
      %v2490 = vpack.c.bf16 %v2430, %v2428
      %v2491 = vpack.c.bf16 %v2433, %v2431
      %v2492 = vpack.c.bf16 %v2434, %v2432
      %v2493 = vpack.c.bf16 %v2437, %v2435
      %v2494 = vpack.c.bf16 %v2438, %v2436
      %v2495 = vpack.c.bf16 %v2441, %v2439
      %v2496 = vpack.c.bf16 %v2442, %v2440
      %v2497 = vpack.c.bf16 %v2445, %v2443
      %v2498 = vpack.c.bf16 %v2446, %v2444
      %v2499 = vpack.c.bf16 %v2449, %v2447
      %v2500 = vpack.c.bf16 %v2450, %v2448
      %v2501 = vpack.c.bf16 %v2453, %v2451
      %v2502 = vpack.c.bf16 %v2454, %v2452
      %v2503 = vpack.c.bf16 %v2457, %v2455
      %v2504 = vpack.c.bf16 %v2458, %v2456
      %v2505 = vpack.c.bf16 %v2461, %v2459
      %v2506 = vpack.c.bf16 %v2462, %v2460
      %v2507 = vpack.c.bf16 %v2465, %v2463
      %v2508 = vpack.c.bf16 %v2466, %v2464
      %v2509 = vpack.c.bf16 %v2469, %v2467
      %v2510 = vpack.c.bf16 %v2470, %v2468
      %v2511 = vpack.c.bf16 %v2473, %v2471
      %v2512 = vpack.c.bf16 %v2474, %v2472
      %v2513 = vpack.c.bf16 %v2477, %v2475
      %v2514 = vpack.c.bf16 %v2478, %v2476
      %v2515 = vpack.c.bf16 %v2481, %v2479
      %v2516 = vpack.c.bf16 %v2482, %v2480
      %v2517 = vpack.c.bf16 %v2485, %v2483
      %v2518 = vpack.c.bf16 %v2486, %v2484
      %v2519 = vld [vmem:[%s2] sm:$0xf]
      %v2520 = vld [vmem:[%s2 + $0x4] sm:$0xf]
      %v2521 = vld [vmem:[%s2 + $0x8] sm:$0xf]
      %v2522 = vld [vmem:[%s2 + $0xc] sm:$0xf]
      %v2523 = vld [vmem:[%s2 + $0x10] sm:$0xf]
      %v2524 = vld [vmem:[%s2 + $0x14] sm:$0xf]
      %v2525 = vld [vmem:[%s2 + $0x18] sm:$0xf]
      %v2526 = vld [vmem:[%s2 + $0x1c] sm:$0xf]
      %v2527 = vld [vmem:[%s2 + $0x20] sm:$0xf]
      %v2528 = vld [vmem:[%s2 + $0x24] sm:$0xf]
      %v2529 = vld [vmem:[%s2 + $0x28] sm:$0xf]
      %v2530 = vld [vmem:[%s2 + $0x2c] sm:$0xf]
      %v2531 = vld [vmem:[%s2 + $0x30] sm:$0xf]
      %v2532 = vld [vmem:[%s2 + $0x34] sm:$0xf]
      %v2533 = vld [vmem:[%s2 + $0x38] sm:$0xf]
      %v2534 = vld [vmem:[%s2 + $0x3c] sm:$0xf]
      %v2535 = vld [vmem:[%s2 + $0x40] sm:$0xf]
      %v2536 = vld [vmem:[%s2 + $0x44] sm:$0xf]
      %v2537 = vld [vmem:[%s2 + $0x48] sm:$0xf]
      %v2538 = vld [vmem:[%s2 + $0x4c] sm:$0xf]
      %v2539 = vld [vmem:[%s2 + $0x50] sm:$0xf]
      %v2540 = vld [vmem:[%s2 + $0x54] sm:$0xf]
      %v2541 = vld [vmem:[%s2 + $0x58] sm:$0xf]
      %v2542 = vld [vmem:[%s2 + $0x5c] sm:$0xf]
      %v2543 = vld [vmem:[%s2 + $0x60] sm:$0xf]
      %v2544 = vld [vmem:[%s2 + $0x64] sm:$0xf]
      %v2545 = vld [vmem:[%s2 + $0x68] sm:$0xf]
      %v2546 = vld [vmem:[%s2 + $0x6c] sm:$0xf]
      %v2547 = vld [vmem:[%s2 + $0x70] sm:$0xf]
      %v2548 = vld [vmem:[%s2 + $0x74] sm:$0xf]
      %v2549 = vld [vmem:[%s2 + $0x78] sm:$0xf]
      %v2550 = vld [vmem:[%s2 + $0x7c] sm:$0xf]
      %v2551 = vld [vmem:[%s12] sm:$0x1]
      %v2553 = vlaneseq
      %v2554 = vshrl.u32 %v2553, 7
      %v2555 = vsub.s32 0, %v2554
      %v2556 = vrot.slane %v2551, %v2555
      %v2590 = vunpack.c.l.b16 %v2519
      %v2591 = vunpack.c.l.b16 %v2520
      %v2592 = vunpack.c.l.b16 %v2521
      %v2593 = vunpack.c.l.b16 %v2522
      %v2594 = vunpack.c.l.b16 %v2523
      %v2595 = vunpack.c.l.b16 %v2524
      %v2596 = vunpack.c.l.b16 %v2525
      %v2597 = vunpack.c.l.b16 %v2526
      %v2598 = vunpack.c.l.b16 %v2527
      %v2599 = vunpack.c.l.b16 %v2528
      %v2600 = vunpack.c.l.b16 %v2529
      %v2601 = vunpack.c.l.b16 %v2530
      %v2602 = vunpack.c.l.b16 %v2531
      %v2603 = vunpack.c.l.b16 %v2532
      %v2604 = vunpack.c.l.b16 %v2533
      %v2605 = vunpack.c.l.b16 %v2534
      %v2606 = vunpack.c.l.b16 %v2535
      %v2607 = vunpack.c.l.b16 %v2536
      %v2608 = vunpack.c.l.b16 %v2537
      %v2609 = vunpack.c.l.b16 %v2538
      %v2610 = vunpack.c.l.b16 %v2539
      %v2611 = vunpack.c.l.b16 %v2540
      %v2612 = vunpack.c.l.b16 %v2541
      %v2613 = vunpack.c.l.b16 %v2542
      %v2614 = vunpack.c.l.b16 %v2543
      %v2615 = vunpack.c.l.b16 %v2544
      %v2616 = vunpack.c.l.b16 %v2545
      %v2617 = vunpack.c.l.b16 %v2546
      %v2618 = vunpack.c.l.b16 %v2547
      %v2619 = vunpack.c.l.b16 %v2548
      %v2620 = vunpack.c.l.b16 %v2549
      %v2621 = vunpack.c.l.b16 %v2550
      %v2622 = vpack.c.b16 %v2591, %v2590
      %v2623 = vpack.c.b16 %v2593, %v2592
      %v2624 = vpack.c.b16 %v2595, %v2594
      %v2625 = vpack.c.b16 %v2597, %v2596
      %v2626 = vpack.c.b16 %v2599, %v2598
      %v2627 = vpack.c.b16 %v2601, %v2600
      %v2628 = vpack.c.b16 %v2603, %v2602
      %v2629 = vpack.c.b16 %v2605, %v2604
      %v2630 = vpack.c.b16 %v2607, %v2606
      %v2631 = vpack.c.b16 %v2609, %v2608
      %v2632 = vpack.c.b16 %v2611, %v2610
      %v2633 = vpack.c.b16 %v2613, %v2612
      %v2634 = vpack.c.b16 %v2615, %v2614
      %v2635 = vpack.c.b16 %v2617, %v2616
      %v2636 = vpack.c.b16 %v2619, %v2618
      %v2637 = vpack.c.b16 %v2621, %v2620
      %2654 = vmatprep.subr.bf16.mxu0 0
      %2655 = vmatpush1.bf16.msra.mxu0 %v2622
      %2656 = vmatprep.subr.bf16.mxu0 0
      %2657 = vmatpush1.bf16.msra.mxu0 %v2623
      %2658 = vmatprep.subr.bf16.mxu0 0
      %2659 = vmatpush1.bf16.msra.mxu0 %v2624
      %2660 = vmatprep.subr.bf16.mxu0 0
      %2661 = vmatpush1.bf16.msra.mxu0 %v2625
      %2662 = vmatprep.subr.bf16.mxu0 0
      %2663 = vmatpush1.bf16.msra.mxu0 %v2626
      %2664 = vmatprep.subr.bf16.mxu0 0
      %2665 = vmatpush1.bf16.msra.mxu0 %v2627
      %2666 = vmatprep.subr.bf16.mxu0 0
      %2667 = vmatpush1.bf16.msra.mxu0 %v2628
      %2668 = vmatprep.subr.bf16.mxu0 0
      %2669 = vmatpush1.bf16.msra.mxu0 %v2629
      %2670 = vmatprep.subr.bf16.mxu0 0
      %2671 = vmatpush1.bf16.msra.mxu0 %v2630
      %2672 = vmatprep.subr.bf16.mxu0 0
      %2673 = vmatpush1.bf16.msra.mxu0 %v2631
      %2674 = vmatprep.subr.bf16.mxu0 0
      %2675 = vmatpush1.bf16.msra.mxu0 %v2632
      %2676 = vmatprep.subr.bf16.mxu0 0
      %2677 = vmatpush1.bf16.msra.mxu0 %v2633
      %2678 = vmatprep.subr.bf16.mxu0 0
      %2679 = vmatpush1.bf16.msra.mxu0 %v2634
      %2680 = vmatprep.subr.bf16.mxu0 0
      %2681 = vmatpush1.bf16.msra.mxu0 %v2635
      %2682 = vmatprep.subr.bf16.mxu0 0
      %2683 = vmatpush1.bf16.msra.mxu0 %v2636
      %2684 = vmatprep.subr.bf16.mxu0 0
      %2685 = vmatpush1.bf16.msra.mxu0 %v2637
      %2686 = vmatprep.mubr.bf16.mxu0 %v2488
      %2687 = vmatmul.mubr.bf16.gmra.mrb[0].mxu0 %v2487
      %v2688 = vpop.f32.mrb[0].mxu0
      %v2689 = vadd.f32 %v2556, %v2688
      %v2690 = vpop.f32.mrb[0].mxu0
      %v2691 = vpop.f32.mrb[0].mxu0
      %v2692 = vadd.f32 %v2556, %v2691
      %v2693 = vpop.f32.mrb[0].mxu0
      %2694 = vmatprep.mubr.bf16.mxu0 %v2490
      %2695 = vmatmul.mubr.bf16.gmra.mrb[0].mxu0 %v2489
      %v2696 = vpop.f32.mrb[0].mxu0
      %v2697 = vadd.f32 %v2556, %v2696
      %v2698 = vpop.f32.mrb[0].mxu0
      %v2699 = vpop.f32.mrb[0].mxu0
      %v2700 = vadd.f32 %v2556, %v2699
      %v2701 = vpop.f32.mrb[0].mxu0
      %2702 = vmatprep.mubr.bf16.mxu0 %v2492
      %2703 = vmatmul.mubr.bf16.gmra.mrb[0].mxu0 %v2491
      %v2704 = vpop.f32.mrb[0].mxu0
      %v2705 = vadd.f32 %v2556, %v2704
      %v2706 = vpop.f32.mrb[0].mxu0
      %v2707 = vpop.f32.mrb[0].mxu0
      %v2708 = vadd.f32 %v2556, %v2707
      %v2709 = vpop.f32.mrb[0].mxu0
      %2710 = vmatprep.mubr.bf16.mxu0 %v2494
      %2711 = vmatmul.mubr.bf16.gmra.mrb[0].mxu0 %v2493
      %v2712 = vpop.f32.mrb[0].mxu0
      %v2713 = vadd.f32 %v2556, %v2712
      %v2714 = vpop.f32.mrb[0].mxu0
      %v2715 = vpop.f32.mrb[0].mxu0
      %v2716 = vadd.f32 %v2556, %v2715
      %v2717 = vpop.f32.mrb[0].mxu0
      %2718 = vmatprep.mubr.bf16.mxu0 %v2496
      %2719 = vmatmul.mubr.bf16.gmra.mrb[0].mxu0 %v2495
      %v2720 = vpop.f32.mrb[0].mxu0
      %v2721 = vadd.f32 %v2556, %v2720
      %v2722 = vpop.f32.mrb[0].mxu0
      %v2723 = vpop.f32.mrb[0].mxu0
      %v2724 = vadd.f32 %v2556, %v2723
      %v2725 = vpop.f32.mrb[0].mxu0
      %2726 = vmatprep.mubr.bf16.mxu0 %v2498
      %2727 = vmatmul.mubr.bf16.gmra.mrb[0].mxu0 %v2497
      %v2728 = vpop.f32.mrb[0].mxu0
      %v2729 = vadd.f32 %v2556, %v2728
      %v2730 = vpop.f32.mrb[0].mxu0
      %v2731 = vpop.f32.mrb[0].mxu0
      %v2732 = vadd.f32 %v2556, %v2731
      %v2733 = vpop.f32.mrb[0].mxu0
      %2734 = vmatprep.mubr.bf16.mxu0 %v2500
      %2735 = vmatmul.mubr.bf16.gmra.mrb[0].mxu0 %v2499
      %v2736 = vpop.f32.mrb[0].mxu0
      %v2737 = vadd.f32 %v2556, %v2736
      %v2738 = vpop.f32.mrb[0].mxu0
      %v2739 = vpop.f32.mrb[0].mxu0
      %v2740 = vadd.f32 %v2556, %v2739
      %v2741 = vpop.f32.mrb[0].mxu0
      %2742 = vmatprep.mubr.bf16.mxu0 %v2502
      %2743 = vmatmul.mubr.bf16.gmra.mrb[0].mxu0 %v2501
      %v2744 = vpop.f32.mrb[0].mxu0
      %v2745 = vadd.f32 %v2556, %v2744
      %v2746 = vpop.f32.mrb[0].mxu0
      %v2747 = vpop.f32.mrb[0].mxu0
      %v2748 = vadd.f32 %v2556, %v2747
      %v2749 = vpop.f32.mrb[0].mxu0
      %2750 = vmatprep.mubr.bf16.mxu0 %v2504
      %2751 = vmatmul.mubr.bf16.gmra.mrb[0].mxu0 %v2503
      %v2752 = vpop.f32.mrb[0].mxu0
      %v2753 = vadd.f32 %v2556, %v2752
      %v2754 = vpop.f32.mrb[0].mxu0
      %v2755 = vpop.f32.mrb[0].mxu0
      %v2756 = vadd.f32 %v2556, %v2755
      %v2757 = vpop.f32.mrb[0].mxu0
      %2758 = vmatprep.mubr.bf16.mxu0 %v2506
      %2759 = vmatmul.mubr.bf16.gmra.mrb[0].mxu0 %v2505
      %v2760 = vpop.f32.mrb[0].mxu0
      %v2761 = vadd.f32 %v2556, %v2760
      %v2762 = vpop.f32.mrb[0].mxu0
      %v2763 = vpop.f32.mrb[0].mxu0
      %v2764 = vadd.f32 %v2556, %v2763
      %v2765 = vpop.f32.mrb[0].mxu0
      %2766 = vmatprep.mubr.bf16.mxu0 %v2508
      %2767 = vmatmul.mubr.bf16.gmra.mrb[0].mxu0 %v2507
      %v2768 = vpop.f32.mrb[0].mxu0
      %v2769 = vadd.f32 %v2556, %v2768
      %v2770 = vpop.f32.mrb[0].mxu0
      %v2771 = vpop.f32.mrb[0].mxu0
      %v2772 = vadd.f32 %v2556, %v2771
      %v2773 = vpop.f32.mrb[0].mxu0
      %2774 = vmatprep.mubr.bf16.mxu0 %v2510
      %2775 = vmatmul.mubr.bf16.gmra.mrb[0].mxu0 %v2509
      %v2776 = vpop.f32.mrb[0].mxu0
      %v2777 = vadd.f32 %v2556, %v2776
      %v2778 = vpop.f32.mrb[0].mxu0
      %v2779 = vpop.f32.mrb[0].mxu0
      %v2780 = vadd.f32 %v2556, %v2779
      %v2781 = vpop.f32.mrb[0].mxu0
      %2782 = vmatprep.mubr.bf16.mxu0 %v2512
      %2783 = vmatmul.mubr.bf16.gmra.mrb[0].mxu0 %v2511
      %v2784 = vpop.f32.mrb[0].mxu0
      %v2785 = vadd.f32 %v2556, %v2784
      %v2786 = vpop.f32.mrb[0].mxu0
      %v2787 = vpop.f32.mrb[0].mxu0
      %v2788 = vadd.f32 %v2556, %v2787
      %v2789 = vpop.f32.mrb[0].mxu0
      %2790 = vmatprep.mubr.bf16.mxu0 %v2514
      %2791 = vmatmul.mubr.bf16.gmra.mrb[0].mxu0 %v2513
      %v2792 = vpop.f32.mrb[0].mxu0
      %v2793 = vadd.f32 %v2556, %v2792
      %v2794 = vpop.f32.mrb[0].mxu0
      %v2795 = vpop.f32.mrb[0].mxu0
      %v2796 = vadd.f32 %v2556, %v2795
      %v2797 = vpop.f32.mrb[0].mxu0
      %2798 = vmatprep.mubr.bf16.mxu0 %v2516
      %2799 = vmatmul.mubr.bf16.gmra.mrb[0].mxu0 %v2515
      %v2800 = vpop.f32.mrb[0].mxu0
      %v2801 = vadd.f32 %v2556, %v2800
      %v2802 = vpop.f32.mrb[0].mxu0
      %v2803 = vpop.f32.mrb[0].mxu0
      %v2804 = vadd.f32 %v2556, %v2803
      %v2805 = vpop.f32.mrb[0].mxu0
      %2806 = vmatprep.mubr.bf16.mxu0 %v2518
      %2807 = vmatmul.mubr.bf16.gmra.mrb[0].mxu0 %v2517
      %v2808 = vpop.f32.mrb[0].mxu0
      %v2809 = vadd.f32 %v2556, %v2808
      %v2810 = vpop.f32.mrb[0].mxu0
      %v2811 = vpop.f32.mrb[0].mxu0
      %v2812 = vadd.f32 %v2556, %v2811
      %v2813 = vpop.f32.mrb[0].mxu0
      %2814 = vdwg.mxu0
      %v2815 = vmax.f32 %v2689, 0.0
      %v2816 = vmax.f32 %v2692, 0.0
      %v2817 = vmax.f32 %v2697, 0.0
      %v2818 = vmax.f32 %v2700, 0.0
      %v2819 = vmax.f32 %v2705, 0.0
      %v2820 = vmax.f32 %v2708, 0.0
      %v2821 = vmax.f32 %v2713, 0.0
      %v2822 = vmax.f32 %v2716, 0.0
      %v2823 = vmax.f32 %v2721, 0.0
      %v2824 = vmax.f32 %v2724, 0.0
      %v2825 = vmax.f32 %v2729, 0.0
      %v2826 = vmax.f32 %v2732, 0.0
      %v2827 = vmax.f32 %v2737, 0.0
      %v2828 = vmax.f32 %v2740, 0.0
      %v2829 = vmax.f32 %v2745, 0.0
      %v2830 = vmax.f32 %v2748, 0.0
      %v2831 = vmax.f32 %v2753, 0.0
      %v2832 = vmax.f32 %v2756, 0.0
      %v2833 = vmax.f32 %v2761, 0.0
      %v2834 = vmax.f32 %v2764, 0.0
      %v2835 = vmax.f32 %v2769, 0.0
      %v2836 = vmax.f32 %v2772, 0.0
      %v2837 = vmax.f32 %v2777, 0.0
      %v2838 = vmax.f32 %v2780, 0.0
      %v2839 = vmax.f32 %v2785, 0.0
      %v2840 = vmax.f32 %v2788, 0.0
      %v2841 = vmax.f32 %v2793, 0.0
      %v2842 = vmax.f32 %v2796, 0.0
      %v2843 = vmax.f32 %v2801, 0.0
      %v2844 = vmax.f32 %v2804, 0.0
      %v2845 = vmax.f32 %v2809, 0.0
      %v2846 = vmax.f32 %v2812, 0.0
      %v2847 = vpack.c.bf16 %v2816, %v2815
      %v2848 = vpack.c.bf16 %v2818, %v2817
      %v2849 = vpack.c.bf16 %v2820, %v2819
      %v2850 = vpack.c.bf16 %v2822, %v2821
      %v2851 = vpack.c.bf16 %v2824, %v2823
      %v2852 = vpack.c.bf16 %v2826, %v2825
      %v2853 = vpack.c.bf16 %v2828, %v2827
      %v2854 = vpack.c.bf16 %v2830, %v2829
      %v2855 = vpack.c.bf16 %v2832, %v2831
      %v2856 = vpack.c.bf16 %v2834, %v2833
      %v2857 = vpack.c.bf16 %v2836, %v2835
      %v2858 = vpack.c.bf16 %v2838, %v2837
      %v2859 = vpack.c.bf16 %v2840, %v2839
      %v2860 = vpack.c.bf16 %v2842, %v2841
      %v2861 = vpack.c.bf16 %v2844, %v2843
      %v2862 = vpack.c.bf16 %v2846, %v2845
      %v2863 = vld [vmem:[%s3] sm:$0xf]
      %v2864 = vld [vmem:[%s3 + $0x4] sm:$0xf]
      %v2865 = vld [vmem:[%s3 + $0x8] sm:$0xf]
      %v2866 = vld [vmem:[%s3 + $0xc] sm:$0xf]
      %v2867 = vld [vmem:[%s3 + $0x10] sm:$0xf]
      %v2868 = vld [vmem:[%s3 + $0x14] sm:$0xf]
      %v2869 = vld [vmem:[%s3 + $0x18] sm:$0xf]
      %v2870 = vld [vmem:[%s3 + $0x1c] sm:$0xf]
      %v2871 = vld [vmem:[%s3 + $0x20] sm:$0xf]
      %v2872 = vld [vmem:[%s3 + $0x24] sm:$0xf]
      %v2873 = vld [vmem:[%s3 + $0x28] sm:$0xf]
      %v2874 = vld [vmem:[%s3 + $0x2c] sm:$0xf]
      %v2875 = vld [vmem:[%s3 + $0x30] sm:$0xf]
      %v2876 = vld [vmem:[%s3 + $0x34] sm:$0xf]
      %v2877 = vld [vmem:[%s3 + $0x38] sm:$0xf]
      %v2878 = vld [vmem:[%s3 + $0x3c] sm:$0xf]
      %v2879 = vld [vmem:[%s13] sm:$0x1]
      %v2881 = vlaneseq
      %v2882 = vshrl.u32 %v2881, 7
      %v2883 = vsub.s32 0, %v2882
      %v2884 = vrot.slane %v2879, %v2883
      %v2902 = vunpack.c.l.b16 %v2863
      %v2903 = vunpack.c.l.b16 %v2864
      %v2904 = vunpack.c.l.b16 %v2865
      %v2905 = vunpack.c.l.b16 %v2866
      %v2906 = vunpack.c.l.b16 %v2867
      %v2907 = vunpack.c.l.b16 %v2868
      %v2908 = vunpack.c.l.b16 %v2869
      %v2909 = vunpack.c.l.b16 %v2870
      %v2910 = vunpack.c.l.b16 %v2871
      %v2911 = vunpack.c.l.b16 %v2872
      %v2912 = vunpack.c.l.b16 %v2873
      %v2913 = vunpack.c.l.b16 %v2874
      %v2914 = vunpack.c.l.b16 %v2875
      %v2915 = vunpack.c.l.b16 %v2876
      %v2916 = vunpack.c.l.b16 %v2877
      %v2917 = vunpack.c.l.b16 %v2878
      %v2918 = vpack.c.b16 %v2903, %v2902
      %v2919 = vpack.c.b16 %v2905, %v2904
      %v2920 = vpack.c.b16 %v2907, %v2906
      %v2921 = vpack.c.b16 %v2909, %v2908
      %v2922 = vpack.c.b16 %v2911, %v2910
      %v2923 = vpack.c.b16 %v2913, %v2912
      %v2924 = vpack.c.b16 %v2915, %v2914
      %v2925 = vpack.c.b16 %v2917, %v2916
      %2934 = vmatprep.subr.bf16.mxu0 0
      %2935 = vmatpush1.bf16.msra.mxu0 %v2918
      %2936 = vmatprep.subr.bf16.mxu0 0
      %2937 = vmatpush1.bf16.msra.mxu0 %v2919
      %2938 = vmatprep.subr.bf16.mxu0 0
      %2939 = vmatpush1.bf16.msra.mxu0 %v2920
      %2940 = vmatprep.subr.bf16.mxu0 0
      %2941 = vmatpush1.bf16.msra.mxu0 %v2921
      %2942 = vmatprep.subr.bf16.mxu0 0
      %2943 = vmatpush1.bf16.msra.mxu0 %v2922
      %2944 = vmatprep.subr.bf16.mxu0 0
      %2945 = vmatpush1.bf16.msra.mxu0 %v2923
      %2946 = vmatprep.subr.bf16.mxu0 0
      %2947 = vmatpush1.bf16.msra.mxu0 %v2924
      %2948 = vmatprep.subr.bf16.mxu0 0
      %2949 = vmatpush1.bf16.msra.mxu0 %v2925
      %2950 = vmatprep.subr.bf16.mxu0 0
      %2951 = vmatpush1.bf16.msra.mxu0 0
      %2952 = vmatprep.subr.bf16.mxu0 0
      %2953 = vmatpush1.bf16.msra.mxu0 0
      %2954 = vmatprep.subr.bf16.mxu0 0
      %2955 = vmatpush1.bf16.msra.mxu0 0
      %2956 = vmatprep.subr.bf16.mxu0 0
      %2957 = vmatpush1.bf16.msra.mxu0 0
      %2958 = vmatprep.subr.bf16.mxu0 0
      %2959 = vmatpush1.bf16.msra.mxu0 0
      %2960 = vmatprep.subr.bf16.mxu0 0
      %2961 = vmatpush1.bf16.msra.mxu0 0
      %2962 = vmatprep.subr.bf16.mxu0 0
      %2963 = vmatpush1.bf16.msra.mxu0 0
      %2964 = vmatprep.subr.bf16.mxu0 0
      %2965 = vmatpush1.bf16.msra.mxu0 0
      %2966 = vmatprep.mubr.bf16.mxu0 0
      %2967 = vmatmul.mubr.bf16.gmra.mrb[0].mxu0 %v2847
      %v2968 = vpop.f32.mrb[0].mxu0
      %v2969 = vadd.f32 %v2884, %v2968
      %v2970 = vpop.f32.mrb[0].mxu0
      %v2971 = vpop.f32.mrb[0].mxu0
      %v2972 = vadd.f32 %v2884, %v2971
      %v2973 = vpop.f32.mrb[0].mxu0
      %2974 = vmatprep.mubr.bf16.mxu0 0
      %2975 = vmatmul.mubr.bf16.gmra.mrb[0].mxu0 %v2848
      %v2976 = vpop.f32.mrb[0].mxu0
      %v2977 = vadd.f32 %v2884, %v2976
      %v2978 = vpop.f32.mrb[0].mxu0
      %v2979 = vpop.f32.mrb[0].mxu0
      %v2980 = vadd.f32 %v2884, %v2979
      %v2981 = vpop.f32.mrb[0].mxu0
      %2982 = vmatprep.mubr.bf16.mxu0 0
      %2983 = vmatmul.mubr.bf16.gmra.mrb[0].mxu0 %v2849
      %v2984 = vpop.f32.mrb[0].mxu0
      %v2985 = vadd.f32 %v2884, %v2984
      %v2986 = vpop.f32.mrb[0].mxu0
      %v2987 = vpop.f32.mrb[0].mxu0
      %v2988 = vadd.f32 %v2884, %v2987
      %v2989 = vpop.f32.mrb[0].mxu0
      %2990 = vmatprep.mubr.bf16.mxu0 0
      %2991 = vmatmul.mubr.bf16.gmra.mrb[0].mxu0 %v2850
      %v2992 = vpop.f32.mrb[0].mxu0
      %v2993 = vadd.f32 %v2884, %v2992
      %v2994 = vpop.f32.mrb[0].mxu0
      %v2995 = vpop.f32.mrb[0].mxu0
      %v2996 = vadd.f32 %v2884, %v2995
      %v2997 = vpop.f32.mrb[0].mxu0
      %2998 = vmatprep.mubr.bf16.mxu0 0
      %2999 = vmatmul.mubr.bf16.gmra.mrb[0].mxu0 %v2851
      %v3000 = vpop.f32.mrb[0].mxu0
      %v3001 = vadd.f32 %v2884, %v3000
      %v3002 = vpop.f32.mrb[0].mxu0
      %v3003 = vpop.f32.mrb[0].mxu0
      %v3004 = vadd.f32 %v2884, %v3003
      %v3005 = vpop.f32.mrb[0].mxu0
      %3006 = vmatprep.mubr.bf16.mxu0 0
      %3007 = vmatmul.mubr.bf16.gmra.mrb[0].mxu0 %v2852
      %v3008 = vpop.f32.mrb[0].mxu0
      %v3009 = vadd.f32 %v2884, %v3008
      %v3010 = vpop.f32.mrb[0].mxu0
      %v3011 = vpop.f32.mrb[0].mxu0
      %v3012 = vadd.f32 %v2884, %v3011
      %v3013 = vpop.f32.mrb[0].mxu0
      %3014 = vmatprep.mubr.bf16.mxu0 0
      %3015 = vmatmul.mubr.bf16.gmra.mrb[0].mxu0 %v2853
      %v3016 = vpop.f32.mrb[0].mxu0
      %v3017 = vadd.f32 %v2884, %v3016
      %v3018 = vpop.f32.mrb[0].mxu0
      %v3019 = vpop.f32.mrb[0].mxu0
      %v3020 = vadd.f32 %v2884, %v3019
      %v3021 = vpop.f32.mrb[0].mxu0
      %3022 = vmatprep.mubr.bf16.mxu0 0
      %3023 = vmatmul.mubr.bf16.gmra.mrb[0].mxu0 %v2854
      %v3024 = vpop.f32.mrb[0].mxu0
      %v3025 = vadd.f32 %v2884, %v3024
      %v3026 = vpop.f32.mrb[0].mxu0
      %v3027 = vpop.f32.mrb[0].mxu0
      %v3028 = vadd.f32 %v2884, %v3027
      %v3029 = vpop.f32.mrb[0].mxu0
      %3030 = vmatprep.mubr.bf16.mxu0 0
      %3031 = vmatmul.mubr.bf16.gmra.mrb[0].mxu0 %v2855
      %v3032 = vpop.f32.mrb[0].mxu0
      %v3033 = vadd.f32 %v2884, %v3032
      %v3034 = vpop.f32.mrb[0].mxu0
      %v3035 = vpop.f32.mrb[0].mxu0
      %v3036 = vadd.f32 %v2884, %v3035
      %v3037 = vpop.f32.mrb[0].mxu0
      %3038 = vmatprep.mubr.bf16.mxu0 0
      %3039 = vmatmul.mubr.bf16.gmra.mrb[0].mxu0 %v2856
      %v3040 = vpop.f32.mrb[0].mxu0
      %v3041 = vadd.f32 %v2884, %v3040
      %v3042 = vpop.f32.mrb[0].mxu0
      %v3043 = vpop.f32.mrb[0].mxu0
      %v3044 = vadd.f32 %v2884, %v3043
      %v3045 = vpop.f32.mrb[0].mxu0
      %3046 = vmatprep.mubr.bf16.mxu0 0
      %3047 = vmatmul.mubr.bf16.gmra.mrb[0].mxu0 %v2857
      %v3048 = vpop.f32.mrb[0].mxu0
      %v3049 = vadd.f32 %v2884, %v3048
      %v3050 = vpop.f32.mrb[0].mxu0
      %v3051 = vpop.f32.mrb[0].mxu0
      %v3052 = vadd.f32 %v2884, %v3051
      %v3053 = vpop.f32.mrb[0].mxu0
      %3054 = vmatprep.mubr.bf16.mxu0 0
      %3055 = vmatmul.mubr.bf16.gmra.mrb[0].mxu0 %v2858
      %v3056 = vpop.f32.mrb[0].mxu0
      %v3057 = vadd.f32 %v2884, %v3056
      %v3058 = vpop.f32.mrb[0].mxu0
      %v3059 = vpop.f32.mrb[0].mxu0
      %v3060 = vadd.f32 %v2884, %v3059
      %v3061 = vpop.f32.mrb[0].mxu0
      %3062 = vmatprep.mubr.bf16.mxu0 0
      %3063 = vmatmul.mubr.bf16.gmra.mrb[0].mxu0 %v2859
      %v3064 = vpop.f32.mrb[0].mxu0
      %v3065 = vadd.f32 %v2884, %v3064
      %v3066 = vpop.f32.mrb[0].mxu0
      %v3067 = vpop.f32.mrb[0].mxu0
      %v3068 = vadd.f32 %v2884, %v3067
      %v3069 = vpop.f32.mrb[0].mxu0
      %3070 = vmatprep.mubr.bf16.mxu0 0
      %3071 = vmatmul.mubr.bf16.gmra.mrb[0].mxu0 %v2860
      %v3072 = vpop.f32.mrb[0].mxu0
      %v3073 = vadd.f32 %v2884, %v3072
      %v3074 = vpop.f32.mrb[0].mxu0
      %v3075 = vpop.f32.mrb[0].mxu0
      %v3076 = vadd.f32 %v2884, %v3075
      %v3077 = vpop.f32.mrb[0].mxu0
      %3078 = vmatprep.mubr.bf16.mxu0 0
      %3079 = vmatmul.mubr.bf16.gmra.mrb[0].mxu0 %v2861
      %v3080 = vpop.f32.mrb[0].mxu0
      %v3081 = vadd.f32 %v2884, %v3080
      %v3082 = vpop.f32.mrb[0].mxu0
      %v3083 = vpop.f32.mrb[0].mxu0
      %v3084 = vadd.f32 %v2884, %v3083
      %v3085 = vpop.f32.mrb[0].mxu0
      %3086 = vmatprep.mubr.bf16.mxu0 0
      %3087 = vmatmul.mubr.bf16.gmra.mrb[0].mxu0 %v2862
      %v3088 = vpop.f32.mrb[0].mxu0
      %v3089 = vadd.f32 %v2884, %v3088
      %v3090 = vpop.f32.mrb[0].mxu0
      %v3091 = vpop.f32.mrb[0].mxu0
      %v3092 = vadd.f32 %v2884, %v3091
      %v3093 = vpop.f32.mrb[0].mxu0
      %3094 = vdwg.mxu0
      %v3095 = vmax.f32 %v2969, 0.0
      %v3096 = vmax.f32 %v2972, 0.0
      %v3097 = vmax.f32 %v2977, 0.0
      %v3098 = vmax.f32 %v2980, 0.0
      %v3099 = vmax.f32 %v2985, 0.0
      %v3100 = vmax.f32 %v2988, 0.0
      %v3101 = vmax.f32 %v2993, 0.0
      %v3102 = vmax.f32 %v2996, 0.0
      %v3103 = vmax.f32 %v3001, 0.0
      %v3104 = vmax.f32 %v3004, 0.0
      %v3105 = vmax.f32 %v3009, 0.0
      %v3106 = vmax.f32 %v3012, 0.0
      %v3107 = vmax.f32 %v3017, 0.0
      %v3108 = vmax.f32 %v3020, 0.0
      %v3109 = vmax.f32 %v3025, 0.0
      %v3110 = vmax.f32 %v3028, 0.0
      %v3111 = vmax.f32 %v3033, 0.0
      %v3112 = vmax.f32 %v3036, 0.0
      %v3113 = vmax.f32 %v3041, 0.0
      %v3114 = vmax.f32 %v3044, 0.0
      %v3115 = vmax.f32 %v3049, 0.0
      %v3116 = vmax.f32 %v3052, 0.0
      %v3117 = vmax.f32 %v3057, 0.0
      %v3118 = vmax.f32 %v3060, 0.0
      %v3119 = vmax.f32 %v3065, 0.0
      %v3120 = vmax.f32 %v3068, 0.0
      %v3121 = vmax.f32 %v3073, 0.0
      %v3122 = vmax.f32 %v3076, 0.0
      %v3123 = vmax.f32 %v3081, 0.0
      %v3124 = vmax.f32 %v3084, 0.0
      %v3125 = vmax.f32 %v3089, 0.0
      %v3126 = vmax.f32 %v3092, 0.0
      %v3127 = vpack.c.bf16 %v3096, %v3095
      %v3128 = vpack.c.bf16 %v3098, %v3097
      %v3129 = vpack.c.bf16 %v3100, %v3099
      %v3130 = vpack.c.bf16 %v3102, %v3101
      %v3131 = vpack.c.bf16 %v3104, %v3103
      %v3132 = vpack.c.bf16 %v3106, %v3105
      %v3133 = vpack.c.bf16 %v3108, %v3107
      %v3134 = vpack.c.bf16 %v3110, %v3109
      %v3135 = vpack.c.bf16 %v3112, %v3111
      %v3136 = vpack.c.bf16 %v3114, %v3113
      %v3137 = vpack.c.bf16 %v3116, %v3115
      %v3138 = vpack.c.bf16 %v3118, %v3117
      %v3139 = vpack.c.bf16 %v3120, %v3119
      %v3140 = vpack.c.bf16 %v3122, %v3121
      %v3141 = vpack.c.bf16 %v3124, %v3123
      %v3142 = vpack.c.bf16 %v3126, %v3125
      %v3143 = vld [vmem:[%s4] sm:$0xf]
      %v3144 = vld [vmem:[%s4 + $0x4] sm:$0xf]
      %v3145 = vld [vmem:[%s4 + $0x8] sm:$0xf]
      %v3146 = vld [vmem:[%s4 + $0xc] sm:$0xf]
      %v3147 = vld [vmem:[%s4 + $0x10] sm:$0xf]
      %v3148 = vld [vmem:[%s4 + $0x14] sm:$0xf]
      %v3149 = vld [vmem:[%s4 + $0x18] sm:$0xf]
      %v3150 = vld [vmem:[%s4 + $0x1c] sm:$0xf]
      %v3151 = vld [vmem:[%s4 + $0x20] sm:$0xf]
      %v3152 = vld [vmem:[%s4 + $0x24] sm:$0xf]
      %v3153 = vld [vmem:[%s4 + $0x28] sm:$0xf]
      %v3154 = vld [vmem:[%s4 + $0x2c] sm:$0xf]
      %v3155 = vld [vmem:[%s4 + $0x30] sm:$0xf]
      %v3156 = vld [vmem:[%s4 + $0x34] sm:$0xf]
      %v3157 = vld [vmem:[%s4 + $0x38] sm:$0xf]
      %v3158 = vld [vmem:[%s4 + $0x3c] sm:$0xf]
      %v3159 = vld [vmem:[%s14] sm:$0x1]
      %v3161 = vlaneseq
      %v3162 = vshrl.u32 %v3161, 7
      %v3163 = vsub.s32 0, %v3162
      %v3164 = vrot.slane %v3159, %v3163
      %v3182 = vunpack.c.l.b16 %v3143
      %v3183 = vunpack.c.l.b16 %v3144
      %v3184 = vunpack.c.l.b16 %v3145
      %v3185 = vunpack.c.l.b16 %v3146
      %v3186 = vunpack.c.l.b16 %v3147
      %v3187 = vunpack.c.l.b16 %v3148
      %v3188 = vunpack.c.l.b16 %v3149
      %v3189 = vunpack.c.l.b16 %v3150
      %v3190 = vunpack.c.l.b16 %v3151
      %v3191 = vunpack.c.l.b16 %v3152
      %v3192 = vunpack.c.l.b16 %v3153
      %v3193 = vunpack.c.l.b16 %v3154
      %v3194 = vunpack.c.l.b16 %v3155
      %v3195 = vunpack.c.l.b16 %v3156
      %v3196 = vunpack.c.l.b16 %v3157
      %v3197 = vunpack.c.l.b16 %v3158
      %v3198 = vpack.c.b16 %v3183, %v3182
      %v3199 = vpack.c.b16 %v3185, %v3184
      %v3200 = vpack.c.b16 %v3187, %v3186
      %v3201 = vpack.c.b16 %v3189, %v3188
      %v3202 = vpack.c.b16 %v3191, %v3190
      %v3203 = vpack.c.b16 %v3193, %v3192
      %v3204 = vpack.c.b16 %v3195, %v3194
      %v3205 = vpack.c.b16 %v3197, %v3196
      %3214 = vmatprep.subr.bf16.mxu0 0
      %3215 = vmatpush1.bf16.msra.mxu0 %v3198
      %3216 = vmatprep.subr.bf16.mxu0 0
      %3217 = vmatpush1.bf16.msra.mxu0 %v3199
      %3218 = vmatprep.subr.bf16.mxu0 0
      %3219 = vmatpush1.bf16.msra.mxu0 %v3200
      %3220 = vmatprep.subr.bf16.mxu0 0
      %3221 = vmatpush1.bf16.msra.mxu0 %v3201
      %3222 = vmatprep.subr.bf16.mxu0 0
      %3223 = vmatpush1.bf16.msra.mxu0 %v3202
      %3224 = vmatprep.subr.bf16.mxu0 0
      %3225 = vmatpush1.bf16.msra.mxu0 %v3203
      %3226 = vmatprep.subr.bf16.mxu0 0
      %3227 = vmatpush1.bf16.msra.mxu0 %v3204
      %3228 = vmatprep.subr.bf16.mxu0 0
      %3229 = vmatpush1.bf16.msra.mxu0 %v3205
      %3230 = vmatprep.subr.bf16.mxu0 0
      %3231 = vmatpush1.bf16.msra.mxu0 0
      %3232 = vmatprep.subr.bf16.mxu0 0
      %3233 = vmatpush1.bf16.msra.mxu0 0
      %3234 = vmatprep.subr.bf16.mxu0 0
      %3235 = vmatpush1.bf16.msra.mxu0 0
      %3236 = vmatprep.subr.bf16.mxu0 0
      %3237 = vmatpush1.bf16.msra.mxu0 0
      %3238 = vmatprep.subr.bf16.mxu0 0
      %3239 = vmatpush1.bf16.msra.mxu0 0
      %3240 = vmatprep.subr.bf16.mxu0 0
      %3241 = vmatpush1.bf16.msra.mxu0 0
      %3242 = vmatprep.subr.bf16.mxu0 0
      %3243 = vmatpush1.bf16.msra.mxu0 0
      %3244 = vmatprep.subr.bf16.mxu0 0
      %3245 = vmatpush1.bf16.msra.mxu0 0
      %3246 = vmatprep.mubr.bf16.mxu0 0
      %3247 = vmatmul.mubr.bf16.gmra.mrb[0].mxu0 %v3127
      %v3248 = vpop.f32.mrb[0].mxu0
      %v3249 = vadd.f32 %v3164, %v3248
      %v3250 = vpop.f32.mrb[0].mxu0
      %v3251 = vpop.f32.mrb[0].mxu0
      %v3252 = vadd.f32 %v3164, %v3251
      %v3253 = vpop.f32.mrb[0].mxu0
      %3254 = vmatprep.mubr.bf16.mxu0 0
      %3255 = vmatmul.mubr.bf16.gmra.mrb[0].mxu0 %v3128
      %v3256 = vpop.f32.mrb[0].mxu0
      %v3257 = vadd.f32 %v3164, %v3256
      %v3258 = vpop.f32.mrb[0].mxu0
      %v3259 = vpop.f32.mrb[0].mxu0
      %v3260 = vadd.f32 %v3164, %v3259
      %v3261 = vpop.f32.mrb[0].mxu0
      %3262 = vmatprep.mubr.bf16.mxu0 0
      %3263 = vmatmul.mubr.bf16.gmra.mrb[0].mxu0 %v3129
      %v3264 = vpop.f32.mrb[0].mxu0
      %v3265 = vadd.f32 %v3164, %v3264
      %v3266 = vpop.f32.mrb[0].mxu0
      %v3267 = vpop.f32.mrb[0].mxu0
      %v3268 = vadd.f32 %v3164, %v3267
      %v3269 = vpop.f32.mrb[0].mxu0
      %3270 = vmatprep.mubr.bf16.mxu0 0
      %3271 = vmatmul.mubr.bf16.gmra.mrb[0].mxu0 %v3130
      %v3272 = vpop.f32.mrb[0].mxu0
      %v3273 = vadd.f32 %v3164, %v3272
      %v3274 = vpop.f32.mrb[0].mxu0
      %v3275 = vpop.f32.mrb[0].mxu0
      %v3276 = vadd.f32 %v3164, %v3275
      %v3277 = vpop.f32.mrb[0].mxu0
      %3278 = vmatprep.mubr.bf16.mxu0 0
      %3279 = vmatmul.mubr.bf16.gmra.mrb[0].mxu0 %v3131
      %v3280 = vpop.f32.mrb[0].mxu0
      %v3281 = vadd.f32 %v3164, %v3280
      %v3282 = vpop.f32.mrb[0].mxu0
      %v3283 = vpop.f32.mrb[0].mxu0
      %v3284 = vadd.f32 %v3164, %v3283
      %v3285 = vpop.f32.mrb[0].mxu0
      %3286 = vmatprep.mubr.bf16.mxu0 0
      %3287 = vmatmul.mubr.bf16.gmra.mrb[0].mxu0 %v3132
      %v3288 = vpop.f32.mrb[0].mxu0
      %v3289 = vadd.f32 %v3164, %v3288
      %v3290 = vpop.f32.mrb[0].mxu0
      %v3291 = vpop.f32.mrb[0].mxu0
      %v3292 = vadd.f32 %v3164, %v3291
      %v3293 = vpop.f32.mrb[0].mxu0
      %3294 = vmatprep.mubr.bf16.mxu0 0
      %3295 = vmatmul.mubr.bf16.gmra.mrb[0].mxu0 %v3133
      %v3296 = vpop.f32.mrb[0].mxu0
      %v3297 = vadd.f32 %v3164, %v3296
      %v3298 = vpop.f32.mrb[0].mxu0
      %v3299 = vpop.f32.mrb[0].mxu0
      %v3300 = vadd.f32 %v3164, %v3299
      %v3301 = vpop.f32.mrb[0].mxu0
      %3302 = vmatprep.mubr.bf16.mxu0 0
      %3303 = vmatmul.mubr.bf16.gmra.mrb[0].mxu0 %v3134
      %v3304 = vpop.f32.mrb[0].mxu0
      %v3305 = vadd.f32 %v3164, %v3304
      %v3306 = vpop.f32.mrb[0].mxu0
      %v3307 = vpop.f32.mrb[0].mxu0
      %v3308 = vadd.f32 %v3164, %v3307
      %v3309 = vpop.f32.mrb[0].mxu0
      %3310 = vmatprep.mubr.bf16.mxu0 0
      %3311 = vmatmul.mubr.bf16.gmra.mrb[0].mxu0 %v3135
      %v3312 = vpop.f32.mrb[0].mxu0
      %v3313 = vadd.f32 %v3164, %v3312
      %v3314 = vpop.f32.mrb[0].mxu0
      %v3315 = vpop.f32.mrb[0].mxu0
      %v3316 = vadd.f32 %v3164, %v3315
      %v3317 = vpop.f32.mrb[0].mxu0
      %3318 = vmatprep.mubr.bf16.mxu0 0
      %3319 = vmatmul.mubr.bf16.gmra.mrb[0].mxu0 %v3136
      %v3320 = vpop.f32.mrb[0].mxu0
      %v3321 = vadd.f32 %v3164, %v3320
      %v3322 = vpop.f32.mrb[0].mxu0
      %v3323 = vpop.f32.mrb[0].mxu0
      %v3324 = vadd.f32 %v3164, %v3323
      %v3325 = vpop.f32.mrb[0].mxu0
      %3326 = vmatprep.mubr.bf16.mxu0 0
      %3327 = vmatmul.mubr.bf16.gmra.mrb[0].mxu0 %v3137
      %v3328 = vpop.f32.mrb[0].mxu0
      %v3329 = vadd.f32 %v3164, %v3328
      %v3330 = vpop.f32.mrb[0].mxu0
      %v3331 = vpop.f32.mrb[0].mxu0
      %v3332 = vadd.f32 %v3164, %v3331
      %v3333 = vpop.f32.mrb[0].mxu0
      %3334 = vmatprep.mubr.bf16.mxu0 0
      %3335 = vmatmul.mubr.bf16.gmra.mrb[0].mxu0 %v3138
      %v3336 = vpop.f32.mrb[0].mxu0
      %v3337 = vadd.f32 %v3164, %v3336
      %v3338 = vpop.f32.mrb[0].mxu0
      %v3339 = vpop.f32.mrb[0].mxu0
      %v3340 = vadd.f32 %v3164, %v3339
      %v3341 = vpop.f32.mrb[0].mxu0
      %3342 = vmatprep.mubr.bf16.mxu0 0
      %3343 = vmatmul.mubr.bf16.gmra.mrb[0].mxu0 %v3139
      %v3344 = vpop.f32.mrb[0].mxu0
      %v3345 = vadd.f32 %v3164, %v3344
      %v3346 = vpop.f32.mrb[0].mxu0
      %v3347 = vpop.f32.mrb[0].mxu0
      %v3348 = vadd.f32 %v3164, %v3347
      %v3349 = vpop.f32.mrb[0].mxu0
      %3350 = vmatprep.mubr.bf16.mxu0 0
      %3351 = vmatmul.mubr.bf16.gmra.mrb[0].mxu0 %v3140
      %v3352 = vpop.f32.mrb[0].mxu0
      %v3353 = vadd.f32 %v3164, %v3352
      %v3354 = vpop.f32.mrb[0].mxu0
      %v3355 = vpop.f32.mrb[0].mxu0
      %v3356 = vadd.f32 %v3164, %v3355
      %v3357 = vpop.f32.mrb[0].mxu0
      %3358 = vmatprep.mubr.bf16.mxu0 0
      %3359 = vmatmul.mubr.bf16.gmra.mrb[0].mxu0 %v3141
      %v3360 = vpop.f32.mrb[0].mxu0
      %v3361 = vadd.f32 %v3164, %v3360
      %v3362 = vpop.f32.mrb[0].mxu0
      %v3363 = vpop.f32.mrb[0].mxu0
      %v3364 = vadd.f32 %v3164, %v3363
      %v3365 = vpop.f32.mrb[0].mxu0
      %3366 = vmatprep.mubr.bf16.mxu0 0
      %3367 = vmatmul.mubr.bf16.gmra.mrb[0].mxu0 %v3142
      %v3368 = vpop.f32.mrb[0].mxu0
      %v3369 = vadd.f32 %v3164, %v3368
      %v3370 = vpop.f32.mrb[0].mxu0
      %v3371 = vpop.f32.mrb[0].mxu0
      %v3372 = vadd.f32 %v3164, %v3371
      %v3373 = vpop.f32.mrb[0].mxu0
      %3374 = vdwg.mxu0
      %v3375 = vmax.f32 %v3249, 0.0
      %v3376 = vmax.f32 %v3252, 0.0
      %v3377 = vmax.f32 %v3257, 0.0
      %v3378 = vmax.f32 %v3260, 0.0
      %v3379 = vmax.f32 %v3265, 0.0
      %v3380 = vmax.f32 %v3268, 0.0
      %v3381 = vmax.f32 %v3273, 0.0
      %v3382 = vmax.f32 %v3276, 0.0
      %v3383 = vmax.f32 %v3281, 0.0
      %v3384 = vmax.f32 %v3284, 0.0
      %v3385 = vmax.f32 %v3289, 0.0
      %v3386 = vmax.f32 %v3292, 0.0
      %v3387 = vmax.f32 %v3297, 0.0
      %v3388 = vmax.f32 %v3300, 0.0
      %v3389 = vmax.f32 %v3305, 0.0
      %v3390 = vmax.f32 %v3308, 0.0
      %v3391 = vmax.f32 %v3313, 0.0
      %v3392 = vmax.f32 %v3316, 0.0
      %v3393 = vmax.f32 %v3321, 0.0
      %v3394 = vmax.f32 %v3324, 0.0
      %v3395 = vmax.f32 %v3329, 0.0
      %v3396 = vmax.f32 %v3332, 0.0
      %v3397 = vmax.f32 %v3337, 0.0
      %v3398 = vmax.f32 %v3340, 0.0
      %v3399 = vmax.f32 %v3345, 0.0
      %v3400 = vmax.f32 %v3348, 0.0
      %v3401 = vmax.f32 %v3353, 0.0
      %v3402 = vmax.f32 %v3356, 0.0
      %v3403 = vmax.f32 %v3361, 0.0
      %v3404 = vmax.f32 %v3364, 0.0
      %v3405 = vmax.f32 %v3369, 0.0
      %v3406 = vmax.f32 %v3372, 0.0
      %v3407 = vpack.c.bf16 %v3376, %v3375
      %v3408 = vpack.c.bf16 %v3378, %v3377
      %v3409 = vpack.c.bf16 %v3380, %v3379
      %v3410 = vpack.c.bf16 %v3382, %v3381
      %v3411 = vpack.c.bf16 %v3384, %v3383
      %v3412 = vpack.c.bf16 %v3386, %v3385
      %v3413 = vpack.c.bf16 %v3388, %v3387
      %v3414 = vpack.c.bf16 %v3390, %v3389
      %v3415 = vpack.c.bf16 %v3392, %v3391
      %v3416 = vpack.c.bf16 %v3394, %v3393
      %v3417 = vpack.c.bf16 %v3396, %v3395
      %v3418 = vpack.c.bf16 %v3398, %v3397
      %v3419 = vpack.c.bf16 %v3400, %v3399
      %v3420 = vpack.c.bf16 %v3402, %v3401
      %v3421 = vpack.c.bf16 %v3404, %v3403
      %v3422 = vpack.c.bf16 %v3406, %v3405
      %v3423 = vld [vmem:[%s5] sm:$0xf]
      %v3424 = vld [vmem:[%s5 + $0x4] sm:$0xf]
      %v3425 = vld [vmem:[%s5 + $0x8] sm:$0xf]
      %v3426 = vld [vmem:[%s5 + $0xc] sm:$0xf]
      %v3427 = vld [vmem:[%s5 + $0x10] sm:$0xf]
      %v3428 = vld [vmem:[%s5 + $0x14] sm:$0xf]
      %v3429 = vld [vmem:[%s5 + $0x18] sm:$0xf]
      %v3430 = vld [vmem:[%s5 + $0x1c] sm:$0xf]
      %v3431 = vld [vmem:[%s5 + $0x20] sm:$0xf]
      %v3432 = vld [vmem:[%s5 + $0x24] sm:$0xf]
      %v3433 = vld [vmem:[%s5 + $0x28] sm:$0xf]
      %v3434 = vld [vmem:[%s5 + $0x2c] sm:$0xf]
      %v3435 = vld [vmem:[%s5 + $0x30] sm:$0xf]
      %v3436 = vld [vmem:[%s5 + $0x34] sm:$0xf]
      %v3437 = vld [vmem:[%s5 + $0x38] sm:$0xf]
      %v3438 = vld [vmem:[%s5 + $0x3c] sm:$0xf]
      %v3439 = vld [vmem:[%s15] sm:$0x1]
      %v3441 = vlaneseq
      %v3442 = vshrl.u32 %v3441, 7
      %v3443 = vsub.s32 0, %v3442
      %v3444 = vrot.slane %v3439, %v3443
      %v3462 = vunpack.c.l.b16 %v3423
      %v3463 = vunpack.c.l.b16 %v3424
      %v3464 = vunpack.c.l.b16 %v3425
      %v3465 = vunpack.c.l.b16 %v3426
      %v3466 = vunpack.c.l.b16 %v3427
      %v3467 = vunpack.c.l.b16 %v3428
      %v3468 = vunpack.c.l.b16 %v3429
      %v3469 = vunpack.c.l.b16 %v3430
      %v3470 = vunpack.c.l.b16 %v3431
      %v3471 = vunpack.c.l.b16 %v3432
      %v3472 = vunpack.c.l.b16 %v3433
      %v3473 = vunpack.c.l.b16 %v3434
      %v3474 = vunpack.c.l.b16 %v3435
      %v3475 = vunpack.c.l.b16 %v3436
      %v3476 = vunpack.c.l.b16 %v3437
      %v3477 = vunpack.c.l.b16 %v3438
      %v3478 = vpack.c.b16 %v3463, %v3462
      %v3479 = vpack.c.b16 %v3465, %v3464
      %v3480 = vpack.c.b16 %v3467, %v3466
      %v3481 = vpack.c.b16 %v3469, %v3468
      %v3482 = vpack.c.b16 %v3471, %v3470
      %v3483 = vpack.c.b16 %v3473, %v3472
      %v3484 = vpack.c.b16 %v3475, %v3474
      %v3485 = vpack.c.b16 %v3477, %v3476
      %3494 = vmatprep.subr.bf16.mxu0 0
      %3495 = vmatpush1.bf16.msra.mxu0 %v3478
      %3496 = vmatprep.subr.bf16.mxu0 0
      %3497 = vmatpush1.bf16.msra.mxu0 %v3479
      %3498 = vmatprep.subr.bf16.mxu0 0
      %3499 = vmatpush1.bf16.msra.mxu0 %v3480
      %3500 = vmatprep.subr.bf16.mxu0 0
      %3501 = vmatpush1.bf16.msra.mxu0 %v3481
      %3502 = vmatprep.subr.bf16.mxu0 0
      %3503 = vmatpush1.bf16.msra.mxu0 %v3482
      %3504 = vmatprep.subr.bf16.mxu0 0
      %3505 = vmatpush1.bf16.msra.mxu0 %v3483
      %3506 = vmatprep.subr.bf16.mxu0 0
      %3507 = vmatpush1.bf16.msra.mxu0 %v3484
      %3508 = vmatprep.subr.bf16.mxu0 0
      %3509 = vmatpush1.bf16.msra.mxu0 %v3485
      %3510 = vmatprep.subr.bf16.mxu0 0
      %3511 = vmatpush1.bf16.msra.mxu0 0
      %3512 = vmatprep.subr.bf16.mxu0 0
      %3513 = vmatpush1.bf16.msra.mxu0 0
      %3514 = vmatprep.subr.bf16.mxu0 0
      %3515 = vmatpush1.bf16.msra.mxu0 0
      %3516 = vmatprep.subr.bf16.mxu0 0
      %3517 = vmatpush1.bf16.msra.mxu0 0
      %3518 = vmatprep.subr.bf16.mxu0 0
      %3519 = vmatpush1.bf16.msra.mxu0 0
      %3520 = vmatprep.subr.bf16.mxu0 0
      %3521 = vmatpush1.bf16.msra.mxu0 0
      %3522 = vmatprep.subr.bf16.mxu0 0
      %3523 = vmatpush1.bf16.msra.mxu0 0
      %3524 = vmatprep.subr.bf16.mxu0 0
      %3525 = vmatpush1.bf16.msra.mxu0 0
      %3526 = vmatprep.mubr.bf16.mxu0 0
      %3527 = vmatmul.mubr.bf16.gmra.mrb[0].mxu0 %v3407
      %v3528 = vpop.f32.mrb[0].mxu0
      %v3529 = vadd.f32 %v3444, %v3528
      %v3530 = vpop.f32.mrb[0].mxu0
      %v3531 = vpop.f32.mrb[0].mxu0
      %v3532 = vadd.f32 %v3444, %v3531
      %v3533 = vpop.f32.mrb[0].mxu0
      %3534 = vmatprep.mubr.bf16.mxu0 0
      %3535 = vmatmul.mubr.bf16.gmra.mrb[0].mxu0 %v3408
      %v3536 = vpop.f32.mrb[0].mxu0
      %v3537 = vadd.f32 %v3444, %v3536
      %v3538 = vpop.f32.mrb[0].mxu0
      %v3539 = vpop.f32.mrb[0].mxu0
      %v3540 = vadd.f32 %v3444, %v3539
      %v3541 = vpop.f32.mrb[0].mxu0
      %3542 = vmatprep.mubr.bf16.mxu0 0
      %3543 = vmatmul.mubr.bf16.gmra.mrb[0].mxu0 %v3409
      %v3544 = vpop.f32.mrb[0].mxu0
      %v3545 = vadd.f32 %v3444, %v3544
      %v3546 = vpop.f32.mrb[0].mxu0
      %v3547 = vpop.f32.mrb[0].mxu0
      %v3548 = vadd.f32 %v3444, %v3547
      %v3549 = vpop.f32.mrb[0].mxu0
      %3550 = vmatprep.mubr.bf16.mxu0 0
      %3551 = vmatmul.mubr.bf16.gmra.mrb[0].mxu0 %v3410
      %v3552 = vpop.f32.mrb[0].mxu0
      %v3553 = vadd.f32 %v3444, %v3552
      %v3554 = vpop.f32.mrb[0].mxu0
      %v3555 = vpop.f32.mrb[0].mxu0
      %v3556 = vadd.f32 %v3444, %v3555
      %v3557 = vpop.f32.mrb[0].mxu0
      %3558 = vmatprep.mubr.bf16.mxu0 0
      %3559 = vmatmul.mubr.bf16.gmra.mrb[0].mxu0 %v3411
      %v3560 = vpop.f32.mrb[0].mxu0
      %v3561 = vadd.f32 %v3444, %v3560
      %v3562 = vpop.f32.mrb[0].mxu0
      %v3563 = vpop.f32.mrb[0].mxu0
      %v3564 = vadd.f32 %v3444, %v3563
      %v3565 = vpop.f32.mrb[0].mxu0
      %3566 = vmatprep.mubr.bf16.mxu0 0
      %3567 = vmatmul.mubr.bf16.gmra.mrb[0].mxu0 %v3412
      %v3568 = vpop.f32.mrb[0].mxu0
      %v3569 = vadd.f32 %v3444, %v3568
      %v3570 = vpop.f32.mrb[0].mxu0
      %v3571 = vpop.f32.mrb[0].mxu0
      %v3572 = vadd.f32 %v3444, %v3571
      %v3573 = vpop.f32.mrb[0].mxu0
      %3574 = vmatprep.mubr.bf16.mxu0 0
      %3575 = vmatmul.mubr.bf16.gmra.mrb[0].mxu0 %v3413
      %v3576 = vpop.f32.mrb[0].mxu0
      %v3577 = vadd.f32 %v3444, %v3576
      %v3578 = vpop.f32.mrb[0].mxu0
      %v3579 = vpop.f32.mrb[0].mxu0
      %v3580 = vadd.f32 %v3444, %v3579
      %v3581 = vpop.f32.mrb[0].mxu0
      %3582 = vmatprep.mubr.bf16.mxu0 0
      %3583 = vmatmul.mubr.bf16.gmra.mrb[0].mxu0 %v3414
      %v3584 = vpop.f32.mrb[0].mxu0
      %v3585 = vadd.f32 %v3444, %v3584
      %v3586 = vpop.f32.mrb[0].mxu0
      %v3587 = vpop.f32.mrb[0].mxu0
      %v3588 = vadd.f32 %v3444, %v3587
      %v3589 = vpop.f32.mrb[0].mxu0
      %3590 = vmatprep.mubr.bf16.mxu0 0
      %3591 = vmatmul.mubr.bf16.gmra.mrb[0].mxu0 %v3415
      %v3592 = vpop.f32.mrb[0].mxu0
      %v3593 = vadd.f32 %v3444, %v3592
      %v3594 = vpop.f32.mrb[0].mxu0
      %v3595 = vpop.f32.mrb[0].mxu0
      %v3596 = vadd.f32 %v3444, %v3595
      %v3597 = vpop.f32.mrb[0].mxu0
      %3598 = vmatprep.mubr.bf16.mxu0 0
      %3599 = vmatmul.mubr.bf16.gmra.mrb[0].mxu0 %v3416
      %v3600 = vpop.f32.mrb[0].mxu0
      %v3601 = vadd.f32 %v3444, %v3600
      %v3602 = vpop.f32.mrb[0].mxu0
      %v3603 = vpop.f32.mrb[0].mxu0
      %v3604 = vadd.f32 %v3444, %v3603
      %v3605 = vpop.f32.mrb[0].mxu0
      %3606 = vmatprep.mubr.bf16.mxu0 0
      %3607 = vmatmul.mubr.bf16.gmra.mrb[0].mxu0 %v3417
      %v3608 = vpop.f32.mrb[0].mxu0
      %v3609 = vadd.f32 %v3444, %v3608
      %v3610 = vpop.f32.mrb[0].mxu0
      %v3611 = vpop.f32.mrb[0].mxu0
      %v3612 = vadd.f32 %v3444, %v3611
      %v3613 = vpop.f32.mrb[0].mxu0
      %3614 = vmatprep.mubr.bf16.mxu0 0
      %3615 = vmatmul.mubr.bf16.gmra.mrb[0].mxu0 %v3418
      %v3616 = vpop.f32.mrb[0].mxu0
      %v3617 = vadd.f32 %v3444, %v3616
      %v3618 = vpop.f32.mrb[0].mxu0
      %v3619 = vpop.f32.mrb[0].mxu0
      %v3620 = vadd.f32 %v3444, %v3619
      %v3621 = vpop.f32.mrb[0].mxu0
      %3622 = vmatprep.mubr.bf16.mxu0 0
      %3623 = vmatmul.mubr.bf16.gmra.mrb[0].mxu0 %v3419
      %v3624 = vpop.f32.mrb[0].mxu0
      %v3625 = vadd.f32 %v3444, %v3624
      %v3626 = vpop.f32.mrb[0].mxu0
      %v3627 = vpop.f32.mrb[0].mxu0
      %v3628 = vadd.f32 %v3444, %v3627
      %v3629 = vpop.f32.mrb[0].mxu0
      %3630 = vmatprep.mubr.bf16.mxu0 0
      %3631 = vmatmul.mubr.bf16.gmra.mrb[0].mxu0 %v3420
      %v3632 = vpop.f32.mrb[0].mxu0
      %v3633 = vadd.f32 %v3444, %v3632
      %v3634 = vpop.f32.mrb[0].mxu0
      %v3635 = vpop.f32.mrb[0].mxu0
      %v3636 = vadd.f32 %v3444, %v3635
      %v3637 = vpop.f32.mrb[0].mxu0
      %3638 = vmatprep.mubr.bf16.mxu0 0
      %3639 = vmatmul.mubr.bf16.gmra.mrb[0].mxu0 %v3421
      %v3640 = vpop.f32.mrb[0].mxu0
      %v3641 = vadd.f32 %v3444, %v3640
      %v3642 = vpop.f32.mrb[0].mxu0
      %v3643 = vpop.f32.mrb[0].mxu0
      %v3644 = vadd.f32 %v3444, %v3643
      %v3645 = vpop.f32.mrb[0].mxu0
      %3646 = vmatprep.mubr.bf16.mxu0 0
      %3647 = vmatmul.mubr.bf16.gmra.mrb[0].mxu0 %v3422
      %v3648 = vpop.f32.mrb[0].mxu0
      %v3649 = vadd.f32 %v3444, %v3648
      %v3650 = vpop.f32.mrb[0].mxu0
      %v3651 = vpop.f32.mrb[0].mxu0
      %v3652 = vadd.f32 %v3444, %v3651
      %v3653 = vpop.f32.mrb[0].mxu0
      %3654 = vdwg.mxu0
      %v3655 = vpack.c.bf16 %v3532, %v3529
      %v3656 = vpack.c.bf16 %v3540, %v3537
      %v3657 = vpack.c.bf16 %v3548, %v3545
      %v3658 = vpack.c.bf16 %v3556, %v3553
      %v3659 = vpack.c.bf16 %v3564, %v3561
      %v3660 = vpack.c.bf16 %v3572, %v3569
      %v3661 = vpack.c.bf16 %v3580, %v3577
      %v3662 = vpack.c.bf16 %v3588, %v3585
      %v3663 = vpack.c.bf16 %v3596, %v3593
      %v3664 = vpack.c.bf16 %v3604, %v3601
      %v3665 = vpack.c.bf16 %v3612, %v3609
      %v3666 = vpack.c.bf16 %v3620, %v3617
      %v3667 = vpack.c.bf16 %v3628, %v3625
      %v3668 = vpack.c.bf16 %v3636, %v3633
      %v3669 = vpack.c.bf16 %v3644, %v3641
      %v3670 = vpack.c.bf16 %v3652, %v3649
      %v3671 = vld [vmem:[%s6] sm:$0xf]
      %v3672 = vld [vmem:[%s6 + $0x4] sm:$0xf]
      %v3673 = vld [vmem:[%s6 + $0x8] sm:$0xf]
      %v3674 = vld [vmem:[%s6 + $0xc] sm:$0xf]
      %v3675 = vld [vmem:[%s6 + $0x10] sm:$0xf]
      %v3676 = vld [vmem:[%s6 + $0x14] sm:$0xf]
      %v3677 = vld [vmem:[%s6 + $0x18] sm:$0xf]
      %v3678 = vld [vmem:[%s6 + $0x1c] sm:$0xf]
      %v3679 = vld [vmem:[%s6 + $0x20] sm:$0xf]
      %v3680 = vld [vmem:[%s6 + $0x24] sm:$0xf]
      %v3681 = vld [vmem:[%s6 + $0x28] sm:$0xf]
      %v3682 = vld [vmem:[%s6 + $0x2c] sm:$0xf]
      %v3683 = vld [vmem:[%s6 + $0x30] sm:$0xf]
      %v3684 = vld [vmem:[%s6 + $0x34] sm:$0xf]
      %v3685 = vld [vmem:[%s6 + $0x38] sm:$0xf]
      %v3686 = vld [vmem:[%s6 + $0x3c] sm:$0xf]
      %v3687 = vld [vmem:[%s16] sm:$0x1]
      %v3689 = vlaneseq
      %v3690 = vshrl.u32 %v3689, 7
      %v3691 = vsub.s32 0, %v3690
      %v3692 = vrot.slane %v3687, %v3691
      %v3710 = vunpack.c.l.b16 %v3671
      %v3711 = vunpack.c.l.b16 %v3672
      %v3712 = vunpack.c.l.b16 %v3673
      %v3713 = vunpack.c.l.b16 %v3674
      %v3714 = vunpack.c.l.b16 %v3675
      %v3715 = vunpack.c.l.b16 %v3676
      %v3716 = vunpack.c.l.b16 %v3677
      %v3717 = vunpack.c.l.b16 %v3678
      %v3718 = vunpack.c.l.b16 %v3679
      %v3719 = vunpack.c.l.b16 %v3680
      %v3720 = vunpack.c.l.b16 %v3681
      %v3721 = vunpack.c.l.b16 %v3682
      %v3722 = vunpack.c.l.b16 %v3683
      %v3723 = vunpack.c.l.b16 %v3684
      %v3724 = vunpack.c.l.b16 %v3685
      %v3725 = vunpack.c.l.b16 %v3686
      %v3726 = vpack.c.b16 %v3711, %v3710
      %v3727 = vpack.c.b16 %v3713, %v3712
      %v3728 = vpack.c.b16 %v3715, %v3714
      %v3729 = vpack.c.b16 %v3717, %v3716
      %v3730 = vpack.c.b16 %v3719, %v3718
      %v3731 = vpack.c.b16 %v3721, %v3720
      %v3732 = vpack.c.b16 %v3723, %v3722
      %v3733 = vpack.c.b16 %v3725, %v3724
      %3742 = vmatprep.subr.bf16.mxu0 0
      %3743 = vmatpush1.bf16.msra.mxu0 %v3726
      %3744 = vmatprep.subr.bf16.mxu0 0
      %3745 = vmatpush1.bf16.msra.mxu0 %v3727
      %3746 = vmatprep.subr.bf16.mxu0 0
      %3747 = vmatpush1.bf16.msra.mxu0 %v3728
      %3748 = vmatprep.subr.bf16.mxu0 0
      %3749 = vmatpush1.bf16.msra.mxu0 %v3729
      %3750 = vmatprep.subr.bf16.mxu0 0
      %3751 = vmatpush1.bf16.msra.mxu0 %v3730
      %3752 = vmatprep.subr.bf16.mxu0 0
      %3753 = vmatpush1.bf16.msra.mxu0 %v3731
      %3754 = vmatprep.subr.bf16.mxu0 0
      %3755 = vmatpush1.bf16.msra.mxu0 %v3732
      %3756 = vmatprep.subr.bf16.mxu0 0
      %3757 = vmatpush1.bf16.msra.mxu0 %v3733
      %3758 = vmatprep.subr.bf16.mxu0 0
      %3759 = vmatpush1.bf16.msra.mxu0 0
      %3760 = vmatprep.subr.bf16.mxu0 0
      %3761 = vmatpush1.bf16.msra.mxu0 0
      %3762 = vmatprep.subr.bf16.mxu0 0
      %3763 = vmatpush1.bf16.msra.mxu0 0
      %3764 = vmatprep.subr.bf16.mxu0 0
      %3765 = vmatpush1.bf16.msra.mxu0 0
      %3766 = vmatprep.subr.bf16.mxu0 0
      %3767 = vmatpush1.bf16.msra.mxu0 0
      %3768 = vmatprep.subr.bf16.mxu0 0
      %3769 = vmatpush1.bf16.msra.mxu0 0
      %3770 = vmatprep.subr.bf16.mxu0 0
      %3771 = vmatpush1.bf16.msra.mxu0 0
      %3772 = vmatprep.subr.bf16.mxu0 0
      %3773 = vmatpush1.bf16.msra.mxu0 0
      %3774 = vmatprep.mubr.bf16.mxu0 0
      %3775 = vmatmul.mubr.bf16.gmra.mrb[0].mxu0 %v3655
      %v3776 = vpop.f32.mrb[0].mxu0
      %v3777 = vadd.f32 %v3692, %v3776
      %v3778 = vpop.f32.mrb[0].mxu0
      %v3779 = vpop.f32.mrb[0].mxu0
      %v3780 = vadd.f32 %v3692, %v3779
      %v3781 = vpop.f32.mrb[0].mxu0
      %3782 = vmatprep.mubr.bf16.mxu0 0
      %3783 = vmatmul.mubr.bf16.gmra.mrb[0].mxu0 %v3656
      %v3784 = vpop.f32.mrb[0].mxu0
      %v3785 = vadd.f32 %v3692, %v3784
      %v3786 = vpop.f32.mrb[0].mxu0
      %v3787 = vpop.f32.mrb[0].mxu0
      %v3788 = vadd.f32 %v3692, %v3787
      %v3789 = vpop.f32.mrb[0].mxu0
      %3790 = vmatprep.mubr.bf16.mxu0 0
      %3791 = vmatmul.mubr.bf16.gmra.mrb[0].mxu0 %v3657
      %v3792 = vpop.f32.mrb[0].mxu0
      %v3793 = vadd.f32 %v3692, %v3792
      %v3794 = vpop.f32.mrb[0].mxu0
      %v3795 = vpop.f32.mrb[0].mxu0
      %v3796 = vadd.f32 %v3692, %v3795
      %v3797 = vpop.f32.mrb[0].mxu0
      %3798 = vmatprep.mubr.bf16.mxu0 0
      %3799 = vmatmul.mubr.bf16.gmra.mrb[0].mxu0 %v3658
      %v3800 = vpop.f32.mrb[0].mxu0
      %v3801 = vadd.f32 %v3692, %v3800
      %v3802 = vpop.f32.mrb[0].mxu0
      %v3803 = vpop.f32.mrb[0].mxu0
      %v3804 = vadd.f32 %v3692, %v3803
      %v3805 = vpop.f32.mrb[0].mxu0
      %3806 = vmatprep.mubr.bf16.mxu0 0
      %3807 = vmatmul.mubr.bf16.gmra.mrb[0].mxu0 %v3659
      %v3808 = vpop.f32.mrb[0].mxu0
      %v3809 = vadd.f32 %v3692, %v3808
      %v3810 = vpop.f32.mrb[0].mxu0
      %v3811 = vpop.f32.mrb[0].mxu0
      %v3812 = vadd.f32 %v3692, %v3811
      %v3813 = vpop.f32.mrb[0].mxu0
      %3814 = vmatprep.mubr.bf16.mxu0 0
      %3815 = vmatmul.mubr.bf16.gmra.mrb[0].mxu0 %v3660
      %v3816 = vpop.f32.mrb[0].mxu0
      %v3817 = vadd.f32 %v3692, %v3816
      %v3818 = vpop.f32.mrb[0].mxu0
      %v3819 = vpop.f32.mrb[0].mxu0
      %v3820 = vadd.f32 %v3692, %v3819
      %v3821 = vpop.f32.mrb[0].mxu0
      %3822 = vmatprep.mubr.bf16.mxu0 0
      %3823 = vmatmul.mubr.bf16.gmra.mrb[0].mxu0 %v3661
      %v3824 = vpop.f32.mrb[0].mxu0
      %v3825 = vadd.f32 %v3692, %v3824
      %v3826 = vpop.f32.mrb[0].mxu0
      %v3827 = vpop.f32.mrb[0].mxu0
      %v3828 = vadd.f32 %v3692, %v3827
      %v3829 = vpop.f32.mrb[0].mxu0
      %3830 = vmatprep.mubr.bf16.mxu0 0
      %3831 = vmatmul.mubr.bf16.gmra.mrb[0].mxu0 %v3662
      %v3832 = vpop.f32.mrb[0].mxu0
      %v3833 = vadd.f32 %v3692, %v3832
      %v3834 = vpop.f32.mrb[0].mxu0
      %v3835 = vpop.f32.mrb[0].mxu0
      %v3836 = vadd.f32 %v3692, %v3835
      %v3837 = vpop.f32.mrb[0].mxu0
      %3838 = vmatprep.mubr.bf16.mxu0 0
      %3839 = vmatmul.mubr.bf16.gmra.mrb[0].mxu0 %v3663
      %v3840 = vpop.f32.mrb[0].mxu0
      %v3841 = vadd.f32 %v3692, %v3840
      %v3842 = vpop.f32.mrb[0].mxu0
      %v3843 = vpop.f32.mrb[0].mxu0
      %v3844 = vadd.f32 %v3692, %v3843
      %v3845 = vpop.f32.mrb[0].mxu0
      %3846 = vmatprep.mubr.bf16.mxu0 0
      %3847 = vmatmul.mubr.bf16.gmra.mrb[0].mxu0 %v3664
      %v3848 = vpop.f32.mrb[0].mxu0
      %v3849 = vadd.f32 %v3692, %v3848
      %v3850 = vpop.f32.mrb[0].mxu0
      %v3851 = vpop.f32.mrb[0].mxu0
      %v3852 = vadd.f32 %v3692, %v3851
      %v3853 = vpop.f32.mrb[0].mxu0
      %3854 = vmatprep.mubr.bf16.mxu0 0
      %3855 = vmatmul.mubr.bf16.gmra.mrb[0].mxu0 %v3665
      %v3856 = vpop.f32.mrb[0].mxu0
      %v3857 = vadd.f32 %v3692, %v3856
      %v3858 = vpop.f32.mrb[0].mxu0
      %v3859 = vpop.f32.mrb[0].mxu0
      %v3860 = vadd.f32 %v3692, %v3859
      %v3861 = vpop.f32.mrb[0].mxu0
      %3862 = vmatprep.mubr.bf16.mxu0 0
      %3863 = vmatmul.mubr.bf16.gmra.mrb[0].mxu0 %v3666
      %v3864 = vpop.f32.mrb[0].mxu0
      %v3865 = vadd.f32 %v3692, %v3864
      %v3866 = vpop.f32.mrb[0].mxu0
      %v3867 = vpop.f32.mrb[0].mxu0
      %v3868 = vadd.f32 %v3692, %v3867
      %v3869 = vpop.f32.mrb[0].mxu0
      %3870 = vmatprep.mubr.bf16.mxu0 0
      %3871 = vmatmul.mubr.bf16.gmra.mrb[0].mxu0 %v3667
      %v3872 = vpop.f32.mrb[0].mxu0
      %v3873 = vadd.f32 %v3692, %v3872
      %v3874 = vpop.f32.mrb[0].mxu0
      %v3875 = vpop.f32.mrb[0].mxu0
      %v3876 = vadd.f32 %v3692, %v3875
      %v3877 = vpop.f32.mrb[0].mxu0
      %3878 = vmatprep.mubr.bf16.mxu0 0
      %3879 = vmatmul.mubr.bf16.gmra.mrb[0].mxu0 %v3668
      %v3880 = vpop.f32.mrb[0].mxu0
      %v3881 = vadd.f32 %v3692, %v3880
      %v3882 = vpop.f32.mrb[0].mxu0
      %v3883 = vpop.f32.mrb[0].mxu0
      %v3884 = vadd.f32 %v3692, %v3883
      %v3885 = vpop.f32.mrb[0].mxu0
      %3886 = vmatprep.mubr.bf16.mxu0 0
      %3887 = vmatmul.mubr.bf16.gmra.mrb[0].mxu0 %v3669
      %v3888 = vpop.f32.mrb[0].mxu0
      %v3889 = vadd.f32 %v3692, %v3888
      %v3890 = vpop.f32.mrb[0].mxu0
      %v3891 = vpop.f32.mrb[0].mxu0
      %v3892 = vadd.f32 %v3692, %v3891
      %v3893 = vpop.f32.mrb[0].mxu0
      %3894 = vmatprep.mubr.bf16.mxu0 0
      %3895 = vmatmul.mubr.bf16.gmra.mrb[0].mxu0 %v3670
      %v3896 = vpop.f32.mrb[0].mxu0
      %v3897 = vadd.f32 %v3692, %v3896
      %v3898 = vpop.f32.mrb[0].mxu0
      %v3899 = vpop.f32.mrb[0].mxu0
      %v3900 = vadd.f32 %v3692, %v3899
      %v3901 = vpop.f32.mrb[0].mxu0
      %3902 = vdwg.mxu0
      %v3903 = vmax.f32 %v3777, 0.0
      %v3904 = vmax.f32 %v3780, 0.0
      %v3905 = vmax.f32 %v3785, 0.0
      %v3906 = vmax.f32 %v3788, 0.0
      %v3907 = vmax.f32 %v3793, 0.0
      %v3908 = vmax.f32 %v3796, 0.0
      %v3909 = vmax.f32 %v3801, 0.0
      %v3910 = vmax.f32 %v3804, 0.0
      %v3911 = vmax.f32 %v3809, 0.0
      %v3912 = vmax.f32 %v3812, 0.0
      %v3913 = vmax.f32 %v3817, 0.0
      %v3914 = vmax.f32 %v3820, 0.0
      %v3915 = vmax.f32 %v3825, 0.0
      %v3916 = vmax.f32 %v3828, 0.0
      %v3917 = vmax.f32 %v3833, 0.0
      %v3918 = vmax.f32 %v3836, 0.0
      %v3919 = vmax.f32 %v3841, 0.0
      %v3920 = vmax.f32 %v3844, 0.0
      %v3921 = vmax.f32 %v3849, 0.0
      %v3922 = vmax.f32 %v3852, 0.0
      %v3923 = vmax.f32 %v3857, 0.0
      %v3924 = vmax.f32 %v3860, 0.0
      %v3925 = vmax.f32 %v3865, 0.0
      %v3926 = vmax.f32 %v3868, 0.0
      %v3927 = vmax.f32 %v3873, 0.0
      %v3928 = vmax.f32 %v3876, 0.0
      %v3929 = vmax.f32 %v3881, 0.0
      %v3930 = vmax.f32 %v3884, 0.0
      %v3931 = vmax.f32 %v3889, 0.0
      %v3932 = vmax.f32 %v3892, 0.0
      %v3933 = vmax.f32 %v3897, 0.0
      %v3934 = vmax.f32 %v3900, 0.0
      %v3935 = vpack.c.bf16 %v3904, %v3903
      %v3936 = vpack.c.bf16 %v3906, %v3905
      %v3937 = vpack.c.bf16 %v3908, %v3907
      %v3938 = vpack.c.bf16 %v3910, %v3909
      %v3939 = vpack.c.bf16 %v3912, %v3911
      %v3940 = vpack.c.bf16 %v3914, %v3913
      %v3941 = vpack.c.bf16 %v3916, %v3915
      %v3942 = vpack.c.bf16 %v3918, %v3917
      %v3943 = vpack.c.bf16 %v3920, %v3919
      %v3944 = vpack.c.bf16 %v3922, %v3921
      %v3945 = vpack.c.bf16 %v3924, %v3923
      %v3946 = vpack.c.bf16 %v3926, %v3925
      %v3947 = vpack.c.bf16 %v3928, %v3927
      %v3948 = vpack.c.bf16 %v3930, %v3929
      %v3949 = vpack.c.bf16 %v3932, %v3931
      %v3950 = vpack.c.bf16 %v3934, %v3933
      %v3951 = vld [vmem:[%s7] sm:$0xf]
      %v3952 = vld [vmem:[%s7 + $0x4] sm:$0xf]
      %v3953 = vld [vmem:[%s7 + $0x8] sm:$0xf]
      %v3954 = vld [vmem:[%s7 + $0xc] sm:$0xf]
      %v3955 = vld [vmem:[%s7 + $0x10] sm:$0xf]
      %v3956 = vld [vmem:[%s7 + $0x14] sm:$0xf]
      %v3957 = vld [vmem:[%s7 + $0x18] sm:$0xf]
      %v3958 = vld [vmem:[%s7 + $0x1c] sm:$0xf]
      %v3959 = vld [vmem:[%s7 + $0x20] sm:$0xf]
      %v3960 = vld [vmem:[%s7 + $0x24] sm:$0xf]
      %v3961 = vld [vmem:[%s7 + $0x28] sm:$0xf]
      %v3962 = vld [vmem:[%s7 + $0x2c] sm:$0xf]
      %v3963 = vld [vmem:[%s7 + $0x30] sm:$0xf]
      %v3964 = vld [vmem:[%s7 + $0x34] sm:$0xf]
      %v3965 = vld [vmem:[%s7 + $0x38] sm:$0xf]
      %v3966 = vld [vmem:[%s7 + $0x3c] sm:$0xf]
      %v3967 = vld [vmem:[%s17] sm:$0x1]
      %v3969 = vlaneseq
      %v3970 = vshrl.u32 %v3969, 7
      %v3971 = vsub.s32 0, %v3970
      %v3972 = vrot.slane %v3967, %v3971
      %v3990 = vunpack.c.l.b16 %v3951
      %v3991 = vunpack.c.l.b16 %v3952
      %v3992 = vunpack.c.l.b16 %v3953
      %v3993 = vunpack.c.l.b16 %v3954
      %v3994 = vunpack.c.l.b16 %v3955
      %v3995 = vunpack.c.l.b16 %v3956
      %v3996 = vunpack.c.l.b16 %v3957
      %v3997 = vunpack.c.l.b16 %v3958
      %v3998 = vunpack.c.l.b16 %v3959
      %v3999 = vunpack.c.l.b16 %v3960
      %v4000 = vunpack.c.l.b16 %v3961
      %v4001 = vunpack.c.l.b16 %v3962
      %v4002 = vunpack.c.l.b16 %v3963
      %v4003 = vunpack.c.l.b16 %v3964
      %v4004 = vunpack.c.l.b16 %v3965
      %v4005 = vunpack.c.l.b16 %v3966
      %v4006 = vpack.c.b16 %v3991, %v3990
      %v4007 = vpack.c.b16 %v3993, %v3992
      %v4008 = vpack.c.b16 %v3995, %v3994
      %v4009 = vpack.c.b16 %v3997, %v3996
      %v4010 = vpack.c.b16 %v3999, %v3998
      %v4011 = vpack.c.b16 %v4001, %v4000
      %v4012 = vpack.c.b16 %v4003, %v4002
      %v4013 = vpack.c.b16 %v4005, %v4004
      %4022 = vmatprep.subr.bf16.mxu0 0
      %4023 = vmatpush1.bf16.msra.mxu0 %v4006
      %4024 = vmatprep.subr.bf16.mxu0 0
      %4025 = vmatpush1.bf16.msra.mxu0 %v4007
      %4026 = vmatprep.subr.bf16.mxu0 0
      %4027 = vmatpush1.bf16.msra.mxu0 %v4008
      %4028 = vmatprep.subr.bf16.mxu0 0
      %4029 = vmatpush1.bf16.msra.mxu0 %v4009
      %4030 = vmatprep.subr.bf16.mxu0 0
      %4031 = vmatpush1.bf16.msra.mxu0 %v4010
      %4032 = vmatprep.subr.bf16.mxu0 0
      %4033 = vmatpush1.bf16.msra.mxu0 %v4011
      %4034 = vmatprep.subr.bf16.mxu0 0
      %4035 = vmatpush1.bf16.msra.mxu0 %v4012
      %4036 = vmatprep.subr.bf16.mxu0 0
      %4037 = vmatpush1.bf16.msra.mxu0 %v4013
      %4038 = vmatprep.subr.bf16.mxu0 0
      %4039 = vmatpush1.bf16.msra.mxu0 0
      %4040 = vmatprep.subr.bf16.mxu0 0
      %4041 = vmatpush1.bf16.msra.mxu0 0
      %4042 = vmatprep.subr.bf16.mxu0 0
      %4043 = vmatpush1.bf16.msra.mxu0 0
      %4044 = vmatprep.subr.bf16.mxu0 0
      %4045 = vmatpush1.bf16.msra.mxu0 0
      %4046 = vmatprep.subr.bf16.mxu0 0
      %4047 = vmatpush1.bf16.msra.mxu0 0
      %4048 = vmatprep.subr.bf16.mxu0 0
      %4049 = vmatpush1.bf16.msra.mxu0 0
      %4050 = vmatprep.subr.bf16.mxu0 0
      %4051 = vmatpush1.bf16.msra.mxu0 0
      %4052 = vmatprep.subr.bf16.mxu0 0
      %4053 = vmatpush1.bf16.msra.mxu0 0
      %4054 = vmatprep.mubr.bf16.mxu0 0
      %4055 = vmatmul.mubr.bf16.gmra.mrb[0].mxu0 %v3935
      %v4056 = vpop.f32.mrb[0].mxu0
      %v4057 = vadd.f32 %v3972, %v4056
      %v4058 = vpop.f32.mrb[0].mxu0
      %v4059 = vpop.f32.mrb[0].mxu0
      %v4060 = vadd.f32 %v3972, %v4059
      %v4061 = vpop.f32.mrb[0].mxu0
      %4062 = vmatprep.mubr.bf16.mxu0 0
      %4063 = vmatmul.mubr.bf16.gmra.mrb[0].mxu0 %v3936
      %v4064 = vpop.f32.mrb[0].mxu0
      %v4065 = vadd.f32 %v3972, %v4064
      %v4066 = vpop.f32.mrb[0].mxu0
      %v4067 = vpop.f32.mrb[0].mxu0
      %v4068 = vadd.f32 %v3972, %v4067
      %v4069 = vpop.f32.mrb[0].mxu0
      %4070 = vmatprep.mubr.bf16.mxu0 0
      %4071 = vmatmul.mubr.bf16.gmra.mrb[0].mxu0 %v3937
      %v4072 = vpop.f32.mrb[0].mxu0
      %v4073 = vadd.f32 %v3972, %v4072
      %v4074 = vpop.f32.mrb[0].mxu0
      %v4075 = vpop.f32.mrb[0].mxu0
      %v4076 = vadd.f32 %v3972, %v4075
      %v4077 = vpop.f32.mrb[0].mxu0
      %4078 = vmatprep.mubr.bf16.mxu0 0
      %4079 = vmatmul.mubr.bf16.gmra.mrb[0].mxu0 %v3938
      %v4080 = vpop.f32.mrb[0].mxu0
      %v4081 = vadd.f32 %v3972, %v4080
      %v4082 = vpop.f32.mrb[0].mxu0
      %v4083 = vpop.f32.mrb[0].mxu0
      %v4084 = vadd.f32 %v3972, %v4083
      %v4085 = vpop.f32.mrb[0].mxu0
      %4086 = vmatprep.mubr.bf16.mxu0 0
      %4087 = vmatmul.mubr.bf16.gmra.mrb[0].mxu0 %v3939
      %v4088 = vpop.f32.mrb[0].mxu0
      %v4089 = vadd.f32 %v3972, %v4088
      %v4090 = vpop.f32.mrb[0].mxu0
      %v4091 = vpop.f32.mrb[0].mxu0
      %v4092 = vadd.f32 %v3972, %v4091
      %v4093 = vpop.f32.mrb[0].mxu0
      %4094 = vmatprep.mubr.bf16.mxu0 0
      %4095 = vmatmul.mubr.bf16.gmra.mrb[0].mxu0 %v3940
      %v4096 = vpop.f32.mrb[0].mxu0
      %v4097 = vadd.f32 %v3972, %v4096
      %v4098 = vpop.f32.mrb[0].mxu0
      %v4099 = vpop.f32.mrb[0].mxu0
      %v4100 = vadd.f32 %v3972, %v4099
      %v4101 = vpop.f32.mrb[0].mxu0
      %4102 = vmatprep.mubr.bf16.mxu0 0
      %4103 = vmatmul.mubr.bf16.gmra.mrb[0].mxu0 %v3941
      %v4104 = vpop.f32.mrb[0].mxu0
      %v4105 = vadd.f32 %v3972, %v4104
      %v4106 = vpop.f32.mrb[0].mxu0
      %v4107 = vpop.f32.mrb[0].mxu0
      %v4108 = vadd.f32 %v3972, %v4107
      %v4109 = vpop.f32.mrb[0].mxu0
      %4110 = vmatprep.mubr.bf16.mxu0 0
      %4111 = vmatmul.mubr.bf16.gmra.mrb[0].mxu0 %v3942
      %v4112 = vpop.f32.mrb[0].mxu0
      %v4113 = vadd.f32 %v3972, %v4112
      %v4114 = vpop.f32.mrb[0].mxu0
      %v4115 = vpop.f32.mrb[0].mxu0
      %v4116 = vadd.f32 %v3972, %v4115
      %v4117 = vpop.f32.mrb[0].mxu0
      %4118 = vmatprep.mubr.bf16.mxu0 0
      %4119 = vmatmul.mubr.bf16.gmra.mrb[0].mxu0 %v3943
      %v4120 = vpop.f32.mrb[0].mxu0
      %v4121 = vadd.f32 %v3972, %v4120
      %v4122 = vpop.f32.mrb[0].mxu0
      %v4123 = vpop.f32.mrb[0].mxu0
      %v4124 = vadd.f32 %v3972, %v4123
      %v4125 = vpop.f32.mrb[0].mxu0
      %4126 = vmatprep.mubr.bf16.mxu0 0
      %4127 = vmatmul.mubr.bf16.gmra.mrb[0].mxu0 %v3944
      %v4128 = vpop.f32.mrb[0].mxu0
      %v4129 = vadd.f32 %v3972, %v4128
      %v4130 = vpop.f32.mrb[0].mxu0
      %v4131 = vpop.f32.mrb[0].mxu0
      %v4132 = vadd.f32 %v3972, %v4131
      %v4133 = vpop.f32.mrb[0].mxu0
      %4134 = vmatprep.mubr.bf16.mxu0 0
      %4135 = vmatmul.mubr.bf16.gmra.mrb[0].mxu0 %v3945
      %v4136 = vpop.f32.mrb[0].mxu0
      %v4137 = vadd.f32 %v3972, %v4136
      %v4138 = vpop.f32.mrb[0].mxu0
      %v4139 = vpop.f32.mrb[0].mxu0
      %v4140 = vadd.f32 %v3972, %v4139
      %v4141 = vpop.f32.mrb[0].mxu0
      %4142 = vmatprep.mubr.bf16.mxu0 0
      %4143 = vmatmul.mubr.bf16.gmra.mrb[0].mxu0 %v3946
      %v4144 = vpop.f32.mrb[0].mxu0
      %v4145 = vadd.f32 %v3972, %v4144
      %v4146 = vpop.f32.mrb[0].mxu0
      %v4147 = vpop.f32.mrb[0].mxu0
      %v4148 = vadd.f32 %v3972, %v4147
      %v4149 = vpop.f32.mrb[0].mxu0
      %4150 = vmatprep.mubr.bf16.mxu0 0
      %4151 = vmatmul.mubr.bf16.gmra.mrb[0].mxu0 %v3947
      %v4152 = vpop.f32.mrb[0].mxu0
      %v4153 = vadd.f32 %v3972, %v4152
      %v4154 = vpop.f32.mrb[0].mxu0
      %v4155 = vpop.f32.mrb[0].mxu0
      %v4156 = vadd.f32 %v3972, %v4155
      %v4157 = vpop.f32.mrb[0].mxu0
      %4158 = vmatprep.mubr.bf16.mxu0 0
      %4159 = vmatmul.mubr.bf16.gmra.mrb[0].mxu0 %v3948
      %v4160 = vpop.f32.mrb[0].mxu0
      %v4161 = vadd.f32 %v3972, %v4160
      %v4162 = vpop.f32.mrb[0].mxu0
      %v4163 = vpop.f32.mrb[0].mxu0
      %v4164 = vadd.f32 %v3972, %v4163
      %v4165 = vpop.f32.mrb[0].mxu0
      %4166 = vmatprep.mubr.bf16.mxu0 0
      %4167 = vmatmul.mubr.bf16.gmra.mrb[0].mxu0 %v3949
      %v4168 = vpop.f32.mrb[0].mxu0
      %v4169 = vadd.f32 %v3972, %v4168
      %v4170 = vpop.f32.mrb[0].mxu0
      %v4171 = vpop.f32.mrb[0].mxu0
      %v4172 = vadd.f32 %v3972, %v4171
      %v4173 = vpop.f32.mrb[0].mxu0
      %4174 = vmatprep.mubr.bf16.mxu0 0
      %4175 = vmatmul.mubr.bf16.gmra.mrb[0].mxu0 %v3950
      %v4176 = vpop.f32.mrb[0].mxu0
      %v4177 = vadd.f32 %v3972, %v4176
      %v4178 = vpop.f32.mrb[0].mxu0
      %v4179 = vpop.f32.mrb[0].mxu0
      %v4180 = vadd.f32 %v3972, %v4179
      %v4181 = vpop.f32.mrb[0].mxu0
      %4182 = vdwg.mxu0
      %v4183 = vmax.f32 %v4057, 0.0
      %v4184 = vmax.f32 %v4060, 0.0
      %v4185 = vmax.f32 %v4065, 0.0
      %v4186 = vmax.f32 %v4068, 0.0
      %v4187 = vmax.f32 %v4073, 0.0
      %v4188 = vmax.f32 %v4076, 0.0
      %v4189 = vmax.f32 %v4081, 0.0
      %v4190 = vmax.f32 %v4084, 0.0
      %v4191 = vmax.f32 %v4089, 0.0
      %v4192 = vmax.f32 %v4092, 0.0
      %v4193 = vmax.f32 %v4097, 0.0
      %v4194 = vmax.f32 %v4100, 0.0
      %v4195 = vmax.f32 %v4105, 0.0
      %v4196 = vmax.f32 %v4108, 0.0
      %v4197 = vmax.f32 %v4113, 0.0
      %v4198 = vmax.f32 %v4116, 0.0
      %v4199 = vmax.f32 %v4121, 0.0
      %v4200 = vmax.f32 %v4124, 0.0
      %v4201 = vmax.f32 %v4129, 0.0
      %v4202 = vmax.f32 %v4132, 0.0
      %v4203 = vmax.f32 %v4137, 0.0
      %v4204 = vmax.f32 %v4140, 0.0
      %v4205 = vmax.f32 %v4145, 0.0
      %v4206 = vmax.f32 %v4148, 0.0
      %v4207 = vmax.f32 %v4153, 0.0
      %v4208 = vmax.f32 %v4156, 0.0
      %v4209 = vmax.f32 %v4161, 0.0
      %v4210 = vmax.f32 %v4164, 0.0
      %v4211 = vmax.f32 %v4169, 0.0
      %v4212 = vmax.f32 %v4172, 0.0
      %v4213 = vmax.f32 %v4177, 0.0
      %v4214 = vmax.f32 %v4180, 0.0
      %v4215 = vpack.c.bf16 %v4184, %v4183
      %v4216 = vpack.c.bf16 %v4186, %v4185
      %v4217 = vpack.c.bf16 %v4188, %v4187
      %v4218 = vpack.c.bf16 %v4190, %v4189
      %v4219 = vpack.c.bf16 %v4192, %v4191
      %v4220 = vpack.c.bf16 %v4194, %v4193
      %v4221 = vpack.c.bf16 %v4196, %v4195
      %v4222 = vpack.c.bf16 %v4198, %v4197
      %v4223 = vpack.c.bf16 %v4200, %v4199
      %v4224 = vpack.c.bf16 %v4202, %v4201
      %v4225 = vpack.c.bf16 %v4204, %v4203
      %v4226 = vpack.c.bf16 %v4206, %v4205
      %v4227 = vpack.c.bf16 %v4208, %v4207
      %v4228 = vpack.c.bf16 %v4210, %v4209
      %v4229 = vpack.c.bf16 %v4212, %v4211
      %v4230 = vpack.c.bf16 %v4214, %v4213
      %v4231 = vld [vmem:[%s8] sm:$0xf]
      %v4232 = vld [vmem:[%s8 + $0x4] sm:$0xf]
      %v4233 = vld [vmem:[%s8 + $0x8] sm:$0xf]
      %v4234 = vld [vmem:[%s8 + $0xc] sm:$0xf]
      %v4235 = vld [vmem:[%s8 + $0x10] sm:$0xf]
      %v4236 = vld [vmem:[%s8 + $0x14] sm:$0xf]
      %v4237 = vld [vmem:[%s8 + $0x18] sm:$0xf]
      %v4238 = vld [vmem:[%s8 + $0x1c] sm:$0xf]
      %v4239 = vld [vmem:[%s8 + $0x20] sm:$0xf]
      %v4240 = vld [vmem:[%s8 + $0x24] sm:$0xf]
      %v4241 = vld [vmem:[%s8 + $0x28] sm:$0xf]
      %v4242 = vld [vmem:[%s8 + $0x2c] sm:$0xf]
      %v4243 = vld [vmem:[%s8 + $0x30] sm:$0xf]
      %v4244 = vld [vmem:[%s8 + $0x34] sm:$0xf]
      %v4245 = vld [vmem:[%s8 + $0x38] sm:$0xf]
      %v4246 = vld [vmem:[%s8 + $0x3c] sm:$0xf]
      %v4247 = vld [vmem:[%s18] sm:$0x1]
      %v4249 = vlaneseq
      %v4250 = vshrl.u32 %v4249, 7
      %v4251 = vsub.s32 0, %v4250
      %v4252 = vrot.slane %v4247, %v4251
      %v4270 = vunpack.c.l.b16 %v4231
      %v4271 = vunpack.c.l.b16 %v4232
      %v4272 = vunpack.c.l.b16 %v4233
      %v4273 = vunpack.c.l.b16 %v4234
      %v4274 = vunpack.c.l.b16 %v4235
      %v4275 = vunpack.c.l.b16 %v4236
      %v4276 = vunpack.c.l.b16 %v4237
      %v4277 = vunpack.c.l.b16 %v4238
      %v4278 = vunpack.c.l.b16 %v4239
      %v4279 = vunpack.c.l.b16 %v4240
      %v4280 = vunpack.c.l.b16 %v4241
      %v4281 = vunpack.c.l.b16 %v4242
      %v4282 = vunpack.c.l.b16 %v4243
      %v4283 = vunpack.c.l.b16 %v4244
      %v4284 = vunpack.c.l.b16 %v4245
      %v4285 = vunpack.c.l.b16 %v4246
      %v4286 = vpack.c.b16 %v4271, %v4270
      %v4287 = vpack.c.b16 %v4273, %v4272
      %v4288 = vpack.c.b16 %v4275, %v4274
      %v4289 = vpack.c.b16 %v4277, %v4276
      %v4290 = vpack.c.b16 %v4279, %v4278
      %v4291 = vpack.c.b16 %v4281, %v4280
      %v4292 = vpack.c.b16 %v4283, %v4282
      %v4293 = vpack.c.b16 %v4285, %v4284
      %4302 = vmatprep.subr.bf16.mxu0 0
      %4303 = vmatpush1.bf16.msra.mxu0 %v4286
      %4304 = vmatprep.subr.bf16.mxu0 0
      %4305 = vmatpush1.bf16.msra.mxu0 %v4287
      %4306 = vmatprep.subr.bf16.mxu0 0
      %4307 = vmatpush1.bf16.msra.mxu0 %v4288
      %4308 = vmatprep.subr.bf16.mxu0 0
      %4309 = vmatpush1.bf16.msra.mxu0 %v4289
      %4310 = vmatprep.subr.bf16.mxu0 0
      %4311 = vmatpush1.bf16.msra.mxu0 %v4290
      %4312 = vmatprep.subr.bf16.mxu0 0
      %4313 = vmatpush1.bf16.msra.mxu0 %v4291
      %4314 = vmatprep.subr.bf16.mxu0 0
      %4315 = vmatpush1.bf16.msra.mxu0 %v4292
      %4316 = vmatprep.subr.bf16.mxu0 0
      %4317 = vmatpush1.bf16.msra.mxu0 %v4293
      %4318 = vmatprep.subr.bf16.mxu0 0
      %4319 = vmatpush1.bf16.msra.mxu0 0
      %4320 = vmatprep.subr.bf16.mxu0 0
      %4321 = vmatpush1.bf16.msra.mxu0 0
      %4322 = vmatprep.subr.bf16.mxu0 0
      %4323 = vmatpush1.bf16.msra.mxu0 0
      %4324 = vmatprep.subr.bf16.mxu0 0
      %4325 = vmatpush1.bf16.msra.mxu0 0
      %4326 = vmatprep.subr.bf16.mxu0 0
      %4327 = vmatpush1.bf16.msra.mxu0 0
      %4328 = vmatprep.subr.bf16.mxu0 0
      %4329 = vmatpush1.bf16.msra.mxu0 0
      %4330 = vmatprep.subr.bf16.mxu0 0
      %4331 = vmatpush1.bf16.msra.mxu0 0
      %4332 = vmatprep.subr.bf16.mxu0 0
      %4333 = vmatpush1.bf16.msra.mxu0 0
      %4334 = vmatprep.mubr.bf16.mxu0 0
      %4335 = vmatmul.mubr.bf16.gmra.mrb[0].mxu0 %v4215
      %v4336 = vpop.f32.mrb[0].mxu0
      %v4337 = vadd.f32 %v4252, %v4336
      %v4338 = vpop.f32.mrb[0].mxu0
      %v4339 = vpop.f32.mrb[0].mxu0
      %v4340 = vadd.f32 %v4252, %v4339
      %v4341 = vpop.f32.mrb[0].mxu0
      %4342 = vmatprep.mubr.bf16.mxu0 0
      %4343 = vmatmul.mubr.bf16.gmra.mrb[0].mxu0 %v4216
      %v4344 = vpop.f32.mrb[0].mxu0
      %v4345 = vadd.f32 %v4252, %v4344
      %v4346 = vpop.f32.mrb[0].mxu0
      %v4347 = vpop.f32.mrb[0].mxu0
      %v4348 = vadd.f32 %v4252, %v4347
      %v4349 = vpop.f32.mrb[0].mxu0
      %4350 = vmatprep.mubr.bf16.mxu0 0
      %4351 = vmatmul.mubr.bf16.gmra.mrb[0].mxu0 %v4217
      %v4352 = vpop.f32.mrb[0].mxu0
      %v4353 = vadd.f32 %v4252, %v4352
      %v4354 = vpop.f32.mrb[0].mxu0
      %v4355 = vpop.f32.mrb[0].mxu0
      %v4356 = vadd.f32 %v4252, %v4355
      %v4357 = vpop.f32.mrb[0].mxu0
      %4358 = vmatprep.mubr.bf16.mxu0 0
      %4359 = vmatmul.mubr.bf16.gmra.mrb[0].mxu0 %v4218
      %v4360 = vpop.f32.mrb[0].mxu0
      %v4361 = vadd.f32 %v4252, %v4360
      %v4362 = vpop.f32.mrb[0].mxu0
      %v4363 = vpop.f32.mrb[0].mxu0
      %v4364 = vadd.f32 %v4252, %v4363
      %v4365 = vpop.f32.mrb[0].mxu0
      %4366 = vmatprep.mubr.bf16.mxu0 0
      %4367 = vmatmul.mubr.bf16.gmra.mrb[0].mxu0 %v4219
      %v4368 = vpop.f32.mrb[0].mxu0
      %v4369 = vadd.f32 %v4252, %v4368
      %v4370 = vpop.f32.mrb[0].mxu0
      %v4371 = vpop.f32.mrb[0].mxu0
      %v4372 = vadd.f32 %v4252, %v4371
      %v4373 = vpop.f32.mrb[0].mxu0
      %4374 = vmatprep.mubr.bf16.mxu0 0
      %4375 = vmatmul.mubr.bf16.gmra.mrb[0].mxu0 %v4220
      %v4376 = vpop.f32.mrb[0].mxu0
      %v4377 = vadd.f32 %v4252, %v4376
      %v4378 = vpop.f32.mrb[0].mxu0
      %v4379 = vpop.f32.mrb[0].mxu0
      %v4380 = vadd.f32 %v4252, %v4379
      %v4381 = vpop.f32.mrb[0].mxu0
      %4382 = vmatprep.mubr.bf16.mxu0 0
      %4383 = vmatmul.mubr.bf16.gmra.mrb[0].mxu0 %v4221
      %v4384 = vpop.f32.mrb[0].mxu0
      %v4385 = vadd.f32 %v4252, %v4384
      %v4386 = vpop.f32.mrb[0].mxu0
      %v4387 = vpop.f32.mrb[0].mxu0
      %v4388 = vadd.f32 %v4252, %v4387
      %v4389 = vpop.f32.mrb[0].mxu0
      %4390 = vmatprep.mubr.bf16.mxu0 0
      %4391 = vmatmul.mubr.bf16.gmra.mrb[0].mxu0 %v4222
      %v4392 = vpop.f32.mrb[0].mxu0
      %v4393 = vadd.f32 %v4252, %v4392
      %v4394 = vpop.f32.mrb[0].mxu0
      %v4395 = vpop.f32.mrb[0].mxu0
      %v4396 = vadd.f32 %v4252, %v4395
      %v4397 = vpop.f32.mrb[0].mxu0
      %4398 = vmatprep.mubr.bf16.mxu0 0
      %4399 = vmatmul.mubr.bf16.gmra.mrb[0].mxu0 %v4223
      %v4400 = vpop.f32.mrb[0].mxu0
      %v4401 = vadd.f32 %v4252, %v4400
      %v4402 = vpop.f32.mrb[0].mxu0
      %v4403 = vpop.f32.mrb[0].mxu0
      %v4404 = vadd.f32 %v4252, %v4403
      %v4405 = vpop.f32.mrb[0].mxu0
      %4406 = vmatprep.mubr.bf16.mxu0 0
      %4407 = vmatmul.mubr.bf16.gmra.mrb[0].mxu0 %v4224
      %v4408 = vpop.f32.mrb[0].mxu0
      %v4409 = vadd.f32 %v4252, %v4408
      %v4410 = vpop.f32.mrb[0].mxu0
      %v4411 = vpop.f32.mrb[0].mxu0
      %v4412 = vadd.f32 %v4252, %v4411
      %v4413 = vpop.f32.mrb[0].mxu0
      %4414 = vmatprep.mubr.bf16.mxu0 0
      %4415 = vmatmul.mubr.bf16.gmra.mrb[0].mxu0 %v4225
      %v4416 = vpop.f32.mrb[0].mxu0
      %v4417 = vadd.f32 %v4252, %v4416
      %v4418 = vpop.f32.mrb[0].mxu0
      %v4419 = vpop.f32.mrb[0].mxu0
      %v4420 = vadd.f32 %v4252, %v4419
      %v4421 = vpop.f32.mrb[0].mxu0
      %4422 = vmatprep.mubr.bf16.mxu0 0
      %4423 = vmatmul.mubr.bf16.gmra.mrb[0].mxu0 %v4226
      %v4424 = vpop.f32.mrb[0].mxu0
      %v4425 = vadd.f32 %v4252, %v4424
      %v4426 = vpop.f32.mrb[0].mxu0
      %v4427 = vpop.f32.mrb[0].mxu0
      %v4428 = vadd.f32 %v4252, %v4427
      %v4429 = vpop.f32.mrb[0].mxu0
      %4430 = vmatprep.mubr.bf16.mxu0 0
      %4431 = vmatmul.mubr.bf16.gmra.mrb[0].mxu0 %v4227
      %v4432 = vpop.f32.mrb[0].mxu0
      %v4433 = vadd.f32 %v4252, %v4432
      %v4434 = vpop.f32.mrb[0].mxu0
      %v4435 = vpop.f32.mrb[0].mxu0
      %v4436 = vadd.f32 %v4252, %v4435
      %v4437 = vpop.f32.mrb[0].mxu0
      %4438 = vmatprep.mubr.bf16.mxu0 0
      %4439 = vmatmul.mubr.bf16.gmra.mrb[0].mxu0 %v4228
      %v4440 = vpop.f32.mrb[0].mxu0
      %v4441 = vadd.f32 %v4252, %v4440
      %v4442 = vpop.f32.mrb[0].mxu0
      %v4443 = vpop.f32.mrb[0].mxu0
      %v4444 = vadd.f32 %v4252, %v4443
      %v4445 = vpop.f32.mrb[0].mxu0
      %4446 = vmatprep.mubr.bf16.mxu0 0
      %4447 = vmatmul.mubr.bf16.gmra.mrb[0].mxu0 %v4229
      %v4448 = vpop.f32.mrb[0].mxu0
      %v4449 = vadd.f32 %v4252, %v4448
      %v4450 = vpop.f32.mrb[0].mxu0
      %v4451 = vpop.f32.mrb[0].mxu0
      %v4452 = vadd.f32 %v4252, %v4451
      %v4453 = vpop.f32.mrb[0].mxu0
      %4454 = vmatprep.mubr.bf16.mxu0 0
      %4455 = vmatmul.mubr.bf16.gmra.mrb[0].mxu0 %v4230
      %v4456 = vpop.f32.mrb[0].mxu0
      %v4457 = vadd.f32 %v4252, %v4456
      %v4458 = vpop.f32.mrb[0].mxu0
      %v4459 = vpop.f32.mrb[0].mxu0
      %v4460 = vadd.f32 %v4252, %v4459
      %v4461 = vpop.f32.mrb[0].mxu0
      %4462 = vdwg.mxu0
      %v4463 = vmax.f32 %v4337, 0.0
      %v4464 = vmax.f32 %v4340, 0.0
      %v4465 = vmax.f32 %v4345, 0.0
      %v4466 = vmax.f32 %v4348, 0.0
      %v4467 = vmax.f32 %v4353, 0.0
      %v4468 = vmax.f32 %v4356, 0.0
      %v4469 = vmax.f32 %v4361, 0.0
      %v4470 = vmax.f32 %v4364, 0.0
      %v4471 = vmax.f32 %v4369, 0.0
      %v4472 = vmax.f32 %v4372, 0.0
      %v4473 = vmax.f32 %v4377, 0.0
      %v4474 = vmax.f32 %v4380, 0.0
      %v4475 = vmax.f32 %v4385, 0.0
      %v4476 = vmax.f32 %v4388, 0.0
      %v4477 = vmax.f32 %v4393, 0.0
      %v4478 = vmax.f32 %v4396, 0.0
      %v4479 = vmax.f32 %v4401, 0.0
      %v4480 = vmax.f32 %v4404, 0.0
      %v4481 = vmax.f32 %v4409, 0.0
      %v4482 = vmax.f32 %v4412, 0.0
      %v4483 = vmax.f32 %v4417, 0.0
      %v4484 = vmax.f32 %v4420, 0.0
      %v4485 = vmax.f32 %v4425, 0.0
      %v4486 = vmax.f32 %v4428, 0.0
      %v4487 = vmax.f32 %v4433, 0.0
      %v4488 = vmax.f32 %v4436, 0.0
      %v4489 = vmax.f32 %v4441, 0.0
      %v4490 = vmax.f32 %v4444, 0.0
      %v4491 = vmax.f32 %v4449, 0.0
      %v4492 = vmax.f32 %v4452, 0.0
      %v4493 = vmax.f32 %v4457, 0.0
      %v4494 = vmax.f32 %v4460, 0.0
      %v4495 = vpack.c.bf16 %v4464, %v4463
      %v4496 = vpack.c.bf16 %v4466, %v4465
      %v4497 = vpack.c.bf16 %v4468, %v4467
      %v4498 = vpack.c.bf16 %v4470, %v4469
      %v4499 = vpack.c.bf16 %v4472, %v4471
      %v4500 = vpack.c.bf16 %v4474, %v4473
      %v4501 = vpack.c.bf16 %v4476, %v4475
      %v4502 = vpack.c.bf16 %v4478, %v4477
      %v4503 = vpack.c.bf16 %v4480, %v4479
      %v4504 = vpack.c.bf16 %v4482, %v4481
      %v4505 = vpack.c.bf16 %v4484, %v4483
      %v4506 = vpack.c.bf16 %v4486, %v4485
      %v4507 = vpack.c.bf16 %v4488, %v4487
      %v4508 = vpack.c.bf16 %v4490, %v4489
      %v4509 = vpack.c.bf16 %v4492, %v4491
      %v4510 = vpack.c.bf16 %v4494, %v4493
      %v4511 = vld [vmem:[%s9] sm:$0xff]
      %v4512 = vld [vmem:[%s9 + $0x8] sm:$0xff]
      %v4513 = vld [vmem:[%s9 + $0x10] sm:$0xff]
      %v4514 = vld [vmem:[%s9 + $0x18] sm:$0xff]
      %v4515 = vld [vmem:[%s9 + $0x20] sm:$0xff]
      %v4516 = vld [vmem:[%s9 + $0x28] sm:$0xff]
      %v4517 = vld [vmem:[%s9 + $0x30] sm:$0xff]
      %v4518 = vld [vmem:[%s9 + $0x38] sm:$0xff]
      %v4519 = vld [vmem:[%s9 + $0x40] sm:$0xff]
      %v4520 = vld [vmem:[%s9 + $0x48] sm:$0xff]
      %v4521 = vld [vmem:[%s9 + $0x50] sm:$0xff]
      %v4522 = vld [vmem:[%s9 + $0x58] sm:$0xff]
      %v4523 = vld [vmem:[%s9 + $0x60] sm:$0xff]
      %v4524 = vld [vmem:[%s9 + $0x68] sm:$0xff]
      %v4525 = vld [vmem:[%s9 + $0x70] sm:$0xff]
      %v4526 = vld [vmem:[%s9 + $0x78] sm:$0xff]
      %v4527 = vld [vmem:[%s19] sm:$0x3]
      %v4529 = vlaneseq
      %v4530 = vshrl.u32 %v4529, 7
      %v4531 = vsub.s32 0, %v4530
      %v4532 = vrot.slane %v4527, %v4531
      %v4533 = vlaneseq
      %v4534 = vshrl.u32 %v4533, 7
      %v4535 = vsub.s32 1, %v4534
      %v4536 = vrot.slane %v4527, %v4535
      %v4555 = vunpack.c.l.b16 %v4511
      %v4556 = vunpack.c.h.b16 %v4511
      %v4557 = vunpack.c.l.b16 %v4512
      %v4558 = vunpack.c.h.b16 %v4512
      %v4559 = vunpack.c.l.b16 %v4513
      %v4560 = vunpack.c.h.b16 %v4513
      %v4561 = vunpack.c.l.b16 %v4514
      %v4562 = vunpack.c.h.b16 %v4514
      %v4563 = vunpack.c.l.b16 %v4515
      %v4564 = vunpack.c.h.b16 %v4515
      %v4565 = vunpack.c.l.b16 %v4516
      %v4566 = vunpack.c.h.b16 %v4516
      %v4567 = vunpack.c.l.b16 %v4517
      %v4568 = vunpack.c.h.b16 %v4517
      %v4569 = vunpack.c.l.b16 %v4518
      %v4570 = vunpack.c.h.b16 %v4518
      %v4571 = vunpack.c.l.b16 %v4519
      %v4572 = vunpack.c.h.b16 %v4519
      %v4573 = vunpack.c.l.b16 %v4520
      %v4574 = vunpack.c.h.b16 %v4520
      %v4575 = vunpack.c.l.b16 %v4521
      %v4576 = vunpack.c.h.b16 %v4521
      %v4577 = vunpack.c.l.b16 %v4522
      %v4578 = vunpack.c.h.b16 %v4522
      %v4579 = vunpack.c.l.b16 %v4523
      %v4580 = vunpack.c.h.b16 %v4523
      %v4581 = vunpack.c.l.b16 %v4524
      %v4582 = vunpack.c.h.b16 %v4524
      %v4583 = vunpack.c.l.b16 %v4525
      %v4584 = vunpack.c.h.b16 %v4525
      %v4585 = vunpack.c.l.b16 %v4526
      %v4586 = vunpack.c.h.b16 %v4526
      %v4587 = vpack.c.b16 %v4557, %v4555
      %v4588 = vpack.c.b16 %v4558, %v4556
      %v4589 = vpack.c.b16 %v4561, %v4559
      %v4590 = vpack.c.b16 %v4562, %v4560
      %v4591 = vpack.c.b16 %v4565, %v4563
      %v4592 = vpack.c.b16 %v4566, %v4564
      %v4593 = vpack.c.b16 %v4569, %v4567
      %v4594 = vpack.c.b16 %v4570, %v4568
      %v4595 = vpack.c.b16 %v4573, %v4571
      %v4596 = vpack.c.b16 %v4574, %v4572
      %v4597 = vpack.c.b16 %v4577, %v4575
      %v4598 = vpack.c.b16 %v4578, %v4576
      %v4599 = vpack.c.b16 %v4581, %v4579
      %v4600 = vpack.c.b16 %v4582, %v4580
      %v4601 = vpack.c.b16 %v4585, %v4583
      %v4602 = vpack.c.b16 %v4586, %v4584
      %4619 = vmatprep.subr.bf16.mxu0 %v4588
      %4620 = vmatpush1.bf16.msra.mxu0 %v4587
      %4621 = vmatprep.subr.bf16.mxu0 %v4590
      %4622 = vmatpush1.bf16.msra.mxu0 %v4589
      %4623 = vmatprep.subr.bf16.mxu0 %v4592
      %4624 = vmatpush1.bf16.msra.mxu0 %v4591
      %4625 = vmatprep.subr.bf16.mxu0 %v4594
      %4626 = vmatpush1.bf16.msra.mxu0 %v4593
      %4627 = vmatprep.subr.bf16.mxu0 %v4596
      %4628 = vmatpush1.bf16.msra.mxu0 %v4595
      %4629 = vmatprep.subr.bf16.mxu0 %v4598
      %4630 = vmatpush1.bf16.msra.mxu0 %v4597
      %4631 = vmatprep.subr.bf16.mxu0 %v4600
      %4632 = vmatpush1.bf16.msra.mxu0 %v4599
      %4633 = vmatprep.subr.bf16.mxu0 %v4602
      %4634 = vmatpush1.bf16.msra.mxu0 %v4601
      %4635 = vmatprep.subr.bf16.mxu0 0
      %4636 = vmatpush1.bf16.msra.mxu0 0
      %4637 = vmatprep.subr.bf16.mxu0 0
      %4638 = vmatpush1.bf16.msra.mxu0 0
      %4639 = vmatprep.subr.bf16.mxu0 0
      %4640 = vmatpush1.bf16.msra.mxu0 0
      %4641 = vmatprep.subr.bf16.mxu0 0
      %4642 = vmatpush1.bf16.msra.mxu0 0
      %4643 = vmatprep.subr.bf16.mxu0 0
      %4644 = vmatpush1.bf16.msra.mxu0 0
      %4645 = vmatprep.subr.bf16.mxu0 0
      %4646 = vmatpush1.bf16.msra.mxu0 0
      %4647 = vmatprep.subr.bf16.mxu0 0
      %4648 = vmatpush1.bf16.msra.mxu0 0
      %4649 = vmatprep.subr.bf16.mxu0 0
      %4650 = vmatpush1.bf16.msra.mxu0 0
      %4651 = vmatprep.mubr.bf16.mxu0 0
      %4652 = vmatmul.mubr.bf16.gmra.mrb[0].mxu0 %v4495
      %v4653 = vpop.f32.mrb[0].mxu0
      %v4654 = vadd.f32 %v4532, %v4653
      %v4655 = vpop.f32.mrb[0].mxu0
      %v4656 = vadd.f32 %v4536, %v4655
      %v4657 = vpop.f32.mrb[0].mxu0
      %v4658 = vadd.f32 %v4532, %v4657
      %v4659 = vpop.f32.mrb[0].mxu0
      %v4660 = vadd.f32 %v4536, %v4659
      %4661 = vmatprep.mubr.bf16.mxu0 0
      %4662 = vmatmul.mubr.bf16.gmra.mrb[0].mxu0 %v4496
      %v4663 = vpop.f32.mrb[0].mxu0
      %v4664 = vadd.f32 %v4532, %v4663
      %v4665 = vpop.f32.mrb[0].mxu0
      %v4666 = vadd.f32 %v4536, %v4665
      %v4667 = vpop.f32.mrb[0].mxu0
      %v4668 = vadd.f32 %v4532, %v4667
      %v4669 = vpop.f32.mrb[0].mxu0
      %v4670 = vadd.f32 %v4536, %v4669
      %4671 = vmatprep.mubr.bf16.mxu0 0
      %4672 = vmatmul.mubr.bf16.gmra.mrb[0].mxu0 %v4497
      %v4673 = vpop.f32.mrb[0].mxu0
      %v4674 = vadd.f32 %v4532, %v4673
      %v4675 = vpop.f32.mrb[0].mxu0
      %v4676 = vadd.f32 %v4536, %v4675
      %v4677 = vpop.f32.mrb[0].mxu0
      %v4678 = vadd.f32 %v4532, %v4677
      %v4679 = vpop.f32.mrb[0].mxu0
      %v4680 = vadd.f32 %v4536, %v4679
      %4681 = vmatprep.mubr.bf16.mxu0 0
      %4682 = vmatmul.mubr.bf16.gmra.mrb[0].mxu0 %v4498
      %v4683 = vpop.f32.mrb[0].mxu0
      %v4684 = vadd.f32 %v4532, %v4683
      %v4685 = vpop.f32.mrb[0].mxu0
      %v4686 = vadd.f32 %v4536, %v4685
      %v4687 = vpop.f32.mrb[0].mxu0
      %v4688 = vadd.f32 %v4532, %v4687
      %v4689 = vpop.f32.mrb[0].mxu0
      %v4690 = vadd.f32 %v4536, %v4689
      %4691 = vmatprep.mubr.bf16.mxu0 0
      %4692 = vmatmul.mubr.bf16.gmra.mrb[0].mxu0 %v4499
      %v4693 = vpop.f32.mrb[0].mxu0
      %v4694 = vadd.f32 %v4532, %v4693
      %v4695 = vpop.f32.mrb[0].mxu0
      %v4696 = vadd.f32 %v4536, %v4695
      %v4697 = vpop.f32.mrb[0].mxu0
      %v4698 = vadd.f32 %v4532, %v4697
      %v4699 = vpop.f32.mrb[0].mxu0
      %v4700 = vadd.f32 %v4536, %v4699
      %4701 = vmatprep.mubr.bf16.mxu0 0
      %4702 = vmatmul.mubr.bf16.gmra.mrb[0].mxu0 %v4500
      %v4703 = vpop.f32.mrb[0].mxu0
      %v4704 = vadd.f32 %v4532, %v4703
      %v4705 = vpop.f32.mrb[0].mxu0
      %v4706 = vadd.f32 %v4536, %v4705
      %v4707 = vpop.f32.mrb[0].mxu0
      %v4708 = vadd.f32 %v4532, %v4707
      %v4709 = vpop.f32.mrb[0].mxu0
      %v4710 = vadd.f32 %v4536, %v4709
      %4711 = vmatprep.mubr.bf16.mxu0 0
      %4712 = vmatmul.mubr.bf16.gmra.mrb[0].mxu0 %v4501
      %v4713 = vpop.f32.mrb[0].mxu0
      %v4714 = vadd.f32 %v4532, %v4713
      %v4715 = vpop.f32.mrb[0].mxu0
      %v4716 = vadd.f32 %v4536, %v4715
      %v4717 = vpop.f32.mrb[0].mxu0
      %v4718 = vadd.f32 %v4532, %v4717
      %v4719 = vpop.f32.mrb[0].mxu0
      %v4720 = vadd.f32 %v4536, %v4719
      %4721 = vmatprep.mubr.bf16.mxu0 0
      %4722 = vmatmul.mubr.bf16.gmra.mrb[0].mxu0 %v4502
      %v4723 = vpop.f32.mrb[0].mxu0
      %v4724 = vadd.f32 %v4532, %v4723
      %v4725 = vpop.f32.mrb[0].mxu0
      %v4726 = vadd.f32 %v4536, %v4725
      %v4727 = vpop.f32.mrb[0].mxu0
      %v4728 = vadd.f32 %v4532, %v4727
      %v4729 = vpop.f32.mrb[0].mxu0
      %v4730 = vadd.f32 %v4536, %v4729
      %4731 = vmatprep.mubr.bf16.mxu0 0
      %4732 = vmatmul.mubr.bf16.gmra.mrb[0].mxu0 %v4503
      %v4733 = vpop.f32.mrb[0].mxu0
      %v4734 = vadd.f32 %v4532, %v4733
      %v4735 = vpop.f32.mrb[0].mxu0
      %v4736 = vadd.f32 %v4536, %v4735
      %v4737 = vpop.f32.mrb[0].mxu0
      %v4738 = vadd.f32 %v4532, %v4737
      %v4739 = vpop.f32.mrb[0].mxu0
      %v4740 = vadd.f32 %v4536, %v4739
      %4741 = vmatprep.mubr.bf16.mxu0 0
      %4742 = vmatmul.mubr.bf16.gmra.mrb[0].mxu0 %v4504
      %v4743 = vpop.f32.mrb[0].mxu0
      %v4744 = vadd.f32 %v4532, %v4743
      %v4745 = vpop.f32.mrb[0].mxu0
      %v4746 = vadd.f32 %v4536, %v4745
      %v4747 = vpop.f32.mrb[0].mxu0
      %v4748 = vadd.f32 %v4532, %v4747
      %v4749 = vpop.f32.mrb[0].mxu0
      %v4750 = vadd.f32 %v4536, %v4749
      %4751 = vmatprep.mubr.bf16.mxu0 0
      %4752 = vmatmul.mubr.bf16.gmra.mrb[0].mxu0 %v4505
      %v4753 = vpop.f32.mrb[0].mxu0
      %v4754 = vadd.f32 %v4532, %v4753
      %v4755 = vpop.f32.mrb[0].mxu0
      %v4756 = vadd.f32 %v4536, %v4755
      %v4757 = vpop.f32.mrb[0].mxu0
      %v4758 = vadd.f32 %v4532, %v4757
      %v4759 = vpop.f32.mrb[0].mxu0
      %v4760 = vadd.f32 %v4536, %v4759
      %4761 = vmatprep.mubr.bf16.mxu0 0
      %4762 = vmatmul.mubr.bf16.gmra.mrb[0].mxu0 %v4506
      %v4763 = vpop.f32.mrb[0].mxu0
      %v4764 = vadd.f32 %v4532, %v4763
      %v4765 = vpop.f32.mrb[0].mxu0
      %v4766 = vadd.f32 %v4536, %v4765
      %v4767 = vpop.f32.mrb[0].mxu0
      %v4768 = vadd.f32 %v4532, %v4767
      %v4769 = vpop.f32.mrb[0].mxu0
      %v4770 = vadd.f32 %v4536, %v4769
      %4771 = vmatprep.mubr.bf16.mxu0 0
      %4772 = vmatmul.mubr.bf16.gmra.mrb[0].mxu0 %v4507
      %v4773 = vpop.f32.mrb[0].mxu0
      %v4774 = vadd.f32 %v4532, %v4773
      %v4775 = vpop.f32.mrb[0].mxu0
      %v4776 = vadd.f32 %v4536, %v4775
      %v4777 = vpop.f32.mrb[0].mxu0
      %v4778 = vadd.f32 %v4532, %v4777
      %v4779 = vpop.f32.mrb[0].mxu0
      %v4780 = vadd.f32 %v4536, %v4779
      %4781 = vmatprep.mubr.bf16.mxu0 0
      %4782 = vmatmul.mubr.bf16.gmra.mrb[0].mxu0 %v4508
      %v4783 = vpop.f32.mrb[0].mxu0
      %v4784 = vadd.f32 %v4532, %v4783
      %v4785 = vpop.f32.mrb[0].mxu0
      %v4786 = vadd.f32 %v4536, %v4785
      %v4787 = vpop.f32.mrb[0].mxu0
      %v4788 = vadd.f32 %v4532, %v4787
      %v4789 = vpop.f32.mrb[0].mxu0
      %v4790 = vadd.f32 %v4536, %v4789
      %4791 = vmatprep.mubr.bf16.mxu0 0
      %4792 = vmatmul.mubr.bf16.gmra.mrb[0].mxu0 %v4509
      %v4793 = vpop.f32.mrb[0].mxu0
      %v4794 = vadd.f32 %v4532, %v4793
      %v4795 = vpop.f32.mrb[0].mxu0
      %v4796 = vadd.f32 %v4536, %v4795
      %v4797 = vpop.f32.mrb[0].mxu0
      %v4798 = vadd.f32 %v4532, %v4797
      %v4799 = vpop.f32.mrb[0].mxu0
      %v4800 = vadd.f32 %v4536, %v4799
      %4801 = vmatprep.mubr.bf16.mxu0 0
      %4802 = vmatmul.mubr.bf16.gmra.mrb[0].mxu0 %v4510
      %v4803 = vpop.f32.mrb[0].mxu0
      %v4804 = vadd.f32 %v4532, %v4803
      %v4805 = vpop.f32.mrb[0].mxu0
      %v4806 = vadd.f32 %v4536, %v4805
      %v4807 = vpop.f32.mrb[0].mxu0
      %v4808 = vadd.f32 %v4532, %v4807
      %v4809 = vpop.f32.mrb[0].mxu0
      %v4810 = vadd.f32 %v4536, %v4809
      %4811 = vdwg.mxu0
      %v4812 = vmax.f32 %v4654, 0.0
      %v4813 = vmax.f32 %v4656, 0.0
      %v4814 = vmax.f32 %v4658, 0.0
      %v4815 = vmax.f32 %v4660, 0.0
      %v4816 = vmax.f32 %v4664, 0.0
      %v4817 = vmax.f32 %v4666, 0.0
      %v4818 = vmax.f32 %v4668, 0.0
      %v4819 = vmax.f32 %v4670, 0.0
      %v4820 = vmax.f32 %v4674, 0.0
      %v4821 = vmax.f32 %v4676, 0.0
      %v4822 = vmax.f32 %v4678, 0.0
      %v4823 = vmax.f32 %v4680, 0.0
      %v4824 = vmax.f32 %v4684, 0.0
      %v4825 = vmax.f32 %v4686, 0.0
      %v4826 = vmax.f32 %v4688, 0.0
      %v4827 = vmax.f32 %v4690, 0.0
      %v4828 = vmax.f32 %v4694, 0.0
      %v4829 = vmax.f32 %v4696, 0.0
      %v4830 = vmax.f32 %v4698, 0.0
      %v4831 = vmax.f32 %v4700, 0.0
      %v4832 = vmax.f32 %v4704, 0.0
      %v4833 = vmax.f32 %v4706, 0.0
      %v4834 = vmax.f32 %v4708, 0.0
      %v4835 = vmax.f32 %v4710, 0.0
      %v4836 = vmax.f32 %v4714, 0.0
      %v4837 = vmax.f32 %v4716, 0.0
      %v4838 = vmax.f32 %v4718, 0.0
      %v4839 = vmax.f32 %v4720, 0.0
      %v4840 = vmax.f32 %v4724, 0.0
      %v4841 = vmax.f32 %v4726, 0.0
      %v4842 = vmax.f32 %v4728, 0.0
      %v4843 = vmax.f32 %v4730, 0.0
      %v4844 = vmax.f32 %v4734, 0.0
      %v4845 = vmax.f32 %v4736, 0.0
      %v4846 = vmax.f32 %v4738, 0.0
      %v4847 = vmax.f32 %v4740, 0.0
      %v4848 = vmax.f32 %v4744, 0.0
      %v4849 = vmax.f32 %v4746, 0.0
      %v4850 = vmax.f32 %v4748, 0.0
      %v4851 = vmax.f32 %v4750, 0.0
      %v4852 = vmax.f32 %v4754, 0.0
      %v4853 = vmax.f32 %v4756, 0.0
      %v4854 = vmax.f32 %v4758, 0.0
      %v4855 = vmax.f32 %v4760, 0.0
      %v4856 = vmax.f32 %v4764, 0.0
      %v4857 = vmax.f32 %v4766, 0.0
      %v4858 = vmax.f32 %v4768, 0.0
      %v4859 = vmax.f32 %v4770, 0.0
      %v4860 = vmax.f32 %v4774, 0.0
      %v4861 = vmax.f32 %v4776, 0.0
      %v4862 = vmax.f32 %v4778, 0.0
      %v4863 = vmax.f32 %v4780, 0.0
      %v4864 = vmax.f32 %v4784, 0.0
      %v4865 = vmax.f32 %v4786, 0.0
      %v4866 = vmax.f32 %v4788, 0.0
      %v4867 = vmax.f32 %v4790, 0.0
      %v4868 = vmax.f32 %v4794, 0.0
      %v4869 = vmax.f32 %v4796, 0.0
      %v4870 = vmax.f32 %v4798, 0.0
      %v4871 = vmax.f32 %v4800, 0.0
      %v4872 = vmax.f32 %v4804, 0.0
      %v4873 = vmax.f32 %v4806, 0.0
      %v4874 = vmax.f32 %v4808, 0.0
      %v4875 = vmax.f32 %v4810, 0.0
      %v4876 = vpack.c.bf16 %v4814, %v4812
      %v4877 = vpack.c.bf16 %v4815, %v4813
      %v4878 = vpack.c.bf16 %v4818, %v4816
      %v4879 = vpack.c.bf16 %v4819, %v4817
      %v4880 = vpack.c.bf16 %v4822, %v4820
      %v4881 = vpack.c.bf16 %v4823, %v4821
      %v4882 = vpack.c.bf16 %v4826, %v4824
      %v4883 = vpack.c.bf16 %v4827, %v4825
      %v4884 = vpack.c.bf16 %v4830, %v4828
      %v4885 = vpack.c.bf16 %v4831, %v4829
      %v4886 = vpack.c.bf16 %v4834, %v4832
      %v4887 = vpack.c.bf16 %v4835, %v4833
      %v4888 = vpack.c.bf16 %v4838, %v4836
      %v4889 = vpack.c.bf16 %v4839, %v4837
      %v4890 = vpack.c.bf16 %v4842, %v4840
      %v4891 = vpack.c.bf16 %v4843, %v4841
      %v4892 = vpack.c.bf16 %v4846, %v4844
      %v4893 = vpack.c.bf16 %v4847, %v4845
      %v4894 = vpack.c.bf16 %v4850, %v4848
      %v4895 = vpack.c.bf16 %v4851, %v4849
      %v4896 = vpack.c.bf16 %v4854, %v4852
      %v4897 = vpack.c.bf16 %v4855, %v4853
      %v4898 = vpack.c.bf16 %v4858, %v4856
      %v4899 = vpack.c.bf16 %v4859, %v4857
      %v4900 = vpack.c.bf16 %v4862, %v4860
      %v4901 = vpack.c.bf16 %v4863, %v4861
      %v4902 = vpack.c.bf16 %v4866, %v4864
      %v4903 = vpack.c.bf16 %v4867, %v4865
      %v4904 = vpack.c.bf16 %v4870, %v4868
      %v4905 = vpack.c.bf16 %v4871, %v4869
      %v4906 = vpack.c.bf16 %v4874, %v4872
      %v4907 = vpack.c.bf16 %v4875, %v4873
      %v4908 = vld [vmem:[%s10] sm:$0xff]
      %v4909 = vld [vmem:[%s10 + $0x8] sm:$0xff]
      %v4910 = vld [vmem:[%s10 + $0x10] sm:$0xff]
      %v4911 = vld [vmem:[%s10 + $0x18] sm:$0xf]
      %v4912 = vld [vmem:[%s10 + $0x1c] sm:$0xff]
      %v4913 = vld [vmem:[%s10 + $0x24] sm:$0xff]
      %v4914 = vld [vmem:[%s10 + $0x2c] sm:$0xff]
      %v4915 = vld [vmem:[%s10 + $0x34] sm:$0xf]
      %v4916 = vld [vmem:[%s10 + $0x38] sm:$0xff]
      %v4917 = vld [vmem:[%s10 + $0x40] sm:$0xff]
      %v4918 = vld [vmem:[%s10 + $0x48] sm:$0xff]
      %v4919 = vld [vmem:[%s10 + $0x50] sm:$0xf]
      %v4920 = vld [vmem:[%s10 + $0x54] sm:$0xff]
      %v4921 = vld [vmem:[%s10 + $0x5c] sm:$0xff]
      %v4922 = vld [vmem:[%s10 + $0x64] sm:$0xff]
      %v4923 = vld [vmem:[%s10 + $0x6c] sm:$0xf]
      %v4924 = vld [vmem:[%s10 + $0x70] sm:$0xff]
      %v4925 = vld [vmem:[%s10 + $0x78] sm:$0xff]
      %v4926 = vld [vmem:[%s10 + $0x80] sm:$0xff]
      %v4927 = vld [vmem:[%s10 + $0x88] sm:$0xf]
      %v4928 = vld [vmem:[%s10 + $0x8c] sm:$0xff]
      %v4929 = vld [vmem:[%s10 + $0x94] sm:$0xff]
      %v4930 = vld [vmem:[%s10 + $0x9c] sm:$0xff]
      %v4931 = vld [vmem:[%s10 + $0xa4] sm:$0xf]
      %v4932 = vld [vmem:[%s10 + $0xa8] sm:$0xff]
      %v4933 = vld [vmem:[%s10 + $0xb0] sm:$0xff]
      %v4934 = vld [vmem:[%s10 + $0xb8] sm:$0xff]
      %v4935 = vld [vmem:[%s10 + $0xc0] sm:$0xf]
      %v4936 = vld [vmem:[%s10 + $0xc4] sm:$0xff]
      %v4937 = vld [vmem:[%s10 + $0xcc] sm:$0xff]
      %v4938 = vld [vmem:[%s10 + $0xd4] sm:$0xff]
      %v4939 = vld [vmem:[%s10 + $0xdc] sm:$0xf]
      %v4940 = vld [vmem:[%s10 + $0xe0] sm:$0xff]
      %v4941 = vld [vmem:[%s10 + $0xe8] sm:$0xff]
      %v4942 = vld [vmem:[%s10 + $0xf0] sm:$0xff]
      %v4943 = vld [vmem:[%s10 + $0xf8] sm:$0xf]
      %v4944 = vld [vmem:[%s10 + $0xfc] sm:$0xff]
      %v4945 = vld [vmem:[%s10 + $0x104] sm:$0xff]
      %v4946 = vld [vmem:[%s10 + $0x10c] sm:$0xff]
      %v4947 = vld [vmem:[%s10 + $0x114] sm:$0xf]
      %v4948 = vld [vmem:[%s10 + $0x118] sm:$0xff]
      %v4949 = vld [vmem:[%s10 + $0x120] sm:$0xff]
      %v4950 = vld [vmem:[%s10 + $0x128] sm:$0xff]
      %v4951 = vld [vmem:[%s10 + $0x130] sm:$0xf]
      %v4952 = vld [vmem:[%s10 + $0x134] sm:$0xff]
      %v4953 = vld [vmem:[%s10 + $0x13c] sm:$0xff]
      %v4954 = vld [vmem:[%s10 + $0x144] sm:$0xff]
      %v4955 = vld [vmem:[%s10 + $0x14c] sm:$0xf]
      %v4956 = vld [vmem:[%s10 + $0x150] sm:$0xff]
      %v4957 = vld [vmem:[%s10 + $0x158] sm:$0xff]
      %v4958 = vld [vmem:[%s10 + $0x160] sm:$0xff]
      %v4959 = vld [vmem:[%s10 + $0x168] sm:$0xf]
      %v4960 = vld [vmem:[%s10 + $0x16c] sm:$0xff]
      %v4961 = vld [vmem:[%s10 + $0x174] sm:$0xff]
      %v4962 = vld [vmem:[%s10 + $0x17c] sm:$0xff]
      %v4963 = vld [vmem:[%s10 + $0x184] sm:$0xf]
      %v4964 = vld [vmem:[%s10 + $0x188] sm:$0xff]
      %v4965 = vld [vmem:[%s10 + $0x190] sm:$0xff]
      %v4966 = vld [vmem:[%s10 + $0x198] sm:$0xff]
      %v4967 = vld [vmem:[%s10 + $0x1a0] sm:$0xf]
      %v4968 = vld [vmem:[%s10 + $0x1a4] sm:$0xff]
      %v4969 = vld [vmem:[%s10 + $0x1ac] sm:$0xff]
      %v4970 = vld [vmem:[%s10 + $0x1b4] sm:$0xff]
      %v4971 = vld [vmem:[%s10 + $0x1bc] sm:$0xf]
      %v4972 = vld [vmem:[%s10 + $0x1c0] sm:$0xff]
      %v4973 = vld [vmem:[%s10 + $0x1c8] sm:$0xff]
      %v4974 = vld [vmem:[%s10 + $0x1d0] sm:$0xff]
      %v4975 = vld [vmem:[%s10 + $0x1d8] sm:$0xf]
      %v4976 = vld [vmem:[%s10 + $0x1dc] sm:$0xff]
      %v4977 = vld [vmem:[%s10 + $0x1e4] sm:$0xff]
      %v4978 = vld [vmem:[%s10 + $0x1ec] sm:$0xff]
      %v4979 = vld [vmem:[%s10 + $0x1f4] sm:$0xf]
      %v4980 = vld [vmem:[%s10 + $0x1f8] sm:$0xff]
      %v4981 = vld [vmem:[%s10 + $0x200] sm:$0xff]
      %v4982 = vld [vmem:[%s10 + $0x208] sm:$0xff]
      %v4983 = vld [vmem:[%s10 + $0x210] sm:$0xf]
      %v4984 = vld [vmem:[%s10 + $0x214] sm:$0xff]
      %v4985 = vld [vmem:[%s10 + $0x21c] sm:$0xff]
      %v4986 = vld [vmem:[%s10 + $0x224] sm:$0xff]
      %v4987 = vld [vmem:[%s10 + $0x22c] sm:$0xf]
      %v4988 = vld [vmem:[%s10 + $0x230] sm:$0xff]
      %v4989 = vld [vmem:[%s10 + $0x238] sm:$0xff]
      %v4990 = vld [vmem:[%s10 + $0x240] sm:$0xff]
      %v4991 = vld [vmem:[%s10 + $0x248] sm:$0xf]
      %v4992 = vld [vmem:[%s10 + $0x24c] sm:$0xff]
      %v4993 = vld [vmem:[%s10 + $0x254] sm:$0xff]
      %v4994 = vld [vmem:[%s10 + $0x25c] sm:$0xff]
      %v4995 = vld [vmem:[%s10 + $0x264] sm:$0xf]
      %v4996 = vld [vmem:[%s10 + $0x268] sm:$0xff]
      %v4997 = vld [vmem:[%s10 + $0x270] sm:$0xff]
      %v4998 = vld [vmem:[%s10 + $0x278] sm:$0xff]
      %v4999 = vld [vmem:[%s10 + $0x280] sm:$0xf]
      %v5000 = vld [vmem:[%s10 + $0x284] sm:$0xff]
      %v5001 = vld [vmem:[%s10 + $0x28c] sm:$0xff]
      %v5002 = vld [vmem:[%s10 + $0x294] sm:$0xff]
      %v5003 = vld [vmem:[%s10 + $0x29c] sm:$0xf]
      %v5004 = vld [vmem:[%s10 + $0x2a0] sm:$0xff]
      %v5005 = vld [vmem:[%s10 + $0x2a8] sm:$0xff]
      %v5006 = vld [vmem:[%s10 + $0x2b0] sm:$0xff]
      %v5007 = vld [vmem:[%s10 + $0x2b8] sm:$0xf]
      %v5008 = vld [vmem:[%s10 + $0x2bc] sm:$0xff]
      %v5009 = vld [vmem:[%s10 + $0x2c4] sm:$0xff]
      %v5010 = vld [vmem:[%s10 + $0x2cc] sm:$0xff]
      %v5011 = vld [vmem:[%s10 + $0x2d4] sm:$0xf]
      %v5012 = vld [vmem:[%s10 + $0x2d8] sm:$0xff]
      %v5013 = vld [vmem:[%s10 + $0x2e0] sm:$0xff]
      %v5014 = vld [vmem:[%s10 + $0x2e8] sm:$0xff]
      %v5015 = vld [vmem:[%s10 + $0x2f0] sm:$0xf]
      %v5016 = vld [vmem:[%s10 + $0x2f4] sm:$0xff]
      %v5017 = vld [vmem:[%s10 + $0x2fc] sm:$0xff]
      %v5018 = vld [vmem:[%s10 + $0x304] sm:$0xff]
      %v5019 = vld [vmem:[%s10 + $0x30c] sm:$0xf]
      %v5020 = vld [vmem:[%s10 + $0x310] sm:$0xff]
      %v5021 = vld [vmem:[%s10 + $0x318] sm:$0xff]
      %v5022 = vld [vmem:[%s10 + $0x320] sm:$0xff]
      %v5023 = vld [vmem:[%s10 + $0x328] sm:$0xf]
      %v5024 = vld [vmem:[%s10 + $0x32c] sm:$0xff]
      %v5025 = vld [vmem:[%s10 + $0x334] sm:$0xff]
      %v5026 = vld [vmem:[%s10 + $0x33c] sm:$0xff]
      %v5027 = vld [vmem:[%s10 + $0x344] sm:$0xf]
      %v5028 = vld [vmem:[%s10 + $0x348] sm:$0xff]
      %v5029 = vld [vmem:[%s10 + $0x350] sm:$0xff]
      %v5030 = vld [vmem:[%s10 + $0x358] sm:$0xff]
      %v5031 = vld [vmem:[%s10 + $0x360] sm:$0xf]
      %v5032 = vld [vmem:[%s10 + $0x364] sm:$0xff]
      %v5033 = vld [vmem:[%s10 + $0x36c] sm:$0xff]
      %v5034 = vld [vmem:[%s10 + $0x374] sm:$0xff]
      %v5035 = vld [vmem:[%s10 + $0x37c] sm:$0xf]
      %v5036 = vld [vmem:[%s20] sm:$0x7f]
      %v5038 = vlaneseq
      %v5039 = vshrl.u32 %v5038, 7
      %v5040 = vsub.s32 0, %v5039
      %v5041 = vrot.slane %v5036, %v5040
      %v5042 = vlaneseq
      %v5043 = vshrl.u32 %v5042, 7
      %v5044 = vsub.s32 1, %v5043
      %v5045 = vrot.slane %v5036, %v5044
      %v5046 = vlaneseq
      %v5047 = vshrl.u32 %v5046, 7
      %v5048 = vsub.s32 2, %v5047
      %v5049 = vrot.slane %v5036, %v5048
      %v5050 = vlaneseq
      %v5051 = vshrl.u32 %v5050, 7
      %v5052 = vsub.s32 3, %v5051
      %v5053 = vrot.slane %v5036, %v5052
      %v5054 = vlaneseq
      %v5055 = vshrl.u32 %v5054, 7
      %v5056 = vsub.s32 4, %v5055
      %v5057 = vrot.slane %v5036, %v5056
      %v5058 = vlaneseq
      %v5059 = vshrl.u32 %v5058, 7
      %v5060 = vsub.s32 5, %v5059
      %v5061 = vrot.slane %v5036, %v5060
      %v5062 = vlaneseq
      %v5063 = vshrl.u32 %v5062, 7
      %v5064 = vsub.s32 6, %v5063
      %v5065 = vrot.slane %v5036, %v5064
      %v5201 = vunpack.c.l.b16 %v4908
      %v5202 = vunpack.c.h.b16 %v4908
      %v5203 = vunpack.c.l.b16 %v4909
      %v5204 = vunpack.c.h.b16 %v4909
      %v5205 = vunpack.c.l.b16 %v4910
      %v5206 = vunpack.c.h.b16 %v4910
      %v5207 = vunpack.c.l.b16 %v4911
      %v5208 = vunpack.c.l.b16 %v4912
      %v5209 = vunpack.c.h.b16 %v4912
      %v5210 = vunpack.c.l.b16 %v4913
      %v5211 = vunpack.c.h.b16 %v4913
      %v5212 = vunpack.c.l.b16 %v4914
      %v5213 = vunpack.c.h.b16 %v4914
      %v5214 = vunpack.c.l.b16 %v4915
      %v5215 = vunpack.c.l.b16 %v4916
      %v5216 = vunpack.c.h.b16 %v4916
      %v5217 = vunpack.c.l.b16 %v4917
      %v5218 = vunpack.c.h.b16 %v4917
      %v5219 = vunpack.c.l.b16 %v4918
      %v5220 = vunpack.c.h.b16 %v4918
      %v5221 = vunpack.c.l.b16 %v4919
      %v5222 = vunpack.c.l.b16 %v4920
      %v5223 = vunpack.c.h.b16 %v4920
      %v5224 = vunpack.c.l.b16 %v4921
      %v5225 = vunpack.c.h.b16 %v4921
      %v5226 = vunpack.c.l.b16 %v4922
      %v5227 = vunpack.c.h.b16 %v4922
      %v5228 = vunpack.c.l.b16 %v4923
      %v5229 = vunpack.c.l.b16 %v4924
      %v5230 = vunpack.c.h.b16 %v4924
      %v5231 = vunpack.c.l.b16 %v4925
      %v5232 = vunpack.c.h.b16 %v4925
      %v5233 = vunpack.c.l.b16 %v4926
      %v5234 = vunpack.c.h.b16 %v4926
      %v5235 = vunpack.c.l.b16 %v4927
      %v5236 = vunpack.c.l.b16 %v4928
      %v5237 = vunpack.c.h.b16 %v4928
      %v5238 = vunpack.c.l.b16 %v4929
      %v5239 = vunpack.c.h.b16 %v4929
      %v5240 = vunpack.c.l.b16 %v4930
      %v5241 = vunpack.c.h.b16 %v4930
      %v5242 = vunpack.c.l.b16 %v4931
      %v5243 = vunpack.c.l.b16 %v4932
      %v5244 = vunpack.c.h.b16 %v4932
      %v5245 = vunpack.c.l.b16 %v4933
      %v5246 = vunpack.c.h.b16 %v4933
      %v5247 = vunpack.c.l.b16 %v4934
      %v5248 = vunpack.c.h.b16 %v4934
      %v5249 = vunpack.c.l.b16 %v4935
      %v5250 = vunpack.c.l.b16 %v4936
      %v5251 = vunpack.c.h.b16 %v4936
      %v5252 = vunpack.c.l.b16 %v4937
      %v5253 = vunpack.c.h.b16 %v4937
      %v5254 = vunpack.c.l.b16 %v4938
      %v5255 = vunpack.c.h.b16 %v4938
      %v5256 = vunpack.c.l.b16 %v4939
      %v5257 = vunpack.c.l.b16 %v4940
      %v5258 = vunpack.c.h.b16 %v4940
      %v5259 = vunpack.c.l.b16 %v4941
      %v5260 = vunpack.c.h.b16 %v4941
      %v5261 = vunpack.c.l.b16 %v4942
      %v5262 = vunpack.c.h.b16 %v4942
      %v5263 = vunpack.c.l.b16 %v4943
      %v5264 = vunpack.c.l.b16 %v4944
      %v5265 = vunpack.c.h.b16 %v4944
      %v5266 = vunpack.c.l.b16 %v4945
      %v5267 = vunpack.c.h.b16 %v4945
      %v5268 = vunpack.c.l.b16 %v4946
      %v5269 = vunpack.c.h.b16 %v4946
      %v5270 = vunpack.c.l.b16 %v4947
      %v5271 = vunpack.c.l.b16 %v4948
      %v5272 = vunpack.c.h.b16 %v4948
      %v5273 = vunpack.c.l.b16 %v4949
      %v5274 = vunpack.c.h.b16 %v4949
      %v5275 = vunpack.c.l.b16 %v4950
      %v5276 = vunpack.c.h.b16 %v4950
      %v5277 = vunpack.c.l.b16 %v4951
      %v5278 = vunpack.c.l.b16 %v4952
      %v5279 = vunpack.c.h.b16 %v4952
      %v5280 = vunpack.c.l.b16 %v4953
      %v5281 = vunpack.c.h.b16 %v4953
      %v5282 = vunpack.c.l.b16 %v4954
      %v5283 = vunpack.c.h.b16 %v4954
      %v5284 = vunpack.c.l.b16 %v4955
      %v5285 = vunpack.c.l.b16 %v4956
      %v5286 = vunpack.c.h.b16 %v4956
      %v5287 = vunpack.c.l.b16 %v4957
      %v5288 = vunpack.c.h.b16 %v4957
      %v5289 = vunpack.c.l.b16 %v4958
      %v5290 = vunpack.c.h.b16 %v4958
      %v5291 = vunpack.c.l.b16 %v4959
      %v5292 = vunpack.c.l.b16 %v4960
      %v5293 = vunpack.c.h.b16 %v4960
      %v5294 = vunpack.c.l.b16 %v4961
      %v5295 = vunpack.c.h.b16 %v4961
      %v5296 = vunpack.c.l.b16 %v4962
      %v5297 = vunpack.c.h.b16 %v4962
      %v5298 = vunpack.c.l.b16 %v4963
      %v5299 = vunpack.c.l.b16 %v4964
      %v5300 = vunpack.c.h.b16 %v4964
      %v5301 = vunpack.c.l.b16 %v4965
      %v5302 = vunpack.c.h.b16 %v4965
      %v5303 = vunpack.c.l.b16 %v4966
      %v5304 = vunpack.c.h.b16 %v4966
      %v5305 = vunpack.c.l.b16 %v4967
      %v5306 = vunpack.c.l.b16 %v4968
      %v5307 = vunpack.c.h.b16 %v4968
      %v5308 = vunpack.c.l.b16 %v4969
      %v5309 = vunpack.c.h.b16 %v4969
      %v5310 = vunpack.c.l.b16 %v4970
      %v5311 = vunpack.c.h.b16 %v4970
      %v5312 = vunpack.c.l.b16 %v4971
      %v5313 = vunpack.c.l.b16 %v4972
      %v5314 = vunpack.c.h.b16 %v4972
      %v5315 = vunpack.c.l.b16 %v4973
      %v5316 = vunpack.c.h.b16 %v4973
      %v5317 = vunpack.c.l.b16 %v4974
      %v5318 = vunpack.c.h.b16 %v4974
      %v5319 = vunpack.c.l.b16 %v4975
      %v5320 = vunpack.c.l.b16 %v4976
      %v5321 = vunpack.c.h.b16 %v4976
      %v5322 = vunpack.c.l.b16 %v4977
      %v5323 = vunpack.c.h.b16 %v4977
      %v5324 = vunpack.c.l.b16 %v4978
      %v5325 = vunpack.c.h.b16 %v4978
      %v5326 = vunpack.c.l.b16 %v4979
      %v5327 = vunpack.c.l.b16 %v4980
      %v5328 = vunpack.c.h.b16 %v4980
      %v5329 = vunpack.c.l.b16 %v4981
      %v5330 = vunpack.c.h.b16 %v4981
      %v5331 = vunpack.c.l.b16 %v4982
      %v5332 = vunpack.c.h.b16 %v4982
      %v5333 = vunpack.c.l.b16 %v4983
      %v5334 = vunpack.c.l.b16 %v4984
      %v5335 = vunpack.c.h.b16 %v4984
      %v5336 = vunpack.c.l.b16 %v4985
      %v5337 = vunpack.c.h.b16 %v4985
      %v5338 = vunpack.c.l.b16 %v4986
      %v5339 = vunpack.c.h.b16 %v4986
      %v5340 = vunpack.c.l.b16 %v4987
      %v5341 = vunpack.c.l.b16 %v4988
      %v5342 = vunpack.c.h.b16 %v4988
      %v5343 = vunpack.c.l.b16 %v4989
      %v5344 = vunpack.c.h.b16 %v4989
      %v5345 = vunpack.c.l.b16 %v4990
      %v5346 = vunpack.c.h.b16 %v4990
      %v5347 = vunpack.c.l.b16 %v4991
      %v5348 = vunpack.c.l.b16 %v4992
      %v5349 = vunpack.c.h.b16 %v4992
      %v5350 = vunpack.c.l.b16 %v4993
      %v5351 = vunpack.c.h.b16 %v4993
      %v5352 = vunpack.c.l.b16 %v4994
      %v5353 = vunpack.c.h.b16 %v4994
      %v5354 = vunpack.c.l.b16 %v4995
      %v5355 = vunpack.c.l.b16 %v4996
      %v5356 = vunpack.c.h.b16 %v4996
      %v5357 = vunpack.c.l.b16 %v4997
      %v5358 = vunpack.c.h.b16 %v4997
      %v5359 = vunpack.c.l.b16 %v4998
      %v5360 = vunpack.c.h.b16 %v4998
      %v5361 = vunpack.c.l.b16 %v4999
      %v5362 = vunpack.c.l.b16 %v5000
      %v5363 = vunpack.c.h.b16 %v5000
      %v5364 = vunpack.c.l.b16 %v5001
      %v5365 = vunpack.c.h.b16 %v5001
      %v5366 = vunpack.c.l.b16 %v5002
      %v5367 = vunpack.c.h.b16 %v5002
      %v5368 = vunpack.c.l.b16 %v5003
      %v5369 = vunpack.c.l.b16 %v5004
      %v5370 = vunpack.c.h.b16 %v5004
      %v5371 = vunpack.c.l.b16 %v5005
      %v5372 = vunpack.c.h.b16 %v5005
      %v5373 = vunpack.c.l.b16 %v5006
      %v5374 = vunpack.c.h.b16 %v5006
      %v5375 = vunpack.c.l.b16 %v5007
      %v5376 = vunpack.c.l.b16 %v5008
      %v5377 = vunpack.c.h.b16 %v5008
      %v5378 = vunpack.c.l.b16 %v5009
      %v5379 = vunpack.c.h.b16 %v5009
      %v5380 = vunpack.c.l.b16 %v5010
      %v5381 = vunpack.c.h.b16 %v5010
      %v5382 = vunpack.c.l.b16 %v5011
      %v5383 = vunpack.c.l.b16 %v5012
      %v5384 = vunpack.c.h.b16 %v5012
      %v5385 = vunpack.c.l.b16 %v5013
      %v5386 = vunpack.c.h.b16 %v5013
      %v5387 = vunpack.c.l.b16 %v5014
      %v5388 = vunpack.c.h.b16 %v5014
      %v5389 = vunpack.c.l.b16 %v5015
      %v5390 = vunpack.c.l.b16 %v5016
      %v5391 = vunpack.c.h.b16 %v5016
      %v5392 = vunpack.c.l.b16 %v5017
      %v5393 = vunpack.c.h.b16 %v5017
      %v5394 = vunpack.c.l.b16 %v5018
      %v5395 = vunpack.c.h.b16 %v5018
      %v5396 = vunpack.c.l.b16 %v5019
      %v5397 = vunpack.c.l.b16 %v5020
      %v5398 = vunpack.c.h.b16 %v5020
      %v5399 = vunpack.c.l.b16 %v5021
      %v5400 = vunpack.c.h.b16 %v5021
      %v5401 = vunpack.c.l.b16 %v5022
      %v5402 = vunpack.c.h.b16 %v5022
      %v5403 = vunpack.c.l.b16 %v5023
      %v5404 = vunpack.c.l.b16 %v5024
      %v5405 = vunpack.c.h.b16 %v5024
      %v5406 = vunpack.c.l.b16 %v5025
      %v5407 = vunpack.c.h.b16 %v5025
      %v5408 = vunpack.c.l.b16 %v5026
      %v5409 = vunpack.c.h.b16 %v5026
      %v5410 = vunpack.c.l.b16 %v5027
      %v5411 = vunpack.c.l.b16 %v5028
      %v5412 = vunpack.c.h.b16 %v5028
      %v5413 = vunpack.c.l.b16 %v5029
      %v5414 = vunpack.c.h.b16 %v5029
      %v5415 = vunpack.c.l.b16 %v5030
      %v5416 = vunpack.c.h.b16 %v5030
      %v5417 = vunpack.c.l.b16 %v5031
      %v5418 = vunpack.c.l.b16 %v5032
      %v5419 = vunpack.c.h.b16 %v5032
      %v5420 = vunpack.c.l.b16 %v5033
      %v5421 = vunpack.c.h.b16 %v5033
      %v5422 = vunpack.c.l.b16 %v5034
      %v5423 = vunpack.c.h.b16 %v5034
      %v5424 = vunpack.c.l.b16 %v5035
      %v5425 = vpack.c.b16 %v5208, %v5201
      %v5426 = vpack.c.b16 %v5209, %v5202
      %v5427 = vpack.c.b16 %v5210, %v5203
      %v5428 = vpack.c.b16 %v5211, %v5204
      %v5429 = vpack.c.b16 %v5212, %v5205
      %v5430 = vpack.c.b16 %v5213, %v5206
      %v5431 = vpack.c.b16 %v5214, %v5207
      %v5432 = vpack.c.b16 %v5222, %v5215
      %v5433 = vpack.c.b16 %v5223, %v5216
      %v5434 = vpack.c.b16 %v5224, %v5217
      %v5435 = vpack.c.b16 %v5225, %v5218
      %v5436 = vpack.c.b16 %v5226, %v5219
      %v5437 = vpack.c.b16 %v5227, %v5220
      %v5438 = vpack.c.b16 %v5228, %v5221
      %v5439 = vpack.c.b16 %v5236, %v5229
      %v5440 = vpack.c.b16 %v5237, %v5230
      %v5441 = vpack.c.b16 %v5238, %v5231
      %v5442 = vpack.c.b16 %v5239, %v5232
      %v5443 = vpack.c.b16 %v5240, %v5233
      %v5444 = vpack.c.b16 %v5241, %v5234
      %v5445 = vpack.c.b16 %v5242, %v5235
      %v5446 = vpack.c.b16 %v5250, %v5243
      %v5447 = vpack.c.b16 %v5251, %v5244
      %v5448 = vpack.c.b16 %v5252, %v5245
      %v5449 = vpack.c.b16 %v5253, %v5246
      %v5450 = vpack.c.b16 %v5254, %v5247
      %v5451 = vpack.c.b16 %v5255, %v5248
      %v5452 = vpack.c.b16 %v5256, %v5249
      %v5453 = vpack.c.b16 %v5264, %v5257
      %v5454 = vpack.c.b16 %v5265, %v5258
      %v5455 = vpack.c.b16 %v5266, %v5259
      %v5456 = vpack.c.b16 %v5267, %v5260
      %v5457 = vpack.c.b16 %v5268, %v5261
      %v5458 = vpack.c.b16 %v5269, %v5262
      %v5459 = vpack.c.b16 %v5270, %v5263
      %v5460 = vpack.c.b16 %v5278, %v5271
      %v5461 = vpack.c.b16 %v5279, %v5272
      %v5462 = vpack.c.b16 %v5280, %v5273
      %v5463 = vpack.c.b16 %v5281, %v5274
      %v5464 = vpack.c.b16 %v5282, %v5275
      %v5465 = vpack.c.b16 %v5283, %v5276
      %v5466 = vpack.c.b16 %v5284, %v5277
      %v5467 = vpack.c.b16 %v5292, %v5285
      %v5468 = vpack.c.b16 %v5293, %v5286
      %v5469 = vpack.c.b16 %v5294, %v5287
      %v5470 = vpack.c.b16 %v5295, %v5288
      %v5471 = vpack.c.b16 %v5296, %v5289
      %v5472 = vpack.c.b16 %v5297, %v5290
      %v5473 = vpack.c.b16 %v5298, %v5291
      %v5474 = vpack.c.b16 %v5306, %v5299
      %v5475 = vpack.c.b16 %v5307, %v5300
      %v5476 = vpack.c.b16 %v5308, %v5301
      %v5477 = vpack.c.b16 %v5309, %v5302
      %v5478 = vpack.c.b16 %v5310, %v5303
      %v5479 = vpack.c.b16 %v5311, %v5304
      %v5480 = vpack.c.b16 %v5312, %v5305
      %v5481 = vpack.c.b16 %v5320, %v5313
      %v5482 = vpack.c.b16 %v5321, %v5314
      %v5483 = vpack.c.b16 %v5322, %v5315
      %v5484 = vpack.c.b16 %v5323, %v5316
      %v5485 = vpack.c.b16 %v5324, %v5317
      %v5486 = vpack.c.b16 %v5325, %v5318
      %v5487 = vpack.c.b16 %v5326, %v5319
      %v5488 = vpack.c.b16 %v5334, %v5327
      %v5489 = vpack.c.b16 %v5335, %v5328
      %v5490 = vpack.c.b16 %v5336, %v5329
      %v5491 = vpack.c.b16 %v5337, %v5330
      %v5492 = vpack.c.b16 %v5338, %v5331
      %v5493 = vpack.c.b16 %v5339, %v5332
      %v5494 = vpack.c.b16 %v5340, %v5333
      %v5495 = vpack.c.b16 %v5348, %v5341
      %v5496 = vpack.c.b16 %v5349, %v5342
      %v5497 = vpack.c.b16 %v5350, %v5343
      %v5498 = vpack.c.b16 %v5351, %v5344
      %v5499 = vpack.c.b16 %v5352, %v5345
      %v5500 = vpack.c.b16 %v5353, %v5346
      %v5501 = vpack.c.b16 %v5354, %v5347
      %v5502 = vpack.c.b16 %v5362, %v5355
      %v5503 = vpack.c.b16 %v5363, %v5356
      %v5504 = vpack.c.b16 %v5364, %v5357
      %v5505 = vpack.c.b16 %v5365, %v5358
      %v5506 = vpack.c.b16 %v5366, %v5359
      %v5507 = vpack.c.b16 %v5367, %v5360
      %v5508 = vpack.c.b16 %v5368, %v5361
      %v5509 = vpack.c.b16 %v5376, %v5369
      %v5510 = vpack.c.b16 %v5377, %v5370
      %v5511 = vpack.c.b16 %v5378, %v5371
      %v5512 = vpack.c.b16 %v5379, %v5372
      %v5513 = vpack.c.b16 %v5380, %v5373
      %v5514 = vpack.c.b16 %v5381, %v5374
      %v5515 = vpack.c.b16 %v5382, %v5375
      %v5516 = vpack.c.b16 %v5390, %v5383
      %v5517 = vpack.c.b16 %v5391, %v5384
      %v5518 = vpack.c.b16 %v5392, %v5385
      %v5519 = vpack.c.b16 %v5393, %v5386
      %v5520 = vpack.c.b16 %v5394, %v5387
      %v5521 = vpack.c.b16 %v5395, %v5388
      %v5522 = vpack.c.b16 %v5396, %v5389
      %v5523 = vpack.c.b16 %v5404, %v5397
      %v5524 = vpack.c.b16 %v5405, %v5398
      %v5525 = vpack.c.b16 %v5406, %v5399
      %v5526 = vpack.c.b16 %v5407, %v5400
      %v5527 = vpack.c.b16 %v5408, %v5401
      %v5528 = vpack.c.b16 %v5409, %v5402
      %v5529 = vpack.c.b16 %v5410, %v5403
      %v5530 = vpack.c.b16 %v5418, %v5411
      %v5531 = vpack.c.b16 %v5419, %v5412
      %v5532 = vpack.c.b16 %v5420, %v5413
      %v5533 = vpack.c.b16 %v5421, %v5414
      %v5534 = vpack.c.b16 %v5422, %v5415
      %v5535 = vpack.c.b16 %v5423, %v5416
      %v5536 = vpack.c.b16 %v5424, %v5417
      %5649 = vmatprep.subr.bf16.mxu0 %v5426
      %5650 = vmatpush1.bf16.msra.mxu0 %v5425
      %5651 = vmatprep.subr.bf16.mxu0 %v5433
      %5652 = vmatpush1.bf16.msra.mxu0 %v5432
      %5653 = vmatprep.subr.bf16.mxu0 %v5440
      %5654 = vmatpush1.bf16.msra.mxu0 %v5439
      %5655 = vmatprep.subr.bf16.mxu0 %v5447
      %5656 = vmatpush1.bf16.msra.mxu0 %v5446
      %5657 = vmatprep.subr.bf16.mxu0 %v5454
      %5658 = vmatpush1.bf16.msra.mxu0 %v5453
      %5659 = vmatprep.subr.bf16.mxu0 %v5461
      %5660 = vmatpush1.bf16.msra.mxu0 %v5460
      %5661 = vmatprep.subr.bf16.mxu0 %v5468
      %5662 = vmatpush1.bf16.msra.mxu0 %v5467
      %5663 = vmatprep.subr.bf16.mxu0 %v5475
      %5664 = vmatpush1.bf16.msra.mxu0 %v5474
      %5665 = vmatprep.subr.bf16.mxu0 %v5482
      %5666 = vmatpush1.bf16.msra.mxu0 %v5481
      %5667 = vmatprep.subr.bf16.mxu0 %v5489
      %5668 = vmatpush1.bf16.msra.mxu0 %v5488
      %5669 = vmatprep.subr.bf16.mxu0 %v5496
      %5670 = vmatpush1.bf16.msra.mxu0 %v5495
      %5671 = vmatprep.subr.bf16.mxu0 %v5503
      %5672 = vmatpush1.bf16.msra.mxu0 %v5502
      %5673 = vmatprep.subr.bf16.mxu0 %v5510
      %5674 = vmatpush1.bf16.msra.mxu0 %v5509
      %5675 = vmatprep.subr.bf16.mxu0 %v5517
      %5676 = vmatpush1.bf16.msra.mxu0 %v5516
      %5677 = vmatprep.subr.bf16.mxu0 %v5524
      %5678 = vmatpush1.bf16.msra.mxu0 %v5523
      %5679 = vmatprep.subr.bf16.mxu0 %v5531
      %5680 = vmatpush1.bf16.msra.mxu0 %v5530
      %5681 = vmatprep.mubr.bf16.mxu0 %v4877
      %5682 = vmatmul.mubr.bf16.gmra.mrb[0].mxu0 %v4876
      %v5683 = vpop.f32.mrb[0].mxu0
      %v5684 = vadd.f32 %v5041, %v5683
      %v5685 = vpop.f32.mrb[0].mxu0
      %v5686 = vadd.f32 %v5045, %v5685
      %v5687 = vpop.f32.mrb[0].mxu0
      %v5688 = vadd.f32 %v5041, %v5687
      %v5689 = vpop.f32.mrb[0].mxu0
      %v5690 = vadd.f32 %v5045, %v5689
      %5691 = vmatprep.mubr.bf16.mxu0 %v4879
      %5692 = vmatmul.mubr.bf16.gmra.mrb[0].mxu0 %v4878
      %v5693 = vpop.f32.mrb[0].mxu0
      %v5694 = vadd.f32 %v5041, %v5693
      %v5695 = vpop.f32.mrb[0].mxu0
      %v5696 = vadd.f32 %v5045, %v5695
      %v5697 = vpop.f32.mrb[0].mxu0
      %v5698 = vadd.f32 %v5041, %v5697
      %v5699 = vpop.f32.mrb[0].mxu0
      %v5700 = vadd.f32 %v5045, %v5699
      %5701 = vmatprep.mubr.bf16.mxu0 %v4881
      %5702 = vmatmul.mubr.bf16.gmra.mrb[0].mxu0 %v4880
      %v5703 = vpop.f32.mrb[0].mxu0
      %v5704 = vadd.f32 %v5041, %v5703
      %v5705 = vpop.f32.mrb[0].mxu0
      %v5706 = vadd.f32 %v5045, %v5705
      %v5707 = vpop.f32.mrb[0].mxu0
      %v5708 = vadd.f32 %v5041, %v5707
      %v5709 = vpop.f32.mrb[0].mxu0
      %v5710 = vadd.f32 %v5045, %v5709
      %5711 = vmatprep.mubr.bf16.mxu0 %v4883
      %5712 = vmatmul.mubr.bf16.gmra.mrb[0].mxu0 %v4882
      %v5713 = vpop.f32.mrb[0].mxu0
      %v5714 = vadd.f32 %v5041, %v5713
      %v5715 = vpop.f32.mrb[0].mxu0
      %v5716 = vadd.f32 %v5045, %v5715
      %v5717 = vpop.f32.mrb[0].mxu0
      %v5718 = vadd.f32 %v5041, %v5717
      %v5719 = vpop.f32.mrb[0].mxu0
      %v5720 = vadd.f32 %v5045, %v5719
      %5721 = vmatprep.mubr.bf16.mxu0 %v4885
      %5722 = vmatmul.mubr.bf16.gmra.mrb[0].mxu0 %v4884
      %v5723 = vpop.f32.mrb[0].mxu0
      %v5724 = vadd.f32 %v5041, %v5723
      %v5725 = vpop.f32.mrb[0].mxu0
      %v5726 = vadd.f32 %v5045, %v5725
      %v5727 = vpop.f32.mrb[0].mxu0
      %v5728 = vadd.f32 %v5041, %v5727
      %v5729 = vpop.f32.mrb[0].mxu0
      %v5730 = vadd.f32 %v5045, %v5729
      %5731 = vmatprep.mubr.bf16.mxu0 %v4887
      %5732 = vmatmul.mubr.bf16.gmra.mrb[0].mxu0 %v4886
      %v5733 = vpop.f32.mrb[0].mxu0
      %v5734 = vadd.f32 %v5041, %v5733
      %v5735 = vpop.f32.mrb[0].mxu0
      %v5736 = vadd.f32 %v5045, %v5735
      %v5737 = vpop.f32.mrb[0].mxu0
      %v5738 = vadd.f32 %v5041, %v5737
      %v5739 = vpop.f32.mrb[0].mxu0
      %v5740 = vadd.f32 %v5045, %v5739
      %5741 = vmatprep.mubr.bf16.mxu0 %v4889
      %5742 = vmatmul.mubr.bf16.gmra.mrb[0].mxu0 %v4888
      %v5743 = vpop.f32.mrb[0].mxu0
      %v5744 = vadd.f32 %v5041, %v5743
      %v5745 = vpop.f32.mrb[0].mxu0
      %v5746 = vadd.f32 %v5045, %v5745
      %v5747 = vpop.f32.mrb[0].mxu0
      %v5748 = vadd.f32 %v5041, %v5747
      %v5749 = vpop.f32.mrb[0].mxu0
      %v5750 = vadd.f32 %v5045, %v5749
      %5751 = vmatprep.mubr.bf16.mxu0 %v4891
      %5752 = vmatmul.mubr.bf16.gmra.mrb[0].mxu0 %v4890
      %v5753 = vpop.f32.mrb[0].mxu0
      %v5754 = vadd.f32 %v5041, %v5753
      %v5755 = vpop.f32.mrb[0].mxu0
      %v5756 = vadd.f32 %v5045, %v5755
      %v5757 = vpop.f32.mrb[0].mxu0
      %v5758 = vadd.f32 %v5041, %v5757
      %v5759 = vpop.f32.mrb[0].mxu0
      %v5760 = vadd.f32 %v5045, %v5759
      %5761 = vmatprep.mubr.bf16.mxu0 %v4893
      %5762 = vmatmul.mubr.bf16.gmra.mrb[0].mxu0 %v4892
      %v5763 = vpop.f32.mrb[0].mxu0
      %v5764 = vadd.f32 %v5041, %v5763
      %v5765 = vpop.f32.mrb[0].mxu0
      %v5766 = vadd.f32 %v5045, %v5765
      %v5767 = vpop.f32.mrb[0].mxu0
      %v5768 = vadd.f32 %v5041, %v5767
      %v5769 = vpop.f32.mrb[0].mxu0
      %v5770 = vadd.f32 %v5045, %v5769
      %5771 = vmatprep.mubr.bf16.mxu0 %v4895
      %5772 = vmatmul.mubr.bf16.gmra.mrb[0].mxu0 %v4894
      %v5773 = vpop.f32.mrb[0].mxu0
      %v5774 = vadd.f32 %v5041, %v5773
      %v5775 = vpop.f32.mrb[0].mxu0
      %v5776 = vadd.f32 %v5045, %v5775
      %v5777 = vpop.f32.mrb[0].mxu0
      %v5778 = vadd.f32 %v5041, %v5777
      %v5779 = vpop.f32.mrb[0].mxu0
      %v5780 = vadd.f32 %v5045, %v5779
      %5781 = vmatprep.mubr.bf16.mxu0 %v4897
      %5782 = vmatmul.mubr.bf16.gmra.mrb[0].mxu0 %v4896
      %v5783 = vpop.f32.mrb[0].mxu0
      %v5784 = vadd.f32 %v5041, %v5783
      %v5785 = vpop.f32.mrb[0].mxu0
      %v5786 = vadd.f32 %v5045, %v5785
      %v5787 = vpop.f32.mrb[0].mxu0
      %v5788 = vadd.f32 %v5041, %v5787
      %v5789 = vpop.f32.mrb[0].mxu0
      %v5790 = vadd.f32 %v5045, %v5789
      %5791 = vmatprep.mubr.bf16.mxu0 %v4899
      %5792 = vmatmul.mubr.bf16.gmra.mrb[0].mxu0 %v4898
      %v5793 = vpop.f32.mrb[0].mxu0
      %v5794 = vadd.f32 %v5041, %v5793
      %v5795 = vpop.f32.mrb[0].mxu0
      %v5796 = vadd.f32 %v5045, %v5795
      %v5797 = vpop.f32.mrb[0].mxu0
      %v5798 = vadd.f32 %v5041, %v5797
      %v5799 = vpop.f32.mrb[0].mxu0
      %v5800 = vadd.f32 %v5045, %v5799
      %5801 = vmatprep.mubr.bf16.mxu0 %v4901
      %5802 = vmatmul.mubr.bf16.gmra.mrb[0].mxu0 %v4900
      %v5803 = vpop.f32.mrb[0].mxu0
      %v5804 = vadd.f32 %v5041, %v5803
      %v5805 = vpop.f32.mrb[0].mxu0
      %v5806 = vadd.f32 %v5045, %v5805
      %v5807 = vpop.f32.mrb[0].mxu0
      %v5808 = vadd.f32 %v5041, %v5807
      %v5809 = vpop.f32.mrb[0].mxu0
      %v5810 = vadd.f32 %v5045, %v5809
      %5811 = vmatprep.mubr.bf16.mxu0 %v4903
      %5812 = vmatmul.mubr.bf16.gmra.mrb[0].mxu0 %v4902
      %v5813 = vpop.f32.mrb[0].mxu0
      %v5814 = vadd.f32 %v5041, %v5813
      %v5815 = vpop.f32.mrb[0].mxu0
      %v5816 = vadd.f32 %v5045, %v5815
      %v5817 = vpop.f32.mrb[0].mxu0
      %v5818 = vadd.f32 %v5041, %v5817
      %v5819 = vpop.f32.mrb[0].mxu0
      %v5820 = vadd.f32 %v5045, %v5819
      %5821 = vmatprep.mubr.bf16.mxu0 %v4905
      %5822 = vmatmul.mubr.bf16.gmra.mrb[0].mxu0 %v4904
      %v5823 = vpop.f32.mrb[0].mxu0
      %v5824 = vadd.f32 %v5041, %v5823
      %v5825 = vpop.f32.mrb[0].mxu0
      %v5826 = vadd.f32 %v5045, %v5825
      %v5827 = vpop.f32.mrb[0].mxu0
      %v5828 = vadd.f32 %v5041, %v5827
      %v5829 = vpop.f32.mrb[0].mxu0
      %v5830 = vadd.f32 %v5045, %v5829
      %5831 = vmatprep.mubr.bf16.mxu0 %v4907
      %5832 = vmatmul.mubr.bf16.gmra.mrb[0].mxu0 %v4906
      %v5833 = vpop.f32.mrb[0].mxu0
      %v5834 = vadd.f32 %v5041, %v5833
      %v5835 = vpop.f32.mrb[0].mxu0
      %v5836 = vadd.f32 %v5045, %v5835
      %v5837 = vpop.f32.mrb[0].mxu0
      %v5838 = vadd.f32 %v5041, %v5837
      %v5839 = vpop.f32.mrb[0].mxu0
      %v5840 = vadd.f32 %v5045, %v5839
      %5841 = vdwg.mxu0
      %5842 = vmatprep.subr.bf16.mxu0 %v5428
      %5843 = vmatpush1.bf16.msra.mxu0 %v5427
      %5844 = vmatprep.subr.bf16.mxu0 %v5435
      %5845 = vmatpush1.bf16.msra.mxu0 %v5434
      %5846 = vmatprep.subr.bf16.mxu0 %v5442
      %5847 = vmatpush1.bf16.msra.mxu0 %v5441
      %5848 = vmatprep.subr.bf16.mxu0 %v5449
      %5849 = vmatpush1.bf16.msra.mxu0 %v5448
      %5850 = vmatprep.subr.bf16.mxu0 %v5456
      %5851 = vmatpush1.bf16.msra.mxu0 %v5455
      %5852 = vmatprep.subr.bf16.mxu0 %v5463
      %5853 = vmatpush1.bf16.msra.mxu0 %v5462
      %5854 = vmatprep.subr.bf16.mxu0 %v5470
      %5855 = vmatpush1.bf16.msra.mxu0 %v5469
      %5856 = vmatprep.subr.bf16.mxu0 %v5477
      %5857 = vmatpush1.bf16.msra.mxu0 %v5476
      %5858 = vmatprep.subr.bf16.mxu0 %v5484
      %5859 = vmatpush1.bf16.msra.mxu0 %v5483
      %5860 = vmatprep.subr.bf16.mxu0 %v5491
      %5861 = vmatpush1.bf16.msra.mxu0 %v5490
      %5862 = vmatprep.subr.bf16.mxu0 %v5498
      %5863 = vmatpush1.bf16.msra.mxu0 %v5497
      %5864 = vmatprep.subr.bf16.mxu0 %v5505
      %5865 = vmatpush1.bf16.msra.mxu0 %v5504
      %5866 = vmatprep.subr.bf16.mxu0 %v5512
      %5867 = vmatpush1.bf16.msra.mxu0 %v5511
      %5868 = vmatprep.subr.bf16.mxu0 %v5519
      %5869 = vmatpush1.bf16.msra.mxu0 %v5518
      %5870 = vmatprep.subr.bf16.mxu0 %v5526
      %5871 = vmatpush1.bf16.msra.mxu0 %v5525
      %5872 = vmatprep.subr.bf16.mxu0 %v5533
      %5873 = vmatpush1.bf16.msra.mxu0 %v5532
      %5874 = vmatprep.mubr.bf16.mxu0 %v4877
      %5875 = vmatmul.mubr.bf16.gmra.mrb[0].mxu0 %v4876
      %v5876 = vpop.f32.mrb[0].mxu0
      %v5877 = vadd.f32 %v5049, %v5876
      %v5878 = vpop.f32.mrb[0].mxu0
      %v5879 = vadd.f32 %v5053, %v5878
      %v5880 = vpop.f32.mrb[0].mxu0
      %v5881 = vadd.f32 %v5049, %v5880
      %v5882 = vpop.f32.mrb[0].mxu0
      %v5883 = vadd.f32 %v5053, %v5882
      %5884 = vmatprep.mubr.bf16.mxu0 %v4879
      %5885 = vmatmul.mubr.bf16.gmra.mrb[0].mxu0 %v4878
      %v5886 = vpop.f32.mrb[0].mxu0
      %v5887 = vadd.f32 %v5049, %v5886
      %v5888 = vpop.f32.mrb[0].mxu0
      %v5889 = vadd.f32 %v5053, %v5888
      %v5890 = vpop.f32.mrb[0].mxu0
      %v5891 = vadd.f32 %v5049, %v5890
      %v5892 = vpop.f32.mrb[0].mxu0
      %v5893 = vadd.f32 %v5053, %v5892
      %5894 = vmatprep.mubr.bf16.mxu0 %v4881
      %5895 = vmatmul.mubr.bf16.gmra.mrb[0].mxu0 %v4880
      %v5896 = vpop.f32.mrb[0].mxu0
      %v5897 = vadd.f32 %v5049, %v5896
      %v5898 = vpop.f32.mrb[0].mxu0
      %v5899 = vadd.f32 %v5053, %v5898
      %v5900 = vpop.f32.mrb[0].mxu0
      %v5901 = vadd.f32 %v5049, %v5900
      %v5902 = vpop.f32.mrb[0].mxu0
      %v5903 = vadd.f32 %v5053, %v5902
      %5904 = vmatprep.mubr.bf16.mxu0 %v4883
      %5905 = vmatmul.mubr.bf16.gmra.mrb[0].mxu0 %v4882
      %v5906 = vpop.f32.mrb[0].mxu0
      %v5907 = vadd.f32 %v5049, %v5906
      %v5908 = vpop.f32.mrb[0].mxu0
      %v5909 = vadd.f32 %v5053, %v5908
      %v5910 = vpop.f32.mrb[0].mxu0
      %v5911 = vadd.f32 %v5049, %v5910
      %v5912 = vpop.f32.mrb[0].mxu0
      %v5913 = vadd.f32 %v5053, %v5912
      %5914 = vmatprep.mubr.bf16.mxu0 %v4885
      %5915 = vmatmul.mubr.bf16.gmra.mrb[0].mxu0 %v4884
      %v5916 = vpop.f32.mrb[0].mxu0
      %v5917 = vadd.f32 %v5049, %v5916
      %v5918 = vpop.f32.mrb[0].mxu0
      %v5919 = vadd.f32 %v5053, %v5918
      %v5920 = vpop.f32.mrb[0].mxu0
      %v5921 = vadd.f32 %v5049, %v5920
      %v5922 = vpop.f32.mrb[0].mxu0
      %v5923 = vadd.f32 %v5053, %v5922
      %5924 = vmatprep.mubr.bf16.mxu0 %v4887
      %5925 = vmatmul.mubr.bf16.gmra.mrb[0].mxu0 %v4886
      %v5926 = vpop.f32.mrb[0].mxu0
      %v5927 = vadd.f32 %v5049, %v5926
      %v5928 = vpop.f32.mrb[0].mxu0
      %v5929 = vadd.f32 %v5053, %v5928
      %v5930 = vpop.f32.mrb[0].mxu0
      %v5931 = vadd.f32 %v5049, %v5930
      %v5932 = vpop.f32.mrb[0].mxu0
      %v5933 = vadd.f32 %v5053, %v5932
      %5934 = vmatprep.mubr.bf16.mxu0 %v4889
      %5935 = vmatmul.mubr.bf16.gmra.mrb[0].mxu0 %v4888
      %v5936 = vpop.f32.mrb[0].mxu0
      %v5937 = vadd.f32 %v5049, %v5936
      %v5938 = vpop.f32.mrb[0].mxu0
      %v5939 = vadd.f32 %v5053, %v5938
      %v5940 = vpop.f32.mrb[0].mxu0
      %v5941 = vadd.f32 %v5049, %v5940
      %v5942 = vpop.f32.mrb[0].mxu0
      %v5943 = vadd.f32 %v5053, %v5942
      %5944 = vmatprep.mubr.bf16.mxu0 %v4891
      %5945 = vmatmul.mubr.bf16.gmra.mrb[0].mxu0 %v4890
      %v5946 = vpop.f32.mrb[0].mxu0
      %v5947 = vadd.f32 %v5049, %v5946
      %v5948 = vpop.f32.mrb[0].mxu0
      %v5949 = vadd.f32 %v5053, %v5948
      %v5950 = vpop.f32.mrb[0].mxu0
      %v5951 = vadd.f32 %v5049, %v5950
      %v5952 = vpop.f32.mrb[0].mxu0
      %v5953 = vadd.f32 %v5053, %v5952
      %5954 = vmatprep.mubr.bf16.mxu0 %v4893
      %5955 = vmatmul.mubr.bf16.gmra.mrb[0].mxu0 %v4892
      %v5956 = vpop.f32.mrb[0].mxu0
      %v5957 = vadd.f32 %v5049, %v5956
      %v5958 = vpop.f32.mrb[0].mxu0
      %v5959 = vadd.f32 %v5053, %v5958
      %v5960 = vpop.f32.mrb[0].mxu0
      %v5961 = vadd.f32 %v5049, %v5960
      %v5962 = vpop.f32.mrb[0].mxu0
      %v5963 = vadd.f32 %v5053, %v5962
      %5964 = vmatprep.mubr.bf16.mxu0 %v4895
      %5965 = vmatmul.mubr.bf16.gmra.mrb[0].mxu0 %v4894
      %v5966 = vpop.f32.mrb[0].mxu0
      %v5967 = vadd.f32 %v5049, %v5966
      %v5968 = vpop.f32.mrb[0].mxu0
      %v5969 = vadd.f32 %v5053, %v5968
      %v5970 = vpop.f32.mrb[0].mxu0
      %v5971 = vadd.f32 %v5049, %v5970
      %v5972 = vpop.f32.mrb[0].mxu0
      %v5973 = vadd.f32 %v5053, %v5972
      %5974 = vmatprep.mubr.bf16.mxu0 %v4897
      %5975 = vmatmul.mubr.bf16.gmra.mrb[0].mxu0 %v4896
      %v5976 = vpop.f32.mrb[0].mxu0
      %v5977 = vadd.f32 %v5049, %v5976
      %v5978 = vpop.f32.mrb[0].mxu0
      %v5979 = vadd.f32 %v5053, %v5978
      %v5980 = vpop.f32.mrb[0].mxu0
      %v5981 = vadd.f32 %v5049, %v5980
      %v5982 = vpop.f32.mrb[0].mxu0
      %v5983 = vadd.f32 %v5053, %v5982
      %5984 = vmatprep.mubr.bf16.mxu0 %v4899
      %5985 = vmatmul.mubr.bf16.gmra.mrb[0].mxu0 %v4898
      %v5986 = vpop.f32.mrb[0].mxu0
      %v5987 = vadd.f32 %v5049, %v5986
      %v5988 = vpop.f32.mrb[0].mxu0
      %v5989 = vadd.f32 %v5053, %v5988
      %v5990 = vpop.f32.mrb[0].mxu0
      %v5991 = vadd.f32 %v5049, %v5990
      %v5992 = vpop.f32.mrb[0].mxu0
      %v5993 = vadd.f32 %v5053, %v5992
      %5994 = vmatprep.mubr.bf16.mxu0 %v4901
      %5995 = vmatmul.mubr.bf16.gmra.mrb[0].mxu0 %v4900
      %v5996 = vpop.f32.mrb[0].mxu0
      %v5997 = vadd.f32 %v5049, %v5996
      %v5998 = vpop.f32.mrb[0].mxu0
      %v5999 = vadd.f32 %v5053, %v5998
      %v6000 = vpop.f32.mrb[0].mxu0
      %v6001 = vadd.f32 %v5049, %v6000
      %v6002 = vpop.f32.mrb[0].mxu0
      %v6003 = vadd.f32 %v5053, %v6002
      %6004 = vmatprep.mubr.bf16.mxu0 %v4903
      %6005 = vmatmul.mubr.bf16.gmra.mrb[0].mxu0 %v4902
      %v6006 = vpop.f32.mrb[0].mxu0
      %v6007 = vadd.f32 %v5049, %v6006
      %v6008 = vpop.f32.mrb[0].mxu0
      %v6009 = vadd.f32 %v5053, %v6008
      %v6010 = vpop.f32.mrb[0].mxu0
      %v6011 = vadd.f32 %v5049, %v6010
      %v6012 = vpop.f32.mrb[0].mxu0
      %v6013 = vadd.f32 %v5053, %v6012
      %6014 = vmatprep.mubr.bf16.mxu0 %v4905
      %6015 = vmatmul.mubr.bf16.gmra.mrb[0].mxu0 %v4904
      %v6016 = vpop.f32.mrb[0].mxu0
      %v6017 = vadd.f32 %v5049, %v6016
      %v6018 = vpop.f32.mrb[0].mxu0
      %v6019 = vadd.f32 %v5053, %v6018
      %v6020 = vpop.f32.mrb[0].mxu0
      %v6021 = vadd.f32 %v5049, %v6020
      %v6022 = vpop.f32.mrb[0].mxu0
      %v6023 = vadd.f32 %v5053, %v6022
      %6024 = vmatprep.mubr.bf16.mxu0 %v4907
      %6025 = vmatmul.mubr.bf16.gmra.mrb[0].mxu0 %v4906
      %v6026 = vpop.f32.mrb[0].mxu0
      %v6027 = vadd.f32 %v5049, %v6026
      %v6028 = vpop.f32.mrb[0].mxu0
      %v6029 = vadd.f32 %v5053, %v6028
      %v6030 = vpop.f32.mrb[0].mxu0
      %v6031 = vadd.f32 %v5049, %v6030
      %v6032 = vpop.f32.mrb[0].mxu0
      %v6033 = vadd.f32 %v5053, %v6032
      %6034 = vdwg.mxu0
      %6035 = vmatprep.subr.bf16.mxu0 %v5430
      %6036 = vmatpush1.bf16.msra.mxu0 %v5429
      %6037 = vmatprep.subr.bf16.mxu0 %v5437
      %6038 = vmatpush1.bf16.msra.mxu0 %v5436
      %6039 = vmatprep.subr.bf16.mxu0 %v5444
      %6040 = vmatpush1.bf16.msra.mxu0 %v5443
      %6041 = vmatprep.subr.bf16.mxu0 %v5451
      %6042 = vmatpush1.bf16.msra.mxu0 %v5450
      %6043 = vmatprep.subr.bf16.mxu0 %v5458
      %6044 = vmatpush1.bf16.msra.mxu0 %v5457
      %6045 = vmatprep.subr.bf16.mxu0 %v5465
      %6046 = vmatpush1.bf16.msra.mxu0 %v5464
      %6047 = vmatprep.subr.bf16.mxu0 %v5472
      %6048 = vmatpush1.bf16.msra.mxu0 %v5471
      %6049 = vmatprep.subr.bf16.mxu0 %v5479
      %6050 = vmatpush1.bf16.msra.mxu0 %v5478
      %6051 = vmatprep.subr.bf16.mxu0 %v5486
      %6052 = vmatpush1.bf16.msra.mxu0 %v5485
      %6053 = vmatprep.subr.bf16.mxu0 %v5493
      %6054 = vmatpush1.bf16.msra.mxu0 %v5492
      %6055 = vmatprep.subr.bf16.mxu0 %v5500
      %6056 = vmatpush1.bf16.msra.mxu0 %v5499
      %6057 = vmatprep.subr.bf16.mxu0 %v5507
      %6058 = vmatpush1.bf16.msra.mxu0 %v5506
      %6059 = vmatprep.subr.bf16.mxu0 %v5514
      %6060 = vmatpush1.bf16.msra.mxu0 %v5513
      %6061 = vmatprep.subr.bf16.mxu0 %v5521
      %6062 = vmatpush1.bf16.msra.mxu0 %v5520
      %6063 = vmatprep.subr.bf16.mxu0 %v5528
      %6064 = vmatpush1.bf16.msra.mxu0 %v5527
      %6065 = vmatprep.subr.bf16.mxu0 %v5535
      %6066 = vmatpush1.bf16.msra.mxu0 %v5534
      %6067 = vmatprep.mubr.bf16.mxu0 %v4877
      %6068 = vmatmul.mubr.bf16.gmra.mrb[0].mxu0 %v4876
      %v6069 = vpop.f32.mrb[0].mxu0
      %v6070 = vadd.f32 %v5057, %v6069
      %v6071 = vpop.f32.mrb[0].mxu0
      %v6072 = vadd.f32 %v5061, %v6071
      %v6073 = vpop.f32.mrb[0].mxu0
      %v6074 = vadd.f32 %v5057, %v6073
      %v6075 = vpop.f32.mrb[0].mxu0
      %v6076 = vadd.f32 %v5061, %v6075
      %6077 = vmatprep.mubr.bf16.mxu0 %v4879
      %6078 = vmatmul.mubr.bf16.gmra.mrb[0].mxu0 %v4878
      %v6079 = vpop.f32.mrb[0].mxu0
      %v6080 = vadd.f32 %v5057, %v6079
      %v6081 = vpop.f32.mrb[0].mxu0
      %v6082 = vadd.f32 %v5061, %v6081
      %v6083 = vpop.f32.mrb[0].mxu0
      %v6084 = vadd.f32 %v5057, %v6083
      %v6085 = vpop.f32.mrb[0].mxu0
      %v6086 = vadd.f32 %v5061, %v6085
      %6087 = vmatprep.mubr.bf16.mxu0 %v4881
      %6088 = vmatmul.mubr.bf16.gmra.mrb[0].mxu0 %v4880
      %v6089 = vpop.f32.mrb[0].mxu0
      %v6090 = vadd.f32 %v5057, %v6089
      %v6091 = vpop.f32.mrb[0].mxu0
      %v6092 = vadd.f32 %v5061, %v6091
      %v6093 = vpop.f32.mrb[0].mxu0
      %v6094 = vadd.f32 %v5057, %v6093
      %v6095 = vpop.f32.mrb[0].mxu0
      %v6096 = vadd.f32 %v5061, %v6095
      %6097 = vmatprep.mubr.bf16.mxu0 %v4883
      %6098 = vmatmul.mubr.bf16.gmra.mrb[0].mxu0 %v4882
      %v6099 = vpop.f32.mrb[0].mxu0
      %v6100 = vadd.f32 %v5057, %v6099
      %v6101 = vpop.f32.mrb[0].mxu0
      %v6102 = vadd.f32 %v5061, %v6101
      %v6103 = vpop.f32.mrb[0].mxu0
      %v6104 = vadd.f32 %v5057, %v6103
      %v6105 = vpop.f32.mrb[0].mxu0
      %v6106 = vadd.f32 %v5061, %v6105
      %6107 = vmatprep.mubr.bf16.mxu0 %v4885
      %6108 = vmatmul.mubr.bf16.gmra.mrb[0].mxu0 %v4884
      %v6109 = vpop.f32.mrb[0].mxu0
      %v6110 = vadd.f32 %v5057, %v6109
      %v6111 = vpop.f32.mrb[0].mxu0
      %v6112 = vadd.f32 %v5061, %v6111
      %v6113 = vpop.f32.mrb[0].mxu0
      %v6114 = vadd.f32 %v5057, %v6113
      %v6115 = vpop.f32.mrb[0].mxu0
      %v6116 = vadd.f32 %v5061, %v6115
      %6117 = vmatprep.mubr.bf16.mxu0 %v4887
      %6118 = vmatmul.mubr.bf16.gmra.mrb[0].mxu0 %v4886
      %v6119 = vpop.f32.mrb[0].mxu0
      %v6120 = vadd.f32 %v5057, %v6119
      %v6121 = vpop.f32.mrb[0].mxu0
      %v6122 = vadd.f32 %v5061, %v6121
      %v6123 = vpop.f32.mrb[0].mxu0
      %v6124 = vadd.f32 %v5057, %v6123
      %v6125 = vpop.f32.mrb[0].mxu0
      %v6126 = vadd.f32 %v5061, %v6125
      %6127 = vmatprep.mubr.bf16.mxu0 %v4889
      %6128 = vmatmul.mubr.bf16.gmra.mrb[0].mxu0 %v4888
      %v6129 = vpop.f32.mrb[0].mxu0
      %v6130 = vadd.f32 %v5057, %v6129
      %v6131 = vpop.f32.mrb[0].mxu0
      %v6132 = vadd.f32 %v5061, %v6131
      %v6133 = vpop.f32.mrb[0].mxu0
      %v6134 = vadd.f32 %v5057, %v6133
      %v6135 = vpop.f32.mrb[0].mxu0
      %v6136 = vadd.f32 %v5061, %v6135
      %6137 = vmatprep.mubr.bf16.mxu0 %v4891
      %6138 = vmatmul.mubr.bf16.gmra.mrb[0].mxu0 %v4890
      %v6139 = vpop.f32.mrb[0].mxu0
      %v6140 = vadd.f32 %v5057, %v6139
      %v6141 = vpop.f32.mrb[0].mxu0
      %v6142 = vadd.f32 %v5061, %v6141
      %v6143 = vpop.f32.mrb[0].mxu0
      %v6144 = vadd.f32 %v5057, %v6143
      %v6145 = vpop.f32.mrb[0].mxu0
      %v6146 = vadd.f32 %v5061, %v6145
      %6147 = vmatprep.mubr.bf16.mxu0 %v4893
      %6148 = vmatmul.mubr.bf16.gmra.mrb[0].mxu0 %v4892
      %v6149 = vpop.f32.mrb[0].mxu0
      %v6150 = vadd.f32 %v5057, %v6149
      %v6151 = vpop.f32.mrb[0].mxu0
      %v6152 = vadd.f32 %v5061, %v6151
      %v6153 = vpop.f32.mrb[0].mxu0
      %v6154 = vadd.f32 %v5057, %v6153
      %v6155 = vpop.f32.mrb[0].mxu0
      %v6156 = vadd.f32 %v5061, %v6155
      %6157 = vmatprep.mubr.bf16.mxu0 %v4895
      %6158 = vmatmul.mubr.bf16.gmra.mrb[0].mxu0 %v4894
      %v6159 = vpop.f32.mrb[0].mxu0
      %v6160 = vadd.f32 %v5057, %v6159
      %v6161 = vpop.f32.mrb[0].mxu0
      %v6162 = vadd.f32 %v5061, %v6161
      %v6163 = vpop.f32.mrb[0].mxu0
      %v6164 = vadd.f32 %v5057, %v6163
      %v6165 = vpop.f32.mrb[0].mxu0
      %v6166 = vadd.f32 %v5061, %v6165
      %6167 = vmatprep.mubr.bf16.mxu0 %v4897
      %6168 = vmatmul.mubr.bf16.gmra.mrb[0].mxu0 %v4896
      %v6169 = vpop.f32.mrb[0].mxu0
      %v6170 = vadd.f32 %v5057, %v6169
      %v6171 = vpop.f32.mrb[0].mxu0
      %v6172 = vadd.f32 %v5061, %v6171
      %v6173 = vpop.f32.mrb[0].mxu0
      %v6174 = vadd.f32 %v5057, %v6173
      %v6175 = vpop.f32.mrb[0].mxu0
      %v6176 = vadd.f32 %v5061, %v6175
      %6177 = vmatprep.mubr.bf16.mxu0 %v4899
      %6178 = vmatmul.mubr.bf16.gmra.mrb[0].mxu0 %v4898
      %v6179 = vpop.f32.mrb[0].mxu0
      %v6180 = vadd.f32 %v5057, %v6179
      %v6181 = vpop.f32.mrb[0].mxu0
      %v6182 = vadd.f32 %v5061, %v6181
      %v6183 = vpop.f32.mrb[0].mxu0
      %v6184 = vadd.f32 %v5057, %v6183
      %v6185 = vpop.f32.mrb[0].mxu0
      %v6186 = vadd.f32 %v5061, %v6185
      %6187 = vmatprep.mubr.bf16.mxu0 %v4901
      %6188 = vmatmul.mubr.bf16.gmra.mrb[0].mxu0 %v4900
      %v6189 = vpop.f32.mrb[0].mxu0
      %v6190 = vadd.f32 %v5057, %v6189
      %v6191 = vpop.f32.mrb[0].mxu0
      %v6192 = vadd.f32 %v5061, %v6191
      %v6193 = vpop.f32.mrb[0].mxu0
      %v6194 = vadd.f32 %v5057, %v6193
      %v6195 = vpop.f32.mrb[0].mxu0
      %v6196 = vadd.f32 %v5061, %v6195
      %6197 = vmatprep.mubr.bf16.mxu0 %v4903
      %6198 = vmatmul.mubr.bf16.gmra.mrb[0].mxu0 %v4902
      %v6199 = vpop.f32.mrb[0].mxu0
      %v6200 = vadd.f32 %v5057, %v6199
      %v6201 = vpop.f32.mrb[0].mxu0
      %v6202 = vadd.f32 %v5061, %v6201
      %v6203 = vpop.f32.mrb[0].mxu0
      %v6204 = vadd.f32 %v5057, %v6203
      %v6205 = vpop.f32.mrb[0].mxu0
      %v6206 = vadd.f32 %v5061, %v6205
      %6207 = vmatprep.mubr.bf16.mxu0 %v4905
      %6208 = vmatmul.mubr.bf16.gmra.mrb[0].mxu0 %v4904
      %v6209 = vpop.f32.mrb[0].mxu0
      %v6210 = vadd.f32 %v5057, %v6209
      %v6211 = vpop.f32.mrb[0].mxu0
      %v6212 = vadd.f32 %v5061, %v6211
      %v6213 = vpop.f32.mrb[0].mxu0
      %v6214 = vadd.f32 %v5057, %v6213
      %v6215 = vpop.f32.mrb[0].mxu0
      %v6216 = vadd.f32 %v5061, %v6215
      %6217 = vmatprep.mubr.bf16.mxu0 %v4907
      %6218 = vmatmul.mubr.bf16.gmra.mrb[0].mxu0 %v4906
      %v6219 = vpop.f32.mrb[0].mxu0
      %v6220 = vadd.f32 %v5057, %v6219
      %v6221 = vpop.f32.mrb[0].mxu0
      %v6222 = vadd.f32 %v5061, %v6221
      %v6223 = vpop.f32.mrb[0].mxu0
      %v6224 = vadd.f32 %v5057, %v6223
      %v6225 = vpop.f32.mrb[0].mxu0
      %v6226 = vadd.f32 %v5061, %v6225
      %6227 = vdwg.mxu0
      %6228 = vmatprep.subr.bf16.mxu0 0
      %6229 = vmatpush1.bf16.msra.mxu0 %v5431
      %6230 = vmatprep.subr.bf16.mxu0 0
      %6231 = vmatpush1.bf16.msra.mxu0 %v5438
      %6232 = vmatprep.subr.bf16.mxu0 0
      %6233 = vmatpush1.bf16.msra.mxu0 %v5445
      %6234 = vmatprep.subr.bf16.mxu0 0
      %6235 = vmatpush1.bf16.msra.mxu0 %v5452
      %6236 = vmatprep.subr.bf16.mxu0 0
      %6237 = vmatpush1.bf16.msra.mxu0 %v5459
      %6238 = vmatprep.subr.bf16.mxu0 0
      %6239 = vmatpush1.bf16.msra.mxu0 %v5466
      %6240 = vmatprep.subr.bf16.mxu0 0
      %6241 = vmatpush1.bf16.msra.mxu0 %v5473
      %6242 = vmatprep.subr.bf16.mxu0 0
      %6243 = vmatpush1.bf16.msra.mxu0 %v5480
      %6244 = vmatprep.subr.bf16.mxu0 0
      %6245 = vmatpush1.bf16.msra.mxu0 %v5487
      %6246 = vmatprep.subr.bf16.mxu0 0
      %6247 = vmatpush1.bf16.msra.mxu0 %v5494
      %6248 = vmatprep.subr.bf16.mxu0 0
      %6249 = vmatpush1.bf16.msra.mxu0 %v5501
      %6250 = vmatprep.subr.bf16.mxu0 0
      %6251 = vmatpush1.bf16.msra.mxu0 %v5508
      %6252 = vmatprep.subr.bf16.mxu0 0
      %6253 = vmatpush1.bf16.msra.mxu0 %v5515
      %6254 = vmatprep.subr.bf16.mxu0 0
      %6255 = vmatpush1.bf16.msra.mxu0 %v5522
      %6256 = vmatprep.subr.bf16.mxu0 0
      %6257 = vmatpush1.bf16.msra.mxu0 %v5529
      %6258 = vmatprep.subr.bf16.mxu0 0
      %6259 = vmatpush1.bf16.msra.mxu0 %v5536
      %6260 = vmatprep.mubr.bf16.mxu0 %v4877
      %6261 = vmatmul.mubr.bf16.gmra.mrb[0].mxu0 %v4876
      %v6262 = vpop.f32.mrb[0].mxu0
      %v6263 = vadd.f32 %v5065, %v6262
      %v6264 = vpop.f32.mrb[0].mxu0
      %v6265 = vpop.f32.mrb[0].mxu0
      %v6266 = vadd.f32 %v5065, %v6265
      %v6267 = vpop.f32.mrb[0].mxu0
      %6268 = vmatprep.mubr.bf16.mxu0 %v4879
      %6269 = vmatmul.mubr.bf16.gmra.mrb[0].mxu0 %v4878
      %v6270 = vpop.f32.mrb[0].mxu0
      %v6271 = vadd.f32 %v5065, %v6270
      %v6272 = vpop.f32.mrb[0].mxu0
      %v6273 = vpop.f32.mrb[0].mxu0
      %v6274 = vadd.f32 %v5065, %v6273
      %v6275 = vpop.f32.mrb[0].mxu0
      %6276 = vmatprep.mubr.bf16.mxu0 %v4881
      %6277 = vmatmul.mubr.bf16.gmra.mrb[0].mxu0 %v4880
      %v6278 = vpop.f32.mrb[0].mxu0
      %v6279 = vadd.f32 %v5065, %v6278
      %v6280 = vpop.f32.mrb[0].mxu0
      %v6281 = vpop.f32.mrb[0].mxu0
      %v6282 = vadd.f32 %v5065, %v6281
      %v6283 = vpop.f32.mrb[0].mxu0
      %6284 = vmatprep.mubr.bf16.mxu0 %v4883
      %6285 = vmatmul.mubr.bf16.gmra.mrb[0].mxu0 %v4882
      %v6286 = vpop.f32.mrb[0].mxu0
      %v6287 = vadd.f32 %v5065, %v6286
      %v6288 = vpop.f32.mrb[0].mxu0
      %v6289 = vpop.f32.mrb[0].mxu0
      %v6290 = vadd.f32 %v5065, %v6289
      %v6291 = vpop.f32.mrb[0].mxu0
      %6292 = vmatprep.mubr.bf16.mxu0 %v4885
      %6293 = vmatmul.mubr.bf16.gmra.mrb[0].mxu0 %v4884
      %v6294 = vpop.f32.mrb[0].mxu0
      %v6295 = vadd.f32 %v5065, %v6294
      %v6296 = vpop.f32.mrb[0].mxu0
      %v6297 = vpop.f32.mrb[0].mxu0
      %v6298 = vadd.f32 %v5065, %v6297
      %v6299 = vpop.f32.mrb[0].mxu0
      %6300 = vmatprep.mubr.bf16.mxu0 %v4887
      %6301 = vmatmul.mubr.bf16.gmra.mrb[0].mxu0 %v4886
      %v6302 = vpop.f32.mrb[0].mxu0
      %v6303 = vadd.f32 %v5065, %v6302
      %v6304 = vpop.f32.mrb[0].mxu0
      %v6305 = vpop.f32.mrb[0].mxu0
      %v6306 = vadd.f32 %v5065, %v6305
      %v6307 = vpop.f32.mrb[0].mxu0
      %6308 = vmatprep.mubr.bf16.mxu0 %v4889
      %6309 = vmatmul.mubr.bf16.gmra.mrb[0].mxu0 %v4888
      %v6310 = vpop.f32.mrb[0].mxu0
      %v6311 = vadd.f32 %v5065, %v6310
      %v6312 = vpop.f32.mrb[0].mxu0
      %v6313 = vpop.f32.mrb[0].mxu0
      %v6314 = vadd.f32 %v5065, %v6313
      %v6315 = vpop.f32.mrb[0].mxu0
      %6316 = vmatprep.mubr.bf16.mxu0 %v4891
      %6317 = vmatmul.mubr.bf16.gmra.mrb[0].mxu0 %v4890
      %v6318 = vpop.f32.mrb[0].mxu0
      %v6319 = vadd.f32 %v5065, %v6318
      %v6320 = vpop.f32.mrb[0].mxu0
      %v6321 = vpop.f32.mrb[0].mxu0
      %v6322 = vadd.f32 %v5065, %v6321
      %v6323 = vpop.f32.mrb[0].mxu0
      %6324 = vmatprep.mubr.bf16.mxu0 %v4893
      %6325 = vmatmul.mubr.bf16.gmra.mrb[0].mxu0 %v4892
      %v6326 = vpop.f32.mrb[0].mxu0
      %v6327 = vadd.f32 %v5065, %v6326
      %v6328 = vpop.f32.mrb[0].mxu0
      %v6329 = vpop.f32.mrb[0].mxu0
      %v6330 = vadd.f32 %v5065, %v6329
      %v6331 = vpop.f32.mrb[0].mxu0
      %6332 = vmatprep.mubr.bf16.mxu0 %v4895
      %6333 = vmatmul.mubr.bf16.gmra.mrb[0].mxu0 %v4894
      %v6334 = vpop.f32.mrb[0].mxu0
      %v6335 = vadd.f32 %v5065, %v6334
      %v6336 = vpop.f32.mrb[0].mxu0
      %v6337 = vpop.f32.mrb[0].mxu0
      %v6338 = vadd.f32 %v5065, %v6337
      %v6339 = vpop.f32.mrb[0].mxu0
      %6340 = vmatprep.mubr.bf16.mxu0 %v4897
      %6341 = vmatmul.mubr.bf16.gmra.mrb[0].mxu0 %v4896
      %v6342 = vpop.f32.mrb[0].mxu0
      %v6343 = vadd.f32 %v5065, %v6342
      %v6344 = vpop.f32.mrb[0].mxu0
      %v6345 = vpop.f32.mrb[0].mxu0
      %v6346 = vadd.f32 %v5065, %v6345
      %v6347 = vpop.f32.mrb[0].mxu0
      %6348 = vmatprep.mubr.bf16.mxu0 %v4899
      %6349 = vmatmul.mubr.bf16.gmra.mrb[0].mxu0 %v4898
      %v6350 = vpop.f32.mrb[0].mxu0
      %v6351 = vadd.f32 %v5065, %v6350
      %v6352 = vpop.f32.mrb[0].mxu0
      %v6353 = vpop.f32.mrb[0].mxu0
      %v6354 = vadd.f32 %v5065, %v6353
      %v6355 = vpop.f32.mrb[0].mxu0
      %6356 = vmatprep.mubr.bf16.mxu0 %v4901
      %6357 = vmatmul.mubr.bf16.gmra.mrb[0].mxu0 %v4900
      %v6358 = vpop.f32.mrb[0].mxu0
      %v6359 = vadd.f32 %v5065, %v6358
      %v6360 = vpop.f32.mrb[0].mxu0
      %v6361 = vpop.f32.mrb[0].mxu0
      %v6362 = vadd.f32 %v5065, %v6361
      %v6363 = vpop.f32.mrb[0].mxu0
      %6364 = vmatprep.mubr.bf16.mxu0 %v4903
      %6365 = vmatmul.mubr.bf16.gmra.mrb[0].mxu0 %v4902
      %v6366 = vpop.f32.mrb[0].mxu0
      %v6367 = vadd.f32 %v5065, %v6366
      %v6368 = vpop.f32.mrb[0].mxu0
      %v6369 = vpop.f32.mrb[0].mxu0
      %v6370 = vadd.f32 %v5065, %v6369
      %v6371 = vpop.f32.mrb[0].mxu0
      %6372 = vmatprep.mubr.bf16.mxu0 %v4905
      %6373 = vmatmul.mubr.bf16.gmra.mrb[0].mxu0 %v4904
      %v6374 = vpop.f32.mrb[0].mxu0
      %v6375 = vadd.f32 %v5065, %v6374
      %v6376 = vpop.f32.mrb[0].mxu0
      %v6377 = vpop.f32.mrb[0].mxu0
      %v6378 = vadd.f32 %v5065, %v6377
      %v6379 = vpop.f32.mrb[0].mxu0
      %6380 = vmatprep.mubr.bf16.mxu0 %v4907
      %6381 = vmatmul.mubr.bf16.gmra.mrb[0].mxu0 %v4906
      %v6382 = vpop.f32.mrb[0].mxu0
      %v6383 = vadd.f32 %v5065, %v6382
      %v6384 = vpop.f32.mrb[0].mxu0
      %v6385 = vpop.f32.mrb[0].mxu0
      %v6386 = vadd.f32 %v5065, %v6385
      %v6387 = vpop.f32.mrb[0].mxu0
      %6388 = vdwg.mxu0
      %v6389 = vxor.u32 %v5684, 2147483648
      %v6390 = vxor.u32 %v5686, 2147483648
      %v6391 = vxor.u32 %v5877, 2147483648
      %v6392 = vxor.u32 %v5879, 2147483648
      %v6393 = vxor.u32 %v6070, 2147483648
      %v6394 = vxor.u32 %v6072, 2147483648
      %v6395 = vxor.u32 %v6263, 2147483648
      %v6396 = vxor.u32 %v5688, 2147483648
      %v6397 = vxor.u32 %v5690, 2147483648
      %v6398 = vxor.u32 %v5881, 2147483648
      %v6399 = vxor.u32 %v5883, 2147483648
      %v6400 = vxor.u32 %v6074, 2147483648
      %v6401 = vxor.u32 %v6076, 2147483648
      %v6402 = vxor.u32 %v6266, 2147483648
      %v6403 = vxor.u32 %v5694, 2147483648
      %v6404 = vxor.u32 %v5696, 2147483648
      %v6405 = vxor.u32 %v5887, 2147483648
      %v6406 = vxor.u32 %v5889, 2147483648
      %v6407 = vxor.u32 %v6080, 2147483648
      %v6408 = vxor.u32 %v6082, 2147483648
      %v6409 = vxor.u32 %v6271, 2147483648
      %v6410 = vxor.u32 %v5698, 2147483648
      %v6411 = vxor.u32 %v5700, 2147483648
      %v6412 = vxor.u32 %v5891, 2147483648
      %v6413 = vxor.u32 %v5893, 2147483648
      %v6414 = vxor.u32 %v6084, 2147483648
      %v6415 = vxor.u32 %v6086, 2147483648
      %v6416 = vxor.u32 %v6274, 2147483648
      %v6417 = vxor.u32 %v5704, 2147483648
      %v6418 = vxor.u32 %v5706, 2147483648
      %v6419 = vxor.u32 %v5897, 2147483648
      %v6420 = vxor.u32 %v5899, 2147483648
      %v6421 = vxor.u32 %v6090, 2147483648
      %v6422 = vxor.u32 %v6092, 2147483648
      %v6423 = vxor.u32 %v6279, 2147483648
      %v6424 = vxor.u32 %v5708, 2147483648
      %v6425 = vxor.u32 %v5710, 2147483648
      %v6426 = vxor.u32 %v5901, 2147483648
      %v6427 = vxor.u32 %v5903, 2147483648
      %v6428 = vxor.u32 %v6094, 2147483648
      %v6429 = vxor.u32 %v6096, 2147483648
      %v6430 = vxor.u32 %v6282, 2147483648
      %v6431 = vxor.u32 %v5714, 2147483648
      %v6432 = vxor.u32 %v5716, 2147483648
      %v6433 = vxor.u32 %v5907, 2147483648
      %v6434 = vxor.u32 %v5909, 2147483648
      %v6435 = vxor.u32 %v6100, 2147483648
      %v6436 = vxor.u32 %v6102, 2147483648
      %v6437 = vxor.u32 %v6287, 2147483648
      %v6438 = vxor.u32 %v5718, 2147483648
      %v6439 = vxor.u32 %v5720, 2147483648
      %v6440 = vxor.u32 %v5911, 2147483648
      %v6441 = vxor.u32 %v5913, 2147483648
      %v6442 = vxor.u32 %v6104, 2147483648
      %v6443 = vxor.u32 %v6106, 2147483648
      %v6444 = vxor.u32 %v6290, 2147483648
      %v6445 = vxor.u32 %v5724, 2147483648
      %v6446 = vxor.u32 %v5726, 2147483648
      %v6447 = vxor.u32 %v5917, 2147483648
      %v6448 = vxor.u32 %v5919, 2147483648
      %v6449 = vxor.u32 %v6110, 2147483648
      %v6450 = vxor.u32 %v6112, 2147483648
      %v6451 = vxor.u32 %v6295, 2147483648
      %v6452 = vxor.u32 %v5728, 2147483648
      %v6453 = vxor.u32 %v5730, 2147483648
      %v6454 = vxor.u32 %v5921, 2147483648
      %v6455 = vxor.u32 %v5923, 2147483648
      %v6456 = vxor.u32 %v6114, 2147483648
      %v6457 = vxor.u32 %v6116, 2147483648
      %v6458 = vxor.u32 %v6298, 2147483648
      %v6459 = vxor.u32 %v5734, 2147483648
      %v6460 = vxor.u32 %v5736, 2147483648
      %v6461 = vxor.u32 %v5927, 2147483648
      %v6462 = vxor.u32 %v5929, 2147483648
      %v6463 = vxor.u32 %v6120, 2147483648
      %v6464 = vxor.u32 %v6122, 2147483648
      %v6465 = vxor.u32 %v6303, 2147483648
      %v6466 = vxor.u32 %v5738, 2147483648
      %v6467 = vxor.u32 %v5740, 2147483648
      %v6468 = vxor.u32 %v5931, 2147483648
      %v6469 = vxor.u32 %v5933, 2147483648
      %v6470 = vxor.u32 %v6124, 2147483648
      %v6471 = vxor.u32 %v6126, 2147483648
      %v6472 = vxor.u32 %v6306, 2147483648
      %v6473 = vxor.u32 %v5744, 2147483648
      %v6474 = vxor.u32 %v5746, 2147483648
      %v6475 = vxor.u32 %v5937, 2147483648
      %v6476 = vxor.u32 %v5939, 2147483648
      %v6477 = vxor.u32 %v6130, 2147483648
      %v6478 = vxor.u32 %v6132, 2147483648
      %v6479 = vxor.u32 %v6311, 2147483648
      %v6480 = vxor.u32 %v5748, 2147483648
      %v6481 = vxor.u32 %v5750, 2147483648
      %v6482 = vxor.u32 %v5941, 2147483648
      %v6483 = vxor.u32 %v5943, 2147483648
      %v6484 = vxor.u32 %v6134, 2147483648
      %v6485 = vxor.u32 %v6136, 2147483648
      %v6486 = vxor.u32 %v6314, 2147483648
      %v6487 = vxor.u32 %v5754, 2147483648
      %v6488 = vxor.u32 %v5756, 2147483648
      %v6489 = vxor.u32 %v5947, 2147483648
      %v6490 = vxor.u32 %v5949, 2147483648
      %v6491 = vxor.u32 %v6140, 2147483648
      %v6492 = vxor.u32 %v6142, 2147483648
      %v6493 = vxor.u32 %v6319, 2147483648
      %v6494 = vxor.u32 %v5758, 2147483648
      %v6495 = vxor.u32 %v5760, 2147483648
      %v6496 = vxor.u32 %v5951, 2147483648
      %v6497 = vxor.u32 %v5953, 2147483648
      %v6498 = vxor.u32 %v6144, 2147483648
      %v6499 = vxor.u32 %v6146, 2147483648
      %v6500 = vxor.u32 %v6322, 2147483648
      %v6501 = vxor.u32 %v5764, 2147483648
      %v6502 = vxor.u32 %v5766, 2147483648
      %v6503 = vxor.u32 %v5957, 2147483648
      %v6504 = vxor.u32 %v5959, 2147483648
      %v6505 = vxor.u32 %v6150, 2147483648
      %v6506 = vxor.u32 %v6152, 2147483648
      %v6507 = vxor.u32 %v6327, 2147483648
      %v6508 = vxor.u32 %v5768, 2147483648
      %v6509 = vxor.u32 %v5770, 2147483648
      %v6510 = vxor.u32 %v5961, 2147483648
      %v6511 = vxor.u32 %v5963, 2147483648
      %v6512 = vxor.u32 %v6154, 2147483648
      %v6513 = vxor.u32 %v6156, 2147483648
      %v6514 = vxor.u32 %v6330, 2147483648
      %v6515 = vxor.u32 %v5774, 2147483648
      %v6516 = vxor.u32 %v5776, 2147483648
      %v6517 = vxor.u32 %v5967, 2147483648
      %v6518 = vxor.u32 %v5969, 2147483648
      %v6519 = vxor.u32 %v6160, 2147483648
      %v6520 = vxor.u32 %v6162, 2147483648
      %v6521 = vxor.u32 %v6335, 2147483648
      %v6522 = vxor.u32 %v5778, 2147483648
      %v6523 = vxor.u32 %v5780, 2147483648
      %v6524 = vxor.u32 %v5971, 2147483648
      %v6525 = vxor.u32 %v5973, 2147483648
      %v6526 = vxor.u32 %v6164, 2147483648
      %v6527 = vxor.u32 %v6166, 2147483648
      %v6528 = vxor.u32 %v6338, 2147483648
      %v6529 = vxor.u32 %v5784, 2147483648
      %v6530 = vxor.u32 %v5786, 2147483648
      %v6531 = vxor.u32 %v5977, 2147483648
      %v6532 = vxor.u32 %v5979, 2147483648
      %v6533 = vxor.u32 %v6170, 2147483648
      %v6534 = vxor.u32 %v6172, 2147483648
      %v6535 = vxor.u32 %v6343, 2147483648
      %v6536 = vxor.u32 %v5788, 2147483648
      %v6537 = vxor.u32 %v5790, 2147483648
      %v6538 = vxor.u32 %v5981, 2147483648
      %v6539 = vxor.u32 %v5983, 2147483648
      %v6540 = vxor.u32 %v6174, 2147483648
      %v6541 = vxor.u32 %v6176, 2147483648
      %v6542 = vxor.u32 %v6346, 2147483648
      %v6543 = vxor.u32 %v5794, 2147483648
      %v6544 = vxor.u32 %v5796, 2147483648
      %v6545 = vxor.u32 %v5987, 2147483648
      %v6546 = vxor.u32 %v5989, 2147483648
      %v6547 = vxor.u32 %v6180, 2147483648
      %v6548 = vxor.u32 %v6182, 2147483648
      %v6549 = vxor.u32 %v6351, 2147483648
      %v6550 = vxor.u32 %v5798, 2147483648
      %v6551 = vxor.u32 %v5800, 2147483648
      %v6552 = vxor.u32 %v5991, 2147483648
      %v6553 = vxor.u32 %v5993, 2147483648
      %v6554 = vxor.u32 %v6184, 2147483648
      %v6555 = vxor.u32 %v6186, 2147483648
      %v6556 = vxor.u32 %v6354, 2147483648
      %v6557 = vxor.u32 %v5804, 2147483648
      %v6558 = vxor.u32 %v5806, 2147483648
      %v6559 = vxor.u32 %v5997, 2147483648
      %v6560 = vxor.u32 %v5999, 2147483648
      %v6561 = vxor.u32 %v6190, 2147483648
      %v6562 = vxor.u32 %v6192, 2147483648
      %v6563 = vxor.u32 %v6359, 2147483648
      %v6564 = vxor.u32 %v5808, 2147483648
      %v6565 = vxor.u32 %v5810, 2147483648
      %v6566 = vxor.u32 %v6001, 2147483648
      %v6567 = vxor.u32 %v6003, 2147483648
      %v6568 = vxor.u32 %v6194, 2147483648
      %v6569 = vxor.u32 %v6196, 2147483648
      %v6570 = vxor.u32 %v6362, 2147483648
      %v6571 = vxor.u32 %v5814, 2147483648
      %v6572 = vxor.u32 %v5816, 2147483648
      %v6573 = vxor.u32 %v6007, 2147483648
      %v6574 = vxor.u32 %v6009, 2147483648
      %v6575 = vxor.u32 %v6200, 2147483648
      %v6576 = vxor.u32 %v6202, 2147483648
      %v6577 = vxor.u32 %v6367, 2147483648
      %v6578 = vxor.u32 %v5818, 2147483648
      %v6579 = vxor.u32 %v5820, 2147483648
      %v6580 = vxor.u32 %v6011, 2147483648
      %v6581 = vxor.u32 %v6013, 2147483648
      %v6582 = vxor.u32 %v6204, 2147483648
      %v6583 = vxor.u32 %v6206, 2147483648
      %v6584 = vxor.u32 %v6370, 2147483648
      %v6585 = vxor.u32 %v5824, 2147483648
      %v6586 = vxor.u32 %v5826, 2147483648
      %v6587 = vxor.u32 %v6017, 2147483648
      %v6588 = vxor.u32 %v6019, 2147483648
      %v6589 = vxor.u32 %v6210, 2147483648
      %v6590 = vxor.u32 %v6212, 2147483648
      %v6591 = vxor.u32 %v6375, 2147483648
      %v6592 = vxor.u32 %v5828, 2147483648
      %v6593 = vxor.u32 %v5830, 2147483648
      %v6594 = vxor.u32 %v6021, 2147483648
      %v6595 = vxor.u32 %v6023, 2147483648
      %v6596 = vxor.u32 %v6214, 2147483648
      %v6597 = vxor.u32 %v6216, 2147483648
      %v6598 = vxor.u32 %v6378, 2147483648
      %v6599 = vxor.u32 %v5834, 2147483648
      %v6600 = vxor.u32 %v5836, 2147483648
      %v6601 = vxor.u32 %v6027, 2147483648
      %v6602 = vxor.u32 %v6029, 2147483648
      %v6603 = vxor.u32 %v6220, 2147483648
      %v6604 = vxor.u32 %v6222, 2147483648
      %v6605 = vxor.u32 %v6383, 2147483648
      %v6606 = vxor.u32 %v5838, 2147483648
      %v6607 = vxor.u32 %v5840, 2147483648
      %v6608 = vxor.u32 %v6031, 2147483648
      %v6609 = vxor.u32 %v6033, 2147483648
      %v6610 = vxor.u32 %v6224, 2147483648
      %v6611 = vxor.u32 %v6226, 2147483648
      %v6612 = vxor.u32 %v6386, 2147483648
      %v6613 = vmul.f32 %v6389, 1.442695
      %v6614 = vpow.pop %v6613
      %v6615 = vmul.f32 %v6390, 1.442695
      %v6616 = vpow.pop %v6615
      %v6617 = vmul.f32 %v6391, 1.442695
      %v6618 = vpow.pop %v6617
      %v6619 = vmul.f32 %v6392, 1.442695
      %v6620 = vpow.pop %v6619
      %v6621 = vmul.f32 %v6393, 1.442695
      %v6622 = vpow.pop %v6621
      %v6623 = vmul.f32 %v6394, 1.442695
      %v6624 = vpow.pop %v6623
      %v6625 = vmul.f32 %v6395, 1.442695
      %v6626 = vpow.pop %v6625
      %v6627 = vmul.f32 %v6396, 1.442695
      %v6628 = vpow.pop %v6627
      %v6629 = vmul.f32 %v6397, 1.442695
      %v6630 = vpow.pop %v6629
      %v6631 = vmul.f32 %v6398, 1.442695
      %v6632 = vpow.pop %v6631
      %v6633 = vmul.f32 %v6399, 1.442695
      %v6634 = vpow.pop %v6633
      %v6635 = vmul.f32 %v6400, 1.442695
      %v6636 = vpow.pop %v6635
      %v6637 = vmul.f32 %v6401, 1.442695
      %v6638 = vpow.pop %v6637
      %v6639 = vmul.f32 %v6402, 1.442695
      %v6640 = vpow.pop %v6639
      %v6641 = vmul.f32 %v6403, 1.442695
      %v6642 = vpow.pop %v6641
      %v6643 = vmul.f32 %v6404, 1.442695
      %v6644 = vpow.pop %v6643
      %v6645 = vmul.f32 %v6405, 1.442695
      %v6646 = vpow.pop %v6645
      %v6647 = vmul.f32 %v6406, 1.442695
      %v6648 = vpow.pop %v6647
      %v6649 = vmul.f32 %v6407, 1.442695
      %v6650 = vpow.pop %v6649
      %v6651 = vmul.f32 %v6408, 1.442695
      %v6652 = vpow.pop %v6651
      %v6653 = vmul.f32 %v6409, 1.442695
      %v6654 = vpow.pop %v6653
      %v6655 = vmul.f32 %v6410, 1.442695
      %v6656 = vpow.pop %v6655
      %v6657 = vmul.f32 %v6411, 1.442695
      %v6658 = vpow.pop %v6657
      %v6659 = vmul.f32 %v6412, 1.442695
      %v6660 = vpow.pop %v6659
      %v6661 = vmul.f32 %v6413, 1.442695
      %v6662 = vpow.pop %v6661
      %v6663 = vmul.f32 %v6414, 1.442695
      %v6664 = vpow.pop %v6663
      %v6665 = vmul.f32 %v6415, 1.442695
      %v6666 = vpow.pop %v6665
      %v6667 = vmul.f32 %v6416, 1.442695
      %v6668 = vpow.pop %v6667
      %v6669 = vmul.f32 %v6417, 1.442695
      %v6670 = vpow.pop %v6669
      %v6671 = vmul.f32 %v6418, 1.442695
      %v6672 = vpow.pop %v6671
      %v6673 = vmul.f32 %v6419, 1.442695
      %v6674 = vpow.pop %v6673
      %v6675 = vmul.f32 %v6420, 1.442695
      %v6676 = vpow.pop %v6675
      %v6677 = vmul.f32 %v6421, 1.442695
      %v6678 = vpow.pop %v6677
      %v6679 = vmul.f32 %v6422, 1.442695
      %v6680 = vpow.pop %v6679
      %v6681 = vmul.f32 %v6423, 1.442695
      %v6682 = vpow.pop %v6681
      %v6683 = vmul.f32 %v6424, 1.442695
      %v6684 = vpow.pop %v6683
      %v6685 = vmul.f32 %v6425, 1.442695
      %v6686 = vpow.pop %v6685
      %v6687 = vmul.f32 %v6426, 1.442695
      %v6688 = vpow.pop %v6687
      %v6689 = vmul.f32 %v6427, 1.442695
      %v6690 = vpow.pop %v6689
      %v6691 = vmul.f32 %v6428, 1.442695
      %v6692 = vpow.pop %v6691
      %v6693 = vmul.f32 %v6429, 1.442695
      %v6694 = vpow.pop %v6693
      %v6695 = vmul.f32 %v6430, 1.442695
      %v6696 = vpow.pop %v6695
      %v6697 = vmul.f32 %v6431, 1.442695
      %v6698 = vpow.pop %v6697
      %v6699 = vmul.f32 %v6432, 1.442695
      %v6700 = vpow.pop %v6699
      %v6701 = vmul.f32 %v6433, 1.442695
      %v6702 = vpow.pop %v6701
      %v6703 = vmul.f32 %v6434, 1.442695
      %v6704 = vpow.pop %v6703
      %v6705 = vmul.f32 %v6435, 1.442695
      %v6706 = vpow.pop %v6705
      %v6707 = vmul.f32 %v6436, 1.442695
      %v6708 = vpow.pop %v6707
      %v6709 = vmul.f32 %v6437, 1.442695
      %v6710 = vpow.pop %v6709
      %v6711 = vmul.f32 %v6438, 1.442695
      %v6712 = vpow.pop %v6711
      %v6713 = vmul.f32 %v6439, 1.442695
      %v6714 = vpow.pop %v6713
      %v6715 = vmul.f32 %v6440, 1.442695
      %v6716 = vpow.pop %v6715
      %v6717 = vmul.f32 %v6441, 1.442695
      %v6718 = vpow.pop %v6717
      %v6719 = vmul.f32 %v6442, 1.442695
      %v6720 = vpow.pop %v6719
      %v6721 = vmul.f32 %v6443, 1.442695
      %v6722 = vpow.pop %v6721
      %v6723 = vmul.f32 %v6444, 1.442695
      %v6724 = vpow.pop %v6723
      %v6725 = vmul.f32 %v6445, 1.442695
      %v6726 = vpow.pop %v6725
      %v6727 = vmul.f32 %v6446, 1.442695
      %v6728 = vpow.pop %v6727
      %v6729 = vmul.f32 %v6447, 1.442695
      %v6730 = vpow.pop %v6729
      %v6731 = vmul.f32 %v6448, 1.442695
      %v6732 = vpow.pop %v6731
      %v6733 = vmul.f32 %v6449, 1.442695
      %v6734 = vpow.pop %v6733
      %v6735 = vmul.f32 %v6450, 1.442695
      %v6736 = vpow.pop %v6735
      %v6737 = vmul.f32 %v6451, 1.442695
      %v6738 = vpow.pop %v6737
      %v6739 = vmul.f32 %v6452, 1.442695
      %v6740 = vpow.pop %v6739
      %v6741 = vmul.f32 %v6453, 1.442695
      %v6742 = vpow.pop %v6741
      %v6743 = vmul.f32 %v6454, 1.442695
      %v6744 = vpow.pop %v6743
      %v6745 = vmul.f32 %v6455, 1.442695
      %v6746 = vpow.pop %v6745
      %v6747 = vmul.f32 %v6456, 1.442695
      %v6748 = vpow.pop %v6747
      %v6749 = vmul.f32 %v6457, 1.442695
      %v6750 = vpow.pop %v6749
      %v6751 = vmul.f32 %v6458, 1.442695
      %v6752 = vpow.pop %v6751
      %v6753 = vmul.f32 %v6459, 1.442695
      %v6754 = vpow.pop %v6753
      %v6755 = vmul.f32 %v6460, 1.442695
      %v6756 = vpow.pop %v6755
      %v6757 = vmul.f32 %v6461, 1.442695
      %v6758 = vpow.pop %v6757
      %v6759 = vmul.f32 %v6462, 1.442695
      %v6760 = vpow.pop %v6759
      %v6761 = vmul.f32 %v6463, 1.442695
      %v6762 = vpow.pop %v6761
      %v6763 = vmul.f32 %v6464, 1.442695
      %v6764 = vpow.pop %v6763
      %v6765 = vmul.f32 %v6465, 1.442695
      %v6766 = vpow.pop %v6765
      %v6767 = vmul.f32 %v6466, 1.442695
      %v6768 = vpow.pop %v6767
      %v6769 = vmul.f32 %v6467, 1.442695
      %v6770 = vpow.pop %v6769
      %v6771 = vmul.f32 %v6468, 1.442695
      %v6772 = vpow.pop %v6771
      %v6773 = vmul.f32 %v6469, 1.442695
      %v6774 = vpow.pop %v6773
      %v6775 = vmul.f32 %v6470, 1.442695
      %v6776 = vpow.pop %v6775
      %v6777 = vmul.f32 %v6471, 1.442695
      %v6778 = vpow.pop %v6777
      %v6779 = vmul.f32 %v6472, 1.442695
      %v6780 = vpow.pop %v6779
      %v6781 = vmul.f32 %v6473, 1.442695
      %v6782 = vpow.pop %v6781
      %v6783 = vmul.f32 %v6474, 1.442695
      %v6784 = vpow.pop %v6783
      %v6785 = vmul.f32 %v6475, 1.442695
      %v6786 = vpow.pop %v6785
      %v6787 = vmul.f32 %v6476, 1.442695
      %v6788 = vpow.pop %v6787
      %v6789 = vmul.f32 %v6477, 1.442695
      %v6790 = vpow.pop %v6789
      %v6791 = vmul.f32 %v6478, 1.442695
      %v6792 = vpow.pop %v6791
      %v6793 = vmul.f32 %v6479, 1.442695
      %v6794 = vpow.pop %v6793
      %v6795 = vmul.f32 %v6480, 1.442695
      %v6796 = vpow.pop %v6795
      %v6797 = vmul.f32 %v6481, 1.442695
      %v6798 = vpow.pop %v6797
      %v6799 = vmul.f32 %v6482, 1.442695
      %v6800 = vpow.pop %v6799
      %v6801 = vmul.f32 %v6483, 1.442695
      %v6802 = vpow.pop %v6801
      %v6803 = vmul.f32 %v6484, 1.442695
      %v6804 = vpow.pop %v6803
      %v6805 = vmul.f32 %v6485, 1.442695
      %v6806 = vpow.pop %v6805
      %v6807 = vmul.f32 %v6486, 1.442695
      %v6808 = vpow.pop %v6807
      %v6809 = vmul.f32 %v6487, 1.442695
      %v6810 = vpow.pop %v6809
      %v6811 = vmul.f32 %v6488, 1.442695
      %v6812 = vpow.pop %v6811
      %v6813 = vmul.f32 %v6489, 1.442695
      %v6814 = vpow.pop %v6813
      %v6815 = vmul.f32 %v6490, 1.442695
      %v6816 = vpow.pop %v6815
      %v6817 = vmul.f32 %v6491, 1.442695
      %v6818 = vpow.pop %v6817
      %v6819 = vmul.f32 %v6492, 1.442695
      %v6820 = vpow.pop %v6819
      %v6821 = vmul.f32 %v6493, 1.442695
      %v6822 = vpow.pop %v6821
      %v6823 = vmul.f32 %v6494, 1.442695
      %v6824 = vpow.pop %v6823
      %v6825 = vmul.f32 %v6495, 1.442695
      %v6826 = vpow.pop %v6825
      %v6827 = vmul.f32 %v6496, 1.442695
      %v6828 = vpow.pop %v6827
      %v6829 = vmul.f32 %v6497, 1.442695
      %v6830 = vpow.pop %v6829
      %v6831 = vmul.f32 %v6498, 1.442695
      %v6832 = vpow.pop %v6831
      %v6833 = vmul.f32 %v6499, 1.442695
      %v6834 = vpow.pop %v6833
      %v6835 = vmul.f32 %v6500, 1.442695
      %v6836 = vpow.pop %v6835
      %v6837 = vmul.f32 %v6501, 1.442695
      %v6838 = vpow.pop %v6837
      %v6839 = vmul.f32 %v6502, 1.442695
      %v6840 = vpow.pop %v6839
      %v6841 = vmul.f32 %v6503, 1.442695
      %v6842 = vpow.pop %v6841
      %v6843 = vmul.f32 %v6504, 1.442695
      %v6844 = vpow.pop %v6843
      %v6845 = vmul.f32 %v6505, 1.442695
      %v6846 = vpow.pop %v6845
      %v6847 = vmul.f32 %v6506, 1.442695
      %v6848 = vpow.pop %v6847
      %v6849 = vmul.f32 %v6507, 1.442695
      %v6850 = vpow.pop %v6849
      %v6851 = vmul.f32 %v6508, 1.442695
      %v6852 = vpow.pop %v6851
      %v6853 = vmul.f32 %v6509, 1.442695
      %v6854 = vpow.pop %v6853
      %v6855 = vmul.f32 %v6510, 1.442695
      %v6856 = vpow.pop %v6855
      %v6857 = vmul.f32 %v6511, 1.442695
      %v6858 = vpow.pop %v6857
      %v6859 = vmul.f32 %v6512, 1.442695
      %v6860 = vpow.pop %v6859
      %v6861 = vmul.f32 %v6513, 1.442695
      %v6862 = vpow.pop %v6861
      %v6863 = vmul.f32 %v6514, 1.442695
      %v6864 = vpow.pop %v6863
      %v6865 = vmul.f32 %v6515, 1.442695
      %v6866 = vpow.pop %v6865
      %v6867 = vmul.f32 %v6516, 1.442695
      %v6868 = vpow.pop %v6867
      %v6869 = vmul.f32 %v6517, 1.442695
      %v6870 = vpow.pop %v6869
      %v6871 = vmul.f32 %v6518, 1.442695
      %v6872 = vpow.pop %v6871
      %v6873 = vmul.f32 %v6519, 1.442695
      %v6874 = vpow.pop %v6873
      %v6875 = vmul.f32 %v6520, 1.442695
      %v6876 = vpow.pop %v6875
      %v6877 = vmul.f32 %v6521, 1.442695
      %v6878 = vpow.pop %v6877
      %v6879 = vmul.f32 %v6522, 1.442695
      %v6880 = vpow.pop %v6879
      %v6881 = vmul.f32 %v6523, 1.442695
      %v6882 = vpow.pop %v6881
      %v6883 = vmul.f32 %v6524, 1.442695
      %v6884 = vpow.pop %v6883
      %v6885 = vmul.f32 %v6525, 1.442695
      %v6886 = vpow.pop %v6885
      %v6887 = vmul.f32 %v6526, 1.442695
      %v6888 = vpow.pop %v6887
      %v6889 = vmul.f32 %v6527, 1.442695
      %v6890 = vpow.pop %v6889
      %v6891 = vmul.f32 %v6528, 1.442695
      %v6892 = vpow.pop %v6891
      %v6893 = vmul.f32 %v6529, 1.442695
      %v6894 = vpow.pop %v6893
      %v6895 = vmul.f32 %v6530, 1.442695
      %v6896 = vpow.pop %v6895
      %v6897 = vmul.f32 %v6531, 1.442695
      %v6898 = vpow.pop %v6897
      %v6899 = vmul.f32 %v6532, 1.442695
      %v6900 = vpow.pop %v6899
      %v6901 = vmul.f32 %v6533, 1.442695
      %v6902 = vpow.pop %v6901
      %v6903 = vmul.f32 %v6534, 1.442695
      %v6904 = vpow.pop %v6903
      %v6905 = vmul.f32 %v6535, 1.442695
      %v6906 = vpow.pop %v6905
      %v6907 = vmul.f32 %v6536, 1.442695
      %v6908 = vpow.pop %v6907
      %v6909 = vmul.f32 %v6537, 1.442695
      %v6910 = vpow.pop %v6909
      %v6911 = vmul.f32 %v6538, 1.442695
      %v6912 = vpow.pop %v6911
      %v6913 = vmul.f32 %v6539, 1.442695
      %v6914 = vpow.pop %v6913
      %v6915 = vmul.f32 %v6540, 1.442695
      %v6916 = vpow.pop %v6915
      %v6917 = vmul.f32 %v6541, 1.442695
      %v6918 = vpow.pop %v6917
      %v6919 = vmul.f32 %v6542, 1.442695
      %v6920 = vpow.pop %v6919
      %v6921 = vmul.f32 %v6543, 1.442695
      %v6922 = vpow.pop %v6921
      %v6923 = vmul.f32 %v6544, 1.442695
      %v6924 = vpow.pop %v6923
      %v6925 = vmul.f32 %v6545, 1.442695
      %v6926 = vpow.pop %v6925
      %v6927 = vmul.f32 %v6546, 1.442695
      %v6928 = vpow.pop %v6927
      %v6929 = vmul.f32 %v6547, 1.442695
      %v6930 = vpow.pop %v6929
      %v6931 = vmul.f32 %v6548, 1.442695
      %v6932 = vpow.pop %v6931
      %v6933 = vmul.f32 %v6549, 1.442695
      %v6934 = vpow.pop %v6933
      %v6935 = vmul.f32 %v6550, 1.442695
      %v6936 = vpow.pop %v6935
      %v6937 = vmul.f32 %v6551, 1.442695
      %v6938 = vpow.pop %v6937
      %v6939 = vmul.f32 %v6552, 1.442695
      %v6940 = vpow.pop %v6939
      %v6941 = vmul.f32 %v6553, 1.442695
      %v6942 = vpow.pop %v6941
      %v6943 = vmul.f32 %v6554, 1.442695
      %v6944 = vpow.pop %v6943
      %v6945 = vmul.f32 %v6555, 1.442695
      %v6946 = vpow.pop %v6945
      %v6947 = vmul.f32 %v6556, 1.442695
      %v6948 = vpow.pop %v6947
      %v6949 = vmul.f32 %v6557, 1.442695
      %v6950 = vpow.pop %v6949
      %v6951 = vmul.f32 %v6558, 1.442695
      %v6952 = vpow.pop %v6951
      %v6953 = vmul.f32 %v6559, 1.442695
      %v6954 = vpow.pop %v6953
      %v6955 = vmul.f32 %v6560, 1.442695
      %v6956 = vpow.pop %v6955
      %v6957 = vmul.f32 %v6561, 1.442695
      %v6958 = vpow.pop %v6957
      %v6959 = vmul.f32 %v6562, 1.442695
      %v6960 = vpow.pop %v6959
      %v6961 = vmul.f32 %v6563, 1.442695
      %v6962 = vpow.pop %v6961
      %v6963 = vmul.f32 %v6564, 1.442695
      %v6964 = vpow.pop %v6963
      %v6965 = vmul.f32 %v6565, 1.442695
      %v6966 = vpow.pop %v6965
      %v6967 = vmul.f32 %v6566, 1.442695
      %v6968 = vpow.pop %v6967
      %v6969 = vmul.f32 %v6567, 1.442695
      %v6970 = vpow.pop %v6969
      %v6971 = vmul.f32 %v6568, 1.442695
      %v6972 = vpow.pop %v6971
      %v6973 = vmul.f32 %v6569, 1.442695
      %v6974 = vpow.pop %v6973
      %v6975 = vmul.f32 %v6570, 1.442695
      %v6976 = vpow.pop %v6975
      %v6977 = vmul.f32 %v6571, 1.442695
      %v6978 = vpow.pop %v6977
      %v6979 = vmul.f32 %v6572, 1.442695
      %v6980 = vpow.pop %v6979
      %v6981 = vmul.f32 %v6573, 1.442695
      %v6982 = vpow.pop %v6981
      %v6983 = vmul.f32 %v6574, 1.442695
      %v6984 = vpow.pop %v6983
      %v6985 = vmul.f32 %v6575, 1.442695
      %v6986 = vpow.pop %v6985
      %v6987 = vmul.f32 %v6576, 1.442695
      %v6988 = vpow.pop %v6987
      %v6989 = vmul.f32 %v6577, 1.442695
      %v6990 = vpow.pop %v6989
      %v6991 = vmul.f32 %v6578, 1.442695
      %v6992 = vpow.pop %v6991
      %v6993 = vmul.f32 %v6579, 1.442695
      %v6994 = vpow.pop %v6993
      %v6995 = vmul.f32 %v6580, 1.442695
      %v6996 = vpow.pop %v6995
      %v6997 = vmul.f32 %v6581, 1.442695
      %v6998 = vpow.pop %v6997
      %v6999 = vmul.f32 %v6582, 1.442695
      %v7000 = vpow.pop %v6999
      %v7001 = vmul.f32 %v6583, 1.442695
      %v7002 = vpow.pop %v7001
      %v7003 = vmul.f32 %v6584, 1.442695
      %v7004 = vpow.pop %v7003
      %v7005 = vmul.f32 %v6585, 1.442695
      %v7006 = vpow.pop %v7005
      %v7007 = vmul.f32 %v6586, 1.442695
      %v7008 = vpow.pop %v7007
      %v7009 = vmul.f32 %v6587, 1.442695
      %v7010 = vpow.pop %v7009
      %v7011 = vmul.f32 %v6588, 1.442695
      %v7012 = vpow.pop %v7011
      %v7013 = vmul.f32 %v6589, 1.442695
      %v7014 = vpow.pop %v7013
      %v7015 = vmul.f32 %v6590, 1.442695
      %v7016 = vpow.pop %v7015
      %v7017 = vmul.f32 %v6591, 1.442695
      %v7018 = vpow.pop %v7017
      %v7019 = vmul.f32 %v6592, 1.442695
      %v7020 = vpow.pop %v7019
      %v7021 = vmul.f32 %v6593, 1.442695
      %v7022 = vpow.pop %v7021
      %v7023 = vmul.f32 %v6594, 1.442695
      %v7024 = vpow.pop %v7023
      %v7025 = vmul.f32 %v6595, 1.442695
      %v7026 = vpow.pop %v7025
      %v7027 = vmul.f32 %v6596, 1.442695
      %v7028 = vpow.pop %v7027
      %v7029 = vmul.f32 %v6597, 1.442695
      %v7030 = vpow.pop %v7029
      %v7031 = vmul.f32 %v6598, 1.442695
      %v7032 = vpow.pop %v7031
      %v7033 = vmul.f32 %v6599, 1.442695
      %v7034 = vpow.pop %v7033
      %v7035 = vmul.f32 %v6600, 1.442695
      %v7036 = vpow.pop %v7035
      %v7037 = vmul.f32 %v6601, 1.442695
      %v7038 = vpow.pop %v7037
      %v7039 = vmul.f32 %v6602, 1.442695
      %v7040 = vpow.pop %v7039
      %v7041 = vmul.f32 %v6603, 1.442695
      %v7042 = vpow.pop %v7041
      %v7043 = vmul.f32 %v6604, 1.442695
      %v7044 = vpow.pop %v7043
      %v7045 = vmul.f32 %v6605, 1.442695
      %v7046 = vpow.pop %v7045
      %v7047 = vmul.f32 %v6606, 1.442695
      %v7048 = vpow.pop %v7047
      %v7049 = vmul.f32 %v6607, 1.442695
      %v7050 = vpow.pop %v7049
      %v7051 = vmul.f32 %v6608, 1.442695
      %v7052 = vpow.pop %v7051
      %v7053 = vmul.f32 %v6609, 1.442695
      %v7054 = vpow.pop %v7053
      %v7055 = vmul.f32 %v6610, 1.442695
      %v7056 = vpow.pop %v7055
      %v7057 = vmul.f32 %v6611, 1.442695
      %v7058 = vpow.pop %v7057
      %v7059 = vmul.f32 %v6612, 1.442695
      %v7060 = vpow.pop %v7059
      %v7061 = vadd.f32 %v6614, 1.0
      %v7062 = vadd.f32 %v6616, 1.0
      %v7063 = vadd.f32 %v6618, 1.0
      %v7064 = vadd.f32 %v6620, 1.0
      %v7065 = vadd.f32 %v6622, 1.0
      %v7066 = vadd.f32 %v6624, 1.0
      %v7067 = vadd.f32 %v6626, 1.0
      %v7068 = vadd.f32 %v6628, 1.0
      %v7069 = vadd.f32 %v6630, 1.0
      %v7070 = vadd.f32 %v6632, 1.0
      %v7071 = vadd.f32 %v6634, 1.0
      %v7072 = vadd.f32 %v6636, 1.0
      %v7073 = vadd.f32 %v6638, 1.0
      %v7074 = vadd.f32 %v6640, 1.0
      %v7075 = vadd.f32 %v6642, 1.0
      %v7076 = vadd.f32 %v6644, 1.0
      %v7077 = vadd.f32 %v6646, 1.0
      %v7078 = vadd.f32 %v6648, 1.0
      %v7079 = vadd.f32 %v6650, 1.0
      %v7080 = vadd.f32 %v6652, 1.0
      %v7081 = vadd.f32 %v6654, 1.0
      %v7082 = vadd.f32 %v6656, 1.0
      %v7083 = vadd.f32 %v6658, 1.0
      %v7084 = vadd.f32 %v6660, 1.0
      %v7085 = vadd.f32 %v6662, 1.0
      %v7086 = vadd.f32 %v6664, 1.0
      %v7087 = vadd.f32 %v6666, 1.0
      %v7088 = vadd.f32 %v6668, 1.0
      %v7089 = vadd.f32 %v6670, 1.0
      %v7090 = vadd.f32 %v6672, 1.0
      %v7091 = vadd.f32 %v6674, 1.0
      %v7092 = vadd.f32 %v6676, 1.0
      %v7093 = vadd.f32 %v6678, 1.0
      %v7094 = vadd.f32 %v6680, 1.0
      %v7095 = vadd.f32 %v6682, 1.0
      %v7096 = vadd.f32 %v6684, 1.0
      %v7097 = vadd.f32 %v6686, 1.0
      %v7098 = vadd.f32 %v6688, 1.0
      %v7099 = vadd.f32 %v6690, 1.0
      %v7100 = vadd.f32 %v6692, 1.0
      %v7101 = vadd.f32 %v6694, 1.0
      %v7102 = vadd.f32 %v6696, 1.0
      %v7103 = vadd.f32 %v6698, 1.0
      %v7104 = vadd.f32 %v6700, 1.0
      %v7105 = vadd.f32 %v6702, 1.0
      %v7106 = vadd.f32 %v6704, 1.0
      %v7107 = vadd.f32 %v6706, 1.0
      %v7108 = vadd.f32 %v6708, 1.0
      %v7109 = vadd.f32 %v6710, 1.0
      %v7110 = vadd.f32 %v6712, 1.0
      %v7111 = vadd.f32 %v6714, 1.0
      %v7112 = vadd.f32 %v6716, 1.0
      %v7113 = vadd.f32 %v6718, 1.0
      %v7114 = vadd.f32 %v6720, 1.0
      %v7115 = vadd.f32 %v6722, 1.0
      %v7116 = vadd.f32 %v6724, 1.0
      %v7117 = vadd.f32 %v6726, 1.0
      %v7118 = vadd.f32 %v6728, 1.0
      %v7119 = vadd.f32 %v6730, 1.0
      %v7120 = vadd.f32 %v6732, 1.0
      %v7121 = vadd.f32 %v6734, 1.0
      %v7122 = vadd.f32 %v6736, 1.0
      %v7123 = vadd.f32 %v6738, 1.0
      %v7124 = vadd.f32 %v6740, 1.0
      %v7125 = vadd.f32 %v6742, 1.0
      %v7126 = vadd.f32 %v6744, 1.0
      %v7127 = vadd.f32 %v6746, 1.0
      %v7128 = vadd.f32 %v6748, 1.0
      %v7129 = vadd.f32 %v6750, 1.0
      %v7130 = vadd.f32 %v6752, 1.0
      %v7131 = vadd.f32 %v6754, 1.0
      %v7132 = vadd.f32 %v6756, 1.0
      %v7133 = vadd.f32 %v6758, 1.0
      %v7134 = vadd.f32 %v6760, 1.0
      %v7135 = vadd.f32 %v6762, 1.0
      %v7136 = vadd.f32 %v6764, 1.0
      %v7137 = vadd.f32 %v6766, 1.0
      %v7138 = vadd.f32 %v6768, 1.0
      %v7139 = vadd.f32 %v6770, 1.0
      %v7140 = vadd.f32 %v6772, 1.0
      %v7141 = vadd.f32 %v6774, 1.0
      %v7142 = vadd.f32 %v6776, 1.0
      %v7143 = vadd.f32 %v6778, 1.0
      %v7144 = vadd.f32 %v6780, 1.0
      %v7145 = vadd.f32 %v6782, 1.0
      %v7146 = vadd.f32 %v6784, 1.0
      %v7147 = vadd.f32 %v6786, 1.0
      %v7148 = vadd.f32 %v6788, 1.0
      %v7149 = vadd.f32 %v6790, 1.0
      %v7150 = vadd.f32 %v6792, 1.0
      %v7151 = vadd.f32 %v6794, 1.0
      %v7152 = vadd.f32 %v6796, 1.0
      %v7153 = vadd.f32 %v6798, 1.0
      %v7154 = vadd.f32 %v6800, 1.0
      %v7155 = vadd.f32 %v6802, 1.0
      %v7156 = vadd.f32 %v6804, 1.0
      %v7157 = vadd.f32 %v6806, 1.0
      %v7158 = vadd.f32 %v6808, 1.0
      %v7159 = vadd.f32 %v6810, 1.0
      %v7160 = vadd.f32 %v6812, 1.0
      %v7161 = vadd.f32 %v6814, 1.0
      %v7162 = vadd.f32 %v6816, 1.0
      %v7163 = vadd.f32 %v6818, 1.0
      %v7164 = vadd.f32 %v6820, 1.0
      %v7165 = vadd.f32 %v6822, 1.0
      %v7166 = vadd.f32 %v6824, 1.0
      %v7167 = vadd.f32 %v6826, 1.0
      %v7168 = vadd.f32 %v6828, 1.0
      %v7169 = vadd.f32 %v6830, 1.0
      %v7170 = vadd.f32 %v6832, 1.0
      %v7171 = vadd.f32 %v6834, 1.0
      %v7172 = vadd.f32 %v6836, 1.0
      %v7173 = vadd.f32 %v6838, 1.0
      %v7174 = vadd.f32 %v6840, 1.0
      %v7175 = vadd.f32 %v6842, 1.0
      %v7176 = vadd.f32 %v6844, 1.0
      %v7177 = vadd.f32 %v6846, 1.0
      %v7178 = vadd.f32 %v6848, 1.0
      %v7179 = vadd.f32 %v6850, 1.0
      %v7180 = vadd.f32 %v6852, 1.0
      %v7181 = vadd.f32 %v6854, 1.0
      %v7182 = vadd.f32 %v6856, 1.0
      %v7183 = vadd.f32 %v6858, 1.0
      %v7184 = vadd.f32 %v6860, 1.0
      %v7185 = vadd.f32 %v6862, 1.0
      %v7186 = vadd.f32 %v6864, 1.0
      %v7187 = vadd.f32 %v6866, 1.0
      %v7188 = vadd.f32 %v6868, 1.0
      %v7189 = vadd.f32 %v6870, 1.0
      %v7190 = vadd.f32 %v6872, 1.0
      %v7191 = vadd.f32 %v6874, 1.0
      %v7192 = vadd.f32 %v6876, 1.0
      %v7193 = vadd.f32 %v6878, 1.0
      %v7194 = vadd.f32 %v6880, 1.0
      %v7195 = vadd.f32 %v6882, 1.0
      %v7196 = vadd.f32 %v6884, 1.0
      %v7197 = vadd.f32 %v6886, 1.0
      %v7198 = vadd.f32 %v6888, 1.0
      %v7199 = vadd.f32 %v6890, 1.0
      %v7200 = vadd.f32 %v6892, 1.0
      %v7201 = vadd.f32 %v6894, 1.0
      %v7202 = vadd.f32 %v6896, 1.0
      %v7203 = vadd.f32 %v6898, 1.0
      %v7204 = vadd.f32 %v6900, 1.0
      %v7205 = vadd.f32 %v6902, 1.0
      %v7206 = vadd.f32 %v6904, 1.0
      %v7207 = vadd.f32 %v6906, 1.0
      %v7208 = vadd.f32 %v6908, 1.0
      %v7209 = vadd.f32 %v6910, 1.0
      %v7210 = vadd.f32 %v6912, 1.0
      %v7211 = vadd.f32 %v6914, 1.0
      %v7212 = vadd.f32 %v6916, 1.0
      %v7213 = vadd.f32 %v6918, 1.0
      %v7214 = vadd.f32 %v6920, 1.0
      %v7215 = vadd.f32 %v6922, 1.0
      %v7216 = vadd.f32 %v6924, 1.0
      %v7217 = vadd.f32 %v6926, 1.0
      %v7218 = vadd.f32 %v6928, 1.0
      %v7219 = vadd.f32 %v6930, 1.0
      %v7220 = vadd.f32 %v6932, 1.0
      %v7221 = vadd.f32 %v6934, 1.0
      %v7222 = vadd.f32 %v6936, 1.0
      %v7223 = vadd.f32 %v6938, 1.0
      %v7224 = vadd.f32 %v6940, 1.0
      %v7225 = vadd.f32 %v6942, 1.0
      %v7226 = vadd.f32 %v6944, 1.0
      %v7227 = vadd.f32 %v6946, 1.0
      %v7228 = vadd.f32 %v6948, 1.0
      %v7229 = vadd.f32 %v6950, 1.0
      %v7230 = vadd.f32 %v6952, 1.0
      %v7231 = vadd.f32 %v6954, 1.0
      %v7232 = vadd.f32 %v6956, 1.0
      %v7233 = vadd.f32 %v6958, 1.0
      %v7234 = vadd.f32 %v6960, 1.0
      %v7235 = vadd.f32 %v6962, 1.0
      %v7236 = vadd.f32 %v6964, 1.0
      %v7237 = vadd.f32 %v6966, 1.0
      %v7238 = vadd.f32 %v6968, 1.0
      %v7239 = vadd.f32 %v6970, 1.0
      %v7240 = vadd.f32 %v6972, 1.0
      %v7241 = vadd.f32 %v6974, 1.0
      %v7242 = vadd.f32 %v6976, 1.0
      %v7243 = vadd.f32 %v6978, 1.0
      %v7244 = vadd.f32 %v6980, 1.0
      %v7245 = vadd.f32 %v6982, 1.0
      %v7246 = vadd.f32 %v6984, 1.0
      %v7247 = vadd.f32 %v6986, 1.0
      %v7248 = vadd.f32 %v6988, 1.0
      %v7249 = vadd.f32 %v6990, 1.0
      %v7250 = vadd.f32 %v6992, 1.0
      %v7251 = vadd.f32 %v6994, 1.0
      %v7252 = vadd.f32 %v6996, 1.0
      %v7253 = vadd.f32 %v6998, 1.0
      %v7254 = vadd.f32 %v7000, 1.0
      %v7255 = vadd.f32 %v7002, 1.0
      %v7256 = vadd.f32 %v7004, 1.0
      %v7257 = vadd.f32 %v7006, 1.0
      %v7258 = vadd.f32 %v7008, 1.0
      %v7259 = vadd.f32 %v7010, 1.0
      %v7260 = vadd.f32 %v7012, 1.0
      %v7261 = vadd.f32 %v7014, 1.0
      %v7262 = vadd.f32 %v7016, 1.0
      %v7263 = vadd.f32 %v7018, 1.0
      %v7264 = vadd.f32 %v7020, 1.0
      %v7265 = vadd.f32 %v7022, 1.0
      %v7266 = vadd.f32 %v7024, 1.0
      %v7267 = vadd.f32 %v7026, 1.0
      %v7268 = vadd.f32 %v7028, 1.0
      %v7269 = vadd.f32 %v7030, 1.0
      %v7270 = vadd.f32 %v7032, 1.0
      %v7271 = vadd.f32 %v7034, 1.0
      %v7272 = vadd.f32 %v7036, 1.0
      %v7273 = vadd.f32 %v7038, 1.0
      %v7274 = vadd.f32 %v7040, 1.0
      %v7275 = vadd.f32 %v7042, 1.0
      %v7276 = vadd.f32 %v7044, 1.0
      %v7277 = vadd.f32 %v7046, 1.0
      %v7278 = vadd.f32 %v7048, 1.0
      %v7279 = vadd.f32 %v7050, 1.0
      %v7280 = vadd.f32 %v7052, 1.0
      %v7281 = vadd.f32 %v7054, 1.0
      %v7282 = vadd.f32 %v7056, 1.0
      %v7283 = vadd.f32 %v7058, 1.0
      %v7284 = vadd.f32 %v7060, 1.0
      %v7285 = vrcp.pop %v7061
      %v7286 = vmul.f32 1.0, %v7285
      %v7287 = vrcp.pop %v7062
      %v7288 = vmul.f32 1.0, %v7287
      %v7289 = vrcp.pop %v7063
      %v7290 = vmul.f32 1.0, %v7289
      %v7291 = vrcp.pop %v7064
      %v7292 = vmul.f32 1.0, %v7291
      %v7293 = vrcp.pop %v7065
      %v7294 = vmul.f32 1.0, %v7293
      %v7295 = vrcp.pop %v7066
      %v7296 = vmul.f32 1.0, %v7295
      %v7297 = vrcp.pop %v7067
      %v7298 = vmul.f32 1.0, %v7297
      %v7299 = vrcp.pop %v7068
      %v7300 = vmul.f32 1.0, %v7299
      %v7301 = vrcp.pop %v7069
      %v7302 = vmul.f32 1.0, %v7301
      %v7303 = vrcp.pop %v7070
      %v7304 = vmul.f32 1.0, %v7303
      %v7305 = vrcp.pop %v7071
      %v7306 = vmul.f32 1.0, %v7305
      %v7307 = vrcp.pop %v7072
      %v7308 = vmul.f32 1.0, %v7307
      %v7309 = vrcp.pop %v7073
      %v7310 = vmul.f32 1.0, %v7309
      %v7311 = vrcp.pop %v7074
      %v7312 = vmul.f32 1.0, %v7311
      %v7313 = vrcp.pop %v7075
      %v7314 = vmul.f32 1.0, %v7313
      %v7315 = vrcp.pop %v7076
      %v7316 = vmul.f32 1.0, %v7315
      %v7317 = vrcp.pop %v7077
      %v7318 = vmul.f32 1.0, %v7317
      %v7319 = vrcp.pop %v7078
      %v7320 = vmul.f32 1.0, %v7319
      %v7321 = vrcp.pop %v7079
      %v7322 = vmul.f32 1.0, %v7321
      %v7323 = vrcp.pop %v7080
      %v7324 = vmul.f32 1.0, %v7323
      %v7325 = vrcp.pop %v7081
      %v7326 = vmul.f32 1.0, %v7325
      %v7327 = vrcp.pop %v7082
      %v7328 = vmul.f32 1.0, %v7327
      %v7329 = vrcp.pop %v7083
      %v7330 = vmul.f32 1.0, %v7329
      %v7331 = vrcp.pop %v7084
      %v7332 = vmul.f32 1.0, %v7331
      %v7333 = vrcp.pop %v7085
      %v7334 = vmul.f32 1.0, %v7333
      %v7335 = vrcp.pop %v7086
      %v7336 = vmul.f32 1.0, %v7335
      %v7337 = vrcp.pop %v7087
      %v7338 = vmul.f32 1.0, %v7337
      %v7339 = vrcp.pop %v7088
      %v7340 = vmul.f32 1.0, %v7339
      %v7341 = vrcp.pop %v7089
      %v7342 = vmul.f32 1.0, %v7341
      %v7343 = vrcp.pop %v7090
      %v7344 = vmul.f32 1.0, %v7343
      %v7345 = vrcp.pop %v7091
      %v7346 = vmul.f32 1.0, %v7345
      %v7347 = vrcp.pop %v7092
      %v7348 = vmul.f32 1.0, %v7347
      %v7349 = vrcp.pop %v7093
      %v7350 = vmul.f32 1.0, %v7349
      %v7351 = vrcp.pop %v7094
      %v7352 = vmul.f32 1.0, %v7351
      %v7353 = vrcp.pop %v7095
      %v7354 = vmul.f32 1.0, %v7353
      %v7355 = vrcp.pop %v7096
      %v7356 = vmul.f32 1.0, %v7355
      %v7357 = vrcp.pop %v7097
      %v7358 = vmul.f32 1.0, %v7357
      %v7359 = vrcp.pop %v7098
      %v7360 = vmul.f32 1.0, %v7359
      %v7361 = vrcp.pop %v7099
      %v7362 = vmul.f32 1.0, %v7361
      %v7363 = vrcp.pop %v7100
      %v7364 = vmul.f32 1.0, %v7363
      %v7365 = vrcp.pop %v7101
      %v7366 = vmul.f32 1.0, %v7365
      %v7367 = vrcp.pop %v7102
      %v7368 = vmul.f32 1.0, %v7367
      %v7369 = vrcp.pop %v7103
      %v7370 = vmul.f32 1.0, %v7369
      %v7371 = vrcp.pop %v7104
      %v7372 = vmul.f32 1.0, %v7371
      %v7373 = vrcp.pop %v7105
      %v7374 = vmul.f32 1.0, %v7373
      %v7375 = vrcp.pop %v7106
      %v7376 = vmul.f32 1.0, %v7375
      %v7377 = vrcp.pop %v7107
      %v7378 = vmul.f32 1.0, %v7377
      %v7379 = vrcp.pop %v7108
      %v7380 = vmul.f32 1.0, %v7379
      %v7381 = vrcp.pop %v7109
      %v7382 = vmul.f32 1.0, %v7381
      %v7383 = vrcp.pop %v7110
      %v7384 = vmul.f32 1.0, %v7383
      %v7385 = vrcp.pop %v7111
      %v7386 = vmul.f32 1.0, %v7385
      %v7387 = vrcp.pop %v7112
      %v7388 = vmul.f32 1.0, %v7387
      %v7389 = vrcp.pop %v7113
      %v7390 = vmul.f32 1.0, %v7389
      %v7391 = vrcp.pop %v7114
      %v7392 = vmul.f32 1.0, %v7391
      %v7393 = vrcp.pop %v7115
      %v7394 = vmul.f32 1.0, %v7393
      %v7395 = vrcp.pop %v7116
      %v7396 = vmul.f32 1.0, %v7395
      %v7397 = vrcp.pop %v7117
      %v7398 = vmul.f32 1.0, %v7397
      %v7399 = vrcp.pop %v7118
      %v7400 = vmul.f32 1.0, %v7399
      %v7401 = vrcp.pop %v7119
      %v7402 = vmul.f32 1.0, %v7401
      %v7403 = vrcp.pop %v7120
      %v7404 = vmul.f32 1.0, %v7403
      %v7405 = vrcp.pop %v7121
      %v7406 = vmul.f32 1.0, %v7405
      %v7407 = vrcp.pop %v7122
      %v7408 = vmul.f32 1.0, %v7407
      %v7409 = vrcp.pop %v7123
      %v7410 = vmul.f32 1.0, %v7409
      %v7411 = vrcp.pop %v7124
      %v7412 = vmul.f32 1.0, %v7411
      %v7413 = vrcp.pop %v7125
      %v7414 = vmul.f32 1.0, %v7413
      %v7415 = vrcp.pop %v7126
      %v7416 = vmul.f32 1.0, %v7415
      %v7417 = vrcp.pop %v7127
      %v7418 = vmul.f32 1.0, %v7417
      %v7419 = vrcp.pop %v7128
      %v7420 = vmul.f32 1.0, %v7419
      %v7421 = vrcp.pop %v7129
      %v7422 = vmul.f32 1.0, %v7421
      %v7423 = vrcp.pop %v7130
      %v7424 = vmul.f32 1.0, %v7423
      %v7425 = vrcp.pop %v7131
      %v7426 = vmul.f32 1.0, %v7425
      %v7427 = vrcp.pop %v7132
      %v7428 = vmul.f32 1.0, %v7427
      %v7429 = vrcp.pop %v7133
      %v7430 = vmul.f32 1.0, %v7429
      %v7431 = vrcp.pop %v7134
      %v7432 = vmul.f32 1.0, %v7431
      %v7433 = vrcp.pop %v7135
      %v7434 = vmul.f32 1.0, %v7433
      %v7435 = vrcp.pop %v7136
      %v7436 = vmul.f32 1.0, %v7435
      %v7437 = vrcp.pop %v7137
      %v7438 = vmul.f32 1.0, %v7437
      %v7439 = vrcp.pop %v7138
      %v7440 = vmul.f32 1.0, %v7439
      %v7441 = vrcp.pop %v7139
      %v7442 = vmul.f32 1.0, %v7441
      %v7443 = vrcp.pop %v7140
      %v7444 = vmul.f32 1.0, %v7443
      %v7445 = vrcp.pop %v7141
      %v7446 = vmul.f32 1.0, %v7445
      %v7447 = vrcp.pop %v7142
      %v7448 = vmul.f32 1.0, %v7447
      %v7449 = vrcp.pop %v7143
      %v7450 = vmul.f32 1.0, %v7449
      %v7451 = vrcp.pop %v7144
      %v7452 = vmul.f32 1.0, %v7451
      %v7453 = vrcp.pop %v7145
      %v7454 = vmul.f32 1.0, %v7453
      %v7455 = vrcp.pop %v7146
      %v7456 = vmul.f32 1.0, %v7455
      %v7457 = vrcp.pop %v7147
      %v7458 = vmul.f32 1.0, %v7457
      %v7459 = vrcp.pop %v7148
      %v7460 = vmul.f32 1.0, %v7459
      %v7461 = vrcp.pop %v7149
      %v7462 = vmul.f32 1.0, %v7461
      %v7463 = vrcp.pop %v7150
      %v7464 = vmul.f32 1.0, %v7463
      %v7465 = vrcp.pop %v7151
      %v7466 = vmul.f32 1.0, %v7465
      %v7467 = vrcp.pop %v7152
      %v7468 = vmul.f32 1.0, %v7467
      %v7469 = vrcp.pop %v7153
      %v7470 = vmul.f32 1.0, %v7469
      %v7471 = vrcp.pop %v7154
      %v7472 = vmul.f32 1.0, %v7471
      %v7473 = vrcp.pop %v7155
      %v7474 = vmul.f32 1.0, %v7473
      %v7475 = vrcp.pop %v7156
      %v7476 = vmul.f32 1.0, %v7475
      %v7477 = vrcp.pop %v7157
      %v7478 = vmul.f32 1.0, %v7477
      %v7479 = vrcp.pop %v7158
      %v7480 = vmul.f32 1.0, %v7479
      %v7481 = vrcp.pop %v7159
      %v7482 = vmul.f32 1.0, %v7481
      %v7483 = vrcp.pop %v7160
      %v7484 = vmul.f32 1.0, %v7483
      %v7485 = vrcp.pop %v7161
      %v7486 = vmul.f32 1.0, %v7485
      %v7487 = vrcp.pop %v7162
      %v7488 = vmul.f32 1.0, %v7487
      %v7489 = vrcp.pop %v7163
      %v7490 = vmul.f32 1.0, %v7489
      %v7491 = vrcp.pop %v7164
      %v7492 = vmul.f32 1.0, %v7491
      %v7493 = vrcp.pop %v7165
      %v7494 = vmul.f32 1.0, %v7493
      %v7495 = vrcp.pop %v7166
      %v7496 = vmul.f32 1.0, %v7495
      %v7497 = vrcp.pop %v7167
      %v7498 = vmul.f32 1.0, %v7497
      %v7499 = vrcp.pop %v7168
      %v7500 = vmul.f32 1.0, %v7499
      %v7501 = vrcp.pop %v7169
      %v7502 = vmul.f32 1.0, %v7501
      %v7503 = vrcp.pop %v7170
      %v7504 = vmul.f32 1.0, %v7503
      %v7505 = vrcp.pop %v7171
      %v7506 = vmul.f32 1.0, %v7505
      %v7507 = vrcp.pop %v7172
      %v7508 = vmul.f32 1.0, %v7507
      %v7509 = vrcp.pop %v7173
      %v7510 = vmul.f32 1.0, %v7509
      %v7511 = vrcp.pop %v7174
      %v7512 = vmul.f32 1.0, %v7511
      %v7513 = vrcp.pop %v7175
      %v7514 = vmul.f32 1.0, %v7513
      %v7515 = vrcp.pop %v7176
      %v7516 = vmul.f32 1.0, %v7515
      %v7517 = vrcp.pop %v7177
      %v7518 = vmul.f32 1.0, %v7517
      %v7519 = vrcp.pop %v7178
      %v7520 = vmul.f32 1.0, %v7519
      %v7521 = vrcp.pop %v7179
      %v7522 = vmul.f32 1.0, %v7521
      %v7523 = vrcp.pop %v7180
      %v7524 = vmul.f32 1.0, %v7523
      %v7525 = vrcp.pop %v7181
      %v7526 = vmul.f32 1.0, %v7525
      %v7527 = vrcp.pop %v7182
      %v7528 = vmul.f32 1.0, %v7527
      %v7529 = vrcp.pop %v7183
      %v7530 = vmul.f32 1.0, %v7529
      %v7531 = vrcp.pop %v7184
      %v7532 = vmul.f32 1.0, %v7531
      %v7533 = vrcp.pop %v7185
      %v7534 = vmul.f32 1.0, %v7533
      %v7535 = vrcp.pop %v7186
      %v7536 = vmul.f32 1.0, %v7535
      %v7537 = vrcp.pop %v7187
      %v7538 = vmul.f32 1.0, %v7537
      %v7539 = vrcp.pop %v7188
      %v7540 = vmul.f32 1.0, %v7539
      %v7541 = vrcp.pop %v7189
      %v7542 = vmul.f32 1.0, %v7541
      %v7543 = vrcp.pop %v7190
      %v7544 = vmul.f32 1.0, %v7543
      %v7545 = vrcp.pop %v7191
      %v7546 = vmul.f32 1.0, %v7545
      %v7547 = vrcp.pop %v7192
      %v7548 = vmul.f32 1.0, %v7547
      %v7549 = vrcp.pop %v7193
      %v7550 = vmul.f32 1.0, %v7549
      %v7551 = vrcp.pop %v7194
      %v7552 = vmul.f32 1.0, %v7551
      %v7553 = vrcp.pop %v7195
      %v7554 = vmul.f32 1.0, %v7553
      %v7555 = vrcp.pop %v7196
      %v7556 = vmul.f32 1.0, %v7555
      %v7557 = vrcp.pop %v7197
      %v7558 = vmul.f32 1.0, %v7557
      %v7559 = vrcp.pop %v7198
      %v7560 = vmul.f32 1.0, %v7559
      %v7561 = vrcp.pop %v7199
      %v7562 = vmul.f32 1.0, %v7561
      %v7563 = vrcp.pop %v7200
      %v7564 = vmul.f32 1.0, %v7563
      %v7565 = vrcp.pop %v7201
      %v7566 = vmul.f32 1.0, %v7565
      %v7567 = vrcp.pop %v7202
      %v7568 = vmul.f32 1.0, %v7567
      %v7569 = vrcp.pop %v7203
      %v7570 = vmul.f32 1.0, %v7569
      %v7571 = vrcp.pop %v7204
      %v7572 = vmul.f32 1.0, %v7571
      %v7573 = vrcp.pop %v7205
      %v7574 = vmul.f32 1.0, %v7573
      %v7575 = vrcp.pop %v7206
      %v7576 = vmul.f32 1.0, %v7575
      %v7577 = vrcp.pop %v7207
      %v7578 = vmul.f32 1.0, %v7577
      %v7579 = vrcp.pop %v7208
      %v7580 = vmul.f32 1.0, %v7579
      %v7581 = vrcp.pop %v7209
      %v7582 = vmul.f32 1.0, %v7581
      %v7583 = vrcp.pop %v7210
      %v7584 = vmul.f32 1.0, %v7583
      %v7585 = vrcp.pop %v7211
      %v7586 = vmul.f32 1.0, %v7585
      %v7587 = vrcp.pop %v7212
      %v7588 = vmul.f32 1.0, %v7587
      %v7589 = vrcp.pop %v7213
      %v7590 = vmul.f32 1.0, %v7589
      %v7591 = vrcp.pop %v7214
      %v7592 = vmul.f32 1.0, %v7591
      %v7593 = vrcp.pop %v7215
      %v7594 = vmul.f32 1.0, %v7593
      %v7595 = vrcp.pop %v7216
      %v7596 = vmul.f32 1.0, %v7595
      %v7597 = vrcp.pop %v7217
      %v7598 = vmul.f32 1.0, %v7597
      %v7599 = vrcp.pop %v7218
      %v7600 = vmul.f32 1.0, %v7599
      %v7601 = vrcp.pop %v7219
      %v7602 = vmul.f32 1.0, %v7601
      %v7603 = vrcp.pop %v7220
      %v7604 = vmul.f32 1.0, %v7603
      %v7605 = vrcp.pop %v7221
      %v7606 = vmul.f32 1.0, %v7605
      %v7607 = vrcp.pop %v7222
      %v7608 = vmul.f32 1.0, %v7607
      %v7609 = vrcp.pop %v7223
      %v7610 = vmul.f32 1.0, %v7609
      %v7611 = vrcp.pop %v7224
      %v7612 = vmul.f32 1.0, %v7611
      %v7613 = vrcp.pop %v7225
      %v7614 = vmul.f32 1.0, %v7613
      %v7615 = vrcp.pop %v7226
      %v7616 = vmul.f32 1.0, %v7615
      %v7617 = vrcp.pop %v7227
      %v7618 = vmul.f32 1.0, %v7617
      %v7619 = vrcp.pop %v7228
      %v7620 = vmul.f32 1.0, %v7619
      %v7621 = vrcp.pop %v7229
      %v7622 = vmul.f32 1.0, %v7621
      %v7623 = vrcp.pop %v7230
      %v7624 = vmul.f32 1.0, %v7623
      %v7625 = vrcp.pop %v7231
      %v7626 = vmul.f32 1.0, %v7625
      %v7627 = vrcp.pop %v7232
      %v7628 = vmul.f32 1.0, %v7627
      %v7629 = vrcp.pop %v7233
      %v7630 = vmul.f32 1.0, %v7629
      %v7631 = vrcp.pop %v7234
      %v7632 = vmul.f32 1.0, %v7631
      %v7633 = vrcp.pop %v7235
      %v7634 = vmul.f32 1.0, %v7633
      %v7635 = vrcp.pop %v7236
      %v7636 = vmul.f32 1.0, %v7635
      %v7637 = vrcp.pop %v7237
      %v7638 = vmul.f32 1.0, %v7637
      %v7639 = vrcp.pop %v7238
      %v7640 = vmul.f32 1.0, %v7639
      %v7641 = vrcp.pop %v7239
      %v7642 = vmul.f32 1.0, %v7641
      %v7643 = vrcp.pop %v7240
      %v7644 = vmul.f32 1.0, %v7643
      %v7645 = vrcp.pop %v7241
      %v7646 = vmul.f32 1.0, %v7645
      %v7647 = vrcp.pop %v7242
      %v7648 = vmul.f32 1.0, %v7647
      %v7649 = vrcp.pop %v7243
      %v7650 = vmul.f32 1.0, %v7649
      %v7651 = vrcp.pop %v7244
      %v7652 = vmul.f32 1.0, %v7651
      %v7653 = vrcp.pop %v7245
      %v7654 = vmul.f32 1.0, %v7653
      %v7655 = vrcp.pop %v7246
      %v7656 = vmul.f32 1.0, %v7655
      %v7657 = vrcp.pop %v7247
      %v7658 = vmul.f32 1.0, %v7657
      %v7659 = vrcp.pop %v7248
      %v7660 = vmul.f32 1.0, %v7659
      %v7661 = vrcp.pop %v7249
      %v7662 = vmul.f32 1.0, %v7661
      %v7663 = vrcp.pop %v7250
      %v7664 = vmul.f32 1.0, %v7663
      %v7665 = vrcp.pop %v7251
      %v7666 = vmul.f32 1.0, %v7665
      %v7667 = vrcp.pop %v7252
      %v7668 = vmul.f32 1.0, %v7667
      %v7669 = vrcp.pop %v7253
      %v7670 = vmul.f32 1.0, %v7669
      %v7671 = vrcp.pop %v7254
      %v7672 = vmul.f32 1.0, %v7671
      %v7673 = vrcp.pop %v7255
      %v7674 = vmul.f32 1.0, %v7673
      %v7675 = vrcp.pop %v7256
      %v7676 = vmul.f32 1.0, %v7675
      %v7677 = vrcp.pop %v7257
      %v7678 = vmul.f32 1.0, %v7677
      %v7679 = vrcp.pop %v7258
      %v7680 = vmul.f32 1.0, %v7679
      %v7681 = vrcp.pop %v7259
      %v7682 = vmul.f32 1.0, %v7681
      %v7683 = vrcp.pop %v7260
      %v7684 = vmul.f32 1.0, %v7683
      %v7685 = vrcp.pop %v7261
      %v7686 = vmul.f32 1.0, %v7685
      %v7687 = vrcp.pop %v7262
      %v7688 = vmul.f32 1.0, %v7687
      %v7689 = vrcp.pop %v7263
      %v7690 = vmul.f32 1.0, %v7689
      %v7691 = vrcp.pop %v7264
      %v7692 = vmul.f32 1.0, %v7691
      %v7693 = vrcp.pop %v7265
      %v7694 = vmul.f32 1.0, %v7693
      %v7695 = vrcp.pop %v7266
      %v7696 = vmul.f32 1.0, %v7695
      %v7697 = vrcp.pop %v7267
      %v7698 = vmul.f32 1.0, %v7697
      %v7699 = vrcp.pop %v7268
      %v7700 = vmul.f32 1.0, %v7699
      %v7701 = vrcp.pop %v7269
      %v7702 = vmul.f32 1.0, %v7701
      %v7703 = vrcp.pop %v7270
      %v7704 = vmul.f32 1.0, %v7703
      %v7705 = vrcp.pop %v7271
      %v7706 = vmul.f32 1.0, %v7705
      %v7707 = vrcp.pop %v7272
      %v7708 = vmul.f32 1.0, %v7707
      %v7709 = vrcp.pop %v7273
      %v7710 = vmul.f32 1.0, %v7709
      %v7711 = vrcp.pop %v7274
      %v7712 = vmul.f32 1.0, %v7711
      %v7713 = vrcp.pop %v7275
      %v7714 = vmul.f32 1.0, %v7713
      %v7715 = vrcp.pop %v7276
      %v7716 = vmul.f32 1.0, %v7715
      %v7717 = vrcp.pop %v7277
      %v7718 = vmul.f32 1.0, %v7717
      %v7719 = vrcp.pop %v7278
      %v7720 = vmul.f32 1.0, %v7719
      %v7721 = vrcp.pop %v7279
      %v7722 = vmul.f32 1.0, %v7721
      %v7723 = vrcp.pop %v7280
      %v7724 = vmul.f32 1.0, %v7723
      %v7725 = vrcp.pop %v7281
      %v7726 = vmul.f32 1.0, %v7725
      %v7727 = vrcp.pop %v7282
      %v7728 = vmul.f32 1.0, %v7727
      %v7729 = vrcp.pop %v7283
      %v7730 = vmul.f32 1.0, %v7729
      %v7731 = vrcp.pop %v7284
      %v7732 = vmul.f32 1.0, %v7731
      %7733 = vst [vmem:[%s663] sm:$0xff] %v7286
      %7734 = vst [vmem:[%s663 + $0x8] sm:$0xff] %v7288
      %7735 = vst [vmem:[%s663 + $0x10] sm:$0xff] %v7290
      %7736 = vst [vmem:[%s663 + $0x18] sm:$0xff] %v7292
      %7737 = vst [vmem:[%s663 + $0x20] sm:$0xff] %v7294
      %7738 = vst [vmem:[%s663 + $0x28] sm:$0xff] %v7296
      %7739 = vst.msk [vmem:[%s663 + $0x30] sm:$0xff] %vm1602, %v7298
      %7740 = vst [vmem:[%s663 + $0x38] sm:$0xff] %v7300
      %7741 = vst [vmem:[%s663 + $0x40] sm:$0xff] %v7302
      %7742 = vst [vmem:[%s663 + $0x48] sm:$0xff] %v7304
      %7743 = vst [vmem:[%s663 + $0x50] sm:$0xff] %v7306
      %7744 = vst [vmem:[%s663 + $0x58] sm:$0xff] %v7308
      %7745 = vst [vmem:[%s663 + $0x60] sm:$0xff] %v7310
      %7746 = vst.msk [vmem:[%s663 + $0x68] sm:$0xff] %vm1602, %v7312
      %7747 = vst [vmem:[%s663 + $0x70] sm:$0xff] %v7314
      %7748 = vst [vmem:[%s663 + $0x78] sm:$0xff] %v7316
      %7749 = vst [vmem:[%s663 + $0x80] sm:$0xff] %v7318
      %7750 = vst [vmem:[%s663 + $0x88] sm:$0xff] %v7320
      %7751 = vst [vmem:[%s663 + $0x90] sm:$0xff] %v7322
      %7752 = vst [vmem:[%s663 + $0x98] sm:$0xff] %v7324
      %7753 = vst.msk [vmem:[%s663 + $0xa0] sm:$0xff] %vm1602, %v7326
      %7754 = vst [vmem:[%s663 + $0xa8] sm:$0xff] %v7328
      %7755 = vst [vmem:[%s663 + $0xb0] sm:$0xff] %v7330
      %7756 = vst [vmem:[%s663 + $0xb8] sm:$0xff] %v7332
      %7757 = vst [vmem:[%s663 + $0xc0] sm:$0xff] %v7334
      %7758 = vst [vmem:[%s663 + $0xc8] sm:$0xff] %v7336
      %7759 = vst [vmem:[%s663 + $0xd0] sm:$0xff] %v7338
      %7760 = vst.msk [vmem:[%s663 + $0xd8] sm:$0xff] %vm1602, %v7340
      %7761 = vst [vmem:[%s663 + $0xe0] sm:$0xff] %v7342
      %7762 = vst [vmem:[%s663 + $0xe8] sm:$0xff] %v7344
      %7763 = vst [vmem:[%s663 + $0xf0] sm:$0xff] %v7346
      %7764 = vst [vmem:[%s663 + $0xf8] sm:$0xff] %v7348
      %7765 = vst [vmem:[%s663 + $0x100] sm:$0xff] %v7350
      %7766 = vst [vmem:[%s663 + $0x108] sm:$0xff] %v7352
      %7767 = vst.msk [vmem:[%s663 + $0x110] sm:$0xff] %vm1602, %v7354
      %7768 = vst [vmem:[%s663 + $0x118] sm:$0xff] %v7356
      %7769 = vst [vmem:[%s663 + $0x120] sm:$0xff] %v7358
      %7770 = vst [vmem:[%s663 + $0x128] sm:$0xff] %v7360
      %7771 = vst [vmem:[%s663 + $0x130] sm:$0xff] %v7362
      %7772 = vst [vmem:[%s663 + $0x138] sm:$0xff] %v7364
      %7773 = vst [vmem:[%s663 + $0x140] sm:$0xff] %v7366
      %7774 = vst.msk [vmem:[%s663 + $0x148] sm:$0xff] %vm1602, %v7368
      %7775 = vst [vmem:[%s663 + $0x150] sm:$0xff] %v7370
      %7776 = vst [vmem:[%s663 + $0x158] sm:$0xff] %v7372
      %7777 = vst [vmem:[%s663 + $0x160] sm:$0xff] %v7374
      %7778 = vst [vmem:[%s663 + $0x168] sm:$0xff] %v7376
      %7779 = vst [vmem:[%s663 + $0x170] sm:$0xff] %v7378
      %7780 = vst [vmem:[%s663 + $0x178] sm:$0xff] %v7380
      %7781 = vst.msk [vmem:[%s663 + $0x180] sm:$0xff] %vm1602, %v7382
      %7782 = vst [vmem:[%s663 + $0x188] sm:$0xff] %v7384
      %7783 = vst [vmem:[%s663 + $0x190] sm:$0xff] %v7386
      %7784 = vst [vmem:[%s663 + $0x198] sm:$0xff] %v7388
      %7785 = vst [vmem:[%s663 + $0x1a0] sm:$0xff] %v7390
      %7786 = vst [vmem:[%s663 + $0x1a8] sm:$0xff] %v7392
      %7787 = vst [vmem:[%s663 + $0x1b0] sm:$0xff] %v7394
      %7788 = vst.msk [vmem:[%s663 + $0x1b8] sm:$0xff] %vm1602, %v7396
      %7789 = vst [vmem:[%s663 + $0x1c0] sm:$0xff] %v7398
      %7790 = vst [vmem:[%s663 + $0x1c8] sm:$0xff] %v7400
      %7791 = vst [vmem:[%s663 + $0x1d0] sm:$0xff] %v7402
      %7792 = vst [vmem:[%s663 + $0x1d8] sm:$0xff] %v7404
      %7793 = vst [vmem:[%s663 + $0x1e0] sm:$0xff] %v7406
      %7794 = vst [vmem:[%s663 + $0x1e8] sm:$0xff] %v7408
      %7795 = vst.msk [vmem:[%s663 + $0x1f0] sm:$0xff] %vm1602, %v7410
      %7796 = vst [vmem:[%s663 + $0x1f8] sm:$0xff] %v7412
      %7797 = vst [vmem:[%s663 + $0x200] sm:$0xff] %v7414
      %7798 = vst [vmem:[%s663 + $0x208] sm:$0xff] %v7416
      %7799 = vst [vmem:[%s663 + $0x210] sm:$0xff] %v7418
      %7800 = vst [vmem:[%s663 + $0x218] sm:$0xff] %v7420
      %7801 = vst [vmem:[%s663 + $0x220] sm:$0xff] %v7422
      %7802 = vst.msk [vmem:[%s663 + $0x228] sm:$0xff] %vm1602, %v7424
      %7803 = vst [vmem:[%s663 + $0x230] sm:$0xff] %v7426
      %7804 = vst [vmem:[%s663 + $0x238] sm:$0xff] %v7428
      %7805 = vst [vmem:[%s663 + $0x240] sm:$0xff] %v7430
      %7806 = vst [vmem:[%s663 + $0x248] sm:$0xff] %v7432
      %7807 = vst [vmem:[%s663 + $0x250] sm:$0xff] %v7434
      %7808 = vst [vmem:[%s663 + $0x258] sm:$0xff] %v7436
      %7809 = vst.msk [vmem:[%s663 + $0x260] sm:$0xff] %vm1602, %v7438
      %7810 = vst [vmem:[%s663 + $0x268] sm:$0xff] %v7440
      %7811 = vst [vmem:[%s663 + $0x270] sm:$0xff] %v7442
      %7812 = vst [vmem:[%s663 + $0x278] sm:$0xff] %v7444
      %7813 = vst [vmem:[%s663 + $0x280] sm:$0xff] %v7446
      %7814 = vst [vmem:[%s663 + $0x288] sm:$0xff] %v7448
      %7815 = vst [vmem:[%s663 + $0x290] sm:$0xff] %v7450
      %7816 = vst.msk [vmem:[%s663 + $0x298] sm:$0xff] %vm1602, %v7452
      %7817 = vst [vmem:[%s663 + $0x2a0] sm:$0xff] %v7454
      %7818 = vst [vmem:[%s663 + $0x2a8] sm:$0xff] %v7456
      %7819 = vst [vmem:[%s663 + $0x2b0] sm:$0xff] %v7458
      %7820 = vst [vmem:[%s663 + $0x2b8] sm:$0xff] %v7460
      %7821 = vst [vmem:[%s663 + $0x2c0] sm:$0xff] %v7462
      %7822 = vst [vmem:[%s663 + $0x2c8] sm:$0xff] %v7464
      %7823 = vst.msk [vmem:[%s663 + $0x2d0] sm:$0xff] %vm1602, %v7466
      %7824 = vst [vmem:[%s663 + $0x2d8] sm:$0xff] %v7468
      %7825 = vst [vmem:[%s663 + $0x2e0] sm:$0xff] %v7470
      %7826 = vst [vmem:[%s663 + $0x2e8] sm:$0xff] %v7472
      %7827 = vst [vmem:[%s663 + $0x2f0] sm:$0xff] %v7474
      %7828 = vst [vmem:[%s663 + $0x2f8] sm:$0xff] %v7476
      %7829 = vst [vmem:[%s663 + $0x300] sm:$0xff] %v7478
      %7830 = vst.msk [vmem:[%s663 + $0x308] sm:$0xff] %vm1602, %v7480
      %7831 = vst [vmem:[%s663 + $0x310] sm:$0xff] %v7482
      %7832 = vst [vmem:[%s663 + $0x318] sm:$0xff] %v7484
      %7833 = vst [vmem:[%s663 + $0x320] sm:$0xff] %v7486
      %7834 = vst [vmem:[%s663 + $0x328] sm:$0xff] %v7488
      %7835 = vst [vmem:[%s663 + $0x330] sm:$0xff] %v7490
      %7836 = vst [vmem:[%s663 + $0x338] sm:$0xff] %v7492
      %7837 = vst.msk [vmem:[%s663 + $0x340] sm:$0xff] %vm1602, %v7494
      %7838 = vst [vmem:[%s663 + $0x348] sm:$0xff] %v7496
      %7839 = vst [vmem:[%s663 + $0x350] sm:$0xff] %v7498
      %7840 = vst [vmem:[%s663 + $0x358] sm:$0xff] %v7500
      %7841 = vst [vmem:[%s663 + $0x360] sm:$0xff] %v7502
      %7842 = vst [vmem:[%s663 + $0x368] sm:$0xff] %v7504
      %7843 = vst [vmem:[%s663 + $0x370] sm:$0xff] %v7506
      %7844 = vst.msk [vmem:[%s663 + $0x378] sm:$0xff] %vm1602, %v7508
      %7845 = vst [vmem:[%s663 + $0x380] sm:$0xff] %v7510
      %7846 = vst [vmem:[%s663 + $0x388] sm:$0xff] %v7512
      %7847 = vst [vmem:[%s663 + $0x390] sm:$0xff] %v7514
      %7848 = vst [vmem:[%s663 + $0x398] sm:$0xff] %v7516
      %7849 = vst [vmem:[%s663 + $0x3a0] sm:$0xff] %v7518
      %7850 = vst [vmem:[%s663 + $0x3a8] sm:$0xff] %v7520
      %7851 = vst.msk [vmem:[%s663 + $0x3b0] sm:$0xff] %vm1602, %v7522
      %7852 = vst [vmem:[%s663 + $0x3b8] sm:$0xff] %v7524
      %7853 = vst [vmem:[%s663 + $0x3c0] sm:$0xff] %v7526
      %7854 = vst [vmem:[%s663 + $0x3c8] sm:$0xff] %v7528
      %7855 = vst [vmem:[%s663 + $0x3d0] sm:$0xff] %v7530
      %7856 = vst [vmem:[%s663 + $0x3d8] sm:$0xff] %v7532
      %7857 = vst [vmem:[%s663 + $0x3e0] sm:$0xff] %v7534
      %7858 = vst.msk [vmem:[%s663 + $0x3e8] sm:$0xff] %vm1602, %v7536
      %7859 = vst [vmem:[%s663 + $0x3f0] sm:$0xff] %v7538
      %7860 = vst [vmem:[%s663 + $0x3f8] sm:$0xff] %v7540
      %7861 = vst [vmem:[%s663 + $0x400] sm:$0xff] %v7542
      %7862 = vst [vmem:[%s663 + $0x408] sm:$0xff] %v7544
      %7863 = vst [vmem:[%s663 + $0x410] sm:$0xff] %v7546
      %7864 = vst [vmem:[%s663 + $0x418] sm:$0xff] %v7548
      %7865 = vst.msk [vmem:[%s663 + $0x420] sm:$0xff] %vm1602, %v7550
      %7866 = vst [vmem:[%s663 + $0x428] sm:$0xff] %v7552
      %7867 = vst [vmem:[%s663 + $0x430] sm:$0xff] %v7554
      %7868 = vst [vmem:[%s663 + $0x438] sm:$0xff] %v7556
      %7869 = vst [vmem:[%s663 + $0x440] sm:$0xff] %v7558
      %7870 = vst [vmem:[%s663 + $0x448] sm:$0xff] %v7560
      %7871 = vst [vmem:[%s663 + $0x450] sm:$0xff] %v7562
      %7872 = vst.msk [vmem:[%s663 + $0x458] sm:$0xff] %vm1602, %v7564
      %7873 = vst [vmem:[%s663 + $0x460] sm:$0xff] %v7566
      %7874 = vst [vmem:[%s663 + $0x468] sm:$0xff] %v7568
      %7875 = vst [vmem:[%s663 + $0x470] sm:$0xff] %v7570
      %7876 = vst [vmem:[%s663 + $0x478] sm:$0xff] %v7572
      %7877 = vst [vmem:[%s663 + $0x480] sm:$0xff] %v7574
      %7878 = vst [vmem:[%s663 + $0x488] sm:$0xff] %v7576
      %7879 = vst.msk [vmem:[%s663 + $0x490] sm:$0xff] %vm1602, %v7578
      %7880 = vst [vmem:[%s663 + $0x498] sm:$0xff] %v7580
      %7881 = vst [vmem:[%s663 + $0x4a0] sm:$0xff] %v7582
      %7882 = vst [vmem:[%s663 + $0x4a8] sm:$0xff] %v7584
      %7883 = vst [vmem:[%s663 + $0x4b0] sm:$0xff] %v7586
      %7884 = vst [vmem:[%s663 + $0x4b8] sm:$0xff] %v7588
      %7885 = vst [vmem:[%s663 + $0x4c0] sm:$0xff] %v7590
      %7886 = vst.msk [vmem:[%s663 + $0x4c8] sm:$0xff] %vm1602, %v7592
      %7887 = vst [vmem:[%s663 + $0x4d0] sm:$0xff] %v7594
      %7888 = vst [vmem:[%s663 + $0x4d8] sm:$0xff] %v7596
      %7889 = vst [vmem:[%s663 + $0x4e0] sm:$0xff] %v7598
      %7890 = vst [vmem:[%s663 + $0x4e8] sm:$0xff] %v7600
      %7891 = vst [vmem:[%s663 + $0x4f0] sm:$0xff] %v7602
      %7892 = vst [vmem:[%s663 + $0x4f8] sm:$0xff] %v7604
      %7893 = vst.msk [vmem:[%s663 + $0x500] sm:$0xff] %vm1602, %v7606
      %7894 = vst [vmem:[%s663 + $0x508] sm:$0xff] %v7608
      %7895 = vst [vmem:[%s663 + $0x510] sm:$0xff] %v7610
      %7896 = vst [vmem:[%s663 + $0x518] sm:$0xff] %v7612
      %7897 = vst [vmem:[%s663 + $0x520] sm:$0xff] %v7614
      %7898 = vst [vmem:[%s663 + $0x528] sm:$0xff] %v7616
      %7899 = vst [vmem:[%s663 + $0x530] sm:$0xff] %v7618
      %7900 = vst.msk [vmem:[%s663 + $0x538] sm:$0xff] %vm1602, %v7620
      %7901 = vst [vmem:[%s663 + $0x540] sm:$0xff] %v7622
      %7902 = vst [vmem:[%s663 + $0x548] sm:$0xff] %v7624
      %7903 = vst [vmem:[%s663 + $0x550] sm:$0xff] %v7626
      %7904 = vst [vmem:[%s663 + $0x558] sm:$0xff] %v7628
      %7905 = vst [vmem:[%s663 + $0x560] sm:$0xff] %v7630
      %7906 = vst [vmem:[%s663 + $0x568] sm:$0xff] %v7632
      %7907 = vst.msk [vmem:[%s663 + $0x570] sm:$0xff] %vm1602, %v7634
      %7908 = vst [vmem:[%s663 + $0x578] sm:$0xff] %v7636
      %7909 = vst [vmem:[%s663 + $0x580] sm:$0xff] %v7638
      %7910 = vst [vmem:[%s663 + $0x588] sm:$0xff] %v7640
      %7911 = vst [vmem:[%s663 + $0x590] sm:$0xff] %v7642
      %7912 = vst [vmem:[%s663 + $0x598] sm:$0xff] %v7644
      %7913 = vst [vmem:[%s663 + $0x5a0] sm:$0xff] %v7646
      %7914 = vst.msk [vmem:[%s663 + $0x5a8] sm:$0xff] %vm1602, %v7648
      %7915 = vst [vmem:[%s663 + $0x5b0] sm:$0xff] %v7650
      %7916 = vst [vmem:[%s663 + $0x5b8] sm:$0xff] %v7652
      %7917 = vst [vmem:[%s663 + $0x5c0] sm:$0xff] %v7654
      %7918 = vst [vmem:[%s663 + $0x5c8] sm:$0xff] %v7656
      %7919 = vst [vmem:[%s663 + $0x5d0] sm:$0xff] %v7658
      %7920 = vst [vmem:[%s663 + $0x5d8] sm:$0xff] %v7660
      %7921 = vst.msk [vmem:[%s663 + $0x5e0] sm:$0xff] %vm1602, %v7662
      %7922 = vst [vmem:[%s663 + $0x5e8] sm:$0xff] %v7664
      %7923 = vst [vmem:[%s663 + $0x5f0] sm:$0xff] %v7666
      %7924 = vst [vmem:[%s663 + $0x5f8] sm:$0xff] %v7668
      %7925 = vst [vmem:[%s663 + $0x600] sm:$0xff] %v7670
      %7926 = vst [vmem:[%s663 + $0x608] sm:$0xff] %v7672
      %7927 = vst [vmem:[%s663 + $0x610] sm:$0xff] %v7674
      %7928 = vst.msk [vmem:[%s663 + $0x618] sm:$0xff] %vm1602, %v7676
      %7929 = vst [vmem:[%s663 + $0x620] sm:$0xff] %v7678
      %7930 = vst [vmem:[%s663 + $0x628] sm:$0xff] %v7680
      %7931 = vst [vmem:[%s663 + $0x630] sm:$0xff] %v7682
      %7932 = vst [vmem:[%s663 + $0x638] sm:$0xff] %v7684
      %7933 = vst [vmem:[%s663 + $0x640] sm:$0xff] %v7686
      %7934 = vst [vmem:[%s663 + $0x648] sm:$0xff] %v7688
      %7935 = vst.msk [vmem:[%s663 + $0x650] sm:$0xff] %vm1602, %v7690
      %7936 = vst [vmem:[%s663 + $0x658] sm:$0xff] %v7692
      %7937 = vst [vmem:[%s663 + $0x660] sm:$0xff] %v7694
      %7938 = vst [vmem:[%s663 + $0x668] sm:$0xff] %v7696
      %7939 = vst [vmem:[%s663 + $0x670] sm:$0xff] %v7698
      %7940 = vst [vmem:[%s663 + $0x678] sm:$0xff] %v7700
      %7941 = vst [vmem:[%s663 + $0x680] sm:$0xff] %v7702
      %7942 = vst.msk [vmem:[%s663 + $0x688] sm:$0xff] %vm1602, %v7704
      %7943 = vst [vmem:[%s663 + $0x690] sm:$0xff] %v7706
      %7944 = vst [vmem:[%s663 + $0x698] sm:$0xff] %v7708
      %7945 = vst [vmem:[%s663 + $0x6a0] sm:$0xff] %v7710
      %7946 = vst [vmem:[%s663 + $0x6a8] sm:$0xff] %v7712
      %7947 = vst [vmem:[%s663 + $0x6b0] sm:$0xff] %v7714
      %7948 = vst [vmem:[%s663 + $0x6b8] sm:$0xff] %v7716
      %7949 = vst.msk [vmem:[%s663 + $0x6c0] sm:$0xff] %vm1602, %v7718
      %7950 = vst [vmem:[%s663 + $0x6c8] sm:$0xff] %v7720
      %7951 = vst [vmem:[%s663 + $0x6d0] sm:$0xff] %v7722
      %7952 = vst [vmem:[%s663 + $0x6d8] sm:$0xff] %v7724
      %7953 = vst [vmem:[%s663 + $0x6e0] sm:$0xff] %v7726
      %7954 = vst [vmem:[%s663 + $0x6e8] sm:$0xff] %v7728
      %7955 = vst [vmem:[%s663 + $0x6f0] sm:$0xff] %v7730
      %7956 = vst.msk [vmem:[%s663 + $0x6f8] sm:$0xff] %vm1602, %v7732
      %s7957 = smul.u32 32, %s32
      %p7958 = scmp.lt.s32.totalorder %s7957, 127
      %s7959 = scalar_select %p7958, %s7957, 127
      %s7960 = smul.addr %s7959, 7
      %s7961 = smul.addr %s7960, 8
      %s7962 = scalar_lea.vmem %s21, %s7961
      // Predicated region
      $region105: #{ae_forward.1} parent=103 // pred_check
        %p7963 = pneg %p496
      $region106: #{ae_forward.1} parent=103 // pred_check_branch
        %7965 = sbr.rel (%p7963) target = $region108
      $region107: #{ae_forward.1} parent=103 // pred_region
        %s7966 = smul.u32 32, %s32
      $region108: #{ae_forward.1} parent=103 // pred_fallthru
        _
    $region104: #{ae_forward.1} parent=5 // pred_fallthru
      _
    %p7967 = scmp.le.s32.totalorder 2, %s27
    // Predicated region
    $region109: #{ae_forward.1} parent=5 // pred_check
      %p7968 = pneg %p7967
    $region110: #{ae_forward.1} parent=5 // pred_check_branch
      %7970 = sbr.rel (%p7968) target = $region112
    $region111: #{ae_forward.1} parent=5 // pred_region
      %s7971 = ssub.s32 %s27, 2
      // Predicated region
      $region113: #{ae_forward.1} parent=111 // pred_check
        %p7972 = pneg %p502
      $region114: #{ae_forward.1} parent=111 // pred_check_branch
        %7974 = sbr.rel (%p7972) target = $region116
      $region115: #{ae_forward.1} parent=111 // pred_region
        %s7975 = smul.u32 32, %s33
        %p7976 = scmp.lt.s32.totalorder %s7975, 127
        %s7977 = scalar_select %p7976, %s7975, 127
        %s7978 = smul.addr %s7977, 7
        %s7979 = smul.addr %s7978, 8
        %s7980 = scalar_lea.vmem %s21, %s7979
      $region116: #{ae_forward.1} parent=111 // pred_fallthru
        _
    $region112: #{ae_forward.1} parent=5 // pred_fallthru
      _
  $region6: #{ae_forward.1} parent=0 // loop_footer
    %s31 = sadd.s32 1, %s27
  $region7: #{ae_forward.1} parent=0 // loop_footer_branch
    %26 = sbr.rel target = $region3
  $region8: #{ae_forward.1} parent=0 // loop_exit
    _

</llo_original>
